<compile_context>
chip_gen: v7x
topology: tpu7x:2x2x1
jax: 0.10.0
libtpu: 0.0.40
codegen_flags: <defaults>
</compile_context>

<pallas_src>
import math
from functools import partial

import jax
import jax.numpy as jnp
from jax.experimental import pallas as pl
from jax.experimental.pallas import tpu as pltpu

# ----------------------------- configuration ------------------------------
B = 2           # batch
T = 8           # timesteps per band
M_BANDS = 2     # number of photometric bands
N_HARM = 16     # Fourier harmonics in TimeFilm
EMB = 64        # embedding_size (d_model)
NH = 4          # num_heads
DH = EMB // NH  # head dim
FF = 128        # embedding_size_sub (dim_feedforward)
N_LAYERS = 2    # num_encoders
NCLASSES = 5    # general.num_classes
TMAX = 1500.0
SEQ = 1 + M_BANDS * T            # logical tokens per element
SP = ((SEQ + 7) // 8) * 8        # sublane-aligned per-element row stride (24)
OUT_LANES = 128                  # lane-dense logits output width


def _gelu_tanh(u):
    # TODO(synk): PyTorch activation='gelu' is the exact erf form; tanh approximation
    # used here (routes to the EUP slot) — deviation ~1e-3, irrelevant for classification.
    c = math.sqrt(2.0 / math.pi)
    return 0.5 * u * (1.0 + jnp.tanh(c * (u + 0.044715 * u * u * u)))


# ----------------------- single fused forward kernel -----------------------
def fused_forward_kernel(lens_ref, dt_ref, fc_ref, wfilm_ref, small_ref,
                         wqkv_ref, wo_ref, w1_ref, w2_ref, wcb_ref, out_ref,
                         *, nb, n_harm, n_layers, n_heads, head_dim,
                         n_bands, t_len):
    emb = n_heads * head_dim
    ff = w1_ref.shape[-1]
    two_h = 2 * n_harm
    cls_off = n_bands * t_len                        # [CLS] row within one element
    sp = ((cls_off + 1 + 7) // 8) * 8                # aligned per-element stride
    scale = 1.0 / math.sqrt(head_dim)

    # ---- TimeFilm constants (packed rows of fc_ref) ------------------------
    token = fc_ref[n_bands:n_bands + 1, :]                    # (1, E) learnable [CLS]
    angles = fc_ref[n_bands + 1:n_bands + 2, 0:two_h]         # (1, 2H) omega * harmonic
    phase = fc_ref[n_bands + 2:n_bands + 3, 0:two_h]          # (1, 2H) 0 | pi/2
    tail_rows = sp - cls_off                                  # 8: [CLS] + zero pad rows
    ridx = jax.lax.broadcasted_iota(jnp.int32, (tail_rows, emb), 0)
    token_tile = jnp.where(ridx == 0,
                           jnp.broadcast_to(token, (tail_rows, emb)), 0.0)

    pos = jax.lax.broadcasted_iota(jnp.int32, (1, sp), 1)
    base = pl.program_id(0) * nb

    # ---- per-band TimeFilm + band-major sequence assembly (aligned tiles) --
    x_parts = []
    kbias = []
    for e in range(nb):                                       # static unroll
        dte = dt_ref[e]                                       # (2, T, M)
        dat = dte[0]                                          # (T, M) flux
        tim = dte[1]                                          # (T, M) time
        for j in range(n_bands):
            t_col = tim[:, j:j + 1]                           # (T, 1)
            x_col = dat[:, j:j + 1]                           # (T, 1)
            feat = jnp.sin(t_col * angles + phase)            # (T, 2H): [sin | cos]
            fl = jnp.dot(feat.astype(jnp.bfloat16), wfilm_ref[j],
                         preferred_element_type=jnp.float32)  # (T, 2E): [mul | add]
            xproj = x_col * fc_ref[j:j + 1, :]                # (T,1)*(1,E) -> (T,E)
            x_parts.append(xproj * fl[:, 0:emb] + fl[:, emb:2 * emb])
        x_parts.append(token_tile)                            # [CLS] + zero pad rows

        # key-padding bias from per-(batch, band) lengths (SMEM scalars).
        # TODO(synk): assumes prefix-style masks; arbitrary masks need per-key bias.
        valid = pos == cls_off                                # token always valid
        for j in range(n_bands):
            in_band = (pos >= j * t_len) & (pos < (j + 1) * t_len)
            valid = valid | (in_band & ((pos - j * t_len) < lens_ref[base + e, j]))
        kbias.append(jnp.where(valid, 0.0, -1e9).astype(jnp.float32))

    x = jnp.concatenate(x_parts, axis=0)                      # (nb*sp, E) f32

    def layer_norm(v, g, b):
        mu = jnp.mean(v, axis=-1, keepdims=True)
        var = jnp.mean(jnp.square(v - mu), axis=-1, keepdims=True)
        return (v - mu) * jax.lax.rsqrt(var + 1e-5) * g + b

    # ---- pre-LN transformer encoder stack ----------------------------------
    for l in range(n_layers):                                 # static unroll
        small = small_ref[l]                                  # (8, 192) packed vectors
        ln1g, ln1b = small[0:1, 0:emb], small[1:2, 0:emb]
        bqkv = small[2:3, 0:3 * emb]
        bo = small[3:4, 0:emb]
        ln2g, ln2b = small[4:5, 0:emb], small[5:6, 0:emb]
        b1 = small[6:7, 0:ff]
        b2 = small[7:8, 0:emb]

        # --- self-attention block (fused QKV, per-head accumulate into Wo) ---
        xn = layer_norm(x, ln1g, ln1b)
        qkv = jnp.dot(xn.astype(jnp.bfloat16), wqkv_ref[l],
                      preferred_element_type=jnp.float32) + bqkv    # (R, 3E)
        wo_l = wo_ref[l]                                      # (E, E) bf16
        attn_parts = []
        for e in range(nb):
            qkv_e = qkv[e * sp:(e + 1) * sp, :]
            acc = jnp.zeros((sp, emb), jnp.float32)
            for h in range(n_heads):
                lo = h * head_dim
                qh = qkv_e[:, lo:lo + head_dim].astype(jnp.bfloat16)
                kh = qkv_e[:, emb + lo:emb + lo + head_dim].astype(jnp.bfloat16)
                vh = qkv_e[:, 2 * emb + lo:2 * emb + lo + head_dim].astype(jnp.bfloat16)
                s = jax.lax.dot_general(qh, kh, (((1,), (1,)), ((), ())),
                                        preferred_element_type=jnp.float32) * scale
                s = s + kbias[e]                              # mask padded keys
                mrow = jnp.max(s, axis=-1, keepdims=True)
                p = jnp.exp(s - mrow)
                p = p * pl.reciprocal(jnp.sum(p, axis=-1, keepdims=True), approx=True)
                ctx = jnp.dot(p.astype(jnp.bfloat16), vh,
                              preferred_element_type=jnp.float32)   # (sp, DH)
                acc = acc + jnp.dot(ctx.astype(jnp.bfloat16),
                                    wo_l[lo:lo + head_dim, :],
                                    preferred_element_type=jnp.float32)
            attn_parts.append(acc + bo)
        x = x + jnp.concatenate(attn_parts, axis=0)

        # --- feed-forward block ---
        xn2 = layer_norm(x, ln2g, ln2b)
        h1 = jnp.dot(xn2.astype(jnp.bfloat16), w1_ref[l],
                     preferred_element_type=jnp.float32) + b1
        h1 = _gelu_tanh(h1)
        x = x + jnp.dot(h1.astype(jnp.bfloat16), w2_ref[l],
                        preferred_element_type=jnp.float32) + b2

    # ---- token classifier head (lane-dense 128-wide logits) ----------------
    wc = wcb_ref[0:emb, :]                                    # (E, 128) bf16
    bc = wcb_ref[emb:emb + 1, :]                              # (1, 128) bf16
    for e in range(nb):
        cls = x[e * sp + cls_off:e * sp + cls_off + 1, :]     # (1, E)
        logits = jnp.dot(cls.astype(jnp.bfloat16), wc,
                         preferred_element_type=jnp.float32) + bc
        out_ref[e] = logits.astype(jnp.float32)


# ----------------------------- parameter init ------------------------------
def _xavier(key, shape):
    fan_in = shape[-2] if len(shape) >= 2 else shape[-1]
    fan_out = shape[-1]
    std = math.sqrt(2.0 / (fan_in + fan_out))
    return (std * jax.random.normal(key, shape)).astype(jnp.float32)


def init_params(key):
    keys = iter(jax.random.split(key, 64))
    two_h = 2 * N_HARM

    # --- per-band TimeFilm, mul/add fused along the output axis ---
    alpha = _xavier(next(keys), (M_BANDS, N_HARM, EMB))
    beta = _xavier(next(keys), (M_BANDS, N_HARM, EMB))
    gamma = _xavier(next(keys), (M_BANDS, N_HARM, EMB))
    delta = _xavier(next(keys), (M_BANDS, N_HARM, EMB))
    wmul = jnp.concatenate([alpha, beta], axis=1)             # (M, 2H, E)
    wadd = jnp.concatenate([gamma, delta], axis=1)            # (M, 2H, E)
    wfilm = jnp.concatenate([wmul, wadd], axis=2).astype(jnp.bfloat16)  # (M, 2H, 2E)

    # --- packed TimeFilm constants: wproj rows | token | angles | phase ---
    wproj = _xavier(next(keys), (M_BANDS, EMB))               # Linear(1,E,bias=False)/band
    token = _xavier(next(keys), (1, EMB))                     # learnable [CLS]
    harm = jnp.concatenate([jnp.arange(1, N_HARM + 1),
                            jnp.arange(1, N_HARM + 1)]).astype(jnp.float32)
    phase = jnp.concatenate([jnp.zeros((N_HARM,)),
                             jnp.full((N_HARM,), 0.5 * math.pi)]).astype(jnp.float32)
    angles = (2.0 * math.pi / TMAX) * harm
    row_ang = jnp.zeros((1, EMB), jnp.float32).at[0, :two_h].set(angles)
    row_ph = jnp.zeros((1, EMB), jnp.float32).at[0, :two_h].set(phase)
    film_const = jnp.concatenate(
        [wproj, token, row_ang, row_ph,
         jnp.zeros((8 - M_BANDS - 3, EMB), jnp.float32)], axis=0)        # (8, E)

    # --- transformer layers: big weights stacked, tiny vectors packed ---
    def pad_row(v, width=3 * EMB):
        return jnp.pad(v, ((0, 0), (0, width - v.shape[1])))

    small_rows, wqkv_l, wo_l, w1_l, w2_l = [], [], [], [], []
    for _ in range(N_LAYERS):
        wqkv_l.append(jnp.concatenate(
            [_xavier(next(keys), (EMB, EMB)) for _ in range(3)], axis=1))  # (E, 3E)
        wo_l.append(_xavier(next(keys), (EMB, EMB)))
        w1_l.append(_xavier(next(keys), (EMB, FF)))
        w2_l.append(_xavier(next(keys), (FF, EMB)))
        small_rows.append(jnp.concatenate([
            pad_row(jnp.ones((1, EMB), jnp.float32)),     # ln1 gamma
            pad_row(jnp.zeros((1, EMB), jnp.float32)),    # ln1 beta
            pad_row(jnp.zeros((1, 3 * EMB), jnp.float32)),  # qkv bias
            pad_row(jnp.zeros((1, EMB), jnp.float32)),    # out-proj bias
            pad_row(jnp.ones((1, EMB), jnp.float32)),     # ln2 gamma
            pad_row(jnp.zeros((1, EMB), jnp.float32)),    # ln2 beta
            pad_row(jnp.zeros((1, FF), jnp.float32)),     # ff bias 1
            pad_row(jnp.zeros((1, EMB), jnp.float32)),    # ff bias 2
        ], axis=0))                                        # (8, 192)

    # --- classifier head, lane-dense padded, weight+bias packed ---
    wc = _xavier(next(keys), (EMB, NCLASSES))
    wc_pad = jnp.zeros((EMB, OUT_LANES), jnp.float32).at[:, :NCLASSES].set(wc)
    bc_pad = jnp.zeros((1, OUT_LANES), jnp.float32)
    wcb = jnp.concatenate([wc_pad, bc_pad,
                           jnp.zeros((7, OUT_LANES), jnp.float32)],
                          axis=0).astype(jnp.bfloat16)     # (E+8, 128)

    return {
        'film_const': film_const,                           # (8, E) f32
        'wfilm': wfilm,                                     # (M, 2H, 2E) bf16
        'small': jnp.stack(small_rows, axis=0),             # (L, 8, 192) f32
        'wqkv': jnp.stack(wqkv_l, axis=0).astype(jnp.bfloat16),  # (L, E, 3E)
        'wo': jnp.stack(wo_l, axis=0).astype(jnp.bfloat16),      # (L, E, E)
        'w1': jnp.stack(w1_l, axis=0).astype(jnp.bfloat16),      # (L, E, FF)
        'w2': jnp.stack(w2_l, axis=0).astype(jnp.bfloat16),      # (L, FF, E)
        'wcb': wcb,                                              # (E+8, 128) bf16
    }


# ----------------------------- full forward --------------------------------
def _batch_per_step(batch):
    # v7x (2 TensorCores/chip): keep grid=(B,) parallel so both cores get work.
    # Single-TC v5e/v6e: fold the whole batch into one grid step (no per-step overhead).
    try:
        kind = jax.devices()[0].device_kind.lower()
    except Exception:
        kind = ""
    if "v7" in kind or "7x" in kind:
        return 1
    return batch


def lightcurve_classifier_forward(params, data, time, mask):
    """data/time/mask: (B, T, M_bands). mask True/1 = observed, False/0 = padding."""
    b, t, m = data.shape
    nb = _batch_per_step(b)
    grid_steps = b // nb

    dt = jnp.stack([data.astype(jnp.float32), time.astype(jnp.float32)], axis=1)
    # per-(batch, band) observed lengths -> SMEM scalar prefetch (prefix masks)
    lengths = jnp.sum(mask.astype(jnp.int32), axis=1)            # (B, M)

    def full_spec(arr):
        nd = arr.ndim
        return pl.BlockSpec(arr.shape, lambda i, lens, _nd=nd: (0,) * _nd)

    grid_spec = pltpu.PrefetchScalarGridSpec(
        num_scalar_prefetch=1,
        grid=(grid_steps,),
        in_specs=[
            pl.BlockSpec((nb, 2, t, m), lambda i, lens: (i, 0, 0, 0)),   # data+time
            full_spec(params['film_const']),
            full_spec(params['wfilm']),
            full_spec(params['small']),
            full_spec(params['wqkv']),
            full_spec(params['wo']),
            full_spec(params['w1']),
            full_spec(params['w2']),
            full_spec(params['wcb']),
        ],
        out_specs=pl.BlockSpec((nb, 1, OUT_LANES), lambda i, lens: (i, 0, 0)),
    )

    out = pl.pallas_call(
        partial(fused_forward_kernel, nb=nb, n_harm=N_HARM, n_layers=N_LAYERS,
                n_heads=NH, head_dim=DH, n_bands=m, t_len=t),
        out_shape=jax.ShapeDtypeStruct((b, 1, OUT_LANES), jnp.float32),
        grid_spec=grid_spec,
        compiler_params=pltpu.CompilerParams(
            dimension_semantics=("parallel",)),
    )(lengths, dt, params['film_const'], params['wfilm'], params['small'],
      params['wqkv'], params['wo'], params['w1'], params['w2'], params['wcb'])
    return out[:, 0, :NCLASSES]


# ----------------------------------- main -----------------------------------
if __name__ == "__main__":
    key = jax.random.PRNGKey(0)
    kp, kd, kt = jax.random.split(key, 3)

    params = init_params(kp)

    data = jax.random.normal(kd, (B, T, M_BANDS), jnp.float32)
    time = jax.random.uniform(kt, (B, T, M_BANDS), jnp.float32, 0.0, TMAX)
    # deterministic padding pattern: observed lengths per (batch, band)
    obs_len = jnp.array([[8, 6], [5, 7]], jnp.int32)[:, None, :]          # (B, 1, M)
    mask = (jnp.arange(T)[None, :, None] < obs_len)                        # (B, T, M)

    fwd = jax.jit(lightcurve_classifier_forward)
    out = fwd(params, data, time, mask)
    out = jax.block_until_ready(out)

    assert out.shape == (B, NCLASSES), out.shape
    assert bool(jnp.all(jnp.isfinite(out)))
    print("KERNEL_OK")
</pallas_src>

<mosaic_0001>
module attributes {stable_mosaic.version = 11 : i64} {
  func.func @fused_forward_kernel(%arg0: i32, %arg1: memref<2x2xi32, #tpu.memory_space<smem>>, %arg2: memref<2x2x8x2xf32, #tpu.memory_space<vmem>>, %arg3: memref<8x64xf32, #tpu.memory_space<vmem>>, %arg4: memref<2x32x128xbf16, #tpu.memory_space<vmem>>, %arg5: memref<2x8x192xf32, #tpu.memory_space<vmem>>, %arg6: memref<2x64x192xbf16, #tpu.memory_space<vmem>>, %arg7: memref<2x64x64xbf16, #tpu.memory_space<vmem>>, %arg8: memref<2x64x128xbf16, #tpu.memory_space<vmem>>, %arg9: memref<2x128x64xbf16, #tpu.memory_space<vmem>>, %arg10: memref<72x128xbf16, #tpu.memory_space<vmem>>, %arg11: memref<2x1x128xf32, #tpu.memory_space<vmem>>) attributes {dimension_semantics = [#tpu.dimension_semantics<parallel>], iteration_bounds = array<i64: 1>, scalar_prefetch = 1 : i64, scratch_operands = 0 : i64, tpu.core_type = #tpu.core_type<tc>, window_params = [{transform_indices = @transform_0, window_bounds = array<i64: 2, 2, 8, 2>}, {pipeline_mode = #tpu.pipeline_mode<synchronous>, transform_indices = @transform_1, window_bounds = array<i64: 8, 64>}, {pipeline_mode = #tpu.pipeline_mode<synchronous>, transform_indices = @transform_2, window_bounds = array<i64: 2, 32, 128>}, {pipeline_mode = #tpu.pipeline_mode<synchronous>, transform_indices = @transform_3, window_bounds = array<i64: 2, 8, 192>}, {pipeline_mode = #tpu.pipeline_mode<synchronous>, transform_indices = @transform_4, window_bounds = array<i64: 2, 64, 192>}, {pipeline_mode = #tpu.pipeline_mode<synchronous>, transform_indices = @transform_5, window_bounds = array<i64: 2, 64, 64>}, {pipeline_mode = #tpu.pipeline_mode<synchronous>, transform_indices = @transform_6, window_bounds = array<i64: 2, 64, 128>}, {pipeline_mode = #tpu.pipeline_mode<synchronous>, transform_indices = @transform_7, window_bounds = array<i64: 2, 128, 64>}, {pipeline_mode = #tpu.pipeline_mode<synchronous>, transform_indices = @transform_8, window_bounds = array<i64: 72, 128>}, {transform_indices = @transform_9, window_bounds = array<i64: 2, 1, 128>}]} {
    %c2 = arith.constant 2 : index
    %c0 = arith.constant 0 : index
    %0 = vector.load %arg3[%c2, %c0] : memref<8x64xf32, #tpu.memory_space<vmem>>, vector<1x64xf32>
    %c3 = arith.constant 3 : index
    %c0_0 = arith.constant 0 : index
    %1 = vector.load %arg3[%c3, %c0_0] : memref<8x64xf32, #tpu.memory_space<vmem>>, vector<1x32xf32>
    %c4 = arith.constant 4 : index
    %c0_1 = arith.constant 0 : index
    %2 = vector.load %arg3[%c4, %c0_1] : memref<8x64xf32, #tpu.memory_space<vmem>>, vector<1x32xf32>
    %3 = tpu.iota {dimensions = array<i32: 0>} : vector<8x64xi32>
    %c0_i32 = arith.constant 0 : i32
    %4 = vector.broadcast %c0_i32 : i32 to vector<8x64xi32>
    %5 = arith.cmpi eq, %3, %4 : vector<8x64xi32>
    %6 = vector.shape_cast %0 : vector<1x64xf32> to vector<1x64xf32>
    %7 = vector.broadcast %6 : vector<1x64xf32> to vector<8x64xf32>
    %cst = arith.constant 0.000000e+00 : f32
    %8 = vector.broadcast %cst : f32 to vector<8x64xf32>
    %9 = arith.select %5, %7, %8 : vector<8x64xi1>, vector<8x64xf32>
    %10 = tpu.iota {dimensions = array<i32: 1>} : vector<1x24xi32>
    %c2_i32 = arith.constant 2 : i32
    %11 = arith.muli %arg0, %c2_i32 : i32
    %c0_2 = arith.constant 0 : index
    %c0_3 = arith.constant 0 : index
    %c0_4 = arith.constant 0 : index
    %c0_5 = arith.constant 0 : index
    %12 = vector.load %arg2[%c0_2, %c0_3, %c0_4, %c0_5] : memref<2x2x8x2xf32, #tpu.memory_space<vmem>>, vector<1x2x8x2xf32>
    %13 = vector.shape_cast %12 : vector<1x2x8x2xf32> to vector<2x8x2xf32>
    %14 = vector.extract_strided_slice %13 {offsets = [0, 0, 0], sizes = [1, 8, 2], strides = [1, 1, 1]} : vector<2x8x2xf32> to vector<1x8x2xf32>
    %15 = vector.shape_cast %14 : vector<1x8x2xf32> to vector<8x2xf32>
    %16 = vector.extract_strided_slice %13 {offsets = [1, 0, 0], sizes = [1, 8, 2], strides = [1, 1, 1]} : vector<2x8x2xf32> to vector<1x8x2xf32>
    %17 = vector.shape_cast %16 : vector<1x8x2xf32> to vector<8x2xf32>
    %18 = vector.extract_strided_slice %17 {offsets = [0, 0], sizes = [8, 1], strides = [1, 1]} : vector<8x2xf32> to vector<8x1xf32>
    %19 = vector.extract_strided_slice %15 {offsets = [0, 0], sizes = [8, 1], strides = [1, 1]} : vector<8x2xf32> to vector<8x1xf32>
    %20 = vector.broadcast %18 : vector<8x1xf32> to vector<8x32xf32>
    %21 = vector.broadcast %1 : vector<1x32xf32> to vector<8x32xf32>
    %22 = arith.mulf %20, %21 : vector<8x32xf32>
    %23 = vector.broadcast %2 : vector<1x32xf32> to vector<8x32xf32>
    %24 = arith.addf %22, %23 : vector<8x32xf32>
    %25 = math.sin %24 : vector<8x32xf32>
    %26 = arith.truncf %25 : vector<8x32xf32> to vector<8x32xbf16>
    %c0_6 = arith.constant 0 : index
    %c0_7 = arith.constant 0 : index
    %c0_8 = arith.constant 0 : index
    %27 = vector.load %arg4[%c0_6, %c0_7, %c0_8] : memref<2x32x128xbf16, #tpu.memory_space<vmem>>, vector<1x32x128xbf16>
    %28 = vector.shape_cast %27 : vector<1x32x128xbf16> to vector<32x128xbf16>
    %cst_9 = arith.constant dense<0.000000e+00> : vector<8x128xf32>
    %29 = tpu.matmul %26, %28, %cst_9 {dimension_numbers = #tpu.dot_dimension_numbers<[1], [0], [0], [1], [0, 0, 1, 1], [], []>} : vector<8x32xbf16>, vector<32x128xbf16>, vector<8x128xf32> -> vector<8x128xf32>
    %c0_10 = arith.constant 0 : index
    %c0_11 = arith.constant 0 : index
    %30 = vector.load %arg3[%c0_10, %c0_11] : memref<8x64xf32, #tpu.memory_space<vmem>>, vector<1x64xf32>
    %31 = vector.broadcast %19 : vector<8x1xf32> to vector<8x64xf32>
    %32 = vector.broadcast %30 : vector<1x64xf32> to vector<8x64xf32>
    %33 = arith.mulf %31, %32 : vector<8x64xf32>
    %34 = vector.extract_strided_slice %29 {offsets = [0, 0], sizes = [8, 64], strides = [1, 1]} : vector<8x128xf32> to vector<8x64xf32>
    %35 = arith.mulf %33, %34 : vector<8x64xf32>
    %36 = vector.extract_strided_slice %29 {offsets = [0, 64], sizes = [8, 64], strides = [1, 1]} : vector<8x128xf32> to vector<8x64xf32>
    %37 = arith.addf %35, %36 : vector<8x64xf32>
    %38 = vector.extract_strided_slice %17 {offsets = [0, 1], sizes = [8, 1], strides = [1, 1]} : vector<8x2xf32> to vector<8x1xf32>
    %39 = vector.extract_strided_slice %15 {offsets = [0, 1], sizes = [8, 1], strides = [1, 1]} : vector<8x2xf32> to vector<8x1xf32>
    %40 = vector.broadcast %38 : vector<8x1xf32> to vector<8x32xf32>
    %41 = vector.broadcast %1 : vector<1x32xf32> to vector<8x32xf32>
    %42 = arith.mulf %40, %41 : vector<8x32xf32>
    %43 = vector.broadcast %2 : vector<1x32xf32> to vector<8x32xf32>
    %44 = arith.addf %42, %43 : vector<8x32xf32>
    %45 = math.sin %44 : vector<8x32xf32>
    %46 = arith.truncf %45 : vector<8x32xf32> to vector<8x32xbf16>
    %c1 = arith.constant 1 : index
    %c0_12 = arith.constant 0 : index
    %c0_13 = arith.constant 0 : index
    %47 = vector.load %arg4[%c1, %c0_12, %c0_13] : memref<2x32x128xbf16, #tpu.memory_space<vmem>>, vector<1x32x128xbf16>
    %48 = vector.shape_cast %47 : vector<1x32x128xbf16> to vector<32x128xbf16>
    %cst_14 = arith.constant dense<0.000000e+00> : vector<8x128xf32>
    %49 = tpu.matmul %46, %48, %cst_14 {dimension_numbers = #tpu.dot_dimension_numbers<[1], [0], [0], [1], [0, 0, 1, 1], [], []>} : vector<8x32xbf16>, vector<32x128xbf16>, vector<8x128xf32> -> vector<8x128xf32>
    %c1_15 = arith.constant 1 : index
    %c0_16 = arith.constant 0 : index
    %50 = vector.load %arg3[%c1_15, %c0_16] : memref<8x64xf32, #tpu.memory_space<vmem>>, vector<1x64xf32>
    %51 = vector.broadcast %39 : vector<8x1xf32> to vector<8x64xf32>
    %52 = vector.broadcast %50 : vector<1x64xf32> to vector<8x64xf32>
    %53 = arith.mulf %51, %52 : vector<8x64xf32>
    %54 = vector.extract_strided_slice %49 {offsets = [0, 0], sizes = [8, 64], strides = [1, 1]} : vector<8x128xf32> to vector<8x64xf32>
    %55 = arith.mulf %53, %54 : vector<8x64xf32>
    %56 = vector.extract_strided_slice %49 {offsets = [0, 64], sizes = [8, 64], strides = [1, 1]} : vector<8x128xf32> to vector<8x64xf32>
    %57 = arith.addf %55, %56 : vector<8x64xf32>
    %c16_i32 = arith.constant 16 : i32
    %58 = vector.broadcast %c16_i32 : i32 to vector<1x24xi32>
    %59 = arith.cmpi eq, %10, %58 : vector<1x24xi32>
    %c0_i32_17 = arith.constant 0 : i32
    %60 = vector.broadcast %c0_i32_17 : i32 to vector<1x24xi32>
    %61 = arith.cmpi sge, %10, %60 : vector<1x24xi32>
    %c8_i32 = arith.constant 8 : i32
    %62 = vector.broadcast %c8_i32 : i32 to vector<1x24xi32>
    %63 = arith.cmpi slt, %10, %62 : vector<1x24xi32>
    %64 = arith.andi %61, %63 : vector<1x24xi1>
    %c0_i32_18 = arith.constant 0 : i32
    %65 = vector.broadcast %c0_i32_18 : i32 to vector<1x24xi32>
    %66 = arith.subi %10, %65 : vector<1x24xi32>
    %c0_i32_19 = arith.constant 0 : i32
    %67 = arith.addi %11, %c0_i32_19 : i32
    %68 = arith.index_cast %67 : i32 to index
    %c0_20 = arith.constant 0 : index
    %69 = memref.load %arg1[%68, %c0_20] : memref<2x2xi32, #tpu.memory_space<smem>>
    %70 = vector.broadcast %69 : i32 to vector<1x24xi32>
    %71 = arith.cmpi slt, %66, %70 : vector<1x24xi32>
    %72 = arith.andi %64, %71 : vector<1x24xi1>
    %73 = arith.ori %59, %72 : vector<1x24xi1>
    %c8_i32_21 = arith.constant 8 : i32
    %74 = vector.broadcast %c8_i32_21 : i32 to vector<1x24xi32>
    %75 = arith.cmpi sge, %10, %74 : vector<1x24xi32>
    %c16_i32_22 = arith.constant 16 : i32
    %76 = vector.broadcast %c16_i32_22 : i32 to vector<1x24xi32>
    %77 = arith.cmpi slt, %10, %76 : vector<1x24xi32>
    %78 = arith.andi %75, %77 : vector<1x24xi1>
    %c8_i32_23 = arith.constant 8 : i32
    %79 = vector.broadcast %c8_i32_23 : i32 to vector<1x24xi32>
    %80 = arith.subi %10, %79 : vector<1x24xi32>
    %c0_i32_24 = arith.constant 0 : i32
    %81 = arith.addi %11, %c0_i32_24 : i32
    %82 = arith.index_cast %81 : i32 to index
    %c1_25 = arith.constant 1 : index
    %83 = memref.load %arg1[%82, %c1_25] : memref<2x2xi32, #tpu.memory_space<smem>>
    %84 = vector.broadcast %83 : i32 to vector<1x24xi32>
    %85 = arith.cmpi slt, %80, %84 : vector<1x24xi32>
    %86 = arith.andi %78, %85 : vector<1x24xi1>
    %87 = arith.ori %73, %86 : vector<1x24xi1>
    %cst_26 = arith.constant 0.000000e+00 : f32
    %cst_27 = arith.constant -1.000000e+09 : f32
    %88 = vector.broadcast %cst_26 : f32 to vector<1x24xf32>
    %89 = vector.broadcast %cst_27 : f32 to vector<1x24xf32>
    %90 = arith.select %87, %88, %89 : vector<1x24xi1>, vector<1x24xf32>
    %c1_28 = arith.constant 1 : index
    %c0_29 = arith.constant 0 : index
    %c0_30 = arith.constant 0 : index
    %c0_31 = arith.constant 0 : index
    %91 = vector.load %arg2[%c1_28, %c0_29, %c0_30, %c0_31] : memref<2x2x8x2xf32, #tpu.memory_space<vmem>>, vector<1x2x8x2xf32>
    %92 = vector.shape_cast %91 : vector<1x2x8x2xf32> to vector<2x8x2xf32>
    %93 = vector.extract_strided_slice %92 {offsets = [0, 0, 0], sizes = [1, 8, 2], strides = [1, 1, 1]} : vector<2x8x2xf32> to vector<1x8x2xf32>
    %94 = vector.shape_cast %93 : vector<1x8x2xf32> to vector<8x2xf32>
    %95 = vector.extract_strided_slice %92 {offsets = [1, 0, 0], sizes = [1, 8, 2], strides = [1, 1, 1]} : vector<2x8x2xf32> to vector<1x8x2xf32>
    %96 = vector.shape_cast %95 : vector<1x8x2xf32> to vector<8x2xf32>
    %97 = vector.extract_strided_slice %96 {offsets = [0, 0], sizes = [8, 1], strides = [1, 1]} : vector<8x2xf32> to vector<8x1xf32>
    %98 = vector.extract_strided_slice %94 {offsets = [0, 0], sizes = [8, 1], strides = [1, 1]} : vector<8x2xf32> to vector<8x1xf32>
    %99 = vector.broadcast %97 : vector<8x1xf32> to vector<8x32xf32>
    %100 = vector.broadcast %1 : vector<1x32xf32> to vector<8x32xf32>
    %101 = arith.mulf %99, %100 : vector<8x32xf32>
    %102 = vector.broadcast %2 : vector<1x32xf32> to vector<8x32xf32>
    %103 = arith.addf %101, %102 : vector<8x32xf32>
    %104 = math.sin %103 : vector<8x32xf32>
    %105 = arith.truncf %104 : vector<8x32xf32> to vector<8x32xbf16>
    %c0_32 = arith.constant 0 : index
    %c0_33 = arith.constant 0 : index
    %c0_34 = arith.constant 0 : index
    %106 = vector.load %arg4[%c0_32, %c0_33, %c0_34] : memref<2x32x128xbf16, #tpu.memory_space<vmem>>, vector<1x32x128xbf16>
    %107 = vector.shape_cast %106 : vector<1x32x128xbf16> to vector<32x128xbf16>
    %cst_35 = arith.constant dense<0.000000e+00> : vector<8x128xf32>
    %108 = tpu.matmul %105, %107, %cst_35 {dimension_numbers = #tpu.dot_dimension_numbers<[1], [0], [0], [1], [0, 0, 1, 1], [], []>} : vector<8x32xbf16>, vector<32x128xbf16>, vector<8x128xf32> -> vector<8x128xf32>
    %c0_36 = arith.constant 0 : index
    %c0_37 = arith.constant 0 : index
    %109 = vector.load %arg3[%c0_36, %c0_37] : memref<8x64xf32, #tpu.memory_space<vmem>>, vector<1x64xf32>
    %110 = vector.broadcast %98 : vector<8x1xf32> to vector<8x64xf32>
    %111 = vector.broadcast %109 : vector<1x64xf32> to vector<8x64xf32>
    %112 = arith.mulf %110, %111 : vector<8x64xf32>
    %113 = vector.extract_strided_slice %108 {offsets = [0, 0], sizes = [8, 64], strides = [1, 1]} : vector<8x128xf32> to vector<8x64xf32>
    %114 = arith.mulf %112, %113 : vector<8x64xf32>
    %115 = vector.extract_strided_slice %108 {offsets = [0, 64], sizes = [8, 64], strides = [1, 1]} : vector<8x128xf32> to vector<8x64xf32>
    %116 = arith.addf %114, %115 : vector<8x64xf32>
    %117 = vector.extract_strided_slice %96 {offsets = [0, 1], sizes = [8, 1], strides = [1, 1]} : vector<8x2xf32> to vector<8x1xf32>
    %118 = vector.extract_strided_slice %94 {offsets = [0, 1], sizes = [8, 1], strides = [1, 1]} : vector<8x2xf32> to vector<8x1xf32>
    %119 = vector.broadcast %117 : vector<8x1xf32> to vector<8x32xf32>
    %120 = vector.broadcast %1 : vector<1x32xf32> to vector<8x32xf32>
    %121 = arith.mulf %119, %120 : vector<8x32xf32>
    %122 = vector.broadcast %2 : vector<1x32xf32> to vector<8x32xf32>
    %123 = arith.addf %121, %122 : vector<8x32xf32>
    %124 = math.sin %123 : vector<8x32xf32>
    %125 = arith.truncf %124 : vector<8x32xf32> to vector<8x32xbf16>
    %c1_38 = arith.constant 1 : index
    %c0_39 = arith.constant 0 : index
    %c0_40 = arith.constant 0 : index
    %126 = vector.load %arg4[%c1_38, %c0_39, %c0_40] : memref<2x32x128xbf16, #tpu.memory_space<vmem>>, vector<1x32x128xbf16>
    %127 = vector.shape_cast %126 : vector<1x32x128xbf16> to vector<32x128xbf16>
    %cst_41 = arith.constant dense<0.000000e+00> : vector<8x128xf32>
    %128 = tpu.matmul %125, %127, %cst_41 {dimension_numbers = #tpu.dot_dimension_numbers<[1], [0], [0], [1], [0, 0, 1, 1], [], []>} : vector<8x32xbf16>, vector<32x128xbf16>, vector<8x128xf32> -> vector<8x128xf32>
    %c1_42 = arith.constant 1 : index
    %c0_43 = arith.constant 0 : index
    %129 = vector.load %arg3[%c1_42, %c0_43] : memref<8x64xf32, #tpu.memory_space<vmem>>, vector<1x64xf32>
    %130 = vector.broadcast %118 : vector<8x1xf32> to vector<8x64xf32>
    %131 = vector.broadcast %129 : vector<1x64xf32> to vector<8x64xf32>
    %132 = arith.mulf %130, %131 : vector<8x64xf32>
    %133 = vector.extract_strided_slice %128 {offsets = [0, 0], sizes = [8, 64], strides = [1, 1]} : vector<8x128xf32> to vector<8x64xf32>
    %134 = arith.mulf %132, %133 : vector<8x64xf32>
    %135 = vector.extract_strided_slice %128 {offsets = [0, 64], sizes = [8, 64], strides = [1, 1]} : vector<8x128xf32> to vector<8x64xf32>
    %136 = arith.addf %134, %135 : vector<8x64xf32>
    %c16_i32_44 = arith.constant 16 : i32
    %137 = vector.broadcast %c16_i32_44 : i32 to vector<1x24xi32>
    %138 = arith.cmpi eq, %10, %137 : vector<1x24xi32>
    %c0_i32_45 = arith.constant 0 : i32
    %139 = vector.broadcast %c0_i32_45 : i32 to vector<1x24xi32>
    %140 = arith.cmpi sge, %10, %139 : vector<1x24xi32>
    %c8_i32_46 = arith.constant 8 : i32
    %141 = vector.broadcast %c8_i32_46 : i32 to vector<1x24xi32>
    %142 = arith.cmpi slt, %10, %141 : vector<1x24xi32>
    %143 = arith.andi %140, %142 : vector<1x24xi1>
    %c0_i32_47 = arith.constant 0 : i32
    %144 = vector.broadcast %c0_i32_47 : i32 to vector<1x24xi32>
    %145 = arith.subi %10, %144 : vector<1x24xi32>
    %c1_i32 = arith.constant 1 : i32
    %146 = arith.addi %11, %c1_i32 : i32
    %147 = arith.index_cast %146 : i32 to index
    %c0_48 = arith.constant 0 : index
    %148 = memref.load %arg1[%147, %c0_48] : memref<2x2xi32, #tpu.memory_space<smem>>
    %149 = vector.broadcast %148 : i32 to vector<1x24xi32>
    %150 = arith.cmpi slt, %145, %149 : vector<1x24xi32>
    %151 = arith.andi %143, %150 : vector<1x24xi1>
    %152 = arith.ori %138, %151 : vector<1x24xi1>
    %c8_i32_49 = arith.constant 8 : i32
    %153 = vector.broadcast %c8_i32_49 : i32 to vector<1x24xi32>
    %154 = arith.cmpi sge, %10, %153 : vector<1x24xi32>
    %c16_i32_50 = arith.constant 16 : i32
    %155 = vector.broadcast %c16_i32_50 : i32 to vector<1x24xi32>
    %156 = arith.cmpi slt, %10, %155 : vector<1x24xi32>
    %157 = arith.andi %154, %156 : vector<1x24xi1>
    %c8_i32_51 = arith.constant 8 : i32
    %158 = vector.broadcast %c8_i32_51 : i32 to vector<1x24xi32>
    %159 = arith.subi %10, %158 : vector<1x24xi32>
    %c1_i32_52 = arith.constant 1 : i32
    %160 = arith.addi %11, %c1_i32_52 : i32
    %161 = arith.index_cast %160 : i32 to index
    %c1_53 = arith.constant 1 : index
    %162 = memref.load %arg1[%161, %c1_53] : memref<2x2xi32, #tpu.memory_space<smem>>
    %163 = vector.broadcast %162 : i32 to vector<1x24xi32>
    %164 = arith.cmpi slt, %159, %163 : vector<1x24xi32>
    %165 = arith.andi %157, %164 : vector<1x24xi1>
    %166 = arith.ori %152, %165 : vector<1x24xi1>
    %cst_54 = arith.constant 0.000000e+00 : f32
    %cst_55 = arith.constant -1.000000e+09 : f32
    %167 = vector.broadcast %cst_54 : f32 to vector<1x24xf32>
    %168 = vector.broadcast %cst_55 : f32 to vector<1x24xf32>
    %169 = arith.select %166, %167, %168 : vector<1x24xi1>, vector<1x24xf32>
    %170 = tpu.concatenate %37, %57, %9, %116, %136, %9 in 0 : vector<8x64xf32>, vector<8x64xf32>, vector<8x64xf32>, vector<8x64xf32>, vector<8x64xf32>, vector<8x64xf32> -> vector<48x64xf32>
    %c0_56 = arith.constant 0 : index
    %c0_57 = arith.constant 0 : index
    %c0_58 = arith.constant 0 : index
    %171 = vector.load %arg5[%c0_56, %c0_57, %c0_58] : memref<2x8x192xf32, #tpu.memory_space<vmem>>, vector<1x8x192xf32>
    %172 = vector.shape_cast %171 : vector<1x8x192xf32> to vector<8x192xf32>
    %173 = vector.extract_strided_slice %172 {offsets = [0, 0], sizes = [1, 64], strides = [1, 1]} : vector<8x192xf32> to vector<1x64xf32>
    %174 = vector.extract_strided_slice %172 {offsets = [1, 0], sizes = [1, 64], strides = [1, 1]} : vector<8x192xf32> to vector<1x64xf32>
    %175 = vector.extract_strided_slice %172 {offsets = [2, 0], sizes = [1, 192], strides = [1, 1]} : vector<8x192xf32> to vector<1x192xf32>
    %176 = vector.extract_strided_slice %172 {offsets = [3, 0], sizes = [1, 64], strides = [1, 1]} : vector<8x192xf32> to vector<1x64xf32>
    %177 = vector.extract_strided_slice %172 {offsets = [4, 0], sizes = [1, 64], strides = [1, 1]} : vector<8x192xf32> to vector<1x64xf32>
    %178 = vector.extract_strided_slice %172 {offsets = [5, 0], sizes = [1, 64], strides = [1, 1]} : vector<8x192xf32> to vector<1x64xf32>
    %179 = vector.extract_strided_slice %172 {offsets = [6, 0], sizes = [1, 128], strides = [1, 1]} : vector<8x192xf32> to vector<1x128xf32>
    %180 = vector.extract_strided_slice %172 {offsets = [7, 0], sizes = [1, 64], strides = [1, 1]} : vector<8x192xf32> to vector<1x64xf32>
    %cst_59 = arith.constant dense<0.000000e+00> : vector<48xf32>
    %181 = vector.multi_reduction <add>, %170, %cst_59 [1] : vector<48x64xf32> to vector<48xf32>
    %182 = vector.shape_cast %181 : vector<48xf32> to vector<48x1xf32>
    %cst_60 = arith.constant 6.400000e+01 : f32
    %183 = vector.broadcast %cst_60 : f32 to vector<48x1xf32>
    %184 = arith.divf %182, %183 : vector<48x1xf32>
    %185 = vector.broadcast %184 : vector<48x1xf32> to vector<48x64xf32>
    %186 = arith.subf %170, %185 : vector<48x64xf32>
    %187 = arith.mulf %186, %186 : vector<48x64xf32>
    %cst_61 = arith.constant dense<0.000000e+00> : vector<48xf32>
    %188 = vector.multi_reduction <add>, %187, %cst_61 [1] : vector<48x64xf32> to vector<48xf32>
    %189 = vector.shape_cast %188 : vector<48xf32> to vector<48x1xf32>
    %cst_62 = arith.constant 6.400000e+01 : f32
    %190 = vector.broadcast %cst_62 : f32 to vector<48x1xf32>
    %191 = arith.divf %189, %190 : vector<48x1xf32>
    %192 = vector.broadcast %184 : vector<48x1xf32> to vector<48x64xf32>
    %193 = arith.subf %170, %192 : vector<48x64xf32>
    %cst_63 = arith.constant 9.99999974E-6 : f32
    %194 = vector.broadcast %cst_63 : f32 to vector<48x1xf32>
    %195 = arith.addf %191, %194 : vector<48x1xf32>
    %196 = math.rsqrt %195 : vector<48x1xf32>
    %197 = vector.broadcast %196 : vector<48x1xf32> to vector<48x64xf32>
    %198 = arith.mulf %193, %197 : vector<48x64xf32>
    %199 = vector.broadcast %173 : vector<1x64xf32> to vector<48x64xf32>
    %200 = arith.mulf %198, %199 : vector<48x64xf32>
    %201 = vector.broadcast %174 : vector<1x64xf32> to vector<48x64xf32>
    %202 = arith.addf %200, %201 : vector<48x64xf32>
    %203 = arith.truncf %202 : vector<48x64xf32> to vector<48x64xbf16>
    %c0_64 = arith.constant 0 : index
    %c0_65 = arith.constant 0 : index
    %c0_66 = arith.constant 0 : index
    %204 = vector.load %arg6[%c0_64, %c0_65, %c0_66] : memref<2x64x192xbf16, #tpu.memory_space<vmem>>, vector<1x64x192xbf16>
    %205 = vector.shape_cast %204 : vector<1x64x192xbf16> to vector<64x192xbf16>
    %cst_67 = arith.constant dense<0.000000e+00> : vector<48x192xf32>
    %206 = tpu.matmul %203, %205, %cst_67 {dimension_numbers = #tpu.dot_dimension_numbers<[1], [0], [0], [1], [0, 0, 1, 1], [], []>} : vector<48x64xbf16>, vector<64x192xbf16>, vector<48x192xf32> -> vector<48x192xf32>
    %207 = vector.broadcast %175 : vector<1x192xf32> to vector<48x192xf32>
    %208 = arith.addf %206, %207 : vector<48x192xf32>
    %c0_68 = arith.constant 0 : index
    %c0_69 = arith.constant 0 : index
    %c0_70 = arith.constant 0 : index
    %209 = vector.load %arg7[%c0_68, %c0_69, %c0_70] : memref<2x64x64xbf16, #tpu.memory_space<vmem>>, vector<1x64x64xbf16>
    %210 = vector.shape_cast %209 : vector<1x64x64xbf16> to vector<64x64xbf16>
    %211 = vector.extract_strided_slice %208 {offsets = [0, 0], sizes = [24, 192], strides = [1, 1]} : vector<48x192xf32> to vector<24x192xf32>
    %cst_71 = arith.constant 0.000000e+00 : f32
    %212 = vector.broadcast %cst_71 : f32 to vector<24x64xf32>
    %213 = vector.extract_strided_slice %211 {offsets = [0, 0], sizes = [24, 16], strides = [1, 1]} : vector<24x192xf32> to vector<24x16xf32>
    %214 = arith.truncf %213 : vector<24x16xf32> to vector<24x16xbf16>
    %215 = vector.extract_strided_slice %211 {offsets = [0, 64], sizes = [24, 16], strides = [1, 1]} : vector<24x192xf32> to vector<24x16xf32>
    %216 = arith.truncf %215 : vector<24x16xf32> to vector<24x16xbf16>
    %217 = vector.extract_strided_slice %211 {offsets = [0, 128], sizes = [24, 16], strides = [1, 1]} : vector<24x192xf32> to vector<24x16xf32>
    %218 = arith.truncf %217 : vector<24x16xf32> to vector<24x16xbf16>
    %cst_72 = arith.constant dense<0.000000e+00> : vector<24x24xf32>
    %219 = tpu.matmul %214, %216, %cst_72 {dimension_numbers = #tpu.dot_dimension_numbers<[1], [1], [0], [0], [0, 0, 1, 0], [], []>} : vector<24x16xbf16>, vector<24x16xbf16>, vector<24x24xf32> -> vector<24x24xf32>
    %cst_73 = arith.constant 2.500000e-01 : f32
    %220 = vector.broadcast %cst_73 : f32 to vector<24x24xf32>
    %221 = arith.mulf %219, %220 : vector<24x24xf32>
    %222 = vector.broadcast %90 : vector<1x24xf32> to vector<24x24xf32>
    %223 = arith.addf %221, %222 : vector<24x24xf32>
    %cst_74 = arith.constant dense<0xFF800000> : vector<24xf32>
    %224 = vector.multi_reduction <maximumf>, %223, %cst_74 [1] : vector<24x24xf32> to vector<24xf32>
    %225 = vector.shape_cast %224 : vector<24xf32> to vector<24x1xf32>
    %226 = vector.broadcast %225 : vector<24x1xf32> to vector<24x24xf32>
    %227 = arith.subf %223, %226 : vector<24x24xf32>
    %228 = math.exp %227 : vector<24x24xf32>
    %cst_75 = arith.constant dense<0.000000e+00> : vector<24xf32>
    %229 = vector.multi_reduction <add>, %228, %cst_75 [1] : vector<24x24xf32> to vector<24xf32>
    %230 = vector.shape_cast %229 : vector<24xf32> to vector<24x1xf32>
    %231 = tpu.reciprocal %230 {approx = true} : vector<24x1xf32> -> vector<24x1xf32>
    %232 = vector.broadcast %231 : vector<24x1xf32> to vector<24x24xf32>
    %233 = arith.mulf %228, %232 : vector<24x24xf32>
    %234 = arith.truncf %233 : vector<24x24xf32> to vector<24x24xbf16>
    %cst_76 = arith.constant dense<0.000000e+00> : vector<24x16xf32>
    %235 = tpu.matmul %234, %218, %cst_76 {dimension_numbers = #tpu.dot_dimension_numbers<[1], [0], [0], [1], [0, 0, 1, 1], [], []>} : vector<24x24xbf16>, vector<24x16xbf16>, vector<24x16xf32> -> vector<24x16xf32>
    %236 = arith.truncf %235 : vector<24x16xf32> to vector<24x16xbf16>
    %237 = vector.extract_strided_slice %210 {offsets = [0, 0], sizes = [16, 64], strides = [1, 1]} : vector<64x64xbf16> to vector<16x64xbf16>
    %cst_77 = arith.constant dense<0.000000e+00> : vector<24x64xf32>
    %238 = tpu.matmul %236, %237, %cst_77 {dimension_numbers = #tpu.dot_dimension_numbers<[1], [0], [0], [1], [0, 0, 1, 1], [], []>} : vector<24x16xbf16>, vector<16x64xbf16>, vector<24x64xf32> -> vector<24x64xf32>
    %239 = arith.addf %212, %238 : vector<24x64xf32>
    %240 = vector.extract_strided_slice %211 {offsets = [0, 16], sizes = [24, 16], strides = [1, 1]} : vector<24x192xf32> to vector<24x16xf32>
    %241 = arith.truncf %240 : vector<24x16xf32> to vector<24x16xbf16>
    %242 = vector.extract_strided_slice %211 {offsets = [0, 80], sizes = [24, 16], strides = [1, 1]} : vector<24x192xf32> to vector<24x16xf32>
    %243 = arith.truncf %242 : vector<24x16xf32> to vector<24x16xbf16>
    %244 = vector.extract_strided_slice %211 {offsets = [0, 144], sizes = [24, 16], strides = [1, 1]} : vector<24x192xf32> to vector<24x16xf32>
    %245 = arith.truncf %244 : vector<24x16xf32> to vector<24x16xbf16>
    %cst_78 = arith.constant dense<0.000000e+00> : vector<24x24xf32>
    %246 = tpu.matmul %241, %243, %cst_78 {dimension_numbers = #tpu.dot_dimension_numbers<[1], [1], [0], [0], [0, 0, 1, 0], [], []>} : vector<24x16xbf16>, vector<24x16xbf16>, vector<24x24xf32> -> vector<24x24xf32>
    %cst_79 = arith.constant 2.500000e-01 : f32
    %247 = vector.broadcast %cst_79 : f32 to vector<24x24xf32>
    %248 = arith.mulf %246, %247 : vector<24x24xf32>
    %249 = vector.broadcast %90 : vector<1x24xf32> to vector<24x24xf32>
    %250 = arith.addf %248, %249 : vector<24x24xf32>
    %cst_80 = arith.constant dense<0xFF800000> : vector<24xf32>
    %251 = vector.multi_reduction <maximumf>, %250, %cst_80 [1] : vector<24x24xf32> to vector<24xf32>
    %252 = vector.shape_cast %251 : vector<24xf32> to vector<24x1xf32>
    %253 = vector.broadcast %252 : vector<24x1xf32> to vector<24x24xf32>
    %254 = arith.subf %250, %253 : vector<24x24xf32>
    %255 = math.exp %254 : vector<24x24xf32>
    %cst_81 = arith.constant dense<0.000000e+00> : vector<24xf32>
    %256 = vector.multi_reduction <add>, %255, %cst_81 [1] : vector<24x24xf32> to vector<24xf32>
    %257 = vector.shape_cast %256 : vector<24xf32> to vector<24x1xf32>
    %258 = tpu.reciprocal %257 {approx = true} : vector<24x1xf32> -> vector<24x1xf32>
    %259 = vector.broadcast %258 : vector<24x1xf32> to vector<24x24xf32>
    %260 = arith.mulf %255, %259 : vector<24x24xf32>
    %261 = arith.truncf %260 : vector<24x24xf32> to vector<24x24xbf16>
    %cst_82 = arith.constant dense<0.000000e+00> : vector<24x16xf32>
    %262 = tpu.matmul %261, %245, %cst_82 {dimension_numbers = #tpu.dot_dimension_numbers<[1], [0], [0], [1], [0, 0, 1, 1], [], []>} : vector<24x24xbf16>, vector<24x16xbf16>, vector<24x16xf32> -> vector<24x16xf32>
    %263 = arith.truncf %262 : vector<24x16xf32> to vector<24x16xbf16>
    %264 = vector.extract_strided_slice %210 {offsets = [16, 0], sizes = [16, 64], strides = [1, 1]} : vector<64x64xbf16> to vector<16x64xbf16>
    %cst_83 = arith.constant dense<0.000000e+00> : vector<24x64xf32>
    %265 = tpu.matmul %263, %264, %cst_83 {dimension_numbers = #tpu.dot_dimension_numbers<[1], [0], [0], [1], [0, 0, 1, 1], [], []>} : vector<24x16xbf16>, vector<16x64xbf16>, vector<24x64xf32> -> vector<24x64xf32>
    %266 = arith.addf %239, %265 : vector<24x64xf32>
    %267 = vector.extract_strided_slice %211 {offsets = [0, 32], sizes = [24, 16], strides = [1, 1]} : vector<24x192xf32> to vector<24x16xf32>
    %268 = arith.truncf %267 : vector<24x16xf32> to vector<24x16xbf16>
    %269 = vector.extract_strided_slice %211 {offsets = [0, 96], sizes = [24, 16], strides = [1, 1]} : vector<24x192xf32> to vector<24x16xf32>
    %270 = arith.truncf %269 : vector<24x16xf32> to vector<24x16xbf16>
    %271 = vector.extract_strided_slice %211 {offsets = [0, 160], sizes = [24, 16], strides = [1, 1]} : vector<24x192xf32> to vector<24x16xf32>
    %272 = arith.truncf %271 : vector<24x16xf32> to vector<24x16xbf16>
    %cst_84 = arith.constant dense<0.000000e+00> : vector<24x24xf32>
    %273 = tpu.matmul %268, %270, %cst_84 {dimension_numbers = #tpu.dot_dimension_numbers<[1], [1], [0], [0], [0, 0, 1, 0], [], []>} : vector<24x16xbf16>, vector<24x16xbf16>, vector<24x24xf32> -> vector<24x24xf32>
    %cst_85 = arith.constant 2.500000e-01 : f32
    %274 = vector.broadcast %cst_85 : f32 to vector<24x24xf32>
    %275 = arith.mulf %273, %274 : vector<24x24xf32>
    %276 = vector.broadcast %90 : vector<1x24xf32> to vector<24x24xf32>
    %277 = arith.addf %275, %276 : vector<24x24xf32>
    %cst_86 = arith.constant dense<0xFF800000> : vector<24xf32>
    %278 = vector.multi_reduction <maximumf>, %277, %cst_86 [1] : vector<24x24xf32> to vector<24xf32>
    %279 = vector.shape_cast %278 : vector<24xf32> to vector<24x1xf32>
    %280 = vector.broadcast %279 : vector<24x1xf32> to vector<24x24xf32>
    %281 = arith.subf %277, %280 : vector<24x24xf32>
    %282 = math.exp %281 : vector<24x24xf32>
    %cst_87 = arith.constant dense<0.000000e+00> : vector<24xf32>
    %283 = vector.multi_reduction <add>, %282, %cst_87 [1] : vector<24x24xf32> to vector<24xf32>
    %284 = vector.shape_cast %283 : vector<24xf32> to vector<24x1xf32>
    %285 = tpu.reciprocal %284 {approx = true} : vector<24x1xf32> -> vector<24x1xf32>
    %286 = vector.broadcast %285 : vector<24x1xf32> to vector<24x24xf32>
    %287 = arith.mulf %282, %286 : vector<24x24xf32>
    %288 = arith.truncf %287 : vector<24x24xf32> to vector<24x24xbf16>
    %cst_88 = arith.constant dense<0.000000e+00> : vector<24x16xf32>
    %289 = tpu.matmul %288, %272, %cst_88 {dimension_numbers = #tpu.dot_dimension_numbers<[1], [0], [0], [1], [0, 0, 1, 1], [], []>} : vector<24x24xbf16>, vector<24x16xbf16>, vector<24x16xf32> -> vector<24x16xf32>
    %290 = arith.truncf %289 : vector<24x16xf32> to vector<24x16xbf16>
    %291 = vector.extract_strided_slice %210 {offsets = [32, 0], sizes = [16, 64], strides = [1, 1]} : vector<64x64xbf16> to vector<16x64xbf16>
    %cst_89 = arith.constant dense<0.000000e+00> : vector<24x64xf32>
    %292 = tpu.matmul %290, %291, %cst_89 {dimension_numbers = #tpu.dot_dimension_numbers<[1], [0], [0], [1], [0, 0, 1, 1], [], []>} : vector<24x16xbf16>, vector<16x64xbf16>, vector<24x64xf32> -> vector<24x64xf32>
    %293 = arith.addf %266, %292 : vector<24x64xf32>
    %294 = vector.extract_strided_slice %211 {offsets = [0, 48], sizes = [24, 16], strides = [1, 1]} : vector<24x192xf32> to vector<24x16xf32>
    %295 = arith.truncf %294 : vector<24x16xf32> to vector<24x16xbf16>
    %296 = vector.extract_strided_slice %211 {offsets = [0, 112], sizes = [24, 16], strides = [1, 1]} : vector<24x192xf32> to vector<24x16xf32>
    %297 = arith.truncf %296 : vector<24x16xf32> to vector<24x16xbf16>
    %298 = vector.extract_strided_slice %211 {offsets = [0, 176], sizes = [24, 16], strides = [1, 1]} : vector<24x192xf32> to vector<24x16xf32>
    %299 = arith.truncf %298 : vector<24x16xf32> to vector<24x16xbf16>
    %cst_90 = arith.constant dense<0.000000e+00> : vector<24x24xf32>
    %300 = tpu.matmul %295, %297, %cst_90 {dimension_numbers = #tpu.dot_dimension_numbers<[1], [1], [0], [0], [0, 0, 1, 0], [], []>} : vector<24x16xbf16>, vector<24x16xbf16>, vector<24x24xf32> -> vector<24x24xf32>
    %cst_91 = arith.constant 2.500000e-01 : f32
    %301 = vector.broadcast %cst_91 : f32 to vector<24x24xf32>
    %302 = arith.mulf %300, %301 : vector<24x24xf32>
    %303 = vector.broadcast %90 : vector<1x24xf32> to vector<24x24xf32>
    %304 = arith.addf %302, %303 : vector<24x24xf32>
    %cst_92 = arith.constant dense<0xFF800000> : vector<24xf32>
    %305 = vector.multi_reduction <maximumf>, %304, %cst_92 [1] : vector<24x24xf32> to vector<24xf32>
    %306 = vector.shape_cast %305 : vector<24xf32> to vector<24x1xf32>
    %307 = vector.broadcast %306 : vector<24x1xf32> to vector<24x24xf32>
    %308 = arith.subf %304, %307 : vector<24x24xf32>
    %309 = math.exp %308 : vector<24x24xf32>
    %cst_93 = arith.constant dense<0.000000e+00> : vector<24xf32>
    %310 = vector.multi_reduction <add>, %309, %cst_93 [1] : vector<24x24xf32> to vector<24xf32>
    %311 = vector.shape_cast %310 : vector<24xf32> to vector<24x1xf32>
    %312 = tpu.reciprocal %311 {approx = true} : vector<24x1xf32> -> vector<24x1xf32>
    %313 = vector.broadcast %312 : vector<24x1xf32> to vector<24x24xf32>
    %314 = arith.mulf %309, %313 : vector<24x24xf32>
    %315 = arith.truncf %314 : vector<24x24xf32> to vector<24x24xbf16>
    %cst_94 = arith.constant dense<0.000000e+00> : vector<24x16xf32>
    %316 = tpu.matmul %315, %299, %cst_94 {dimension_numbers = #tpu.dot_dimension_numbers<[1], [0], [0], [1], [0, 0, 1, 1], [], []>} : vector<24x24xbf16>, vector<24x16xbf16>, vector<24x16xf32> -> vector<24x16xf32>
    %317 = arith.truncf %316 : vector<24x16xf32> to vector<24x16xbf16>
    %318 = vector.extract_strided_slice %210 {offsets = [48, 0], sizes = [16, 64], strides = [1, 1]} : vector<64x64xbf16> to vector<16x64xbf16>
    %cst_95 = arith.constant dense<0.000000e+00> : vector<24x64xf32>
    %319 = tpu.matmul %317, %318, %cst_95 {dimension_numbers = #tpu.dot_dimension_numbers<[1], [0], [0], [1], [0, 0, 1, 1], [], []>} : vector<24x16xbf16>, vector<16x64xbf16>, vector<24x64xf32> -> vector<24x64xf32>
    %320 = arith.addf %293, %319 : vector<24x64xf32>
    %321 = vector.broadcast %176 : vector<1x64xf32> to vector<24x64xf32>
    %322 = arith.addf %320, %321 : vector<24x64xf32>
    %323 = vector.extract_strided_slice %208 {offsets = [24, 0], sizes = [24, 192], strides = [1, 1]} : vector<48x192xf32> to vector<24x192xf32>
    %cst_96 = arith.constant 0.000000e+00 : f32
    %324 = vector.broadcast %cst_96 : f32 to vector<24x64xf32>
    %325 = vector.extract_strided_slice %323 {offsets = [0, 0], sizes = [24, 16], strides = [1, 1]} : vector<24x192xf32> to vector<24x16xf32>
    %326 = arith.truncf %325 : vector<24x16xf32> to vector<24x16xbf16>
    %327 = vector.extract_strided_slice %323 {offsets = [0, 64], sizes = [24, 16], strides = [1, 1]} : vector<24x192xf32> to vector<24x16xf32>
    %328 = arith.truncf %327 : vector<24x16xf32> to vector<24x16xbf16>
    %329 = vector.extract_strided_slice %323 {offsets = [0, 128], sizes = [24, 16], strides = [1, 1]} : vector<24x192xf32> to vector<24x16xf32>
    %330 = arith.truncf %329 : vector<24x16xf32> to vector<24x16xbf16>
    %cst_97 = arith.constant dense<0.000000e+00> : vector<24x24xf32>
    %331 = tpu.matmul %326, %328, %cst_97 {dimension_numbers = #tpu.dot_dimension_numbers<[1], [1], [0], [0], [0, 0, 1, 0], [], []>} : vector<24x16xbf16>, vector<24x16xbf16>, vector<24x24xf32> -> vector<24x24xf32>
    %cst_98 = arith.constant 2.500000e-01 : f32
    %332 = vector.broadcast %cst_98 : f32 to vector<24x24xf32>
    %333 = arith.mulf %331, %332 : vector<24x24xf32>
    %334 = vector.broadcast %169 : vector<1x24xf32> to vector<24x24xf32>
    %335 = arith.addf %333, %334 : vector<24x24xf32>
    %cst_99 = arith.constant dense<0xFF800000> : vector<24xf32>
    %336 = vector.multi_reduction <maximumf>, %335, %cst_99 [1] : vector<24x24xf32> to vector<24xf32>
    %337 = vector.shape_cast %336 : vector<24xf32> to vector<24x1xf32>
    %338 = vector.broadcast %337 : vector<24x1xf32> to vector<24x24xf32>
    %339 = arith.subf %335, %338 : vector<24x24xf32>
    %340 = math.exp %339 : vector<24x24xf32>
    %cst_100 = arith.constant dense<0.000000e+00> : vector<24xf32>
    %341 = vector.multi_reduction <add>, %340, %cst_100 [1] : vector<24x24xf32> to vector<24xf32>
    %342 = vector.shape_cast %341 : vector<24xf32> to vector<24x1xf32>
    %343 = tpu.reciprocal %342 {approx = true} : vector<24x1xf32> -> vector<24x1xf32>
    %344 = vector.broadcast %343 : vector<24x1xf32> to vector<24x24xf32>
    %345 = arith.mulf %340, %344 : vector<24x24xf32>
    %346 = arith.truncf %345 : vector<24x24xf32> to vector<24x24xbf16>
    %cst_101 = arith.constant dense<0.000000e+00> : vector<24x16xf32>
    %347 = tpu.matmul %346, %330, %cst_101 {dimension_numbers = #tpu.dot_dimension_numbers<[1], [0], [0], [1], [0, 0, 1, 1], [], []>} : vector<24x24xbf16>, vector<24x16xbf16>, vector<24x16xf32> -> vector<24x16xf32>
    %348 = arith.truncf %347 : vector<24x16xf32> to vector<24x16xbf16>
    %349 = vector.extract_strided_slice %210 {offsets = [0, 0], sizes = [16, 64], strides = [1, 1]} : vector<64x64xbf16> to vector<16x64xbf16>
    %cst_102 = arith.constant dense<0.000000e+00> : vector<24x64xf32>
    %350 = tpu.matmul %348, %349, %cst_102 {dimension_numbers = #tpu.dot_dimension_numbers<[1], [0], [0], [1], [0, 0, 1, 1], [], []>} : vector<24x16xbf16>, vector<16x64xbf16>, vector<24x64xf32> -> vector<24x64xf32>
    %351 = arith.addf %324, %350 : vector<24x64xf32>
    %352 = vector.extract_strided_slice %323 {offsets = [0, 16], sizes = [24, 16], strides = [1, 1]} : vector<24x192xf32> to vector<24x16xf32>
    %353 = arith.truncf %352 : vector<24x16xf32> to vector<24x16xbf16>
    %354 = vector.extract_strided_slice %323 {offsets = [0, 80], sizes = [24, 16], strides = [1, 1]} : vector<24x192xf32> to vector<24x16xf32>
    %355 = arith.truncf %354 : vector<24x16xf32> to vector<24x16xbf16>
    %356 = vector.extract_strided_slice %323 {offsets = [0, 144], sizes = [24, 16], strides = [1, 1]} : vector<24x192xf32> to vector<24x16xf32>
    %357 = arith.truncf %356 : vector<24x16xf32> to vector<24x16xbf16>
    %cst_103 = arith.constant dense<0.000000e+00> : vector<24x24xf32>
    %358 = tpu.matmul %353, %355, %cst_103 {dimension_numbers = #tpu.dot_dimension_numbers<[1], [1], [0], [0], [0, 0, 1, 0], [], []>} : vector<24x16xbf16>, vector<24x16xbf16>, vector<24x24xf32> -> vector<24x24xf32>
    %cst_104 = arith.constant 2.500000e-01 : f32
    %359 = vector.broadcast %cst_104 : f32 to vector<24x24xf32>
    %360 = arith.mulf %358, %359 : vector<24x24xf32>
    %361 = vector.broadcast %169 : vector<1x24xf32> to vector<24x24xf32>
    %362 = arith.addf %360, %361 : vector<24x24xf32>
    %cst_105 = arith.constant dense<0xFF800000> : vector<24xf32>
    %363 = vector.multi_reduction <maximumf>, %362, %cst_105 [1] : vector<24x24xf32> to vector<24xf32>
    %364 = vector.shape_cast %363 : vector<24xf32> to vector<24x1xf32>
    %365 = vector.broadcast %364 : vector<24x1xf32> to vector<24x24xf32>
    %366 = arith.subf %362, %365 : vector<24x24xf32>
    %367 = math.exp %366 : vector<24x24xf32>
    %cst_106 = arith.constant dense<0.000000e+00> : vector<24xf32>
    %368 = vector.multi_reduction <add>, %367, %cst_106 [1] : vector<24x24xf32> to vector<24xf32>
    %369 = vector.shape_cast %368 : vector<24xf32> to vector<24x1xf32>
    %370 = tpu.reciprocal %369 {approx = true} : vector<24x1xf32> -> vector<24x1xf32>
    %371 = vector.broadcast %370 : vector<24x1xf32> to vector<24x24xf32>
    %372 = arith.mulf %367, %371 : vector<24x24xf32>
    %373 = arith.truncf %372 : vector<24x24xf32> to vector<24x24xbf16>
    %cst_107 = arith.constant dense<0.000000e+00> : vector<24x16xf32>
    %374 = tpu.matmul %373, %357, %cst_107 {dimension_numbers = #tpu.dot_dimension_numbers<[1], [0], [0], [1], [0, 0, 1, 1], [], []>} : vector<24x24xbf16>, vector<24x16xbf16>, vector<24x16xf32> -> vector<24x16xf32>
    %375 = arith.truncf %374 : vector<24x16xf32> to vector<24x16xbf16>
    %376 = vector.extract_strided_slice %210 {offsets = [16, 0], sizes = [16, 64], strides = [1, 1]} : vector<64x64xbf16> to vector<16x64xbf16>
    %cst_108 = arith.constant dense<0.000000e+00> : vector<24x64xf32>
    %377 = tpu.matmul %375, %376, %cst_108 {dimension_numbers = #tpu.dot_dimension_numbers<[1], [0], [0], [1], [0, 0, 1, 1], [], []>} : vector<24x16xbf16>, vector<16x64xbf16>, vector<24x64xf32> -> vector<24x64xf32>
    %378 = arith.addf %351, %377 : vector<24x64xf32>
    %379 = vector.extract_strided_slice %323 {offsets = [0, 32], sizes = [24, 16], strides = [1, 1]} : vector<24x192xf32> to vector<24x16xf32>
    %380 = arith.truncf %379 : vector<24x16xf32> to vector<24x16xbf16>
    %381 = vector.extract_strided_slice %323 {offsets = [0, 96], sizes = [24, 16], strides = [1, 1]} : vector<24x192xf32> to vector<24x16xf32>
    %382 = arith.truncf %381 : vector<24x16xf32> to vector<24x16xbf16>
    %383 = vector.extract_strided_slice %323 {offsets = [0, 160], sizes = [24, 16], strides = [1, 1]} : vector<24x192xf32> to vector<24x16xf32>
    %384 = arith.truncf %383 : vector<24x16xf32> to vector<24x16xbf16>
    %cst_109 = arith.constant dense<0.000000e+00> : vector<24x24xf32>
    %385 = tpu.matmul %380, %382, %cst_109 {dimension_numbers = #tpu.dot_dimension_numbers<[1], [1], [0], [0], [0, 0, 1, 0], [], []>} : vector<24x16xbf16>, vector<24x16xbf16>, vector<24x24xf32> -> vector<24x24xf32>
    %cst_110 = arith.constant 2.500000e-01 : f32
    %386 = vector.broadcast %cst_110 : f32 to vector<24x24xf32>
    %387 = arith.mulf %385, %386 : vector<24x24xf32>
    %388 = vector.broadcast %169 : vector<1x24xf32> to vector<24x24xf32>
    %389 = arith.addf %387, %388 : vector<24x24xf32>
    %cst_111 = arith.constant dense<0xFF800000> : vector<24xf32>
    %390 = vector.multi_reduction <maximumf>, %389, %cst_111 [1] : vector<24x24xf32> to vector<24xf32>
    %391 = vector.shape_cast %390 : vector<24xf32> to vector<24x1xf32>
    %392 = vector.broadcast %391 : vector<24x1xf32> to vector<24x24xf32>
    %393 = arith.subf %389, %392 : vector<24x24xf32>
    %394 = math.exp %393 : vector<24x24xf32>
    %cst_112 = arith.constant dense<0.000000e+00> : vector<24xf32>
    %395 = vector.multi_reduction <add>, %394, %cst_112 [1] : vector<24x24xf32> to vector<24xf32>
    %396 = vector.shape_cast %395 : vector<24xf32> to vector<24x1xf32>
    %397 = tpu.reciprocal %396 {approx = true} : vector<24x1xf32> -> vector<24x1xf32>
    %398 = vector.broadcast %397 : vector<24x1xf32> to vector<24x24xf32>
    %399 = arith.mulf %394, %398 : vector<24x24xf32>
    %400 = arith.truncf %399 : vector<24x24xf32> to vector<24x24xbf16>
    %cst_113 = arith.constant dense<0.000000e+00> : vector<24x16xf32>
    %401 = tpu.matmul %400, %384, %cst_113 {dimension_numbers = #tpu.dot_dimension_numbers<[1], [0], [0], [1], [0, 0, 1, 1], [], []>} : vector<24x24xbf16>, vector<24x16xbf16>, vector<24x16xf32> -> vector<24x16xf32>
    %402 = arith.truncf %401 : vector<24x16xf32> to vector<24x16xbf16>
    %403 = vector.extract_strided_slice %210 {offsets = [32, 0], sizes = [16, 64], strides = [1, 1]} : vector<64x64xbf16> to vector<16x64xbf16>
    %cst_114 = arith.constant dense<0.000000e+00> : vector<24x64xf32>
    %404 = tpu.matmul %402, %403, %cst_114 {dimension_numbers = #tpu.dot_dimension_numbers<[1], [0], [0], [1], [0, 0, 1, 1], [], []>} : vector<24x16xbf16>, vector<16x64xbf16>, vector<24x64xf32> -> vector<24x64xf32>
    %405 = arith.addf %378, %404 : vector<24x64xf32>
    %406 = vector.extract_strided_slice %323 {offsets = [0, 48], sizes = [24, 16], strides = [1, 1]} : vector<24x192xf32> to vector<24x16xf32>
    %407 = arith.truncf %406 : vector<24x16xf32> to vector<24x16xbf16>
    %408 = vector.extract_strided_slice %323 {offsets = [0, 112], sizes = [24, 16], strides = [1, 1]} : vector<24x192xf32> to vector<24x16xf32>
    %409 = arith.truncf %408 : vector<24x16xf32> to vector<24x16xbf16>
    %410 = vector.extract_strided_slice %323 {offsets = [0, 176], sizes = [24, 16], strides = [1, 1]} : vector<24x192xf32> to vector<24x16xf32>
    %411 = arith.truncf %410 : vector<24x16xf32> to vector<24x16xbf16>
    %cst_115 = arith.constant dense<0.000000e+00> : vector<24x24xf32>
    %412 = tpu.matmul %407, %409, %cst_115 {dimension_numbers = #tpu.dot_dimension_numbers<[1], [1], [0], [0], [0, 0, 1, 0], [], []>} : vector<24x16xbf16>, vector<24x16xbf16>, vector<24x24xf32> -> vector<24x24xf32>
    %cst_116 = arith.constant 2.500000e-01 : f32
    %413 = vector.broadcast %cst_116 : f32 to vector<24x24xf32>
    %414 = arith.mulf %412, %413 : vector<24x24xf32>
    %415 = vector.broadcast %169 : vector<1x24xf32> to vector<24x24xf32>
    %416 = arith.addf %414, %415 : vector<24x24xf32>
    %cst_117 = arith.constant dense<0xFF800000> : vector<24xf32>
    %417 = vector.multi_reduction <maximumf>, %416, %cst_117 [1] : vector<24x24xf32> to vector<24xf32>
    %418 = vector.shape_cast %417 : vector<24xf32> to vector<24x1xf32>
    %419 = vector.broadcast %418 : vector<24x1xf32> to vector<24x24xf32>
    %420 = arith.subf %416, %419 : vector<24x24xf32>
    %421 = math.exp %420 : vector<24x24xf32>
    %cst_118 = arith.constant dense<0.000000e+00> : vector<24xf32>
    %422 = vector.multi_reduction <add>, %421, %cst_118 [1] : vector<24x24xf32> to vector<24xf32>
    %423 = vector.shape_cast %422 : vector<24xf32> to vector<24x1xf32>
    %424 = tpu.reciprocal %423 {approx = true} : vector<24x1xf32> -> vector<24x1xf32>
    %425 = vector.broadcast %424 : vector<24x1xf32> to vector<24x24xf32>
    %426 = arith.mulf %421, %425 : vector<24x24xf32>
    %427 = arith.truncf %426 : vector<24x24xf32> to vector<24x24xbf16>
    %cst_119 = arith.constant dense<0.000000e+00> : vector<24x16xf32>
    %428 = tpu.matmul %427, %411, %cst_119 {dimension_numbers = #tpu.dot_dimension_numbers<[1], [0], [0], [1], [0, 0, 1, 1], [], []>} : vector<24x24xbf16>, vector<24x16xbf16>, vector<24x16xf32> -> vector<24x16xf32>
    %429 = arith.truncf %428 : vector<24x16xf32> to vector<24x16xbf16>
    %430 = vector.extract_strided_slice %210 {offsets = [48, 0], sizes = [16, 64], strides = [1, 1]} : vector<64x64xbf16> to vector<16x64xbf16>
    %cst_120 = arith.constant dense<0.000000e+00> : vector<24x64xf32>
    %431 = tpu.matmul %429, %430, %cst_120 {dimension_numbers = #tpu.dot_dimension_numbers<[1], [0], [0], [1], [0, 0, 1, 1], [], []>} : vector<24x16xbf16>, vector<16x64xbf16>, vector<24x64xf32> -> vector<24x64xf32>
    %432 = arith.addf %405, %431 : vector<24x64xf32>
    %433 = vector.broadcast %176 : vector<1x64xf32> to vector<24x64xf32>
    %434 = arith.addf %432, %433 : vector<24x64xf32>
    %435 = tpu.concatenate %322, %434 in 0 : vector<24x64xf32>, vector<24x64xf32> -> vector<48x64xf32>
    %436 = arith.addf %170, %435 : vector<48x64xf32>
    %cst_121 = arith.constant dense<0.000000e+00> : vector<48xf32>
    %437 = vector.multi_reduction <add>, %436, %cst_121 [1] : vector<48x64xf32> to vector<48xf32>
    %438 = vector.shape_cast %437 : vector<48xf32> to vector<48x1xf32>
    %cst_122 = arith.constant 6.400000e+01 : f32
    %439 = vector.broadcast %cst_122 : f32 to vector<48x1xf32>
    %440 = arith.divf %438, %439 : vector<48x1xf32>
    %441 = vector.broadcast %440 : vector<48x1xf32> to vector<48x64xf32>
    %442 = arith.subf %436, %441 : vector<48x64xf32>
    %443 = arith.mulf %442, %442 : vector<48x64xf32>
    %cst_123 = arith.constant dense<0.000000e+00> : vector<48xf32>
    %444 = vector.multi_reduction <add>, %443, %cst_123 [1] : vector<48x64xf32> to vector<48xf32>
    %445 = vector.shape_cast %444 : vector<48xf32> to vector<48x1xf32>
    %cst_124 = arith.constant 6.400000e+01 : f32
    %446 = vector.broadcast %cst_124 : f32 to vector<48x1xf32>
    %447 = arith.divf %445, %446 : vector<48x1xf32>
    %448 = vector.broadcast %440 : vector<48x1xf32> to vector<48x64xf32>
    %449 = arith.subf %436, %448 : vector<48x64xf32>
    %cst_125 = arith.constant 9.99999974E-6 : f32
    %450 = vector.broadcast %cst_125 : f32 to vector<48x1xf32>
    %451 = arith.addf %447, %450 : vector<48x1xf32>
    %452 = math.rsqrt %451 : vector<48x1xf32>
    %453 = vector.broadcast %452 : vector<48x1xf32> to vector<48x64xf32>
    %454 = arith.mulf %449, %453 : vector<48x64xf32>
    %455 = vector.broadcast %177 : vector<1x64xf32> to vector<48x64xf32>
    %456 = arith.mulf %454, %455 : vector<48x64xf32>
    %457 = vector.broadcast %178 : vector<1x64xf32> to vector<48x64xf32>
    %458 = arith.addf %456, %457 : vector<48x64xf32>
    %459 = arith.truncf %458 : vector<48x64xf32> to vector<48x64xbf16>
    %c0_126 = arith.constant 0 : index
    %c0_127 = arith.constant 0 : index
    %c0_128 = arith.constant 0 : index
    %460 = vector.load %arg8[%c0_126, %c0_127, %c0_128] : memref<2x64x128xbf16, #tpu.memory_space<vmem>>, vector<1x64x128xbf16>
    %461 = vector.shape_cast %460 : vector<1x64x128xbf16> to vector<64x128xbf16>
    %cst_129 = arith.constant dense<0.000000e+00> : vector<48x128xf32>
    %462 = tpu.matmul %459, %461, %cst_129 {dimension_numbers = #tpu.dot_dimension_numbers<[1], [0], [0], [1], [0, 0, 1, 1], [], []>} : vector<48x64xbf16>, vector<64x128xbf16>, vector<48x128xf32> -> vector<48x128xf32>
    %463 = vector.broadcast %179 : vector<1x128xf32> to vector<48x128xf32>
    %464 = arith.addf %462, %463 : vector<48x128xf32>
    %cst_130 = arith.constant 5.000000e-01 : f32
    %465 = vector.broadcast %cst_130 : f32 to vector<48x128xf32>
    %466 = arith.mulf %465, %464 : vector<48x128xf32>
    %cst_131 = arith.constant 4.471500e-02 : f32
    %467 = vector.broadcast %cst_131 : f32 to vector<48x128xf32>
    %468 = arith.mulf %467, %464 : vector<48x128xf32>
    %469 = arith.mulf %468, %464 : vector<48x128xf32>
    %470 = arith.mulf %469, %464 : vector<48x128xf32>
    %471 = arith.addf %464, %470 : vector<48x128xf32>
    %cst_132 = arith.constant 0.797884583 : f32
    %472 = vector.broadcast %cst_132 : f32 to vector<48x128xf32>
    %473 = arith.mulf %472, %471 : vector<48x128xf32>
    %474 = math.tanh %473 : vector<48x128xf32>
    %cst_133 = arith.constant 1.000000e+00 : f32
    %475 = vector.broadcast %cst_133 : f32 to vector<48x128xf32>
    %476 = arith.addf %475, %474 : vector<48x128xf32>
    %477 = arith.mulf %466, %476 : vector<48x128xf32>
    %478 = arith.truncf %477 : vector<48x128xf32> to vector<48x128xbf16>
    %c0_134 = arith.constant 0 : index
    %c0_135 = arith.constant 0 : index
    %c0_136 = arith.constant 0 : index
    %479 = vector.load %arg9[%c0_134, %c0_135, %c0_136] : memref<2x128x64xbf16, #tpu.memory_space<vmem>>, vector<1x128x64xbf16>
    %480 = vector.shape_cast %479 : vector<1x128x64xbf16> to vector<128x64xbf16>
    %cst_137 = arith.constant dense<0.000000e+00> : vector<48x64xf32>
    %481 = tpu.matmul %478, %480, %cst_137 {dimension_numbers = #tpu.dot_dimension_numbers<[1], [0], [0], [1], [0, 0, 1, 1], [], []>} : vector<48x128xbf16>, vector<128x64xbf16>, vector<48x64xf32> -> vector<48x64xf32>
    %482 = arith.addf %436, %481 : vector<48x64xf32>
    %483 = vector.broadcast %180 : vector<1x64xf32> to vector<48x64xf32>
    %484 = arith.addf %482, %483 : vector<48x64xf32>
    %c1_138 = arith.constant 1 : index
    %c0_139 = arith.constant 0 : index
    %c0_140 = arith.constant 0 : index
    %485 = vector.load %arg5[%c1_138, %c0_139, %c0_140] : memref<2x8x192xf32, #tpu.memory_space<vmem>>, vector<1x8x192xf32>
    %486 = vector.shape_cast %485 : vector<1x8x192xf32> to vector<8x192xf32>
    %487 = vector.extract_strided_slice %486 {offsets = [0, 0], sizes = [1, 64], strides = [1, 1]} : vector<8x192xf32> to vector<1x64xf32>
    %488 = vector.extract_strided_slice %486 {offsets = [1, 0], sizes = [1, 64], strides = [1, 1]} : vector<8x192xf32> to vector<1x64xf32>
    %489 = vector.extract_strided_slice %486 {offsets = [2, 0], sizes = [1, 192], strides = [1, 1]} : vector<8x192xf32> to vector<1x192xf32>
    %490 = vector.extract_strided_slice %486 {offsets = [3, 0], sizes = [1, 64], strides = [1, 1]} : vector<8x192xf32> to vector<1x64xf32>
    %491 = vector.extract_strided_slice %486 {offsets = [4, 0], sizes = [1, 64], strides = [1, 1]} : vector<8x192xf32> to vector<1x64xf32>
    %492 = vector.extract_strided_slice %486 {offsets = [5, 0], sizes = [1, 64], strides = [1, 1]} : vector<8x192xf32> to vector<1x64xf32>
    %493 = vector.extract_strided_slice %486 {offsets = [6, 0], sizes = [1, 128], strides = [1, 1]} : vector<8x192xf32> to vector<1x128xf32>
    %494 = vector.extract_strided_slice %486 {offsets = [7, 0], sizes = [1, 64], strides = [1, 1]} : vector<8x192xf32> to vector<1x64xf32>
    %cst_141 = arith.constant dense<0.000000e+00> : vector<48xf32>
    %495 = vector.multi_reduction <add>, %484, %cst_141 [1] : vector<48x64xf32> to vector<48xf32>
    %496 = vector.shape_cast %495 : vector<48xf32> to vector<48x1xf32>
    %cst_142 = arith.constant 6.400000e+01 : f32
    %497 = vector.broadcast %cst_142 : f32 to vector<48x1xf32>
    %498 = arith.divf %496, %497 : vector<48x1xf32>
    %499 = vector.broadcast %498 : vector<48x1xf32> to vector<48x64xf32>
    %500 = arith.subf %484, %499 : vector<48x64xf32>
    %501 = arith.mulf %500, %500 : vector<48x64xf32>
    %cst_143 = arith.constant dense<0.000000e+00> : vector<48xf32>
    %502 = vector.multi_reduction <add>, %501, %cst_143 [1] : vector<48x64xf32> to vector<48xf32>
    %503 = vector.shape_cast %502 : vector<48xf32> to vector<48x1xf32>
    %cst_144 = arith.constant 6.400000e+01 : f32
    %504 = vector.broadcast %cst_144 : f32 to vector<48x1xf32>
    %505 = arith.divf %503, %504 : vector<48x1xf32>
    %506 = vector.broadcast %498 : vector<48x1xf32> to vector<48x64xf32>
    %507 = arith.subf %484, %506 : vector<48x64xf32>
    %cst_145 = arith.constant 9.99999974E-6 : f32
    %508 = vector.broadcast %cst_145 : f32 to vector<48x1xf32>
    %509 = arith.addf %505, %508 : vector<48x1xf32>
    %510 = math.rsqrt %509 : vector<48x1xf32>
    %511 = vector.broadcast %510 : vector<48x1xf32> to vector<48x64xf32>
    %512 = arith.mulf %507, %511 : vector<48x64xf32>
    %513 = vector.broadcast %487 : vector<1x64xf32> to vector<48x64xf32>
    %514 = arith.mulf %512, %513 : vector<48x64xf32>
    %515 = vector.broadcast %488 : vector<1x64xf32> to vector<48x64xf32>
    %516 = arith.addf %514, %515 : vector<48x64xf32>
    %517 = arith.truncf %516 : vector<48x64xf32> to vector<48x64xbf16>
    %c1_146 = arith.constant 1 : index
    %c0_147 = arith.constant 0 : index
    %c0_148 = arith.constant 0 : index
    %518 = vector.load %arg6[%c1_146, %c0_147, %c0_148] : memref<2x64x192xbf16, #tpu.memory_space<vmem>>, vector<1x64x192xbf16>
    %519 = vector.shape_cast %518 : vector<1x64x192xbf16> to vector<64x192xbf16>
    %cst_149 = arith.constant dense<0.000000e+00> : vector<48x192xf32>
    %520 = tpu.matmul %517, %519, %cst_149 {dimension_numbers = #tpu.dot_dimension_numbers<[1], [0], [0], [1], [0, 0, 1, 1], [], []>} : vector<48x64xbf16>, vector<64x192xbf16>, vector<48x192xf32> -> vector<48x192xf32>
    %521 = vector.broadcast %489 : vector<1x192xf32> to vector<48x192xf32>
    %522 = arith.addf %520, %521 : vector<48x192xf32>
    %c1_150 = arith.constant 1 : index
    %c0_151 = arith.constant 0 : index
    %c0_152 = arith.constant 0 : index
    %523 = vector.load %arg7[%c1_150, %c0_151, %c0_152] : memref<2x64x64xbf16, #tpu.memory_space<vmem>>, vector<1x64x64xbf16>
    %524 = vector.shape_cast %523 : vector<1x64x64xbf16> to vector<64x64xbf16>
    %525 = vector.extract_strided_slice %522 {offsets = [0, 0], sizes = [24, 192], strides = [1, 1]} : vector<48x192xf32> to vector<24x192xf32>
    %cst_153 = arith.constant 0.000000e+00 : f32
    %526 = vector.broadcast %cst_153 : f32 to vector<24x64xf32>
    %527 = vector.extract_strided_slice %525 {offsets = [0, 0], sizes = [24, 16], strides = [1, 1]} : vector<24x192xf32> to vector<24x16xf32>
    %528 = arith.truncf %527 : vector<24x16xf32> to vector<24x16xbf16>
    %529 = vector.extract_strided_slice %525 {offsets = [0, 64], sizes = [24, 16], strides = [1, 1]} : vector<24x192xf32> to vector<24x16xf32>
    %530 = arith.truncf %529 : vector<24x16xf32> to vector<24x16xbf16>
    %531 = vector.extract_strided_slice %525 {offsets = [0, 128], sizes = [24, 16], strides = [1, 1]} : vector<24x192xf32> to vector<24x16xf32>
    %532 = arith.truncf %531 : vector<24x16xf32> to vector<24x16xbf16>
    %cst_154 = arith.constant dense<0.000000e+00> : vector<24x24xf32>
    %533 = tpu.matmul %528, %530, %cst_154 {dimension_numbers = #tpu.dot_dimension_numbers<[1], [1], [0], [0], [0, 0, 1, 0], [], []>} : vector<24x16xbf16>, vector<24x16xbf16>, vector<24x24xf32> -> vector<24x24xf32>
    %cst_155 = arith.constant 2.500000e-01 : f32
    %534 = vector.broadcast %cst_155 : f32 to vector<24x24xf32>
    %535 = arith.mulf %533, %534 : vector<24x24xf32>
    %536 = vector.broadcast %90 : vector<1x24xf32> to vector<24x24xf32>
    %537 = arith.addf %535, %536 : vector<24x24xf32>
    %cst_156 = arith.constant dense<0xFF800000> : vector<24xf32>
    %538 = vector.multi_reduction <maximumf>, %537, %cst_156 [1] : vector<24x24xf32> to vector<24xf32>
    %539 = vector.shape_cast %538 : vector<24xf32> to vector<24x1xf32>
    %540 = vector.broadcast %539 : vector<24x1xf32> to vector<24x24xf32>
    %541 = arith.subf %537, %540 : vector<24x24xf32>
    %542 = math.exp %541 : vector<24x24xf32>
    %cst_157 = arith.constant dense<0.000000e+00> : vector<24xf32>
    %543 = vector.multi_reduction <add>, %542, %cst_157 [1] : vector<24x24xf32> to vector<24xf32>
    %544 = vector.shape_cast %543 : vector<24xf32> to vector<24x1xf32>
    %545 = tpu.reciprocal %544 {approx = true} : vector<24x1xf32> -> vector<24x1xf32>
    %546 = vector.broadcast %545 : vector<24x1xf32> to vector<24x24xf32>
    %547 = arith.mulf %542, %546 : vector<24x24xf32>
    %548 = arith.truncf %547 : vector<24x24xf32> to vector<24x24xbf16>
    %cst_158 = arith.constant dense<0.000000e+00> : vector<24x16xf32>
    %549 = tpu.matmul %548, %532, %cst_158 {dimension_numbers = #tpu.dot_dimension_numbers<[1], [0], [0], [1], [0, 0, 1, 1], [], []>} : vector<24x24xbf16>, vector<24x16xbf16>, vector<24x16xf32> -> vector<24x16xf32>
    %550 = arith.truncf %549 : vector<24x16xf32> to vector<24x16xbf16>
    %551 = vector.extract_strided_slice %524 {offsets = [0, 0], sizes = [16, 64], strides = [1, 1]} : vector<64x64xbf16> to vector<16x64xbf16>
    %cst_159 = arith.constant dense<0.000000e+00> : vector<24x64xf32>
    %552 = tpu.matmul %550, %551, %cst_159 {dimension_numbers = #tpu.dot_dimension_numbers<[1], [0], [0], [1], [0, 0, 1, 1], [], []>} : vector<24x16xbf16>, vector<16x64xbf16>, vector<24x64xf32> -> vector<24x64xf32>
    %553 = arith.addf %526, %552 : vector<24x64xf32>
    %554 = vector.extract_strided_slice %525 {offsets = [0, 16], sizes = [24, 16], strides = [1, 1]} : vector<24x192xf32> to vector<24x16xf32>
    %555 = arith.truncf %554 : vector<24x16xf32> to vector<24x16xbf16>
    %556 = vector.extract_strided_slice %525 {offsets = [0, 80], sizes = [24, 16], strides = [1, 1]} : vector<24x192xf32> to vector<24x16xf32>
    %557 = arith.truncf %556 : vector<24x16xf32> to vector<24x16xbf16>
    %558 = vector.extract_strided_slice %525 {offsets = [0, 144], sizes = [24, 16], strides = [1, 1]} : vector<24x192xf32> to vector<24x16xf32>
    %559 = arith.truncf %558 : vector<24x16xf32> to vector<24x16xbf16>
    %cst_160 = arith.constant dense<0.000000e+00> : vector<24x24xf32>
    %560 = tpu.matmul %555, %557, %cst_160 {dimension_numbers = #tpu.dot_dimension_numbers<[1], [1], [0], [0], [0, 0, 1, 0], [], []>} : vector<24x16xbf16>, vector<24x16xbf16>, vector<24x24xf32> -> vector<24x24xf32>
    %cst_161 = arith.constant 2.500000e-01 : f32
    %561 = vector.broadcast %cst_161 : f32 to vector<24x24xf32>
    %562 = arith.mulf %560, %561 : vector<24x24xf32>
    %563 = vector.broadcast %90 : vector<1x24xf32> to vector<24x24xf32>
    %564 = arith.addf %562, %563 : vector<24x24xf32>
    %cst_162 = arith.constant dense<0xFF800000> : vector<24xf32>
    %565 = vector.multi_reduction <maximumf>, %564, %cst_162 [1] : vector<24x24xf32> to vector<24xf32>
    %566 = vector.shape_cast %565 : vector<24xf32> to vector<24x1xf32>
    %567 = vector.broadcast %566 : vector<24x1xf32> to vector<24x24xf32>
    %568 = arith.subf %564, %567 : vector<24x24xf32>
    %569 = math.exp %568 : vector<24x24xf32>
    %cst_163 = arith.constant dense<0.000000e+00> : vector<24xf32>
    %570 = vector.multi_reduction <add>, %569, %cst_163 [1] : vector<24x24xf32> to vector<24xf32>
    %571 = vector.shape_cast %570 : vector<24xf32> to vector<24x1xf32>
    %572 = tpu.reciprocal %571 {approx = true} : vector<24x1xf32> -> vector<24x1xf32>
    %573 = vector.broadcast %572 : vector<24x1xf32> to vector<24x24xf32>
    %574 = arith.mulf %569, %573 : vector<24x24xf32>
    %575 = arith.truncf %574 : vector<24x24xf32> to vector<24x24xbf16>
    %cst_164 = arith.constant dense<0.000000e+00> : vector<24x16xf32>
    %576 = tpu.matmul %575, %559, %cst_164 {dimension_numbers = #tpu.dot_dimension_numbers<[1], [0], [0], [1], [0, 0, 1, 1], [], []>} : vector<24x24xbf16>, vector<24x16xbf16>, vector<24x16xf32> -> vector<24x16xf32>
    %577 = arith.truncf %576 : vector<24x16xf32> to vector<24x16xbf16>
    %578 = vector.extract_strided_slice %524 {offsets = [16, 0], sizes = [16, 64], strides = [1, 1]} : vector<64x64xbf16> to vector<16x64xbf16>
    %cst_165 = arith.constant dense<0.000000e+00> : vector<24x64xf32>
    %579 = tpu.matmul %577, %578, %cst_165 {dimension_numbers = #tpu.dot_dimension_numbers<[1], [0], [0], [1], [0, 0, 1, 1], [], []>} : vector<24x16xbf16>, vector<16x64xbf16>, vector<24x64xf32> -> vector<24x64xf32>
    %580 = arith.addf %553, %579 : vector<24x64xf32>
    %581 = vector.extract_strided_slice %525 {offsets = [0, 32], sizes = [24, 16], strides = [1, 1]} : vector<24x192xf32> to vector<24x16xf32>
    %582 = arith.truncf %581 : vector<24x16xf32> to vector<24x16xbf16>
    %583 = vector.extract_strided_slice %525 {offsets = [0, 96], sizes = [24, 16], strides = [1, 1]} : vector<24x192xf32> to vector<24x16xf32>
    %584 = arith.truncf %583 : vector<24x16xf32> to vector<24x16xbf16>
    %585 = vector.extract_strided_slice %525 {offsets = [0, 160], sizes = [24, 16], strides = [1, 1]} : vector<24x192xf32> to vector<24x16xf32>
    %586 = arith.truncf %585 : vector<24x16xf32> to vector<24x16xbf16>
    %cst_166 = arith.constant dense<0.000000e+00> : vector<24x24xf32>
    %587 = tpu.matmul %582, %584, %cst_166 {dimension_numbers = #tpu.dot_dimension_numbers<[1], [1], [0], [0], [0, 0, 1, 0], [], []>} : vector<24x16xbf16>, vector<24x16xbf16>, vector<24x24xf32> -> vector<24x24xf32>
    %cst_167 = arith.constant 2.500000e-01 : f32
    %588 = vector.broadcast %cst_167 : f32 to vector<24x24xf32>
    %589 = arith.mulf %587, %588 : vector<24x24xf32>
    %590 = vector.broadcast %90 : vector<1x24xf32> to vector<24x24xf32>
    %591 = arith.addf %589, %590 : vector<24x24xf32>
    %cst_168 = arith.constant dense<0xFF800000> : vector<24xf32>
    %592 = vector.multi_reduction <maximumf>, %591, %cst_168 [1] : vector<24x24xf32> to vector<24xf32>
    %593 = vector.shape_cast %592 : vector<24xf32> to vector<24x1xf32>
    %594 = vector.broadcast %593 : vector<24x1xf32> to vector<24x24xf32>
    %595 = arith.subf %591, %594 : vector<24x24xf32>
    %596 = math.exp %595 : vector<24x24xf32>
    %cst_169 = arith.constant dense<0.000000e+00> : vector<24xf32>
    %597 = vector.multi_reduction <add>, %596, %cst_169 [1] : vector<24x24xf32> to vector<24xf32>
    %598 = vector.shape_cast %597 : vector<24xf32> to vector<24x1xf32>
    %599 = tpu.reciprocal %598 {approx = true} : vector<24x1xf32> -> vector<24x1xf32>
    %600 = vector.broadcast %599 : vector<24x1xf32> to vector<24x24xf32>
    %601 = arith.mulf %596, %600 : vector<24x24xf32>
    %602 = arith.truncf %601 : vector<24x24xf32> to vector<24x24xbf16>
    %cst_170 = arith.constant dense<0.000000e+00> : vector<24x16xf32>
    %603 = tpu.matmul %602, %586, %cst_170 {dimension_numbers = #tpu.dot_dimension_numbers<[1], [0], [0], [1], [0, 0, 1, 1], [], []>} : vector<24x24xbf16>, vector<24x16xbf16>, vector<24x16xf32> -> vector<24x16xf32>
    %604 = arith.truncf %603 : vector<24x16xf32> to vector<24x16xbf16>
    %605 = vector.extract_strided_slice %524 {offsets = [32, 0], sizes = [16, 64], strides = [1, 1]} : vector<64x64xbf16> to vector<16x64xbf16>
    %cst_171 = arith.constant dense<0.000000e+00> : vector<24x64xf32>
    %606 = tpu.matmul %604, %605, %cst_171 {dimension_numbers = #tpu.dot_dimension_numbers<[1], [0], [0], [1], [0, 0, 1, 1], [], []>} : vector<24x16xbf16>, vector<16x64xbf16>, vector<24x64xf32> -> vector<24x64xf32>
    %607 = arith.addf %580, %606 : vector<24x64xf32>
    %608 = vector.extract_strided_slice %525 {offsets = [0, 48], sizes = [24, 16], strides = [1, 1]} : vector<24x192xf32> to vector<24x16xf32>
    %609 = arith.truncf %608 : vector<24x16xf32> to vector<24x16xbf16>
    %610 = vector.extract_strided_slice %525 {offsets = [0, 112], sizes = [24, 16], strides = [1, 1]} : vector<24x192xf32> to vector<24x16xf32>
    %611 = arith.truncf %610 : vector<24x16xf32> to vector<24x16xbf16>
    %612 = vector.extract_strided_slice %525 {offsets = [0, 176], sizes = [24, 16], strides = [1, 1]} : vector<24x192xf32> to vector<24x16xf32>
    %613 = arith.truncf %612 : vector<24x16xf32> to vector<24x16xbf16>
    %cst_172 = arith.constant dense<0.000000e+00> : vector<24x24xf32>
    %614 = tpu.matmul %609, %611, %cst_172 {dimension_numbers = #tpu.dot_dimension_numbers<[1], [1], [0], [0], [0, 0, 1, 0], [], []>} : vector<24x16xbf16>, vector<24x16xbf16>, vector<24x24xf32> -> vector<24x24xf32>
    %cst_173 = arith.constant 2.500000e-01 : f32
    %615 = vector.broadcast %cst_173 : f32 to vector<24x24xf32>
    %616 = arith.mulf %614, %615 : vector<24x24xf32>
    %617 = vector.broadcast %90 : vector<1x24xf32> to vector<24x24xf32>
    %618 = arith.addf %616, %617 : vector<24x24xf32>
    %cst_174 = arith.constant dense<0xFF800000> : vector<24xf32>
    %619 = vector.multi_reduction <maximumf>, %618, %cst_174 [1] : vector<24x24xf32> to vector<24xf32>
    %620 = vector.shape_cast %619 : vector<24xf32> to vector<24x1xf32>
    %621 = vector.broadcast %620 : vector<24x1xf32> to vector<24x24xf32>
    %622 = arith.subf %618, %621 : vector<24x24xf32>
    %623 = math.exp %622 : vector<24x24xf32>
    %cst_175 = arith.constant dense<0.000000e+00> : vector<24xf32>
    %624 = vector.multi_reduction <add>, %623, %cst_175 [1] : vector<24x24xf32> to vector<24xf32>
    %625 = vector.shape_cast %624 : vector<24xf32> to vector<24x1xf32>
    %626 = tpu.reciprocal %625 {approx = true} : vector<24x1xf32> -> vector<24x1xf32>
    %627 = vector.broadcast %626 : vector<24x1xf32> to vector<24x24xf32>
    %628 = arith.mulf %623, %627 : vector<24x24xf32>
    %629 = arith.truncf %628 : vector<24x24xf32> to vector<24x24xbf16>
    %cst_176 = arith.constant dense<0.000000e+00> : vector<24x16xf32>
    %630 = tpu.matmul %629, %613, %cst_176 {dimension_numbers = #tpu.dot_dimension_numbers<[1], [0], [0], [1], [0, 0, 1, 1], [], []>} : vector<24x24xbf16>, vector<24x16xbf16>, vector<24x16xf32> -> vector<24x16xf32>
    %631 = arith.truncf %630 : vector<24x16xf32> to vector<24x16xbf16>
    %632 = vector.extract_strided_slice %524 {offsets = [48, 0], sizes = [16, 64], strides = [1, 1]} : vector<64x64xbf16> to vector<16x64xbf16>
    %cst_177 = arith.constant dense<0.000000e+00> : vector<24x64xf32>
    %633 = tpu.matmul %631, %632, %cst_177 {dimension_numbers = #tpu.dot_dimension_numbers<[1], [0], [0], [1], [0, 0, 1, 1], [], []>} : vector<24x16xbf16>, vector<16x64xbf16>, vector<24x64xf32> -> vector<24x64xf32>
    %634 = arith.addf %607, %633 : vector<24x64xf32>
    %635 = vector.broadcast %490 : vector<1x64xf32> to vector<24x64xf32>
    %636 = arith.addf %634, %635 : vector<24x64xf32>
    %637 = vector.extract_strided_slice %522 {offsets = [24, 0], sizes = [24, 192], strides = [1, 1]} : vector<48x192xf32> to vector<24x192xf32>
    %cst_178 = arith.constant 0.000000e+00 : f32
    %638 = vector.broadcast %cst_178 : f32 to vector<24x64xf32>
    %639 = vector.extract_strided_slice %637 {offsets = [0, 0], sizes = [24, 16], strides = [1, 1]} : vector<24x192xf32> to vector<24x16xf32>
    %640 = arith.truncf %639 : vector<24x16xf32> to vector<24x16xbf16>
    %641 = vector.extract_strided_slice %637 {offsets = [0, 64], sizes = [24, 16], strides = [1, 1]} : vector<24x192xf32> to vector<24x16xf32>
    %642 = arith.truncf %641 : vector<24x16xf32> to vector<24x16xbf16>
    %643 = vector.extract_strided_slice %637 {offsets = [0, 128], sizes = [24, 16], strides = [1, 1]} : vector<24x192xf32> to vector<24x16xf32>
    %644 = arith.truncf %643 : vector<24x16xf32> to vector<24x16xbf16>
    %cst_179 = arith.constant dense<0.000000e+00> : vector<24x24xf32>
    %645 = tpu.matmul %640, %642, %cst_179 {dimension_numbers = #tpu.dot_dimension_numbers<[1], [1], [0], [0], [0, 0, 1, 0], [], []>} : vector<24x16xbf16>, vector<24x16xbf16>, vector<24x24xf32> -> vector<24x24xf32>
    %cst_180 = arith.constant 2.500000e-01 : f32
    %646 = vector.broadcast %cst_180 : f32 to vector<24x24xf32>
    %647 = arith.mulf %645, %646 : vector<24x24xf32>
    %648 = vector.broadcast %169 : vector<1x24xf32> to vector<24x24xf32>
    %649 = arith.addf %647, %648 : vector<24x24xf32>
    %cst_181 = arith.constant dense<0xFF800000> : vector<24xf32>
    %650 = vector.multi_reduction <maximumf>, %649, %cst_181 [1] : vector<24x24xf32> to vector<24xf32>
    %651 = vector.shape_cast %650 : vector<24xf32> to vector<24x1xf32>
    %652 = vector.broadcast %651 : vector<24x1xf32> to vector<24x24xf32>
    %653 = arith.subf %649, %652 : vector<24x24xf32>
    %654 = math.exp %653 : vector<24x24xf32>
    %cst_182 = arith.constant dense<0.000000e+00> : vector<24xf32>
    %655 = vector.multi_reduction <add>, %654, %cst_182 [1] : vector<24x24xf32> to vector<24xf32>
    %656 = vector.shape_cast %655 : vector<24xf32> to vector<24x1xf32>
    %657 = tpu.reciprocal %656 {approx = true} : vector<24x1xf32> -> vector<24x1xf32>
    %658 = vector.broadcast %657 : vector<24x1xf32> to vector<24x24xf32>
    %659 = arith.mulf %654, %658 : vector<24x24xf32>
    %660 = arith.truncf %659 : vector<24x24xf32> to vector<24x24xbf16>
    %cst_183 = arith.constant dense<0.000000e+00> : vector<24x16xf32>
    %661 = tpu.matmul %660, %644, %cst_183 {dimension_numbers = #tpu.dot_dimension_numbers<[1], [0], [0], [1], [0, 0, 1, 1], [], []>} : vector<24x24xbf16>, vector<24x16xbf16>, vector<24x16xf32> -> vector<24x16xf32>
    %662 = arith.truncf %661 : vector<24x16xf32> to vector<24x16xbf16>
    %663 = vector.extract_strided_slice %524 {offsets = [0, 0], sizes = [16, 64], strides = [1, 1]} : vector<64x64xbf16> to vector<16x64xbf16>
    %cst_184 = arith.constant dense<0.000000e+00> : vector<24x64xf32>
    %664 = tpu.matmul %662, %663, %cst_184 {dimension_numbers = #tpu.dot_dimension_numbers<[1], [0], [0], [1], [0, 0, 1, 1], [], []>} : vector<24x16xbf16>, vector<16x64xbf16>, vector<24x64xf32> -> vector<24x64xf32>
    %665 = arith.addf %638, %664 : vector<24x64xf32>
    %666 = vector.extract_strided_slice %637 {offsets = [0, 16], sizes = [24, 16], strides = [1, 1]} : vector<24x192xf32> to vector<24x16xf32>
    %667 = arith.truncf %666 : vector<24x16xf32> to vector<24x16xbf16>
    %668 = vector.extract_strided_slice %637 {offsets = [0, 80], sizes = [24, 16], strides = [1, 1]} : vector<24x192xf32> to vector<24x16xf32>
    %669 = arith.truncf %668 : vector<24x16xf32> to vector<24x16xbf16>
    %670 = vector.extract_strided_slice %637 {offsets = [0, 144], sizes = [24, 16], strides = [1, 1]} : vector<24x192xf32> to vector<24x16xf32>
    %671 = arith.truncf %670 : vector<24x16xf32> to vector<24x16xbf16>
    %cst_185 = arith.constant dense<0.000000e+00> : vector<24x24xf32>
    %672 = tpu.matmul %667, %669, %cst_185 {dimension_numbers = #tpu.dot_dimension_numbers<[1], [1], [0], [0], [0, 0, 1, 0], [], []>} : vector<24x16xbf16>, vector<24x16xbf16>, vector<24x24xf32> -> vector<24x24xf32>
    %cst_186 = arith.constant 2.500000e-01 : f32
    %673 = vector.broadcast %cst_186 : f32 to vector<24x24xf32>
    %674 = arith.mulf %672, %673 : vector<24x24xf32>
    %675 = vector.broadcast %169 : vector<1x24xf32> to vector<24x24xf32>
    %676 = arith.addf %674, %675 : vector<24x24xf32>
    %cst_187 = arith.constant dense<0xFF800000> : vector<24xf32>
    %677 = vector.multi_reduction <maximumf>, %676, %cst_187 [1] : vector<24x24xf32> to vector<24xf32>
    %678 = vector.shape_cast %677 : vector<24xf32> to vector<24x1xf32>
    %679 = vector.broadcast %678 : vector<24x1xf32> to vector<24x24xf32>
    %680 = arith.subf %676, %679 : vector<24x24xf32>
    %681 = math.exp %680 : vector<24x24xf32>
    %cst_188 = arith.constant dense<0.000000e+00> : vector<24xf32>
    %682 = vector.multi_reduction <add>, %681, %cst_188 [1] : vector<24x24xf32> to vector<24xf32>
    %683 = vector.shape_cast %682 : vector<24xf32> to vector<24x1xf32>
    %684 = tpu.reciprocal %683 {approx = true} : vector<24x1xf32> -> vector<24x1xf32>
    %685 = vector.broadcast %684 : vector<24x1xf32> to vector<24x24xf32>
    %686 = arith.mulf %681, %685 : vector<24x24xf32>
    %687 = arith.truncf %686 : vector<24x24xf32> to vector<24x24xbf16>
    %cst_189 = arith.constant dense<0.000000e+00> : vector<24x16xf32>
    %688 = tpu.matmul %687, %671, %cst_189 {dimension_numbers = #tpu.dot_dimension_numbers<[1], [0], [0], [1], [0, 0, 1, 1], [], []>} : vector<24x24xbf16>, vector<24x16xbf16>, vector<24x16xf32> -> vector<24x16xf32>
    %689 = arith.truncf %688 : vector<24x16xf32> to vector<24x16xbf16>
    %690 = vector.extract_strided_slice %524 {offsets = [16, 0], sizes = [16, 64], strides = [1, 1]} : vector<64x64xbf16> to vector<16x64xbf16>
    %cst_190 = arith.constant dense<0.000000e+00> : vector<24x64xf32>
    %691 = tpu.matmul %689, %690, %cst_190 {dimension_numbers = #tpu.dot_dimension_numbers<[1], [0], [0], [1], [0, 0, 1, 1], [], []>} : vector<24x16xbf16>, vector<16x64xbf16>, vector<24x64xf32> -> vector<24x64xf32>
    %692 = arith.addf %665, %691 : vector<24x64xf32>
    %693 = vector.extract_strided_slice %637 {offsets = [0, 32], sizes = [24, 16], strides = [1, 1]} : vector<24x192xf32> to vector<24x16xf32>
    %694 = arith.truncf %693 : vector<24x16xf32> to vector<24x16xbf16>
    %695 = vector.extract_strided_slice %637 {offsets = [0, 96], sizes = [24, 16], strides = [1, 1]} : vector<24x192xf32> to vector<24x16xf32>
    %696 = arith.truncf %695 : vector<24x16xf32> to vector<24x16xbf16>
    %697 = vector.extract_strided_slice %637 {offsets = [0, 160], sizes = [24, 16], strides = [1, 1]} : vector<24x192xf32> to vector<24x16xf32>
    %698 = arith.truncf %697 : vector<24x16xf32> to vector<24x16xbf16>
    %cst_191 = arith.constant dense<0.000000e+00> : vector<24x24xf32>
    %699 = tpu.matmul %694, %696, %cst_191 {dimension_numbers = #tpu.dot_dimension_numbers<[1], [1], [0], [0], [0, 0, 1, 0], [], []>} : vector<24x16xbf16>, vector<24x16xbf16>, vector<24x24xf32> -> vector<24x24xf32>
    %cst_192 = arith.constant 2.500000e-01 : f32
    %700 = vector.broadcast %cst_192 : f32 to vector<24x24xf32>
    %701 = arith.mulf %699, %700 : vector<24x24xf32>
    %702 = vector.broadcast %169 : vector<1x24xf32> to vector<24x24xf32>
    %703 = arith.addf %701, %702 : vector<24x24xf32>
    %cst_193 = arith.constant dense<0xFF800000> : vector<24xf32>
    %704 = vector.multi_reduction <maximumf>, %703, %cst_193 [1] : vector<24x24xf32> to vector<24xf32>
    %705 = vector.shape_cast %704 : vector<24xf32> to vector<24x1xf32>
    %706 = vector.broadcast %705 : vector<24x1xf32> to vector<24x24xf32>
    %707 = arith.subf %703, %706 : vector<24x24xf32>
    %708 = math.exp %707 : vector<24x24xf32>
    %cst_194 = arith.constant dense<0.000000e+00> : vector<24xf32>
    %709 = vector.multi_reduction <add>, %708, %cst_194 [1] : vector<24x24xf32> to vector<24xf32>
    %710 = vector.shape_cast %709 : vector<24xf32> to vector<24x1xf32>
    %711 = tpu.reciprocal %710 {approx = true} : vector<24x1xf32> -> vector<24x1xf32>
    %712 = vector.broadcast %711 : vector<24x1xf32> to vector<24x24xf32>
    %713 = arith.mulf %708, %712 : vector<24x24xf32>
    %714 = arith.truncf %713 : vector<24x24xf32> to vector<24x24xbf16>
    %cst_195 = arith.constant dense<0.000000e+00> : vector<24x16xf32>
    %715 = tpu.matmul %714, %698, %cst_195 {dimension_numbers = #tpu.dot_dimension_numbers<[1], [0], [0], [1], [0, 0, 1, 1], [], []>} : vector<24x24xbf16>, vector<24x16xbf16>, vector<24x16xf32> -> vector<24x16xf32>
    %716 = arith.truncf %715 : vector<24x16xf32> to vector<24x16xbf16>
    %717 = vector.extract_strided_slice %524 {offsets = [32, 0], sizes = [16, 64], strides = [1, 1]} : vector<64x64xbf16> to vector<16x64xbf16>
    %cst_196 = arith.constant dense<0.000000e+00> : vector<24x64xf32>
    %718 = tpu.matmul %716, %717, %cst_196 {dimension_numbers = #tpu.dot_dimension_numbers<[1], [0], [0], [1], [0, 0, 1, 1], [], []>} : vector<24x16xbf16>, vector<16x64xbf16>, vector<24x64xf32> -> vector<24x64xf32>
    %719 = arith.addf %692, %718 : vector<24x64xf32>
    %720 = vector.extract_strided_slice %637 {offsets = [0, 48], sizes = [24, 16], strides = [1, 1]} : vector<24x192xf32> to vector<24x16xf32>
    %721 = arith.truncf %720 : vector<24x16xf32> to vector<24x16xbf16>
    %722 = vector.extract_strided_slice %637 {offsets = [0, 112], sizes = [24, 16], strides = [1, 1]} : vector<24x192xf32> to vector<24x16xf32>
    %723 = arith.truncf %722 : vector<24x16xf32> to vector<24x16xbf16>
    %724 = vector.extract_strided_slice %637 {offsets = [0, 176], sizes = [24, 16], strides = [1, 1]} : vector<24x192xf32> to vector<24x16xf32>
    %725 = arith.truncf %724 : vector<24x16xf32> to vector<24x16xbf16>
    %cst_197 = arith.constant dense<0.000000e+00> : vector<24x24xf32>
    %726 = tpu.matmul %721, %723, %cst_197 {dimension_numbers = #tpu.dot_dimension_numbers<[1], [1], [0], [0], [0, 0, 1, 0], [], []>} : vector<24x16xbf16>, vector<24x16xbf16>, vector<24x24xf32> -> vector<24x24xf32>
    %cst_198 = arith.constant 2.500000e-01 : f32
    %727 = vector.broadcast %cst_198 : f32 to vector<24x24xf32>
    %728 = arith.mulf %726, %727 : vector<24x24xf32>
    %729 = vector.broadcast %169 : vector<1x24xf32> to vector<24x24xf32>
    %730 = arith.addf %728, %729 : vector<24x24xf32>
    %cst_199 = arith.constant dense<0xFF800000> : vector<24xf32>
    %731 = vector.multi_reduction <maximumf>, %730, %cst_199 [1] : vector<24x24xf32> to vector<24xf32>
    %732 = vector.shape_cast %731 : vector<24xf32> to vector<24x1xf32>
    %733 = vector.broadcast %732 : vector<24x1xf32> to vector<24x24xf32>
    %734 = arith.subf %730, %733 : vector<24x24xf32>
    %735 = math.exp %734 : vector<24x24xf32>
    %cst_200 = arith.constant dense<0.000000e+00> : vector<24xf32>
    %736 = vector.multi_reduction <add>, %735, %cst_200 [1] : vector<24x24xf32> to vector<24xf32>
    %737 = vector.shape_cast %736 : vector<24xf32> to vector<24x1xf32>
    %738 = tpu.reciprocal %737 {approx = true} : vector<24x1xf32> -> vector<24x1xf32>
    %739 = vector.broadcast %738 : vector<24x1xf32> to vector<24x24xf32>
    %740 = arith.mulf %735, %739 : vector<24x24xf32>
    %741 = arith.truncf %740 : vector<24x24xf32> to vector<24x24xbf16>
    %cst_201 = arith.constant dense<0.000000e+00> : vector<24x16xf32>
    %742 = tpu.matmul %741, %725, %cst_201 {dimension_numbers = #tpu.dot_dimension_numbers<[1], [0], [0], [1], [0, 0, 1, 1], [], []>} : vector<24x24xbf16>, vector<24x16xbf16>, vector<24x16xf32> -> vector<24x16xf32>
    %743 = arith.truncf %742 : vector<24x16xf32> to vector<24x16xbf16>
    %744 = vector.extract_strided_slice %524 {offsets = [48, 0], sizes = [16, 64], strides = [1, 1]} : vector<64x64xbf16> to vector<16x64xbf16>
    %cst_202 = arith.constant dense<0.000000e+00> : vector<24x64xf32>
    %745 = tpu.matmul %743, %744, %cst_202 {dimension_numbers = #tpu.dot_dimension_numbers<[1], [0], [0], [1], [0, 0, 1, 1], [], []>} : vector<24x16xbf16>, vector<16x64xbf16>, vector<24x64xf32> -> vector<24x64xf32>
    %746 = arith.addf %719, %745 : vector<24x64xf32>
    %747 = vector.broadcast %490 : vector<1x64xf32> to vector<24x64xf32>
    %748 = arith.addf %746, %747 : vector<24x64xf32>
    %749 = tpu.concatenate %636, %748 in 0 : vector<24x64xf32>, vector<24x64xf32> -> vector<48x64xf32>
    %750 = arith.addf %484, %749 : vector<48x64xf32>
    %cst_203 = arith.constant dense<0.000000e+00> : vector<48xf32>
    %751 = vector.multi_reduction <add>, %750, %cst_203 [1] : vector<48x64xf32> to vector<48xf32>
    %752 = vector.shape_cast %751 : vector<48xf32> to vector<48x1xf32>
    %cst_204 = arith.constant 6.400000e+01 : f32
    %753 = vector.broadcast %cst_204 : f32 to vector<48x1xf32>
    %754 = arith.divf %752, %753 : vector<48x1xf32>
    %755 = vector.broadcast %754 : vector<48x1xf32> to vector<48x64xf32>
    %756 = arith.subf %750, %755 : vector<48x64xf32>
    %757 = arith.mulf %756, %756 : vector<48x64xf32>
    %cst_205 = arith.constant dense<0.000000e+00> : vector<48xf32>
    %758 = vector.multi_reduction <add>, %757, %cst_205 [1] : vector<48x64xf32> to vector<48xf32>
    %759 = vector.shape_cast %758 : vector<48xf32> to vector<48x1xf32>
    %cst_206 = arith.constant 6.400000e+01 : f32
    %760 = vector.broadcast %cst_206 : f32 to vector<48x1xf32>
    %761 = arith.divf %759, %760 : vector<48x1xf32>
    %762 = vector.broadcast %754 : vector<48x1xf32> to vector<48x64xf32>
    %763 = arith.subf %750, %762 : vector<48x64xf32>
    %cst_207 = arith.constant 9.99999974E-6 : f32
    %764 = vector.broadcast %cst_207 : f32 to vector<48x1xf32>
    %765 = arith.addf %761, %764 : vector<48x1xf32>
    %766 = math.rsqrt %765 : vector<48x1xf32>
    %767 = vector.broadcast %766 : vector<48x1xf32> to vector<48x64xf32>
    %768 = arith.mulf %763, %767 : vector<48x64xf32>
    %769 = vector.broadcast %491 : vector<1x64xf32> to vector<48x64xf32>
    %770 = arith.mulf %768, %769 : vector<48x64xf32>
    %771 = vector.broadcast %492 : vector<1x64xf32> to vector<48x64xf32>
    %772 = arith.addf %770, %771 : vector<48x64xf32>
    %773 = arith.truncf %772 : vector<48x64xf32> to vector<48x64xbf16>
    %c1_208 = arith.constant 1 : index
    %c0_209 = arith.constant 0 : index
    %c0_210 = arith.constant 0 : index
    %774 = vector.load %arg8[%c1_208, %c0_209, %c0_210] : memref<2x64x128xbf16, #tpu.memory_space<vmem>>, vector<1x64x128xbf16>
    %775 = vector.shape_cast %774 : vector<1x64x128xbf16> to vector<64x128xbf16>
    %cst_211 = arith.constant dense<0.000000e+00> : vector<48x128xf32>
    %776 = tpu.matmul %773, %775, %cst_211 {dimension_numbers = #tpu.dot_dimension_numbers<[1], [0], [0], [1], [0, 0, 1, 1], [], []>} : vector<48x64xbf16>, vector<64x128xbf16>, vector<48x128xf32> -> vector<48x128xf32>
    %777 = vector.broadcast %493 : vector<1x128xf32> to vector<48x128xf32>
    %778 = arith.addf %776, %777 : vector<48x128xf32>
    %cst_212 = arith.constant 5.000000e-01 : f32
    %779 = vector.broadcast %cst_212 : f32 to vector<48x128xf32>
    %780 = arith.mulf %779, %778 : vector<48x128xf32>
    %cst_213 = arith.constant 4.471500e-02 : f32
    %781 = vector.broadcast %cst_213 : f32 to vector<48x128xf32>
    %782 = arith.mulf %781, %778 : vector<48x128xf32>
    %783 = arith.mulf %782, %778 : vector<48x128xf32>
    %784 = arith.mulf %783, %778 : vector<48x128xf32>
    %785 = arith.addf %778, %784 : vector<48x128xf32>
    %cst_214 = arith.constant 0.797884583 : f32
    %786 = vector.broadcast %cst_214 : f32 to vector<48x128xf32>
    %787 = arith.mulf %786, %785 : vector<48x128xf32>
    %788 = math.tanh %787 : vector<48x128xf32>
    %cst_215 = arith.constant 1.000000e+00 : f32
    %789 = vector.broadcast %cst_215 : f32 to vector<48x128xf32>
    %790 = arith.addf %789, %788 : vector<48x128xf32>
    %791 = arith.mulf %780, %790 : vector<48x128xf32>
    %792 = arith.truncf %791 : vector<48x128xf32> to vector<48x128xbf16>
    %c1_216 = arith.constant 1 : index
    %c0_217 = arith.constant 0 : index
    %c0_218 = arith.constant 0 : index
    %793 = vector.load %arg9[%c1_216, %c0_217, %c0_218] : memref<2x128x64xbf16, #tpu.memory_space<vmem>>, vector<1x128x64xbf16>
    %794 = vector.shape_cast %793 : vector<1x128x64xbf16> to vector<128x64xbf16>
    %cst_219 = arith.constant dense<0.000000e+00> : vector<48x64xf32>
    %795 = tpu.matmul %792, %794, %cst_219 {dimension_numbers = #tpu.dot_dimension_numbers<[1], [0], [0], [1], [0, 0, 1, 1], [], []>} : vector<48x128xbf16>, vector<128x64xbf16>, vector<48x64xf32> -> vector<48x64xf32>
    %796 = arith.addf %750, %795 : vector<48x64xf32>
    %797 = vector.broadcast %494 : vector<1x64xf32> to vector<48x64xf32>
    %798 = arith.addf %796, %797 : vector<48x64xf32>
    %c0_220 = arith.constant 0 : index
    %c0_221 = arith.constant 0 : index
    %799 = vector.load %arg10[%c0_220, %c0_221] : memref<72x128xbf16, #tpu.memory_space<vmem>>, vector<64x128xbf16>
    %c64 = arith.constant 64 : index
    %c0_222 = arith.constant 0 : index
    %800 = vector.load %arg10[%c64, %c0_222] : memref<72x128xbf16, #tpu.memory_space<vmem>>, vector<1x128xbf16>
    %801 = vector.extract_strided_slice %798 {offsets = [16, 0], sizes = [1, 64], strides = [1, 1]} : vector<48x64xf32> to vector<1x64xf32>
    %802 = arith.truncf %801 : vector<1x64xf32> to vector<1x64xbf16>
    %cst_223 = arith.constant dense<0.000000e+00> : vector<1x128xf32>
    %803 = tpu.matmul %802, %799, %cst_223 {dimension_numbers = #tpu.dot_dimension_numbers<[1], [0], [0], [1], [0, 0, 1, 1], [], []>} : vector<1x64xbf16>, vector<64x128xbf16>, vector<1x128xf32> -> vector<1x128xf32>
    %804 = arith.extf %800 : vector<1x128xbf16> to vector<1x128xf32>
    %805 = arith.addf %803, %804 : vector<1x128xf32>
    %c0_224 = arith.constant 0 : index
    %c0_225 = arith.constant 0 : index
    %c0_226 = arith.constant 0 : index
    %806 = vector.load %arg11[%c0_224, %c0_225, %c0_226] : memref<2x1x128xf32, #tpu.memory_space<vmem>>, vector<1x1x128xf32>
    %807 = vector.shape_cast %806 : vector<1x1x128xf32> to vector<1x128xf32>
    %808 = vector.shape_cast %805 : vector<1x128xf32> to vector<1x1x128xf32>
    tpu.vector_store %arg11[%c0_224, %c0_225, %c0_226], %808 {strides = array<i32>} : memref<2x1x128xf32, #tpu.memory_space<vmem>>, vector<1x1x128xf32>,
    %809 = vector.extract_strided_slice %798 {offsets = [40, 0], sizes = [1, 64], strides = [1, 1]} : vector<48x64xf32> to vector<1x64xf32>
    %810 = arith.truncf %809 : vector<1x64xf32> to vector<1x64xbf16>
    %cst_227 = arith.constant dense<0.000000e+00> : vector<1x128xf32>
    %811 = tpu.matmul %810, %799, %cst_227 {dimension_numbers = #tpu.dot_dimension_numbers<[1], [0], [0], [1], [0, 0, 1, 1], [], []>} : vector<1x64xbf16>, vector<64x128xbf16>, vector<1x128xf32> -> vector<1x128xf32>
    %812 = arith.extf %800 : vector<1x128xbf16> to vector<1x128xf32>
    %813 = arith.addf %811, %812 : vector<1x128xf32>
    %c1_228 = arith.constant 1 : index
    %c0_229 = arith.constant 0 : index
    %c0_230 = arith.constant 0 : index
    %814 = vector.load %arg11[%c1_228, %c0_229, %c0_230] : memref<2x1x128xf32, #tpu.memory_space<vmem>>, vector<1x1x128xf32>
    %815 = vector.shape_cast %814 : vector<1x1x128xf32> to vector<1x128xf32>
    %816 = vector.shape_cast %813 : vector<1x128xf32> to vector<1x1x128xf32>
    tpu.vector_store %arg11[%c1_228, %c0_229, %c0_230], %816 {strides = array<i32>} : memref<2x1x128xf32, #tpu.memory_space<vmem>>, vector<1x1x128xf32>,
    return
  }
  func.func @transform_0(%arg0: i32, %arg1: memref<2x2xi32, #tpu.memory_space<smem>>) -> (i32, i32, i32, i32) {
    %c0_i32 = arith.constant 0 : i32
    %c0_i32_0 = arith.constant 0 : i32
    %c0_i32_1 = arith.constant 0 : i32
    %c0_i32_2 = arith.constant 0 : i32
    return %arg0, %c0_i32, %c0_i32_0, %c0_i32_1 : i32, i32, i32, i32
  }
  func.func @transform_1(%arg0: i32, %arg1: memref<2x2xi32, #tpu.memory_space<smem>>) -> (i32, i32) {
    %c0_i32 = arith.constant 0 : i32
    %c0_i32_0 = arith.constant 0 : i32
    %c0_i32_1 = arith.constant 0 : i32
    return %c0_i32, %c0_i32_0 : i32, i32
  }
  func.func @transform_2(%arg0: i32, %arg1: memref<2x2xi32, #tpu.memory_space<smem>>) -> (i32, i32, i32) {
    %c0_i32 = arith.constant 0 : i32
    %c0_i32_0 = arith.constant 0 : i32
    %c0_i32_1 = arith.constant 0 : i32
    %c0_i32_2 = arith.constant 0 : i32
    return %c0_i32, %c0_i32_0, %c0_i32_1 : i32, i32, i32
  }
  func.func @transform_3(%arg0: i32, %arg1: memref<2x2xi32, #tpu.memory_space<smem>>) -> (i32, i32, i32) {
    %c0_i32 = arith.constant 0 : i32
    %c0_i32_0 = arith.constant 0 : i32
    %c0_i32_1 = arith.constant 0 : i32
    %c0_i32_2 = arith.constant 0 : i32
    return %c0_i32, %c0_i32_0, %c0_i32_1 : i32, i32, i32
  }
  func.func @transform_4(%arg0: i32, %arg1: memref<2x2xi32, #tpu.memory_space<smem>>) -> (i32, i32, i32) {
    %c0_i32 = arith.constant 0 : i32
    %c0_i32_0 = arith.constant 0 : i32
    %c0_i32_1 = arith.constant 0 : i32
    %c0_i32_2 = arith.constant 0 : i32
    return %c0_i32, %c0_i32_0, %c0_i32_1 : i32, i32, i32
  }
  func.func @transform_5(%arg0: i32, %arg1: memref<2x2xi32, #tpu.memory_space<smem>>) -> (i32, i32, i32) {
    %c0_i32 = arith.constant 0 : i32
    %c0_i32_0 = arith.constant 0 : i32
    %c0_i32_1 = arith.constant 0 : i32
    %c0_i32_2 = arith.constant 0 : i32
    return %c0_i32, %c0_i32_0, %c0_i32_1 : i32, i32, i32
  }
  func.func @transform_6(%arg0: i32, %arg1: memref<2x2xi32, #tpu.memory_space<smem>>) -> (i32, i32, i32) {
    %c0_i32 = arith.constant 0 : i32
    %c0_i32_0 = arith.constant 0 : i32
    %c0_i32_1 = arith.constant 0 : i32
    %c0_i32_2 = arith.constant 0 : i32
    return %c0_i32, %c0_i32_0, %c0_i32_1 : i32, i32, i32
  }
  func.func @transform_7(%arg0: i32, %arg1: memref<2x2xi32, #tpu.memory_space<smem>>) -> (i32, i32, i32) {
    %c0_i32 = arith.constant 0 : i32
    %c0_i32_0 = arith.constant 0 : i32
    %c0_i32_1 = arith.constant 0 : i32
    %c0_i32_2 = arith.constant 0 : i32
    return %c0_i32, %c0_i32_0, %c0_i32_1 : i32, i32, i32
  }
  func.func @transform_8(%arg0: i32, %arg1: memref<2x2xi32, #tpu.memory_space<smem>>) -> (i32, i32) {
    %c0_i32 = arith.constant 0 : i32
    %c0_i32_0 = arith.constant 0 : i32
    %c0_i32_1 = arith.constant 0 : i32
    return %c0_i32, %c0_i32_0 : i32, i32
  }
  func.func @transform_9(%arg0: i32, %arg1: memref<2x2xi32, #tpu.memory_space<smem>>) -> (i32, i32, i32) {
    %c0_i32 = arith.constant 0 : i32
    %c0_i32_0 = arith.constant 0 : i32
    %c0_i32_1 = arith.constant 0 : i32
    return %arg0, %c0_i32, %c0_i32_0 : i32, i32, i32
  }
}

</mosaic_0001>

<llo_original>
// kernel: lightcurve_classifier_forward.1
$region0: #{lightcurve_classifier_forward.1}
  #allocation0 [shape = 'u32[]', space=smem, size = 0x4, offset = 0x4, fixed_abs, tag = 'smem constant byte address 0x4 - core index']
  #allocation1 [shape = 'u32[144,128]{1,0:T(1,128)}', space=vmem, size = 0x12000, scoped, tag = 'internal scratch']
  #allocation2 [shape = 's32[1]{0}', space=sflag, size = 0x4, scoped, tag = 'scoped memory for lightcurve_classifier_forward.1']
  #allocation3 [shape = 'u8[1024]{0}', space=smem, size = 0x400, scoped, tag = 'prefetched SMEM operand 0']
  %s0 = inlined_call_operand.vmem [shape: s32[2,2], index: 0, kind: input, shape index: {}]
  %s1 = inlined_call_operand.vmem [shape: f32[2,2,8,2], index: 1, kind: input, shape index: {}]
  %s2 = inlined_call_operand.hbm [shape: f32[8,64], index: 2, kind: input, shape index: {}]
  %s3 = inlined_call_operand.vmem [shape: bf16[2,32,128], index: 3, kind: input, shape index: {}]
  %s4 = inlined_call_operand.hbm [shape: f32[2,8,192], index: 4, kind: input, shape index: {}]
  %s5 = inlined_call_operand.vmem [shape: bf16[2,64,192], index: 5, kind: input, shape index: {}]
  %s6 = inlined_call_operand.vmem [shape: bf16[2,64,64], index: 6, kind: input, shape index: {}]
  %s7 = inlined_call_operand.hbm [shape: bf16[2,64,128], index: 7, kind: input, shape index: {}]
  %s8 = inlined_call_operand.vmem [shape: bf16[2,128,64], index: 8, kind: input, shape index: {}]
  %s9 = inlined_call_operand.vmem [shape: bf16[72,128], index: 9, kind: input, shape index: {}]
  %s10 = inlined_call_operand.hbm [shape: f32[2,1,128], index: 10, kind: output, shape index: {}]
  %s11 = sld [smem:[#allocation0]]
  $region58: #{lightcurve_classifier_forward.1} parent=0
    _
  %s13 = ssub.s32 1, %s11
  %s14 = scalar_select 0, %s13, %s11
  %s15 = sshll.u32 %s0, 4
  %s16 = int_to_ptr.vmem [resolvable:$true] %s15
  %18 = dma.vmem_to_smem %s16, 32, [#allocation3], [#allocation2]
  %19 = dma.done [#allocation2], 32
  %20 = sfence
  $region1: #{lightcurve_classifier_forward.1} parent=0
    #allocation4 [shape = 'u8[4096]{0}', space=vmem, size = 0x1000, scoped, tag = 'input window, operand 2, single buffered']
    #allocation5 [shape = 's32[1]{0}', space=sflag, size = 0x4, scoped, tag = 'scoped memory for lightcurve_classifier_forward.1']
    #allocation6 [shape = 's32[1]{0}', space=sflag, size = 0x4, scoped, tag = 'scoped memory for lightcurve_classifier_forward.1']
    #allocation7 [shape = 'u8[16384]{0}', space=vmem, size = 0x4000, scoped, tag = 'input window, operand 4, single buffered']
    #allocation8 [shape = 's32[1]{0}', space=sflag, size = 0x4, scoped, tag = 'scoped memory for lightcurve_classifier_forward.1']
    #allocation9 [shape = 'u8[32768]{0}', space=vmem, size = 0x8000, scoped, tag = 'input window, operand 7, single buffered']
    #allocation10 [shape = 'u8[1024]{0}', space=vmem, size = 0x400, scoped, tag = 'output window, operand 0, single buffered']
    %21 = vsyncpa [#allocation5], 0
    %22 = vsyncpa [#allocation8], 0
    %23 = vsyncpa [#allocation6], 0
    // Predicated region
    $region2: #{lightcurve_classifier_forward.1} parent=1 // pred_check
      _
    $region3: #{lightcurve_classifier_forward.1} parent=1 // pred_check_branch
      %25 = sbr.rel (0) target = $region5
    $region4: #{lightcurve_classifier_forward.1} parent=1 // pred_region
      _
    $region5: #{lightcurve_classifier_forward.1} parent=1 // pred_fallthru
      _
    // Predicated region
    $region6: #{lightcurve_classifier_forward.1} parent=1 // pred_check
      _
    $region7: #{lightcurve_classifier_forward.1} parent=1 // pred_check_branch
      %27 = sbr.rel (0) target = $region9
    $region8: #{lightcurve_classifier_forward.1} parent=1 // pred_region
      %s29 = ssub.s32 128, 128
      %30 = vsyncadd [#allocation5], %s29
      %s32 = sshll.u32 [#allocation4], 4
      %s33 = int_to_ptr.vmem [resolvable:$true] %s32
      %35 = dma.hbm_to_vmem [thread:$0]  %s2, 128, %s33, [#allocation5]
    $region9: #{lightcurve_classifier_forward.1} parent=1 // pred_fallthru
      _
    // Predicated region
    $region10: #{lightcurve_classifier_forward.1} parent=1 // pred_check
      _
    $region11: #{lightcurve_classifier_forward.1} parent=1 // pred_check_branch
      %37 = sbr.rel (0) target = $region13
    $region12: #{lightcurve_classifier_forward.1} parent=1 // pred_region
      _
    $region13: #{lightcurve_classifier_forward.1} parent=1 // pred_fallthru
      _
    // Predicated region
    $region14: #{lightcurve_classifier_forward.1} parent=1 // pred_check
      _
    $region15: #{lightcurve_classifier_forward.1} parent=1 // pred_check_branch
      %39 = sbr.rel (0) target = $region17
    $region16: #{lightcurve_classifier_forward.1} parent=1 // pred_region
      %s41 = ssub.s32 512, 512
      %42 = vsyncadd [#allocation8], %s41
      %s43 = sshll.u32 [#allocation7], 4
      %s44 = int_to_ptr.vmem [resolvable:$true] %s43
      %49 = dma.hbm_to_vmem [thread:$0]  %s4, 512, %s44, [#allocation8], 256, 256, 16
    $region17: #{lightcurve_classifier_forward.1} parent=1 // pred_fallthru
      _
    // Predicated region
    $region18: #{lightcurve_classifier_forward.1} parent=1 // pred_check
      _
    $region19: #{lightcurve_classifier_forward.1} parent=1 // pred_check_branch
      %51 = sbr.rel (0) target = $region21
    $region20: #{lightcurve_classifier_forward.1} parent=1 // pred_region
      _
    $region21: #{lightcurve_classifier_forward.1} parent=1 // pred_fallthru
      _
    // Predicated region
    $region22: #{lightcurve_classifier_forward.1} parent=1 // pred_check
      _
    $region23: #{lightcurve_classifier_forward.1} parent=1 // pred_check_branch
      %53 = sbr.rel (0) target = $region25
    $region24: #{lightcurve_classifier_forward.1} parent=1 // pred_region
      _
    $region25: #{lightcurve_classifier_forward.1} parent=1 // pred_fallthru
      _
    // Predicated region
    $region26: #{lightcurve_classifier_forward.1} parent=1 // pred_check
      _
    $region27: #{lightcurve_classifier_forward.1} parent=1 // pred_check_branch
      %55 = sbr.rel (0) target = $region29
    $region28: #{lightcurve_classifier_forward.1} parent=1 // pred_region
      %s57 = ssub.s32 1024, 1024
      %58 = vsyncadd [#allocation8], %s57
      %s59 = sshll.u32 [#allocation9], 4
      %s60 = int_to_ptr.vmem [resolvable:$true] %s59
      %65 = dma.hbm_to_vmem [thread:$0]  %s7, 1024, %s60, [#allocation8], 64, 64, 4
    $region29: #{lightcurve_classifier_forward.1} parent=1 // pred_fallthru
      _
    // Predicated region
    $region30: #{lightcurve_classifier_forward.1} parent=1 // pred_check
      _
    $region31: #{lightcurve_classifier_forward.1} parent=1 // pred_check_branch
      %67 = sbr.rel (0) target = $region33
    $region32: #{lightcurve_classifier_forward.1} parent=1 // pred_region
      _
    $region33: #{lightcurve_classifier_forward.1} parent=1 // pred_fallthru
      _
    // Predicated region
    $region34: #{lightcurve_classifier_forward.1} parent=1 // pred_check
      _
    $region35: #{lightcurve_classifier_forward.1} parent=1 // pred_check_branch
      %69 = sbr.rel (0) target = $region37
    $region36: #{lightcurve_classifier_forward.1} parent=1 // pred_region
      _
    $region37: #{lightcurve_classifier_forward.1} parent=1 // pred_fallthru
      _
    // Predicated region
    $region38: #{lightcurve_classifier_forward.1} parent=1 // pred_check
      _
    $region39: #{lightcurve_classifier_forward.1} parent=1 // pred_check_branch
      %71 = sbr.rel (0) target = $region41
    $region40: #{lightcurve_classifier_forward.1} parent=1 // pred_region
      %72 = dma.done [#allocation5], 128
    $region41: #{lightcurve_classifier_forward.1} parent=1 // pred_fallthru
      _
    // Predicated region
    $region42: #{lightcurve_classifier_forward.1} parent=1 // pred_check
      _
    $region43: #{lightcurve_classifier_forward.1} parent=1 // pred_check_branch
      %74 = sbr.rel (0) target = $region45
    $region44: #{lightcurve_classifier_forward.1} parent=1 // pred_region
      %75 = dma.done [#allocation8], 512
    $region45: #{lightcurve_classifier_forward.1} parent=1 // pred_fallthru
      _
    // Predicated region
    $region46: #{lightcurve_classifier_forward.1} parent=1 // pred_check
      _
    $region47: #{lightcurve_classifier_forward.1} parent=1 // pred_check_branch
      %77 = sbr.rel (0) target = $region49
    $region48: #{lightcurve_classifier_forward.1} parent=1 // pred_region
      %78 = dma.done [#allocation8], 1024
    $region49: #{lightcurve_classifier_forward.1} parent=1 // pred_fallthru
      _
    %v80 = vld [vmem:[#allocation4 + $0x2] sm:$0x1]
    %v81 = vld [vmem:[#allocation4 + $0x3] sm:$0x1]
    %v82 = vld [vmem:[#allocation4 + $0x4] sm:$0x1]
    %v83 = vlaneseq
    %v84 = vshrl.u32 %v83, 7
    %vm85 = vcmp.eq.s32.totalorder %v84, 0
    %v86 = vlaneseq
    %v87 = vshrl.u32 %v86, 7
    %v88 = vsub.s32 0, %v87
    %v89 = vrot.slane %v80, %v88
    %v90 = vsel %vm85, %v89, 0.0
    %v91 = vlaneseq
    %v92 = vand.u32 %v91, 127
    %s93 = smul.u32 0, 2
    %v94 = vld [vmem:[%s1] sm:$0xff]
    %v95 = vld [vmem:[%s1 + $0x8] sm:$0xff]
    %97 = vset.pattern.permute.xlu0 0
    %98 = vperm.xlu0 %97, %v95
    %v99 = vpop.permute.xlu0 %98
    %v101 = vlaneseq
    %v102 = vshrl.u32 %v101, 7
    %v103 = vsub.s32 0, %v102
    %v104 = vrot.slane %v81, %v103
    %v105 = vmul.f32 %v99, %v104
    %v106 = vlaneseq
    %v107 = vshrl.u32 %v106, 7
    %v108 = vsub.s32 0, %v107
    %v109 = vrot.slane %v82, %v108
    %v110 = vadd.f32 %v105, %v109
    %v111 = vand.u32 2147483647, %v110
    %vm112 = vcmp.le.f32.partialorder %v111, 0.7853982
    %vm113 = vcmp.lt.s32.totalorder %v110, 0
    %v114 = vand.u32 %v110, 2139095040
    %v115 = vshrl.u32 %v114, 23
    %v116 = vsub.s32 %v115, 127
    %v117 = vand.u32 2147483647, %v110
    %v118 = vand.u32 %v117, 8388607
    %v119 = vor.u32 %v118, 8388608
    %v120 = vsub.s32 0, %v119
    %v121 = vadd.s32 %v116, 1
    %vm122 = vcmp.gt.s32.totalorder %v121, 0
    %v123 = vsel %vm122, %v121, 0
    %v124 = vshrl.u32 %v123, 5
    %v125 = vand.u32 %v123, 31
    %v126 = vsub.s32 32, %v125
    %v127 = vshrl.u32 683565275, %v126
    %v128 = vshll.u32 683565275, %v125
    %v129 = vshrl.u32 2475754826, %v126
    %v130 = vor.u32 %v128, %v129
    %v131 = vshll.u32 2475754826, %v125
    %v132 = vshrl.u32 2131351028, %v126
    %v133 = vor.u32 %v131, %v132
    %v134 = vshll.u32 2131351028, %v125
    %v135 = vshrl.u32 2102212464, %v126
    %v136 = vor.u32 %v134, %v135
    %v137 = vshll.u32 2102212464, %v125
    %v138 = vshrl.u32 920167782, %v126
    %v139 = vor.u32 %v137, %v138
    %v140 = vshll.u32 920167782, %v125
    %v141 = vshrl.u32 1326507024, %v126
    %v142 = vor.u32 %v140, %v141
    %vm143 = vcmp.lt.s32.totalorder %v124, 1
    %vm144 = vcmp.lt.s32.totalorder %v124, 2
    %vm145 = vcmp.lt.s32.totalorder %v124, 3
    %vm146 = vcmp.lt.s32.totalorder %v124, 4
    %v147 = vsel %vm143, %v127, %v130
    %v148 = vsel %vm146, %v136, 2102212464
    %v149 = vsel %vm145, %v133, %v148
    %v150 = vsel %vm144, %v147, %v149
    %v151 = vsel %vm143, %v130, %v133
    %v152 = vsel %vm146, %v139, 920167782
    %v153 = vsel %vm145, %v136, %v152
    %v154 = vsel %vm144, %v151, %v153
    %v155 = vsel %vm143, %v133, %v136
    %v156 = vsel %vm146, %v142, 1326507024
    %v157 = vsel %vm145, %v139, %v156
    %v158 = vsel %vm144, %v155, %v157
    %v159 = vshll.u32 %v119, 8
    %v160 = vmul.u32.u64.compose %v159, %v158
    %v161 = vextract.low.u32 %v160
    %v162 = vextract.high.u32 %v160
    %v163 = vmul.u32.u64.compose %v159, %v154
    %v164 = vextract.low.u32 %v163
    %v165 = vextract.high.u32 %v163
    %v166 = vmul.u32 %v159, %v150
    %v167 = vadd.s32 %v162, %v164
    %vm168 = vc.u32 %v162, %v164
    %v169 = vadd.s32 %v165, 1
    %v170 = vsel %vm168, %v169, %v165
    %v171 = vadd.s32 %v166, %v170
    %v172 = vadd.s32 %v171, 536870912
    %v173 = vshrl.u32 %v172, 30
    %v174 = vshll.u32 %v173, 30
    %v175 = vsub.s32 %v171, %v174
    %vm176 = vcmp.lt.s32.totalorder %v175, 0
    %v177 = vsub.s32 0, %v175
    %v178 = vsel %vm176, %v177, %v175
    %v179 = vclz %v178
    %v180 = vsub.s32 %v179, 2
    %vm181 = vcmp.gt.s32.totalorder 0, %v180
    %v182 = vsel %vm181, 0, %v180
    %v183 = vsub.s32 32, %v182
    %v184 = vshll.u32 %v175, %v182
    %v185 = vshrl.u32 %v167, %v183
    %v186 = vor.u32 %v184, %v185
    %v187 = vsub.s32 4294967266, %v182
    %v188 = vadd.s32 %v187, 127
    %v189 = vshll.u32 %v188, 23
    %v190 = vor.u32 4788187, %v189
    %v191 = vand.u32 2147483647, %v190
    %v193 = vcvt.s32.f32 %v186
    %v194 = vmul.f32 %v193, %v191
    %v195 = vxor.u32 %v194, 2147483648
    %v196 = vsel %vm113, %v195, %v194
    %v197 = vsub.s32 4, %v173
    %v198 = vsel %vm113, %v197, %v173
    %v199 = vsel %vm112, %v110, %v196
    %v200 = vsel %vm112, 0, %v198
    %v201 = vcosq.f32.pop %v199
    %v202 = vsinq.f32.pop %v199
    %vm203 = vweird.f32 %v110
    %v204 = vadd.s32 %v200, 3
    %v205 = vand.u32 %v204, 3
    %vm206 = vcmp.lt.s32.totalorder %v205, 2
    %vm207 = vcmp.eq.s32.totalorder %v205, 0
    %v208 = vxor.u32 %v202, 2147483648
    %v209 = vsel %vm207, %v201, %v208
    %vm210 = vcmp.eq.s32.totalorder %v205, 2
    %v211 = vxor.u32 %v201, 2147483648
    %v212 = vsel %vm210, %v211, %v202
    %v213 = vsel %vm206, %v209, %v212
    %v214 = vsel %vm203, nan, %v213
    %v215 = vpack.c.bf16 %v214, %v214
    %v216 = vld [vmem:[%s3] sm:$0xf]
    %v217 = vld [vmem:[%s3 + $0x4] sm:$0xf]
    %v218 = vld [vmem:[%s3 + $0x8] sm:$0xf]
    %v219 = vld [vmem:[%s3 + $0xc] sm:$0xf]
    %v224 = vunpack.c.l.b16 %v216
    %v225 = vunpack.c.l.b16 %v217
    %v226 = vunpack.c.l.b16 %v218
    %v227 = vunpack.c.l.b16 %v219
    %v228 = vpack.c.b16 %v225, %v224
    %v229 = vpack.c.b16 %v227, %v226
    %vm232 = vcmask 261120
    %v234 = vsel %vm232, %v215, 0
    %236 = vmatprep.subr.bf16.mxu0 0
    %237 = vmatpush1.bf16.msra.mxu0 %v228
    %238 = vmatprep.subr.bf16.mxu0 0
    %239 = vmatpush1.bf16.msra.mxu0 %v229
    %240 = vmatprep.subr.bf16.mxu0 0
    %241 = vmatpush1.bf16.msra.mxu0 0
    %242 = vmatprep.subr.bf16.mxu0 0
    %243 = vmatpush1.bf16.msra.mxu0 0
    %244 = vmatprep.subr.bf16.mxu0 0
    %245 = vmatpush1.bf16.msra.mxu0 0
    %246 = vmatprep.subr.bf16.mxu0 0
    %247 = vmatpush1.bf16.msra.mxu0 0
    %248 = vmatprep.subr.bf16.mxu0 0
    %249 = vmatpush1.bf16.msra.mxu0 0
    %250 = vmatprep.subr.bf16.mxu0 0
    %251 = vmatpush1.bf16.msra.mxu0 0
    %252 = vmatprep.subr.bf16.mxu0 0
    %253 = vmatpush1.bf16.msra.mxu0 0
    %254 = vmatprep.subr.bf16.mxu0 0
    %255 = vmatpush1.bf16.msra.mxu0 0
    %256 = vmatprep.subr.bf16.mxu0 0
    %257 = vmatpush1.bf16.msra.mxu0 0
    %258 = vmatprep.subr.bf16.mxu0 0
    %259 = vmatpush1.bf16.msra.mxu0 0
    %260 = vmatprep.subr.bf16.mxu0 0
    %261 = vmatpush1.bf16.msra.mxu0 0
    %262 = vmatprep.subr.bf16.mxu0 0
    %263 = vmatpush1.bf16.msra.mxu0 0
    %264 = vmatprep.subr.bf16.mxu0 0
    %265 = vmatpush1.bf16.msra.mxu0 0
    %266 = vmatprep.subr.bf16.mxu0 0
    %267 = vmatpush1.bf16.msra.mxu0 0
    %268 = vmatprep.mubr.bf16.mxu0 0
    %269 = vmatmul.mubr.bf16.gmra.mrb[0].mxu0 %v234
    %v270 = vpop.f32.mrb[0].mxu0
    %v271 = vadd.f32 0.0, %v270
    %v272 = vpop.f32.mrb[0].mxu0
    %v273 = vpop.f32.mrb[0].mxu0
    %v274 = vpop.f32.mrb[0].mxu0
    %275 = vdwg.mxu0
    %v276 = vld [vmem:[#allocation4] sm:$0x1]
    %278 = vset.pattern.permute.xlu0 0
    %279 = vperm.xlu0 %278, %v94
    %v280 = vpop.permute.xlu0 %279
    %v282 = vlaneseq
    %v283 = vshrl.u32 %v282, 7
    %v284 = vsub.s32 0, %v283
    %v285 = vrot.slane %v276, %v284
    %v286 = vmul.f32 %v280, %v285
    %v287 = vmul.f32 %v286, %v271
    %289 = vrot.lane.b32.xlu0 %v271, 64
    %v290 = vpop.permute.xlu0 %289
    %v292 = vadd.f32 %v287, %v290
    %293 = vset.pattern.permute.xlu0 1
    %294 = vperm.xlu0 %293, %v95
    %v295 = vpop.permute.xlu0 %294
    %v297 = vmul.f32 %v295, %v104
    %v298 = vadd.f32 %v297, %v109
    %v299 = vand.u32 2147483647, %v298
    %vm300 = vcmp.le.f32.partialorder %v299, 0.7853982
    %vm301 = vcmp.lt.s32.totalorder %v298, 0
    %v302 = vand.u32 %v298, 2139095040
    %v303 = vshrl.u32 %v302, 23
    %v304 = vsub.s32 %v303, 127
    %v305 = vand.u32 2147483647, %v298
    %v306 = vand.u32 %v305, 8388607
    %v307 = vor.u32 %v306, 8388608
    %v308 = vsub.s32 0, %v307
    %v309 = vadd.s32 %v304, 1
    %vm310 = vcmp.gt.s32.totalorder %v309, 0
    %v311 = vsel %vm310, %v309, 0
    %v312 = vshrl.u32 %v311, 5
    %v313 = vand.u32 %v311, 31
    %v314 = vsub.s32 32, %v313
    %v315 = vshrl.u32 683565275, %v314
    %v316 = vshll.u32 683565275, %v313
    %v317 = vshrl.u32 2475754826, %v314
    %v318 = vor.u32 %v316, %v317
    %v319 = vshll.u32 2475754826, %v313
    %v320 = vshrl.u32 2131351028, %v314
    %v321 = vor.u32 %v319, %v320
    %v322 = vshll.u32 2131351028, %v313
    %v323 = vshrl.u32 2102212464, %v314
    %v324 = vor.u32 %v322, %v323
    %v325 = vshll.u32 2102212464, %v313
    %v326 = vshrl.u32 920167782, %v314
    %v327 = vor.u32 %v325, %v326
    %v328 = vshll.u32 920167782, %v313
    %v329 = vshrl.u32 1326507024, %v314
    %v330 = vor.u32 %v328, %v329
    %vm331 = vcmp.lt.s32.totalorder %v312, 1
    %vm332 = vcmp.lt.s32.totalorder %v312, 2
    %vm333 = vcmp.lt.s32.totalorder %v312, 3
    %vm334 = vcmp.lt.s32.totalorder %v312, 4
    %v335 = vsel %vm331, %v315, %v318
    %v336 = vsel %vm334, %v324, 2102212464
    %v337 = vsel %vm333, %v321, %v336
    %v338 = vsel %vm332, %v335, %v337
    %v339 = vsel %vm331, %v318, %v321
    %v340 = vsel %vm334, %v327, 920167782
    %v341 = vsel %vm333, %v324, %v340
    %v342 = vsel %vm332, %v339, %v341
    %v343 = vsel %vm331, %v321, %v324
    %v344 = vsel %vm334, %v330, 1326507024
    %v345 = vsel %vm333, %v327, %v344
    %v346 = vsel %vm332, %v343, %v345
    %v347 = vshll.u32 %v307, 8
    %v348 = vmul.u32.u64.compose %v347, %v346
    %v349 = vextract.low.u32 %v348
    %v350 = vextract.high.u32 %v348
    %v351 = vmul.u32.u64.compose %v347, %v342
    %v352 = vextract.low.u32 %v351
    %v353 = vextract.high.u32 %v351
    %v354 = vmul.u32 %v347, %v338
    %v355 = vadd.s32 %v350, %v352
    %vm356 = vc.u32 %v350, %v352
    %v357 = vadd.s32 %v353, 1
    %v358 = vsel %vm356, %v357, %v353
    %v359 = vadd.s32 %v354, %v358
    %v360 = vadd.s32 %v359, 536870912
    %v361 = vshrl.u32 %v360, 30
    %v362 = vshll.u32 %v361, 30
    %v363 = vsub.s32 %v359, %v362
    %vm364 = vcmp.lt.s32.totalorder %v363, 0
    %v365 = vsub.s32 0, %v363
    %v366 = vsel %vm364, %v365, %v363
    %v367 = vclz %v366
    %v368 = vsub.s32 %v367, 2
    %vm369 = vcmp.gt.s32.totalorder 0, %v368
    %v370 = vsel %vm369, 0, %v368
    %v371 = vsub.s32 32, %v370
    %v372 = vshll.u32 %v363, %v370
    %v373 = vshrl.u32 %v355, %v371
    %v374 = vor.u32 %v372, %v373
    %v375 = vsub.s32 4294967266, %v370
    %v376 = vadd.s32 %v375, 127
    %v377 = vshll.u32 %v376, 23
    %v378 = vor.u32 4788187, %v377
    %v379 = vand.u32 2147483647, %v378
    %v381 = vcvt.s32.f32 %v374
    %v382 = vmul.f32 %v381, %v379
    %v383 = vxor.u32 %v382, 2147483648
    %v384 = vsel %vm301, %v383, %v382
    %v385 = vsub.s32 4, %v361
    %v386 = vsel %vm301, %v385, %v361
    %v387 = vsel %vm300, %v298, %v384
    %v388 = vsel %vm300, 0, %v386
    %v389 = vcosq.f32.pop %v387
    %v390 = vsinq.f32.pop %v387
    %vm391 = vweird.f32 %v298
    %v392 = vadd.s32 %v388, 3
    %v393 = vand.u32 %v392, 3
    %vm394 = vcmp.lt.s32.totalorder %v393, 2
    %vm395 = vcmp.eq.s32.totalorder %v393, 0
    %v396 = vxor.u32 %v390, 2147483648
    %v397 = vsel %vm395, %v389, %v396
    %vm398 = vcmp.eq.s32.totalorder %v393, 2
    %v399 = vxor.u32 %v389, 2147483648
    %v400 = vsel %vm398, %v399, %v390
    %v401 = vsel %vm394, %v397, %v400
    %v402 = vsel %vm391, nan, %v401
    %v403 = vpack.c.bf16 %v402, %v402
    %s404 = scalar_lea.vmem %s3, 16
    %v405 = vld [vmem:[%s404] sm:$0xf]
    %v406 = vld [vmem:[%s404 + $0x4] sm:$0xf]
    %v407 = vld [vmem:[%s404 + $0x8] sm:$0xf]
    %v408 = vld [vmem:[%s404 + $0xc] sm:$0xf]
    %v413 = vunpack.c.l.b16 %v405
    %v414 = vunpack.c.l.b16 %v406
    %v415 = vunpack.c.l.b16 %v407
    %v416 = vunpack.c.l.b16 %v408
    %v417 = vpack.c.b16 %v414, %v413
    %v418 = vpack.c.b16 %v416, %v415
    %v422 = vsel %vm232, %v403, 0
    %424 = vmatprep.subr.bf16.mxu0 0
    %425 = vmatpush1.bf16.msra.mxu0 %v417
    %426 = vmatprep.subr.bf16.mxu0 0
    %427 = vmatpush1.bf16.msra.mxu0 %v418
    %428 = vmatprep.subr.bf16.mxu0 0
    %429 = vmatpush1.bf16.msra.mxu0 0
    %430 = vmatprep.subr.bf16.mxu0 0
    %431 = vmatpush1.bf16.msra.mxu0 0
    %432 = vmatprep.subr.bf16.mxu0 0
    %433 = vmatpush1.bf16.msra.mxu0 0
    %434 = vmatprep.subr.bf16.mxu0 0
    %435 = vmatpush1.bf16.msra.mxu0 0
    %436 = vmatprep.subr.bf16.mxu0 0
    %437 = vmatpush1.bf16.msra.mxu0 0
    %438 = vmatprep.subr.bf16.mxu0 0
    %439 = vmatpush1.bf16.msra.mxu0 0
    %440 = vmatprep.subr.bf16.mxu0 0
    %441 = vmatpush1.bf16.msra.mxu0 0
    %442 = vmatprep.subr.bf16.mxu0 0
    %443 = vmatpush1.bf16.msra.mxu0 0
    %444 = vmatprep.subr.bf16.mxu0 0
    %445 = vmatpush1.bf16.msra.mxu0 0
    %446 = vmatprep.subr.bf16.mxu0 0
    %447 = vmatpush1.bf16.msra.mxu0 0
    %448 = vmatprep.subr.bf16.mxu0 0
    %449 = vmatpush1.bf16.msra.mxu0 0
    %450 = vmatprep.subr.bf16.mxu0 0
    %451 = vmatpush1.bf16.msra.mxu0 0
    %452 = vmatprep.subr.bf16.mxu0 0
    %453 = vmatpush1.bf16.msra.mxu0 0
    %454 = vmatprep.subr.bf16.mxu0 0
    %455 = vmatpush1.bf16.msra.mxu0 0
    %456 = vmatprep.mubr.bf16.mxu0 0
    %457 = vmatmul.mubr.bf16.gmra.mrb[0].mxu0 %v422
    %v458 = vpop.f32.mrb[0].mxu0
    %v459 = vadd.f32 0.0, %v458
    %v460 = vpop.f32.mrb[0].mxu0
    %v461 = vpop.f32.mrb[0].mxu0
    %v462 = vpop.f32.mrb[0].mxu0
    %463 = vdwg.mxu0
    %v464 = vld [vmem:[#allocation4 + $0x1] sm:$0x1]
    %465 = vset.pattern.permute.xlu0 1
    %466 = vperm.xlu0 %465, %v94
    %v467 = vpop.permute.xlu0 %466
    %v469 = vlaneseq
    %v470 = vshrl.u32 %v469, 7
    %v471 = vsub.s32 0, %v470
    %v472 = vrot.slane %v464, %v471
    %v473 = vmul.f32 %v467, %v472
    %v474 = vmul.f32 %v473, %v459
    %476 = vrot.lane.b32.xlu0 %v459, 64
    %v477 = vpop.permute.xlu0 %476
    %v479 = vadd.f32 %v474, %v477
    %vm480 = vcmp.eq.s32.totalorder %v92, 16
    %vm481 = vcmp.ge.s32.totalorder %v92, 0
    %vm482 = vcmp.lt.s32.totalorder %v92, 8
    %vm483 = vmand %vm481, %vm482
    %s484 = smul.u32 %s93, 128
    %s485 = sld [smem:[#allocation3 + %s484]]
    %v486 = vstv %s485
    %vm487 = vcmp.lt.s32.totalorder %v92, %v486
    %vm488 = vmand %vm483, %vm487
    %vm489 = vmor %vm480, %vm488
    %vm490 = vcmp.ge.s32.totalorder %v92, 8
    %vm491 = vcmp.lt.s32.totalorder %v92, 16
    %vm492 = vmand %vm490, %vm491
    %v493 = vsub.s32 %v92, 8
    %s494 = sadd.s32 %s484, 1
    %s495 = sld [smem:[#allocation3 + %s494]]
    %v496 = vstv %s495
    %vm497 = vcmp.lt.s32.totalorder %v493, %v496
    %vm498 = vmand %vm492, %vm497
    %vm499 = vmor %vm489, %vm498
    %v500 = vsel %vm499, 0.0, -1e+09
    %s501 = scalar_lea.vmem %s1, 16
    %v502 = vld [vmem:[%s501] sm:$0xff]
    %v503 = vld [vmem:[%s501 + $0x8] sm:$0xff]
    %505 = vset.pattern.permute.xlu0 0
    %506 = vperm.xlu0 %505, %v503
    %v507 = vpop.permute.xlu0 %506
    %v509 = vmul.f32 %v507, %v104
    %v510 = vadd.f32 %v509, %v109
    %v511 = vand.u32 2147483647, %v510
    %vm512 = vcmp.le.f32.partialorder %v511, 0.7853982
    %vm513 = vcmp.lt.s32.totalorder %v510, 0
    %v514 = vand.u32 %v510, 2139095040
    %v515 = vshrl.u32 %v514, 23
    %v516 = vsub.s32 %v515, 127
    %v517 = vand.u32 2147483647, %v510
    %v518 = vand.u32 %v517, 8388607
    %v519 = vor.u32 %v518, 8388608
    %v520 = vsub.s32 0, %v519
    %v521 = vadd.s32 %v516, 1
    %vm522 = vcmp.gt.s32.totalorder %v521, 0
    %v523 = vsel %vm522, %v521, 0
    %v524 = vshrl.u32 %v523, 5
    %v525 = vand.u32 %v523, 31
    %v526 = vsub.s32 32, %v525
    %v527 = vshrl.u32 683565275, %v526
    %v528 = vshll.u32 683565275, %v525
    %v529 = vshrl.u32 2475754826, %v526
    %v530 = vor.u32 %v528, %v529
    %v531 = vshll.u32 2475754826, %v525
    %v532 = vshrl.u32 2131351028, %v526
    %v533 = vor.u32 %v531, %v532
    %v534 = vshll.u32 2131351028, %v525
    %v535 = vshrl.u32 2102212464, %v526
    %v536 = vor.u32 %v534, %v535
    %v537 = vshll.u32 2102212464, %v525
    %v538 = vshrl.u32 920167782, %v526
    %v539 = vor.u32 %v537, %v538
    %v540 = vshll.u32 920167782, %v525
    %v541 = vshrl.u32 1326507024, %v526
    %v542 = vor.u32 %v540, %v541
    %vm543 = vcmp.lt.s32.totalorder %v524, 1
    %vm544 = vcmp.lt.s32.totalorder %v524, 2
    %vm545 = vcmp.lt.s32.totalorder %v524, 3
    %vm546 = vcmp.lt.s32.totalorder %v524, 4
    %v547 = vsel %vm543, %v527, %v530
    %v548 = vsel %vm546, %v536, 2102212464
    %v549 = vsel %vm545, %v533, %v548
    %v550 = vsel %vm544, %v547, %v549
    %v551 = vsel %vm543, %v530, %v533
    %v552 = vsel %vm546, %v539, 920167782
    %v553 = vsel %vm545, %v536, %v552
    %v554 = vsel %vm544, %v551, %v553
    %v555 = vsel %vm543, %v533, %v536
    %v556 = vsel %vm546, %v542, 1326507024
    %v557 = vsel %vm545, %v539, %v556
    %v558 = vsel %vm544, %v555, %v557
    %v559 = vshll.u32 %v519, 8
    %v560 = vmul.u32.u64.compose %v559, %v558
    %v561 = vextract.low.u32 %v560
    %v562 = vextract.high.u32 %v560
    %v563 = vmul.u32.u64.compose %v559, %v554
    %v564 = vextract.low.u32 %v563
    %v565 = vextract.high.u32 %v563
    %v566 = vmul.u32 %v559, %v550
    %v567 = vadd.s32 %v562, %v564
    %vm568 = vc.u32 %v562, %v564
    %v569 = vadd.s32 %v565, 1
    %v570 = vsel %vm568, %v569, %v565
    %v571 = vadd.s32 %v566, %v570
    %v572 = vadd.s32 %v571, 536870912
    %v573 = vshrl.u32 %v572, 30
    %v574 = vshll.u32 %v573, 30
    %v575 = vsub.s32 %v571, %v574
    %vm576 = vcmp.lt.s32.totalorder %v575, 0
    %v577 = vsub.s32 0, %v575
    %v578 = vsel %vm576, %v577, %v575
    %v579 = vclz %v578
    %v580 = vsub.s32 %v579, 2
    %vm581 = vcmp.gt.s32.totalorder 0, %v580
    %v582 = vsel %vm581, 0, %v580
    %v583 = vsub.s32 32, %v582
    %v584 = vshll.u32 %v575, %v582
    %v585 = vshrl.u32 %v567, %v583
    %v586 = vor.u32 %v584, %v585
    %v587 = vsub.s32 4294967266, %v582
    %v588 = vadd.s32 %v587, 127
    %v589 = vshll.u32 %v588, 23
    %v590 = vor.u32 4788187, %v589
    %v591 = vand.u32 2147483647, %v590
    %v593 = vcvt.s32.f32 %v586
    %v594 = vmul.f32 %v593, %v591
    %v595 = vxor.u32 %v594, 2147483648
    %v596 = vsel %vm513, %v595, %v594
    %v597 = vsub.s32 4, %v573
    %v598 = vsel %vm513, %v597, %v573
    %v599 = vsel %vm512, %v510, %v596
    %v600 = vsel %vm512, 0, %v598
    %v601 = vcosq.f32.pop %v599
    %v602 = vsinq.f32.pop %v599
    %vm603 = vweird.f32 %v510
    %v604 = vadd.s32 %v600, 3
    %v605 = vand.u32 %v604, 3
    %vm606 = vcmp.lt.s32.totalorder %v605, 2
    %vm607 = vcmp.eq.s32.totalorder %v605, 0
    %v608 = vxor.u32 %v602, 2147483648
    %v609 = vsel %vm607, %v601, %v608
    %vm610 = vcmp.eq.s32.totalorder %v605, 2
    %v611 = vxor.u32 %v601, 2147483648
    %v612 = vsel %vm610, %v611, %v602
    %v613 = vsel %vm606, %v609, %v612
    %v614 = vsel %vm603, nan, %v613
    %v615 = vpack.c.bf16 %v614, %v614
    %v617 = vsel %vm232, %v615, 0
    %619 = vmatprep.subr.bf16.mxu0 0
    %620 = vmatpush1.bf16.msra.mxu0 %v228
    %621 = vmatprep.subr.bf16.mxu0 0
    %622 = vmatpush1.bf16.msra.mxu0 %v229
    %623 = vmatprep.subr.bf16.mxu0 0
    %624 = vmatpush1.bf16.msra.mxu0 0
    %625 = vmatprep.subr.bf16.mxu0 0
    %626 = vmatpush1.bf16.msra.mxu0 0
    %627 = vmatprep.subr.bf16.mxu0 0
    %628 = vmatpush1.bf16.msra.mxu0 0
    %629 = vmatprep.subr.bf16.mxu0 0
    %630 = vmatpush1.bf16.msra.mxu0 0
    %631 = vmatprep.subr.bf16.mxu0 0
    %632 = vmatpush1.bf16.msra.mxu0 0
    %633 = vmatprep.subr.bf16.mxu0 0
    %634 = vmatpush1.bf16.msra.mxu0 0
    %635 = vmatprep.subr.bf16.mxu0 0
    %636 = vmatpush1.bf16.msra.mxu0 0
    %637 = vmatprep.subr.bf16.mxu0 0
    %638 = vmatpush1.bf16.msra.mxu0 0
    %639 = vmatprep.subr.bf16.mxu0 0
    %640 = vmatpush1.bf16.msra.mxu0 0
    %641 = vmatprep.subr.bf16.mxu0 0
    %642 = vmatpush1.bf16.msra.mxu0 0
    %643 = vmatprep.subr.bf16.mxu0 0
    %644 = vmatpush1.bf16.msra.mxu0 0
    %645 = vmatprep.subr.bf16.mxu0 0
    %646 = vmatpush1.bf16.msra.mxu0 0
    %647 = vmatprep.subr.bf16.mxu0 0
    %648 = vmatpush1.bf16.msra.mxu0 0
    %649 = vmatprep.subr.bf16.mxu0 0
    %650 = vmatpush1.bf16.msra.mxu0 0
    %651 = vmatprep.mubr.bf16.mxu0 0
    %652 = vmatmul.mubr.bf16.gmra.mrb[0].mxu0 %v617
    %v653 = vpop.f32.mrb[0].mxu0
    %v654 = vadd.f32 0.0, %v653
    %v655 = vpop.f32.mrb[0].mxu0
    %v656 = vpop.f32.mrb[0].mxu0
    %v657 = vpop.f32.mrb[0].mxu0
    %658 = vdwg.mxu0
    %660 = vset.pattern.permute.xlu0 0
    %661 = vperm.xlu0 %660, %v502
    %v662 = vpop.permute.xlu0 %661
    %v664 = vmul.f32 %v662, %v285
    %v665 = vmul.f32 %v664, %v654
    %667 = vrot.lane.b32.xlu0 %v654, 64
    %v668 = vpop.permute.xlu0 %667
    %v670 = vadd.f32 %v665, %v668
    %671 = vset.pattern.permute.xlu0 1
    %672 = vperm.xlu0 %671, %v503
    %v673 = vpop.permute.xlu0 %672
    %v675 = vmul.f32 %v673, %v104
    %v676 = vadd.f32 %v675, %v109
    %v677 = vand.u32 2147483647, %v676
    %vm678 = vcmp.le.f32.partialorder %v677, 0.7853982
    %vm679 = vcmp.lt.s32.totalorder %v676, 0
    %v680 = vand.u32 %v676, 2139095040
    %v681 = vshrl.u32 %v680, 23
    %v682 = vsub.s32 %v681, 127
    %v683 = vand.u32 2147483647, %v676
    %v684 = vand.u32 %v683, 8388607
    %v685 = vor.u32 %v684, 8388608
    %v686 = vsub.s32 0, %v685
    %v687 = vadd.s32 %v682, 1
    %vm688 = vcmp.gt.s32.totalorder %v687, 0
    %v689 = vsel %vm688, %v687, 0
    %v690 = vshrl.u32 %v689, 5
    %v691 = vand.u32 %v689, 31
    %v692 = vsub.s32 32, %v691
    %v693 = vshrl.u32 683565275, %v692
    %v694 = vshll.u32 683565275, %v691
    %v695 = vshrl.u32 2475754826, %v692
    %v696 = vor.u32 %v694, %v695
    %v697 = vshll.u32 2475754826, %v691
    %v698 = vshrl.u32 2131351028, %v692
    %v699 = vor.u32 %v697, %v698
    %v700 = vshll.u32 2131351028, %v691
    %v701 = vshrl.u32 2102212464, %v692
    %v702 = vor.u32 %v700, %v701
    %v703 = vshll.u32 2102212464, %v691
    %v704 = vshrl.u32 920167782, %v692
    %v705 = vor.u32 %v703, %v704
    %v706 = vshll.u32 920167782, %v691
    %v707 = vshrl.u32 1326507024, %v692
    %v708 = vor.u32 %v706, %v707
    %vm709 = vcmp.lt.s32.totalorder %v690, 1
    %vm710 = vcmp.lt.s32.totalorder %v690, 2
    %vm711 = vcmp.lt.s32.totalorder %v690, 3
    %vm712 = vcmp.lt.s32.totalorder %v690, 4
    %v713 = vsel %vm709, %v693, %v696
    %v714 = vsel %vm712, %v702, 2102212464
    %v715 = vsel %vm711, %v699, %v714
    %v716 = vsel %vm710, %v713, %v715
    %v717 = vsel %vm709, %v696, %v699
    %v718 = vsel %vm712, %v705, 920167782
    %v719 = vsel %vm711, %v702, %v718
    %v720 = vsel %vm710, %v717, %v719
    %v721 = vsel %vm709, %v699, %v702
    %v722 = vsel %vm712, %v708, 1326507024
    %v723 = vsel %vm711, %v705, %v722
    %v724 = vsel %vm710, %v721, %v723
    %v725 = vshll.u32 %v685, 8
    %v726 = vmul.u32.u64.compose %v725, %v724
    %v727 = vextract.low.u32 %v726
    %v728 = vextract.high.u32 %v726
    %v729 = vmul.u32.u64.compose %v725, %v720
    %v730 = vextract.low.u32 %v729
    %v731 = vextract.high.u32 %v729
    %v732 = vmul.u32 %v725, %v716
    %v733 = vadd.s32 %v728, %v730
    %vm734 = vc.u32 %v728, %v730
    %v735 = vadd.s32 %v731, 1
    %v736 = vsel %vm734, %v735, %v731
    %v737 = vadd.s32 %v732, %v736
    %v738 = vadd.s32 %v737, 536870912
    %v739 = vshrl.u32 %v738, 30
    %v740 = vshll.u32 %v739, 30
    %v741 = vsub.s32 %v737, %v740
    %vm742 = vcmp.lt.s32.totalorder %v741, 0
    %v743 = vsub.s32 0, %v741
    %v744 = vsel %vm742, %v743, %v741
    %v745 = vclz %v744
    %v746 = vsub.s32 %v745, 2
    %vm747 = vcmp.gt.s32.totalorder 0, %v746
    %v748 = vsel %vm747, 0, %v746
    %v749 = vsub.s32 32, %v748
    %v750 = vshll.u32 %v741, %v748
    %v751 = vshrl.u32 %v733, %v749
    %v752 = vor.u32 %v750, %v751
    %v753 = vsub.s32 4294967266, %v748
    %v754 = vadd.s32 %v753, 127
    %v755 = vshll.u32 %v754, 23
    %v756 = vor.u32 4788187, %v755
    %v757 = vand.u32 2147483647, %v756
    %v759 = vcvt.s32.f32 %v752
    %v760 = vmul.f32 %v759, %v757
    %v761 = vxor.u32 %v760, 2147483648
    %v762 = vsel %vm679, %v761, %v760
    %v763 = vsub.s32 4, %v739
    %v764 = vsel %vm679, %v763, %v739
    %v765 = vsel %vm678, %v676, %v762
    %v766 = vsel %vm678, 0, %v764
    %v767 = vcosq.f32.pop %v765
    %v768 = vsinq.f32.pop %v765
    %vm769 = vweird.f32 %v676
    %v770 = vadd.s32 %v766, 3
    %v771 = vand.u32 %v770, 3
    %vm772 = vcmp.lt.s32.totalorder %v771, 2
    %vm773 = vcmp.eq.s32.totalorder %v771, 0
    %v774 = vxor.u32 %v768, 2147483648
    %v775 = vsel %vm773, %v767, %v774
    %vm776 = vcmp.eq.s32.totalorder %v771, 2
    %v777 = vxor.u32 %v767, 2147483648
    %v778 = vsel %vm776, %v777, %v768
    %v779 = vsel %vm772, %v775, %v778
    %v780 = vsel %vm769, nan, %v779
    %v781 = vpack.c.bf16 %v780, %v780
    %v783 = vsel %vm232, %v781, 0
    %785 = vmatprep.subr.bf16.mxu0 0
    %786 = vmatpush1.bf16.msra.mxu0 %v417
    %787 = vmatprep.subr.bf16.mxu0 0
    %788 = vmatpush1.bf16.msra.mxu0 %v418
    %789 = vmatprep.subr.bf16.mxu0 0
    %790 = vmatpush1.bf16.msra.mxu0 0
    %791 = vmatprep.subr.bf16.mxu0 0
    %792 = vmatpush1.bf16.msra.mxu0 0
    %793 = vmatprep.subr.bf16.mxu0 0
    %794 = vmatpush1.bf16.msra.mxu0 0
    %795 = vmatprep.subr.bf16.mxu0 0
    %796 = vmatpush1.bf16.msra.mxu0 0
    %797 = vmatprep.subr.bf16.mxu0 0
    %798 = vmatpush1.bf16.msra.mxu0 0
    %799 = vmatprep.subr.bf16.mxu0 0
    %800 = vmatpush1.bf16.msra.mxu0 0
    %801 = vmatprep.subr.bf16.mxu0 0
    %802 = vmatpush1.bf16.msra.mxu0 0
    %803 = vmatprep.subr.bf16.mxu0 0
    %804 = vmatpush1.bf16.msra.mxu0 0
    %805 = vmatprep.subr.bf16.mxu0 0
    %806 = vmatpush1.bf16.msra.mxu0 0
    %807 = vmatprep.subr.bf16.mxu0 0
    %808 = vmatpush1.bf16.msra.mxu0 0
    %809 = vmatprep.subr.bf16.mxu0 0
    %810 = vmatpush1.bf16.msra.mxu0 0
    %811 = vmatprep.subr.bf16.mxu0 0
    %812 = vmatpush1.bf16.msra.mxu0 0
    %813 = vmatprep.subr.bf16.mxu0 0
    %814 = vmatpush1.bf16.msra.mxu0 0
    %815 = vmatprep.subr.bf16.mxu0 0
    %816 = vmatpush1.bf16.msra.mxu0 0
    %817 = vmatprep.mubr.bf16.mxu0 0
    %818 = vmatmul.mubr.bf16.gmra.mrb[0].mxu0 %v783
    %v819 = vpop.f32.mrb[0].mxu0
    %v820 = vadd.f32 0.0, %v819
    %v821 = vpop.f32.mrb[0].mxu0
    %v822 = vpop.f32.mrb[0].mxu0
    %v823 = vpop.f32.mrb[0].mxu0
    %824 = vdwg.mxu0
    %825 = vset.pattern.permute.xlu0 1
    %826 = vperm.xlu0 %825, %v502
    %v827 = vpop.permute.xlu0 %826
    %v829 = vmul.f32 %v827, %v472
    %v830 = vmul.f32 %v829, %v820
    %832 = vrot.lane.b32.xlu0 %v820, 64
    %v833 = vpop.permute.xlu0 %832
    %v835 = vadd.f32 %v830, %v833
    %s836 = sadd.s32 %s93, 1
    %s837 = smul.u32 %s836, 128
    %s838 = sld [smem:[#allocation3 + %s837]]
    %v839 = vstv %s838
    %vm840 = vcmp.lt.s32.totalorder %v92, %v839
    %vm841 = vmand %vm483, %vm840
    %vm842 = vmor %vm480, %vm841
    %s843 = sadd.s32 %s837, 1
    %s844 = sld [smem:[#allocation3 + %s843]]
    %v845 = vstv %s844
    %vm846 = vcmp.lt.s32.totalorder %v493, %v845
    %vm847 = vmand %vm492, %vm846
    %vm848 = vmor %vm842, %vm847
    %v849 = vsel %vm848, 0.0, -1e+09
    %v850 = vld [vmem:[#allocation7] sm:$0xff]
    %v851 = vld [vmem:[#allocation7 + $0x8] sm:$0xff]
    %vm852 = vcmask 523264
    %v853 = vsel %vm852, %v292, 0.0
    %854 = vadd.xlane.f32.xlu0 %v853
    %v855 = vpop.xlane.xlu0 %854
    %v856 = vsel %vm852, %v479, 0.0
    %857 = vadd.xlane.f32.xlu0 %v856
    %v858 = vpop.xlane.xlu0 %857
    %v859 = vsel %vm852, %v90, 0.0
    %860 = vadd.xlane.f32.xlu0 %v859
    %v861 = vpop.xlane.xlu0 %860
    %v862 = vsel %vm852, %v670, 0.0
    %863 = vadd.xlane.f32.xlu0 %v862
    %v864 = vpop.xlane.xlu0 %863
    %v865 = vsel %vm852, %v835, 0.0
    %866 = vadd.xlane.f32.xlu0 %v865
    %v867 = vpop.xlane.xlu0 %866
    %v868 = vrcp.pop 64.0
    %v869 = vmul.f32 %v855, %v868
    %v870 = vmul.f32 %v858, %v868
    %v871 = vmul.f32 %v861, %v868
    %v872 = vmul.f32 %v864, %v868
    %v873 = vmul.f32 %v867, %v868
    %v874 = vsub.f32 %v292, %v869
    %v875 = vsub.f32 %v479, %v870
    %v876 = vsub.f32 %v90, %v871
    %v877 = vsub.f32 %v670, %v872
    %v878 = vsub.f32 %v835, %v873
    %v879 = vmul.f32 %v874, %v874
    %v880 = vmul.f32 %v875, %v875
    %v881 = vmul.f32 %v876, %v876
    %v882 = vmul.f32 %v877, %v877
    %v883 = vmul.f32 %v878, %v878
    %v884 = vsel %vm852, %v879, 0.0
    %885 = vadd.xlane.f32.xlu0 %v884
    %v886 = vpop.xlane.xlu0 %885
    %v887 = vsel %vm852, %v880, 0.0
    %888 = vadd.xlane.f32.xlu0 %v887
    %v889 = vpop.xlane.xlu0 %888
    %v890 = vsel %vm852, %v881, 0.0
    %891 = vadd.xlane.f32.xlu0 %v890
    %v892 = vpop.xlane.xlu0 %891
    %v893 = vsel %vm852, %v882, 0.0
    %894 = vadd.xlane.f32.xlu0 %v893
    %v895 = vpop.xlane.xlu0 %894
    %v896 = vsel %vm852, %v883, 0.0
    %897 = vadd.xlane.f32.xlu0 %v896
    %v898 = vpop.xlane.xlu0 %897
    %v899 = vmul.f32 %v886, %v868
    %v900 = vmul.f32 %v889, %v868
    %v901 = vmul.f32 %v892, %v868
    %v902 = vmul.f32 %v895, %v868
    %v903 = vmul.f32 %v898, %v868
    %v904 = vadd.f32 %v899, 1e-05
    %v905 = vadd.f32 %v900, 1e-05
    %v906 = vadd.f32 %v901, 1e-05
    %v907 = vadd.f32 %v902, 1e-05
    %v908 = vadd.f32 %v903, 1e-05
    %v909 = vrsqrt.pop %v904
    %v910 = vrsqrt.pop %v905
    %v911 = vrsqrt.pop %v906
    %v912 = vrsqrt.pop %v907
    %v913 = vrsqrt.pop %v908
    %v914 = vmul.f32 %v874, %v909
    %v915 = vmul.f32 %v875, %v910
    %v916 = vmul.f32 %v876, %v911
    %v917 = vmul.f32 %v877, %v912
    %v918 = vmul.f32 %v878, %v913
    %v919 = vlaneseq
    %v920 = vshrl.u32 %v919, 7
    %v921 = vsub.s32 0, %v920
    %v922 = vrot.slane %v850, %v921
    %v923 = vmul.f32 %v914, %v922
    %v924 = vmul.f32 %v915, %v922
    %v925 = vmul.f32 %v916, %v922
    %v926 = vmul.f32 %v917, %v922
    %v927 = vmul.f32 %v918, %v922
    %v928 = vlaneseq
    %v929 = vshrl.u32 %v928, 7
    %v930 = vsub.s32 1, %v929
    %v931 = vrot.slane %v850, %v930
    %v932 = vadd.f32 %v923, %v931
    %v933 = vadd.f32 %v924, %v931
    %v934 = vadd.f32 %v925, %v931
    %v935 = vadd.f32 %v926, %v931
    %v936 = vadd.f32 %v927, %v931
    %v937 = vpack.c.bf16 %v933, %v932
    %v938 = vpack.c.bf16 %v935, %v934
    %v939 = vpack.c.bf16 %v934, %v936
    %v940 = vld [vmem:[%s5] sm:$0xff]
    %v941 = vld [vmem:[%s5 + $0x8] sm:$0xff]
    %v942 = vld [vmem:[%s5 + $0x10] sm:$0xff]
    %v943 = vld [vmem:[%s5 + $0x18] sm:$0xff]
    %v944 = vld [vmem:[%s5 + $0x20] sm:$0xff]
    %v945 = vld [vmem:[%s5 + $0x28] sm:$0xff]
    %v946 = vld [vmem:[%s5 + $0x30] sm:$0xff]
    %v947 = vld [vmem:[%s5 + $0x38] sm:$0xff]
    %v948 = vlaneseq
    %v949 = vshrl.u32 %v948, 7
    %v950 = vsub.s32 2, %v949
    %v951 = vrot.slane %v850, %v950
    %v952 = vlaneseq
    %v953 = vshrl.u32 %v952, 7
    %v954 = vsub.s32 2, %v953
    %v955 = vrot.slane %v851, %v954
    %v964 = vunpack.c.l.b16 %v940
    %v965 = vunpack.c.h.b16 %v940
    %v966 = vunpack.c.l.b16 %v941
    %v967 = vunpack.c.h.b16 %v941
    %v968 = vunpack.c.l.b16 %v942
    %v969 = vunpack.c.h.b16 %v942
    %v970 = vunpack.c.l.b16 %v943
    %v971 = vunpack.c.h.b16 %v943
    %v972 = vunpack.c.l.b16 %v944
    %v973 = vunpack.c.h.b16 %v944
    %v974 = vunpack.c.l.b16 %v945
    %v975 = vunpack.c.h.b16 %v945
    %v976 = vunpack.c.l.b16 %v946
    %v977 = vunpack.c.h.b16 %v946
    %v978 = vunpack.c.l.b16 %v947
    %v979 = vunpack.c.h.b16 %v947
    %v980 = vpack.c.b16 %v966, %v964
    %v981 = vpack.c.b16 %v967, %v965
    %v982 = vpack.c.b16 %v970, %v968
    %v983 = vpack.c.b16 %v971, %v969
    %v984 = vpack.c.b16 %v974, %v972
    %v985 = vpack.c.b16 %v975, %v973
    %v986 = vpack.c.b16 %v978, %v976
    %v987 = vpack.c.b16 %v979, %v977
    %v997 = vsel %vm852, %v937, 0
    %v1000 = vsel %vm852, %v938, 0
    %v1003 = vsel %vm852, %v939, 0
    %1005 = vmatprep.subr.bf16.mxu0 %v981
    %1006 = vmatpush1.bf16.msra.mxu0 %v980
    %1007 = vmatprep.subr.bf16.mxu0 %v983
    %1008 = vmatpush1.bf16.msra.mxu0 %v982
    %1009 = vmatprep.subr.bf16.mxu0 %v985
    %1010 = vmatpush1.bf16.msra.mxu0 %v984
    %1011 = vmatprep.subr.bf16.mxu0 %v987
    %1012 = vmatpush1.bf16.msra.mxu0 %v986
    %1013 = vmatprep.subr.bf16.mxu0 0
    %1014 = vmatpush1.bf16.msra.mxu0 0
    %1015 = vmatprep.subr.bf16.mxu0 0
    %1016 = vmatpush1.bf16.msra.mxu0 0
    %1017 = vmatprep.subr.bf16.mxu0 0
    %1018 = vmatpush1.bf16.msra.mxu0 0
    %1019 = vmatprep.subr.bf16.mxu0 0
    %1020 = vmatpush1.bf16.msra.mxu0 0
    %1021 = vmatprep.subr.bf16.mxu0 0
    %1022 = vmatpush1.bf16.msra.mxu0 0
    %1023 = vmatprep.subr.bf16.mxu0 0
    %1024 = vmatpush1.bf16.msra.mxu0 0
    %1025 = vmatprep.subr.bf16.mxu0 0
    %1026 = vmatpush1.bf16.msra.mxu0 0
    %1027 = vmatprep.subr.bf16.mxu0 0
    %1028 = vmatpush1.bf16.msra.mxu0 0
    %1029 = vmatprep.subr.bf16.mxu0 0
    %1030 = vmatpush1.bf16.msra.mxu0 0
    %1031 = vmatprep.subr.bf16.mxu0 0
    %1032 = vmatpush1.bf16.msra.mxu0 0
    %1033 = vmatprep.subr.bf16.mxu0 0
    %1034 = vmatpush1.bf16.msra.mxu0 0
    %1035 = vmatprep.subr.bf16.mxu0 0
    %1036 = vmatpush1.bf16.msra.mxu0 0
    %1037 = vmatprep.mubr.bf16.mxu0 0
    %1038 = vmatmul.mubr.bf16.gmra.mrb[0].mxu0 %v997
    %v1039 = vpop.f32.mrb[0].mxu0
    %v1040 = vadd.f32 %v951, %v1039
    %v1041 = vpop.f32.mrb[0].mxu0
    %v1042 = vadd.f32 %v955, %v1041
    %v1043 = vpop.f32.mrb[0].mxu0
    %v1044 = vadd.f32 %v951, %v1043
    %v1045 = vpop.f32.mrb[0].mxu0
    %v1046 = vadd.f32 %v955, %v1045
    %1047 = vmatprep.mubr.bf16.mxu0 0
    %1048 = vmatmul.mubr.bf16.gmra.mrb[0].mxu0 %v1000
    %v1049 = vpop.f32.mrb[0].mxu0
    %v1050 = vadd.f32 %v951, %v1049
    %v1051 = vpop.f32.mrb[0].mxu0
    %v1052 = vadd.f32 %v955, %v1051
    %v1053 = vpop.f32.mrb[0].mxu0
    %v1054 = vadd.f32 %v951, %v1053
    %v1055 = vpop.f32.mrb[0].mxu0
    %v1056 = vadd.f32 %v955, %v1055
    %1057 = vmatprep.mubr.bf16.mxu0 0
    %1058 = vmatmul.mubr.bf16.gmra.mrb[0].mxu0 %v1003
    %v1059 = vpop.f32.mrb[0].mxu0
    %v1060 = vadd.f32 %v951, %v1059
    %v1061 = vpop.f32.mrb[0].mxu0
    %v1062 = vadd.f32 %v955, %v1061
    %v1063 = vpop.f32.mrb[0].mxu0
    %v1064 = vadd.f32 %v951, %v1063
    %v1065 = vpop.f32.mrb[0].mxu0
    %v1066 = vadd.f32 %v955, %v1065
    %1067 = vdwg.mxu0
    %v1068 = vld [vmem:[%s6] sm:$0xf]
    %v1069 = vld [vmem:[%s6 + $0x4] sm:$0xf]
    %v1070 = vld [vmem:[%s6 + $0x8] sm:$0xf]
    %v1071 = vld [vmem:[%s6 + $0xc] sm:$0xf]
    %v1072 = vld [vmem:[%s6 + $0x10] sm:$0xf]
    %v1073 = vld [vmem:[%s6 + $0x14] sm:$0xf]
    %v1074 = vld [vmem:[%s6 + $0x18] sm:$0xf]
    %v1075 = vld [vmem:[%s6 + $0x1c] sm:$0xf]
    %v1076 = vpack.c.bf16 %v1044, %v1040
    %v1077 = vpack.c.bf16 %v1050, %v1050
    %v1078 = vpack.c.bf16 %v1046, %v1042
    %v1079 = vpack.c.bf16 %v1052, %v1052
    %1082 = vrot.lane.b32.xlu0 %v1076, 64
    %v1083 = vpop.permute.xlu0 %1082
    %1084 = vrot.lane.b32.xlu0 %v1077, 64
    %v1085 = vpop.permute.xlu0 %1084
    %vm1086 = vcmask 130048
    %v1088 = vsel %vm1086, %v1076, 0
    %v1091 = vsel %vm1086, %v1077, 0
    %v1094 = vsel %vm1086, %v1083, 0
    %v1097 = vsel %vm1086, %v1085, 0
    %1099 = vmatprep.subr.bf16.mxu0 0
    %1100 = vmatpush1.bf16.xpose.msra.mxu0 %v1094
    %1101 = vmatprep.subr.bf16.mxu0 0
    %1102 = vmatpush1.bf16.xpose.msra.mxu0 %v1097
    %1103 = vmatprep.subr.bf16.mxu0 0
    %1104 = vmatpush1.bf16.xpose.msra.mxu0 0
    %1105 = vmatprep.subr.bf16.mxu0 0
    %1106 = vmatpush1.bf16.xpose.msra.mxu0 0
    %1107 = vmatprep.subr.bf16.mxu0 0
    %1108 = vmatpush1.bf16.xpose.msra.mxu0 0
    %1109 = vmatprep.subr.bf16.mxu0 0
    %1110 = vmatpush1.bf16.xpose.msra.mxu0 0
    %1111 = vmatprep.subr.bf16.mxu0 0
    %1112 = vmatpush1.bf16.xpose.msra.mxu0 0
    %1113 = vmatprep.subr.bf16.mxu0 0
    %1114 = vmatpush1.bf16.xpose.msra.mxu0 0
    %1115 = vmatprep.subr.bf16.mxu0 0
    %1116 = vmatpush1.bf16.xpose.msra.mxu0 0
    %1117 = vmatprep.subr.bf16.mxu0 0
    %1118 = vmatpush1.bf16.xpose.msra.mxu0 0
    %1119 = vmatprep.subr.bf16.mxu0 0
    %1120 = vmatpush1.bf16.xpose.msra.mxu0 0
    %1121 = vmatprep.subr.bf16.mxu0 0
    %1122 = vmatpush1.bf16.xpose.msra.mxu0 0
    %1123 = vmatprep.subr.bf16.mxu0 0
    %1124 = vmatpush1.bf16.xpose.msra.mxu0 0
    %1125 = vmatprep.subr.bf16.mxu0 0
    %1126 = vmatpush1.bf16.xpose.msra.mxu0 0
    %1127 = vmatprep.subr.bf16.mxu0 0
    %1128 = vmatpush1.bf16.xpose.msra.mxu0 0
    %1129 = vmatprep.subr.bf16.mxu0 0
    %1130 = vmatpush1.bf16.xpose.msra.mxu0 0
    %1131 = vmatprep.mubr.bf16.mxu0 0
    %1132 = vmatmul.mubr.bf16.gmra.mrb[0].mxu0 %v1088
    %v1133 = vpop.f32.mrb[0].mxu0
    %v1134 = vadd.f32 0.0, %v1133
    %v1135 = vpop.f32.mrb[0].mxu0
    %v1136 = vpop.f32.mrb[0].mxu0
    %v1137 = vadd.f32 0.0, %v1136
    %v1138 = vpop.f32.mrb[0].mxu0
    %1139 = vmatprep.mubr.bf16.mxu0 0
    %1140 = vmatmul.mubr.bf16.gmra.mrb[0].mxu0 %v1091
    %v1141 = vpop.f32.mrb[0].mxu0
    %v1142 = vadd.f32 0.0, %v1141
    %v1143 = vpop.f32.mrb[0].mxu0
    %v1144 = vpop.f32.mrb[0].mxu0
    %v1145 = vpop.f32.mrb[0].mxu0
    %1146 = vdwg.mxu0
    %v1147 = vmul.f32 %v1134, 0.25
    %v1148 = vmul.f32 %v1137, 0.25
    %v1149 = vmul.f32 %v1142, 0.25
    %v1150 = vadd.f32 %v1147, %v500
    %v1151 = vadd.f32 %v1148, %v500
    %v1152 = vadd.f32 %v1149, %v500
    %vm1153 = vcmask 195584
    %v1154 = vsel %vm1153, %v1150, -inf
    %1155 = vmax.xlane.f32.xlu0 %v1154
    %v1156 = vpop.xlane.xlu0 %1155
    %v1157 = vsel %vm1153, %v1151, -inf
    %1158 = vmax.xlane.f32.xlu0 %v1157
    %v1159 = vpop.xlane.xlu0 %1158
    %v1160 = vsel %vm1153, %v1152, -inf
    %1161 = vmax.xlane.f32.xlu0 %v1160
    %v1162 = vpop.xlane.xlu0 %1161
    %v1163 = vsub.f32 %v1150, %v1156
    %v1164 = vsub.f32 %v1151, %v1159
    %v1165 = vsub.f32 %v1152, %v1162
    %v1166 = vmul.f32 %v1163, 1.442695
    %v1167 = vpow.pop %v1166
    %v1168 = vmul.f32 %v1164, 1.442695
    %v1169 = vpow.pop %v1168
    %v1170 = vmul.f32 %v1165, 1.442695
    %v1171 = vpow.pop %v1170
    %v1172 = vsel %vm1153, %v1167, 0.0
    %1173 = vadd.xlane.f32.xlu0 %v1172
    %v1174 = vpop.xlane.xlu0 %1173
    %v1175 = vsel %vm1153, %v1169, 0.0
    %1176 = vadd.xlane.f32.xlu0 %v1175
    %v1177 = vpop.xlane.xlu0 %1176
    %v1178 = vsel %vm1153, %v1171, 0.0
    %1179 = vadd.xlane.f32.xlu0 %v1178
    %v1180 = vpop.xlane.xlu0 %1179
    %v1181 = vrcp.pop %v1174
    %v1182 = vrcp.pop %v1177
    %v1183 = vrcp.pop %v1180
    %v1184 = vmul.f32 %v1167, %v1181
    %v1185 = vmul.f32 %v1169, %v1182
    %v1186 = vmul.f32 %v1171, %v1183
    %v1187 = vpack.c.bf16 %v1185, %v1184
    %v1188 = vpack.c.bf16 %v1186, %v1186
    %v1190 = vsel %vm1153, %v1187, 0
    %v1193 = vsel %vm1153, %v1188, 0
    %vm1195 = vcmask 1043456
    %v1197 = vsel %vm1195, %v1079, 0
    %1199 = vmatprep.subr.bf16.mxu0 0
    %1200 = vmatpush1.bf16.msra.mxu0 %v1078
    %1201 = vmatprep.subr.bf16.mxu0 0
    %1202 = vmatpush1.bf16.msra.mxu0 %v1197
    %1203 = vmatprep.subr.bf16.mxu0 0
    %1204 = vmatpush1.bf16.msra.mxu0 0
    %1205 = vmatprep.subr.bf16.mxu0 0
    %1206 = vmatpush1.bf16.msra.mxu0 0
    %1207 = vmatprep.subr.bf16.mxu0 0
    %1208 = vmatpush1.bf16.msra.mxu0 0
    %1209 = vmatprep.subr.bf16.mxu0 0
    %1210 = vmatpush1.bf16.msra.mxu0 0
    %1211 = vmatprep.subr.bf16.mxu0 0
    %1212 = vmatpush1.bf16.msra.mxu0 0
    %1213 = vmatprep.subr.bf16.mxu0 0
    %1214 = vmatpush1.bf16.msra.mxu0 0
    %1215 = vmatprep.subr.bf16.mxu0 0
    %1216 = vmatpush1.bf16.msra.mxu0 0
    %1217 = vmatprep.subr.bf16.mxu0 0
    %1218 = vmatpush1.bf16.msra.mxu0 0
    %1219 = vmatprep.subr.bf16.mxu0 0
    %1220 = vmatpush1.bf16.msra.mxu0 0
    %1221 = vmatprep.subr.bf16.mxu0 0
    %1222 = vmatpush1.bf16.msra.mxu0 0
    %1223 = vmatprep.subr.bf16.mxu0 0
    %1224 = vmatpush1.bf16.msra.mxu0 0
    %1225 = vmatprep.subr.bf16.mxu0 0
    %1226 = vmatpush1.bf16.msra.mxu0 0
    %1227 = vmatprep.subr.bf16.mxu0 0
    %1228 = vmatpush1.bf16.msra.mxu0 0
    %1229 = vmatprep.subr.bf16.mxu0 0
    %1230 = vmatpush1.bf16.msra.mxu0 0
    %1231 = vmatprep.mubr.bf16.mxu0 0
    %1232 = vmatmul.mubr.bf16.gmra.mrb[0].mxu0 %v1190
    %v1233 = vpop.f32.mrb[0].mxu0
    %v1234 = vadd.f32 0.0, %v1233
    %v1235 = vpop.f32.mrb[0].mxu0
    %v1236 = vpop.f32.mrb[0].mxu0
    %v1237 = vadd.f32 0.0, %v1236
    %v1238 = vpop.f32.mrb[0].mxu0
    %1239 = vmatprep.mubr.bf16.mxu0 0
    %1240 = vmatmul.mubr.bf16.gmra.mrb[0].mxu0 %v1193
    %v1241 = vpop.f32.mrb[0].mxu0
    %v1242 = vadd.f32 0.0, %v1241
    %v1243 = vpop.f32.mrb[0].mxu0
    %v1244 = vpop.f32.mrb[0].mxu0
    %v1245 = vpop.f32.mrb[0].mxu0
    %1246 = vdwg.mxu0
    %v1247 = vpack.c.bf16 %v1237, %v1234
    %v1248 = vpack.c.bf16 %v1242, %v1242
    %1249 = vrot.lane.b32.xlu0 %v1076, 112
    %v1250 = vpop.permute.xlu0 %1249
    %1251 = vrot.lane.b32.xlu0 %v1077, 112
    %v1252 = vpop.permute.xlu0 %1251
    %1253 = vrot.lane.b32.xlu0 %v1076, 48
    %v1254 = vpop.permute.xlu0 %1253
    %1255 = vrot.lane.b32.xlu0 %v1077, 48
    %v1256 = vpop.permute.xlu0 %1255
    %v1258 = vsel %vm1086, %v1250, 0
    %v1261 = vsel %vm1086, %v1252, 0
    %v1264 = vsel %vm1086, %v1254, 0
    %v1267 = vsel %vm1086, %v1256, 0
    %1269 = vmatprep.subr.bf16.mxu0 0
    %1270 = vmatpush1.bf16.xpose.msra.mxu0 %v1264
    %1271 = vmatprep.subr.bf16.mxu0 0
    %1272 = vmatpush1.bf16.xpose.msra.mxu0 %v1267
    %1273 = vmatprep.subr.bf16.mxu0 0
    %1274 = vmatpush1.bf16.xpose.msra.mxu0 0
    %1275 = vmatprep.subr.bf16.mxu0 0
    %1276 = vmatpush1.bf16.xpose.msra.mxu0 0
    %1277 = vmatprep.subr.bf16.mxu0 0
    %1278 = vmatpush1.bf16.xpose.msra.mxu0 0
    %1279 = vmatprep.subr.bf16.mxu0 0
    %1280 = vmatpush1.bf16.xpose.msra.mxu0 0
    %1281 = vmatprep.subr.bf16.mxu0 0
    %1282 = vmatpush1.bf16.xpose.msra.mxu0 0
    %1283 = vmatprep.subr.bf16.mxu0 0
    %1284 = vmatpush1.bf16.xpose.msra.mxu0 0
    %1285 = vmatprep.subr.bf16.mxu0 0
    %1286 = vmatpush1.bf16.xpose.msra.mxu0 0
    %1287 = vmatprep.subr.bf16.mxu0 0
    %1288 = vmatpush1.bf16.xpose.msra.mxu0 0
    %1289 = vmatprep.subr.bf16.mxu0 0
    %1290 = vmatpush1.bf16.xpose.msra.mxu0 0
    %1291 = vmatprep.subr.bf16.mxu0 0
    %1292 = vmatpush1.bf16.xpose.msra.mxu0 0
    %1293 = vmatprep.subr.bf16.mxu0 0
    %1294 = vmatpush1.bf16.xpose.msra.mxu0 0
    %1295 = vmatprep.subr.bf16.mxu0 0
    %1296 = vmatpush1.bf16.xpose.msra.mxu0 0
    %1297 = vmatprep.subr.bf16.mxu0 0
    %1298 = vmatpush1.bf16.xpose.msra.mxu0 0
    %1299 = vmatprep.subr.bf16.mxu0 0
    %1300 = vmatpush1.bf16.xpose.msra.mxu0 0
    %1301 = vmatprep.mubr.bf16.mxu0 0
    %1302 = vmatmul.mubr.bf16.gmra.mrb[0].mxu0 %v1258
    %v1303 = vpop.f32.mrb[0].mxu0
    %v1304 = vadd.f32 0.0, %v1303
    %v1305 = vpop.f32.mrb[0].mxu0
    %v1306 = vpop.f32.mrb[0].mxu0
    %v1307 = vadd.f32 0.0, %v1306
    %v1308 = vpop.f32.mrb[0].mxu0
    %1309 = vmatprep.mubr.bf16.mxu0 0
    %1310 = vmatmul.mubr.bf16.gmra.mrb[0].mxu0 %v1261
    %v1311 = vpop.f32.mrb[0].mxu0
    %v1312 = vadd.f32 0.0, %v1311
    %v1313 = vpop.f32.mrb[0].mxu0
    %v1314 = vpop.f32.mrb[0].mxu0
    %v1315 = vpop.f32.mrb[0].mxu0
    %1316 = vdwg.mxu0
    %v1317 = vmul.f32 %v1304, 0.25
    %v1318 = vmul.f32 %v1307, 0.25
    %v1319 = vmul.f32 %v1312, 0.25
    %v1320 = vadd.f32 %v1317, %v500
    %v1321 = vadd.f32 %v1318, %v500
    %v1322 = vadd.f32 %v1319, %v500
    %v1323 = vsel %vm1153, %v1320, -inf
    %1324 = vmax.xlane.f32.xlu0 %v1323
    %v1325 = vpop.xlane.xlu0 %1324
    %v1326 = vsel %vm1153, %v1321, -inf
    %1327 = vmax.xlane.f32.xlu0 %v1326
    %v1328 = vpop.xlane.xlu0 %1327
    %v1329 = vsel %vm1153, %v1322, -inf
    %1330 = vmax.xlane.f32.xlu0 %v1329
    %v1331 = vpop.xlane.xlu0 %1330
    %v1332 = vsub.f32 %v1320, %v1325
    %v1333 = vsub.f32 %v1321, %v1328
    %v1334 = vsub.f32 %v1322, %v1331
    %v1335 = vmul.f32 %v1332, 1.442695
    %v1336 = vpow.pop %v1335
    %v1337 = vmul.f32 %v1333, 1.442695
    %v1338 = vpow.pop %v1337
    %v1339 = vmul.f32 %v1334, 1.442695
    %v1340 = vpow.pop %v1339
    %v1341 = vsel %vm1153, %v1336, 0.0
    %1342 = vadd.xlane.f32.xlu0 %v1341
    %v1343 = vpop.xlane.xlu0 %1342
    %v1344 = vsel %vm1153, %v1338, 0.0
    %1345 = vadd.xlane.f32.xlu0 %v1344
    %v1346 = vpop.xlane.xlu0 %1345
    %v1347 = vsel %vm1153, %v1340, 0.0
    %1348 = vadd.xlane.f32.xlu0 %v1347
    %v1349 = vpop.xlane.xlu0 %1348
    %v1350 = vrcp.pop %v1343
    %v1351 = vrcp.pop %v1346
    %v1352 = vrcp.pop %v1349
    %v1353 = vmul.f32 %v1336, %v1350
    %v1354 = vmul.f32 %v1338, %v1351
    %v1355 = vmul.f32 %v1340, %v1352
    %v1356 = vpack.c.bf16 %v1354, %v1353
    %v1357 = vpack.c.bf16 %v1355, %v1355
    %1360 = vrot.lane.b32.xlu0 %v1078, 112
    %v1361 = vpop.permute.xlu0 %1360
    %1362 = vrot.lane.b32.xlu0 %v1079, 112
    %v1363 = vpop.permute.xlu0 %1362
    %v1366 = vsel %vm1153, %v1356, 0
    %v1369 = vsel %vm1153, %v1357, 0
    %v1372 = vsel %vm1195, %v1363, 0
    %1374 = vmatprep.subr.bf16.mxu0 0
    %1375 = vmatpush1.bf16.msra.mxu0 %v1361
    %1376 = vmatprep.subr.bf16.mxu0 0
    %1377 = vmatpush1.bf16.msra.mxu0 %v1372
    %1378 = vmatprep.subr.bf16.mxu0 0
    %1379 = vmatpush1.bf16.msra.mxu0 0
    %1380 = vmatprep.subr.bf16.mxu0 0
    %1381 = vmatpush1.bf16.msra.mxu0 0
    %1382 = vmatprep.subr.bf16.mxu0 0
    %1383 = vmatpush1.bf16.msra.mxu0 0
    %1384 = vmatprep.subr.bf16.mxu0 0
    %1385 = vmatpush1.bf16.msra.mxu0 0
    %1386 = vmatprep.subr.bf16.mxu0 0
    %1387 = vmatpush1.bf16.msra.mxu0 0
    %1388 = vmatprep.subr.bf16.mxu0 0
    %1389 = vmatpush1.bf16.msra.mxu0 0
    %1390 = vmatprep.subr.bf16.mxu0 0
    %1391 = vmatpush1.bf16.msra.mxu0 0
    %1392 = vmatprep.subr.bf16.mxu0 0
    %1393 = vmatpush1.bf16.msra.mxu0 0
    %1394 = vmatprep.subr.bf16.mxu0 0
    %1395 = vmatpush1.bf16.msra.mxu0 0
    %1396 = vmatprep.subr.bf16.mxu0 0
    %1397 = vmatpush1.bf16.msra.mxu0 0
    %1398 = vmatprep.subr.bf16.mxu0 0
    %1399 = vmatpush1.bf16.msra.mxu0 0
    %1400 = vmatprep.subr.bf16.mxu0 0
    %1401 = vmatpush1.bf16.msra.mxu0 0
    %1402 = vmatprep.subr.bf16.mxu0 0
    %1403 = vmatpush1.bf16.msra.mxu0 0
    %1404 = vmatprep.subr.bf16.mxu0 0
    %1405 = vmatpush1.bf16.msra.mxu0 0
    %1406 = vmatprep.mubr.bf16.mxu0 0
    %1407 = vmatmul.mubr.bf16.gmra.mrb[0].mxu0 %v1366
    %v1408 = vpop.f32.mrb[0].mxu0
    %v1409 = vadd.f32 0.0, %v1408
    %v1410 = vpop.f32.mrb[0].mxu0
    %v1411 = vpop.f32.mrb[0].mxu0
    %v1412 = vadd.f32 0.0, %v1411
    %v1413 = vpop.f32.mrb[0].mxu0
    %1414 = vmatprep.mubr.bf16.mxu0 0
    %1415 = vmatmul.mubr.bf16.gmra.mrb[0].mxu0 %v1369
    %v1416 = vpop.f32.mrb[0].mxu0
    %v1417 = vadd.f32 0.0, %v1416
    %v1418 = vpop.f32.mrb[0].mxu0
    %v1419 = vpop.f32.mrb[0].mxu0
    %v1420 = vpop.f32.mrb[0].mxu0
    %1421 = vdwg.mxu0
    %v1422 = vpack.c.bf16 %v1412, %v1409
    %v1423 = vpack.c.bf16 %v1417, %v1417
    %v1426 = vunpack.c.l.b16 %v1070
    %v1427 = vunpack.c.l.b16 %v1071
    %v1428 = vpack.c.b16 %v1427, %v1426
    %v1431 = vsel %vm1086, %v1422, 0
    %v1434 = vsel %vm1086, %v1423, 0
    %1436 = vmatprep.subr.bf16.mxu0 0
    %1437 = vmatpush1.bf16.msra.mxu0 %v1428
    %1438 = vmatprep.subr.bf16.mxu0 0
    %1439 = vmatpush1.bf16.msra.mxu0 0
    %1440 = vmatprep.subr.bf16.mxu0 0
    %1441 = vmatpush1.bf16.msra.mxu0 0
    %1442 = vmatprep.subr.bf16.mxu0 0
    %1443 = vmatpush1.bf16.msra.mxu0 0
    %1444 = vmatprep.subr.bf16.mxu0 0
    %1445 = vmatpush1.bf16.msra.mxu0 0
    %1446 = vmatprep.subr.bf16.mxu0 0
    %1447 = vmatpush1.bf16.msra.mxu0 0
    %1448 = vmatprep.subr.bf16.mxu0 0
    %1449 = vmatpush1.bf16.msra.mxu0 0
    %1450 = vmatprep.subr.bf16.mxu0 0
    %1451 = vmatpush1.bf16.msra.mxu0 0
    %1452 = vmatprep.subr.bf16.mxu0 0
    %1453 = vmatpush1.bf16.msra.mxu0 0
    %1454 = vmatprep.subr.bf16.mxu0 0
    %1455 = vmatpush1.bf16.msra.mxu0 0
    %1456 = vmatprep.subr.bf16.mxu0 0
    %1457 = vmatpush1.bf16.msra.mxu0 0
    %1458 = vmatprep.subr.bf16.mxu0 0
    %1459 = vmatpush1.bf16.msra.mxu0 0
    %1460 = vmatprep.subr.bf16.mxu0 0
    %1461 = vmatpush1.bf16.msra.mxu0 0
    %1462 = vmatprep.subr.bf16.mxu0 0
    %1463 = vmatpush1.bf16.msra.mxu0 0
    %1464 = vmatprep.subr.bf16.mxu0 0
    %1465 = vmatpush1.bf16.msra.mxu0 0
    %1466 = vmatprep.subr.bf16.mxu0 0
    %1467 = vmatpush1.bf16.msra.mxu0 0
    %1468 = vmatprep.mubr.bf16.mxu0 0
    %1469 = vmatmul.mubr.bf16.gmra.mrb[0].mxu0 %v1431
    %v1470 = vpop.f32.mrb[0].mxu0
    %v1471 = vadd.f32 0.0, %v1470
    %v1472 = vpop.f32.mrb[0].mxu0
    %v1473 = vpop.f32.mrb[0].mxu0
    %v1474 = vadd.f32 0.0, %v1473
    %v1475 = vpop.f32.mrb[0].mxu0
    %1476 = vmatprep.mubr.bf16.mxu0 0
    %1477 = vmatmul.mubr.bf16.gmra.mrb[0].mxu0 %v1434
    %v1478 = vpop.f32.mrb[0].mxu0
    %v1479 = vadd.f32 0.0, %v1478
    %v1480 = vpop.f32.mrb[0].mxu0
    %v1481 = vpop.f32.mrb[0].mxu0
    %v1482 = vpop.f32.mrb[0].mxu0
    %1483 = vdwg.mxu0
    %v1486 = vunpack.c.l.b16 %v1068
    %v1487 = vunpack.c.l.b16 %v1069
    %v1488 = vpack.c.b16 %v1487, %v1486
    %v1491 = vsel %vm1086, %v1247, 0
    %v1494 = vsel %vm1086, %v1248, 0
    %1496 = vmatprep.subr.bf16.mxu0 0
    %1497 = vmatpush1.bf16.msra.mxu0 %v1488
    %1498 = vmatprep.subr.bf16.mxu0 0
    %1499 = vmatpush1.bf16.msra.mxu0 0
    %1500 = vmatprep.subr.bf16.mxu0 0
    %1501 = vmatpush1.bf16.msra.mxu0 0
    %1502 = vmatprep.subr.bf16.mxu0 0
    %1503 = vmatpush1.bf16.msra.mxu0 0
    %1504 = vmatprep.subr.bf16.mxu0 0
    %1505 = vmatpush1.bf16.msra.mxu0 0
    %1506 = vmatprep.subr.bf16.mxu0 0
    %1507 = vmatpush1.bf16.msra.mxu0 0
    %1508 = vmatprep.subr.bf16.mxu0 0
    %1509 = vmatpush1.bf16.msra.mxu0 0
    %1510 = vmatprep.subr.bf16.mxu0 0
    %1511 = vmatpush1.bf16.msra.mxu0 0
    %1512 = vmatprep.subr.bf16.mxu0 0
    %1513 = vmatpush1.bf16.msra.mxu0 0
    %1514 = vmatprep.subr.bf16.mxu0 0
    %1515 = vmatpush1.bf16.msra.mxu0 0
    %1516 = vmatprep.subr.bf16.mxu0 0
    %1517 = vmatpush1.bf16.msra.mxu0 0
    %1518 = vmatprep.subr.bf16.mxu0 0
    %1519 = vmatpush1.bf16.msra.mxu0 0
    %1520 = vmatprep.subr.bf16.mxu0 0
    %1521 = vmatpush1.bf16.msra.mxu0 0
    %1522 = vmatprep.subr.bf16.mxu0 0
    %1523 = vmatpush1.bf16.msra.mxu0 0
    %1524 = vmatprep.subr.bf16.mxu0 0
    %1525 = vmatpush1.bf16.msra.mxu0 0
    %1526 = vmatprep.subr.bf16.mxu0 0
    %1527 = vmatpush1.bf16.msra.mxu0 0
    %1528 = vmatprep.mubr.bf16.mxu0 0
    %1529 = vmatmul.mubr.bf16.gmra.mrb[0].mxu0 %v1491
    %v1530 = vpop.f32.mrb[0].mxu0
    %v1531 = vadd.f32 %v1471, %v1530
    %v1532 = vpop.f32.mrb[0].mxu0
    %v1533 = vpop.f32.mrb[0].mxu0
    %v1534 = vadd.f32 %v1474, %v1533
    %v1535 = vpop.f32.mrb[0].mxu0
    %1536 = vmatprep.mubr.bf16.mxu0 0
    %1537 = vmatmul.mubr.bf16.gmra.mrb[0].mxu0 %v1494
    %v1538 = vpop.f32.mrb[0].mxu0
    %v1539 = vadd.f32 %v1479, %v1538
    %v1540 = vpop.f32.mrb[0].mxu0
    %v1541 = vpop.f32.mrb[0].mxu0
    %v1542 = vpop.f32.mrb[0].mxu0
    %1543 = vdwg.mxu0
    %1544 = vrot.lane.b32.xlu0 %v1076, 96
    %v1545 = vpop.permute.xlu0 %1544
    %1546 = vrot.lane.b32.xlu0 %v1077, 96
    %v1547 = vpop.permute.xlu0 %1546
    %1548 = vrot.lane.b32.xlu0 %v1076, 32
    %v1549 = vpop.permute.xlu0 %1548
    %1550 = vrot.lane.b32.xlu0 %v1077, 32
    %v1551 = vpop.permute.xlu0 %1550
    %v1553 = vsel %vm1086, %v1545, 0
    %v1556 = vsel %vm1086, %v1547, 0
    %v1559 = vsel %vm1086, %v1549, 0
    %v1562 = vsel %vm1086, %v1551, 0
    %1564 = vmatprep.subr.bf16.mxu0 0
    %1565 = vmatpush1.bf16.xpose.msra.mxu0 %v1559
    %1566 = vmatprep.subr.bf16.mxu0 0
    %1567 = vmatpush1.bf16.xpose.msra.mxu0 %v1562
    %1568 = vmatprep.subr.bf16.mxu0 0
    %1569 = vmatpush1.bf16.xpose.msra.mxu0 0
    %1570 = vmatprep.subr.bf16.mxu0 0
    %1571 = vmatpush1.bf16.xpose.msra.mxu0 0
    %1572 = vmatprep.subr.bf16.mxu0 0
    %1573 = vmatpush1.bf16.xpose.msra.mxu0 0
    %1574 = vmatprep.subr.bf16.mxu0 0
    %1575 = vmatpush1.bf16.xpose.msra.mxu0 0
    %1576 = vmatprep.subr.bf16.mxu0 0
    %1577 = vmatpush1.bf16.xpose.msra.mxu0 0
    %1578 = vmatprep.subr.bf16.mxu0 0
    %1579 = vmatpush1.bf16.xpose.msra.mxu0 0
    %1580 = vmatprep.subr.bf16.mxu0 0
    %1581 = vmatpush1.bf16.xpose.msra.mxu0 0
    %1582 = vmatprep.subr.bf16.mxu0 0
    %1583 = vmatpush1.bf16.xpose.msra.mxu0 0
    %1584 = vmatprep.subr.bf16.mxu0 0
    %1585 = vmatpush1.bf16.xpose.msra.mxu0 0
    %1586 = vmatprep.subr.bf16.mxu0 0
    %1587 = vmatpush1.bf16.xpose.msra.mxu0 0
    %1588 = vmatprep.subr.bf16.mxu0 0
    %1589 = vmatpush1.bf16.xpose.msra.mxu0 0
    %1590 = vmatprep.subr.bf16.mxu0 0
    %1591 = vmatpush1.bf16.xpose.msra.mxu0 0
    %1592 = vmatprep.subr.bf16.mxu0 0
    %1593 = vmatpush1.bf16.xpose.msra.mxu0 0
    %1594 = vmatprep.subr.bf16.mxu0 0
    %1595 = vmatpush1.bf16.xpose.msra.mxu0 0
    %1596 = vmatprep.mubr.bf16.mxu0 0
    %1597 = vmatmul.mubr.bf16.gmra.mrb[0].mxu0 %v1553
    %v1598 = vpop.f32.mrb[0].mxu0
    %v1599 = vadd.f32 0.0, %v1598
    %v1600 = vpop.f32.mrb[0].mxu0
    %v1601 = vpop.f32.mrb[0].mxu0
    %v1602 = vadd.f32 0.0, %v1601
    %v1603 = vpop.f32.mrb[0].mxu0
    %1604 = vmatprep.mubr.bf16.mxu0 0
    %1605 = vmatmul.mubr.bf16.gmra.mrb[0].mxu0 %v1556
    %v1606 = vpop.f32.mrb[0].mxu0
    %v1607 = vadd.f32 0.0, %v1606
    %v1608 = vpop.f32.mrb[0].mxu0
    %v1609 = vpop.f32.mrb[0].mxu0
    %v1610 = vpop.f32.mrb[0].mxu0
    %1611 = vdwg.mxu0
    %v1612 = vmul.f32 %v1599, 0.25
    %v1613 = vmul.f32 %v1602, 0.25
    %v1614 = vmul.f32 %v1607, 0.25
    %v1615 = vadd.f32 %v1612, %v500
    %v1616 = vadd.f32 %v1613, %v500
    %v1617 = vadd.f32 %v1614, %v500
    %v1618 = vsel %vm1153, %v1615, -inf
    %1619 = vmax.xlane.f32.xlu0 %v1618
    %v1620 = vpop.xlane.xlu0 %1619
    %v1621 = vsel %vm1153, %v1616, -inf
    %1622 = vmax.xlane.f32.xlu0 %v1621
    %v1623 = vpop.xlane.xlu0 %1622
    %v1624 = vsel %vm1153, %v1617, -inf
    %1625 = vmax.xlane.f32.xlu0 %v1624
    %v1626 = vpop.xlane.xlu0 %1625
    %v1627 = vsub.f32 %v1615, %v1620
    %v1628 = vsub.f32 %v1616, %v1623
    %v1629 = vsub.f32 %v1617, %v1626
    %v1630 = vmul.f32 %v1627, 1.442695
    %v1631 = vpow.pop %v1630
    %v1632 = vmul.f32 %v1628, 1.442695
    %v1633 = vpow.pop %v1632
    %v1634 = vmul.f32 %v1629, 1.442695
    %v1635 = vpow.pop %v1634
    %v1636 = vsel %vm1153, %v1631, 0.0
    %1637 = vadd.xlane.f32.xlu0 %v1636
    %v1638 = vpop.xlane.xlu0 %1637
    %v1639 = vsel %vm1153, %v1633, 0.0
    %1640 = vadd.xlane.f32.xlu0 %v1639
    %v1641 = vpop.xlane.xlu0 %1640
    %v1642 = vsel %vm1153, %v1635, 0.0
    %1643 = vadd.xlane.f32.xlu0 %v1642
    %v1644 = vpop.xlane.xlu0 %1643
    %v1645 = vrcp.pop %v1638
    %v1646 = vrcp.pop %v1641
    %v1647 = vrcp.pop %v1644
    %v1648 = vmul.f32 %v1631, %v1645
    %v1649 = vmul.f32 %v1633, %v1646
    %v1650 = vmul.f32 %v1635, %v1647
    %v1651 = vpack.c.bf16 %v1649, %v1648
    %v1652 = vpack.c.bf16 %v1650, %v1650
    %1653 = vrot.lane.b32.xlu0 %v1078, 96
    %v1654 = vpop.permute.xlu0 %1653
    %1655 = vrot.lane.b32.xlu0 %v1079, 96
    %v1656 = vpop.permute.xlu0 %1655
    %v1659 = vsel %vm1153, %v1651, 0
    %v1662 = vsel %vm1153, %v1652, 0
    %v1665 = vsel %vm1195, %v1656, 0
    %1667 = vmatprep.subr.bf16.mxu0 0
    %1668 = vmatpush1.bf16.msra.mxu0 %v1654
    %1669 = vmatprep.subr.bf16.mxu0 0
    %1670 = vmatpush1.bf16.msra.mxu0 %v1665
    %1671 = vmatprep.subr.bf16.mxu0 0
    %1672 = vmatpush1.bf16.msra.mxu0 0
    %1673 = vmatprep.subr.bf16.mxu0 0
    %1674 = vmatpush1.bf16.msra.mxu0 0
    %1675 = vmatprep.subr.bf16.mxu0 0
    %1676 = vmatpush1.bf16.msra.mxu0 0
    %1677 = vmatprep.subr.bf16.mxu0 0
    %1678 = vmatpush1.bf16.msra.mxu0 0
    %1679 = vmatprep.subr.bf16.mxu0 0
    %1680 = vmatpush1.bf16.msra.mxu0 0
    %1681 = vmatprep.subr.bf16.mxu0 0
    %1682 = vmatpush1.bf16.msra.mxu0 0
    %1683 = vmatprep.subr.bf16.mxu0 0
    %1684 = vmatpush1.bf16.msra.mxu0 0
    %1685 = vmatprep.subr.bf16.mxu0 0
    %1686 = vmatpush1.bf16.msra.mxu0 0
    %1687 = vmatprep.subr.bf16.mxu0 0
    %1688 = vmatpush1.bf16.msra.mxu0 0
    %1689 = vmatprep.subr.bf16.mxu0 0
    %1690 = vmatpush1.bf16.msra.mxu0 0
    %1691 = vmatprep.subr.bf16.mxu0 0
    %1692 = vmatpush1.bf16.msra.mxu0 0
    %1693 = vmatprep.subr.bf16.mxu0 0
    %1694 = vmatpush1.bf16.msra.mxu0 0
    %1695 = vmatprep.subr.bf16.mxu0 0
    %1696 = vmatpush1.bf16.msra.mxu0 0
    %1697 = vmatprep.subr.bf16.mxu0 0
    %1698 = vmatpush1.bf16.msra.mxu0 0
    %1699 = vmatprep.mubr.bf16.mxu0 0
    %1700 = vmatmul.mubr.bf16.gmra.mrb[0].mxu0 %v1659
    %v1701 = vpop.f32.mrb[0].mxu0
    %v1702 = vadd.f32 0.0, %v1701
    %v1703 = vpop.f32.mrb[0].mxu0
    %v1704 = vpop.f32.mrb[0].mxu0
    %v1705 = vadd.f32 0.0, %v1704
    %v1706 = vpop.f32.mrb[0].mxu0
    %1707 = vmatprep.mubr.bf16.mxu0 0
    %1708 = vmatmul.mubr.bf16.gmra.mrb[0].mxu0 %v1662
    %v1709 = vpop.f32.mrb[0].mxu0
    %v1710 = vadd.f32 0.0, %v1709
    %v1711 = vpop.f32.mrb[0].mxu0
    %v1712 = vpop.f32.mrb[0].mxu0
    %v1713 = vpop.f32.mrb[0].mxu0
    %1714 = vdwg.mxu0
    %v1715 = vpack.c.bf16 %v1705, %v1702
    %v1716 = vpack.c.bf16 %v1710, %v1710
    %v1719 = vunpack.c.l.b16 %v1072
    %v1720 = vunpack.c.l.b16 %v1073
    %v1721 = vpack.c.b16 %v1720, %v1719
    %v1724 = vsel %vm1086, %v1715, 0
    %v1727 = vsel %vm1086, %v1716, 0
    %1729 = vmatprep.subr.bf16.mxu0 0
    %1730 = vmatpush1.bf16.msra.mxu0 %v1721
    %1731 = vmatprep.subr.bf16.mxu0 0
    %1732 = vmatpush1.bf16.msra.mxu0 0
    %1733 = vmatprep.subr.bf16.mxu0 0
    %1734 = vmatpush1.bf16.msra.mxu0 0
    %1735 = vmatprep.subr.bf16.mxu0 0
    %1736 = vmatpush1.bf16.msra.mxu0 0
    %1737 = vmatprep.subr.bf16.mxu0 0
    %1738 = vmatpush1.bf16.msra.mxu0 0
    %1739 = vmatprep.subr.bf16.mxu0 0
    %1740 = vmatpush1.bf16.msra.mxu0 0
    %1741 = vmatprep.subr.bf16.mxu0 0
    %1742 = vmatpush1.bf16.msra.mxu0 0
    %1743 = vmatprep.subr.bf16.mxu0 0
    %1744 = vmatpush1.bf16.msra.mxu0 0
    %1745 = vmatprep.subr.bf16.mxu0 0
    %1746 = vmatpush1.bf16.msra.mxu0 0
    %1747 = vmatprep.subr.bf16.mxu0 0
    %1748 = vmatpush1.bf16.msra.mxu0 0
    %1749 = vmatprep.subr.bf16.mxu0 0
    %1750 = vmatpush1.bf16.msra.mxu0 0
    %1751 = vmatprep.subr.bf16.mxu0 0
    %1752 = vmatpush1.bf16.msra.mxu0 0
    %1753 = vmatprep.subr.bf16.mxu0 0
    %1754 = vmatpush1.bf16.msra.mxu0 0
    %1755 = vmatprep.subr.bf16.mxu0 0
    %1756 = vmatpush1.bf16.msra.mxu0 0
    %1757 = vmatprep.subr.bf16.mxu0 0
    %1758 = vmatpush1.bf16.msra.mxu0 0
    %1759 = vmatprep.subr.bf16.mxu0 0
    %1760 = vmatpush1.bf16.msra.mxu0 0
    %1761 = vmatprep.mubr.bf16.mxu0 0
    %1762 = vmatmul.mubr.bf16.gmra.mrb[0].mxu0 %v1724
    %v1763 = vpop.f32.mrb[0].mxu0
    %v1764 = vadd.f32 0.0, %v1763
    %v1765 = vpop.f32.mrb[0].mxu0
    %v1766 = vpop.f32.mrb[0].mxu0
    %v1767 = vadd.f32 0.0, %v1766
    %v1768 = vpop.f32.mrb[0].mxu0
    %1769 = vmatprep.mubr.bf16.mxu0 0
    %1770 = vmatmul.mubr.bf16.gmra.mrb[0].mxu0 %v1727
    %v1771 = vpop.f32.mrb[0].mxu0
    %v1772 = vadd.f32 0.0, %v1771
    %v1773 = vpop.f32.mrb[0].mxu0
    %v1774 = vpop.f32.mrb[0].mxu0
    %v1775 = vpop.f32.mrb[0].mxu0
    %1776 = vdwg.mxu0
    %v1777 = vadd.f32 %v1531, %v1764
    %v1778 = vadd.f32 %v1534, %v1767
    %v1779 = vadd.f32 %v1539, %v1772
    %1780 = vrot.lane.b32.xlu0 %v1076, 80
    %v1781 = vpop.permute.xlu0 %1780
    %1782 = vrot.lane.b32.xlu0 %v1077, 80
    %v1783 = vpop.permute.xlu0 %1782
    %1784 = vrot.lane.b32.xlu0 %v1076, 16
    %v1785 = vpop.permute.xlu0 %1784
    %1786 = vrot.lane.b32.xlu0 %v1077, 16
    %v1787 = vpop.permute.xlu0 %1786
    %v1789 = vsel %vm1086, %v1781, 0
    %v1792 = vsel %vm1086, %v1783, 0
    %v1795 = vsel %vm1086, %v1785, 0
    %v1798 = vsel %vm1086, %v1787, 0
    %1800 = vmatprep.subr.bf16.mxu0 0
    %1801 = vmatpush1.bf16.xpose.msra.mxu0 %v1795
    %1802 = vmatprep.subr.bf16.mxu0 0
    %1803 = vmatpush1.bf16.xpose.msra.mxu0 %v1798
    %1804 = vmatprep.subr.bf16.mxu0 0
    %1805 = vmatpush1.bf16.xpose.msra.mxu0 0
    %1806 = vmatprep.subr.bf16.mxu0 0
    %1807 = vmatpush1.bf16.xpose.msra.mxu0 0
    %1808 = vmatprep.subr.bf16.mxu0 0
    %1809 = vmatpush1.bf16.xpose.msra.mxu0 0
    %1810 = vmatprep.subr.bf16.mxu0 0
    %1811 = vmatpush1.bf16.xpose.msra.mxu0 0
    %1812 = vmatprep.subr.bf16.mxu0 0
    %1813 = vmatpush1.bf16.xpose.msra.mxu0 0
    %1814 = vmatprep.subr.bf16.mxu0 0
    %1815 = vmatpush1.bf16.xpose.msra.mxu0 0
    %1816 = vmatprep.subr.bf16.mxu0 0
    %1817 = vmatpush1.bf16.xpose.msra.mxu0 0
    %1818 = vmatprep.subr.bf16.mxu0 0
    %1819 = vmatpush1.bf16.xpose.msra.mxu0 0
    %1820 = vmatprep.subr.bf16.mxu0 0
    %1821 = vmatpush1.bf16.xpose.msra.mxu0 0
    %1822 = vmatprep.subr.bf16.mxu0 0
    %1823 = vmatpush1.bf16.xpose.msra.mxu0 0
    %1824 = vmatprep.subr.bf16.mxu0 0
    %1825 = vmatpush1.bf16.xpose.msra.mxu0 0
    %1826 = vmatprep.subr.bf16.mxu0 0
    %1827 = vmatpush1.bf16.xpose.msra.mxu0 0
    %1828 = vmatprep.subr.bf16.mxu0 0
    %1829 = vmatpush1.bf16.xpose.msra.mxu0 0
    %1830 = vmatprep.subr.bf16.mxu0 0
    %1831 = vmatpush1.bf16.xpose.msra.mxu0 0
    %1832 = vmatprep.mubr.bf16.mxu0 0
    %1833 = vmatmul.mubr.bf16.gmra.mrb[0].mxu0 %v1789
    %v1834 = vpop.f32.mrb[0].mxu0
    %v1835 = vadd.f32 0.0, %v1834
    %v1836 = vpop.f32.mrb[0].mxu0
    %v1837 = vpop.f32.mrb[0].mxu0
    %v1838 = vadd.f32 0.0, %v1837
    %v1839 = vpop.f32.mrb[0].mxu0
    %1840 = vmatprep.mubr.bf16.mxu0 0
    %1841 = vmatmul.mubr.bf16.gmra.mrb[0].mxu0 %v1792
    %v1842 = vpop.f32.mrb[0].mxu0
    %v1843 = vadd.f32 0.0, %v1842
    %v1844 = vpop.f32.mrb[0].mxu0
    %v1845 = vpop.f32.mrb[0].mxu0
    %v1846 = vpop.f32.mrb[0].mxu0
    %1847 = vdwg.mxu0
    %v1848 = vmul.f32 %v1835, 0.25
    %v1849 = vmul.f32 %v1838, 0.25
    %v1850 = vmul.f32 %v1843, 0.25
    %v1851 = vadd.f32 %v1848, %v500
    %v1852 = vadd.f32 %v1849, %v500
    %v1853 = vadd.f32 %v1850, %v500
    %v1854 = vsel %vm1153, %v1851, -inf
    %1855 = vmax.xlane.f32.xlu0 %v1854
    %v1856 = vpop.xlane.xlu0 %1855
    %v1857 = vsel %vm1153, %v1852, -inf
    %1858 = vmax.xlane.f32.xlu0 %v1857
    %v1859 = vpop.xlane.xlu0 %1858
    %v1860 = vsel %vm1153, %v1853, -inf
    %1861 = vmax.xlane.f32.xlu0 %v1860
    %v1862 = vpop.xlane.xlu0 %1861
    %v1863 = vsub.f32 %v1851, %v1856
    %v1864 = vsub.f32 %v1852, %v1859
    %v1865 = vsub.f32 %v1853, %v1862
    %v1866 = vmul.f32 %v1863, 1.442695
    %v1867 = vpow.pop %v1866
    %v1868 = vmul.f32 %v1864, 1.442695
    %v1869 = vpow.pop %v1868
    %v1870 = vmul.f32 %v1865, 1.442695
    %v1871 = vpow.pop %v1870
    %v1872 = vsel %vm1153, %v1867, 0.0
    %1873 = vadd.xlane.f32.xlu0 %v1872
    %v1874 = vpop.xlane.xlu0 %1873
    %v1875 = vsel %vm1153, %v1869, 0.0
    %1876 = vadd.xlane.f32.xlu0 %v1875
    %v1877 = vpop.xlane.xlu0 %1876
    %v1878 = vsel %vm1153, %v1871, 0.0
    %1879 = vadd.xlane.f32.xlu0 %v1878
    %v1880 = vpop.xlane.xlu0 %1879
    %v1881 = vrcp.pop %v1874
    %v1882 = vrcp.pop %v1877
    %v1883 = vrcp.pop %v1880
    %v1884 = vmul.f32 %v1867, %v1881
    %v1885 = vmul.f32 %v1869, %v1882
    %v1886 = vmul.f32 %v1871, %v1883
    %v1887 = vpack.c.bf16 %v1885, %v1884
    %v1888 = vpack.c.bf16 %v1886, %v1886
    %1889 = vrot.lane.b32.xlu0 %v1078, 80
    %v1890 = vpop.permute.xlu0 %1889
    %1891 = vrot.lane.b32.xlu0 %v1079, 80
    %v1892 = vpop.permute.xlu0 %1891
    %v1895 = vsel %vm1153, %v1887, 0
    %v1898 = vsel %vm1153, %v1888, 0
    %v1901 = vsel %vm1195, %v1892, 0
    %1903 = vmatprep.subr.bf16.mxu0 0
    %1904 = vmatpush1.bf16.msra.mxu0 %v1890
    %1905 = vmatprep.subr.bf16.mxu0 0
    %1906 = vmatpush1.bf16.msra.mxu0 %v1901
    %1907 = vmatprep.subr.bf16.mxu0 0
    %1908 = vmatpush1.bf16.msra.mxu0 0
    %1909 = vmatprep.subr.bf16.mxu0 0
    %1910 = vmatpush1.bf16.msra.mxu0 0
    %1911 = vmatprep.subr.bf16.mxu0 0
    %1912 = vmatpush1.bf16.msra.mxu0 0
    %1913 = vmatprep.subr.bf16.mxu0 0
    %1914 = vmatpush1.bf16.msra.mxu0 0
    %1915 = vmatprep.subr.bf16.mxu0 0
    %1916 = vmatpush1.bf16.msra.mxu0 0
    %1917 = vmatprep.subr.bf16.mxu0 0
    %1918 = vmatpush1.bf16.msra.mxu0 0
    %1919 = vmatprep.subr.bf16.mxu0 0
    %1920 = vmatpush1.bf16.msra.mxu0 0
    %1921 = vmatprep.subr.bf16.mxu0 0
    %1922 = vmatpush1.bf16.msra.mxu0 0
    %1923 = vmatprep.subr.bf16.mxu0 0
    %1924 = vmatpush1.bf16.msra.mxu0 0
    %1925 = vmatprep.subr.bf16.mxu0 0
    %1926 = vmatpush1.bf16.msra.mxu0 0
    %1927 = vmatprep.subr.bf16.mxu0 0
    %1928 = vmatpush1.bf16.msra.mxu0 0
    %1929 = vmatprep.subr.bf16.mxu0 0
    %1930 = vmatpush1.bf16.msra.mxu0 0
    %1931 = vmatprep.subr.bf16.mxu0 0
    %1932 = vmatpush1.bf16.msra.mxu0 0
    %1933 = vmatprep.subr.bf16.mxu0 0
    %1934 = vmatpush1.bf16.msra.mxu0 0
    %1935 = vmatprep.mubr.bf16.mxu0 0
    %1936 = vmatmul.mubr.bf16.gmra.mrb[0].mxu0 %v1895
    %v1937 = vpop.f32.mrb[0].mxu0
    %v1938 = vadd.f32 0.0, %v1937
    %v1939 = vpop.f32.mrb[0].mxu0
    %v1940 = vpop.f32.mrb[0].mxu0
    %v1941 = vadd.f32 0.0, %v1940
    %v1942 = vpop.f32.mrb[0].mxu0
    %1943 = vmatprep.mubr.bf16.mxu0 0
    %1944 = vmatmul.mubr.bf16.gmra.mrb[0].mxu0 %v1898
    %v1945 = vpop.f32.mrb[0].mxu0
    %v1946 = vadd.f32 0.0, %v1945
    %v1947 = vpop.f32.mrb[0].mxu0
    %v1948 = vpop.f32.mrb[0].mxu0
    %v1949 = vpop.f32.mrb[0].mxu0
    %1950 = vdwg.mxu0
    %v1951 = vpack.c.bf16 %v1941, %v1938
    %v1952 = vpack.c.bf16 %v1946, %v1946
    %v1955 = vunpack.c.l.b16 %v1074
    %v1956 = vunpack.c.l.b16 %v1075
    %v1957 = vpack.c.b16 %v1956, %v1955
    %v1960 = vsel %vm1086, %v1951, 0
    %v1963 = vsel %vm1086, %v1952, 0
    %1965 = vmatprep.subr.bf16.mxu0 0
    %1966 = vmatpush1.bf16.msra.mxu0 %v1957
    %1967 = vmatprep.subr.bf16.mxu0 0
    %1968 = vmatpush1.bf16.msra.mxu0 0
    %1969 = vmatprep.subr.bf16.mxu0 0
    %1970 = vmatpush1.bf16.msra.mxu0 0
    %1971 = vmatprep.subr.bf16.mxu0 0
    %1972 = vmatpush1.bf16.msra.mxu0 0
    %1973 = vmatprep.subr.bf16.mxu0 0
    %1974 = vmatpush1.bf16.msra.mxu0 0
    %1975 = vmatprep.subr.bf16.mxu0 0
    %1976 = vmatpush1.bf16.msra.mxu0 0
    %1977 = vmatprep.subr.bf16.mxu0 0
    %1978 = vmatpush1.bf16.msra.mxu0 0
    %1979 = vmatprep.subr.bf16.mxu0 0
    %1980 = vmatpush1.bf16.msra.mxu0 0
    %1981 = vmatprep.subr.bf16.mxu0 0
    %1982 = vmatpush1.bf16.msra.mxu0 0
    %1983 = vmatprep.subr.bf16.mxu0 0
    %1984 = vmatpush1.bf16.msra.mxu0 0
    %1985 = vmatprep.subr.bf16.mxu0 0
    %1986 = vmatpush1.bf16.msra.mxu0 0
    %1987 = vmatprep.subr.bf16.mxu0 0
    %1988 = vmatpush1.bf16.msra.mxu0 0
    %1989 = vmatprep.subr.bf16.mxu0 0
    %1990 = vmatpush1.bf16.msra.mxu0 0
    %1991 = vmatprep.subr.bf16.mxu0 0
    %1992 = vmatpush1.bf16.msra.mxu0 0
    %1993 = vmatprep.subr.bf16.mxu0 0
    %1994 = vmatpush1.bf16.msra.mxu0 0
    %1995 = vmatprep.subr.bf16.mxu0 0
    %1996 = vmatpush1.bf16.msra.mxu0 0
    %1997 = vmatprep.mubr.bf16.mxu0 0
    %1998 = vmatmul.mubr.bf16.gmra.mrb[0].mxu0 %v1960
    %v1999 = vpop.f32.mrb[0].mxu0
    %v2000 = vadd.f32 0.0, %v1999
    %v2001 = vpop.f32.mrb[0].mxu0
    %v2002 = vpop.f32.mrb[0].mxu0
    %v2003 = vadd.f32 0.0, %v2002
    %v2004 = vpop.f32.mrb[0].mxu0
    %2005 = vmatprep.mubr.bf16.mxu0 0
    %2006 = vmatmul.mubr.bf16.gmra.mrb[0].mxu0 %v1963
    %v2007 = vpop.f32.mrb[0].mxu0
    %v2008 = vadd.f32 0.0, %v2007
    %v2009 = vpop.f32.mrb[0].mxu0
    %v2010 = vpop.f32.mrb[0].mxu0
    %v2011 = vpop.f32.mrb[0].mxu0
    %2012 = vdwg.mxu0
    %v2013 = vadd.f32 %v1777, %v2000
    %v2014 = vadd.f32 %v1778, %v2003
    %v2015 = vadd.f32 %v1779, %v2008
    %v2016 = vlaneseq
    %v2017 = vshrl.u32 %v2016, 7
    %v2018 = vsub.s32 3, %v2017
    %v2019 = vrot.slane %v850, %v2018
    %v2020 = vadd.f32 %v2013, %v2019
    %v2021 = vadd.f32 %v2014, %v2019
    %v2022 = vadd.f32 %v2015, %v2019
    %v2023 = vpack.c.bf16 %v1060, %v1054
    %v2024 = vpack.c.bf16 %v1064, %v1064
    %v2025 = vpack.c.bf16 %v1062, %v1056
    %v2026 = vpack.c.bf16 %v1066, %v1066
    %2029 = vrot.lane.b32.xlu0 %v2023, 64
    %v2030 = vpop.permute.xlu0 %2029
    %2031 = vrot.lane.b32.xlu0 %v2024, 64
    %v2032 = vpop.permute.xlu0 %2031
    %v2034 = vsel %vm1086, %v2023, 0
    %v2037 = vsel %vm1086, %v2024, 0
    %v2040 = vsel %vm1086, %v2030, 0
    %v2043 = vsel %vm1086, %v2032, 0
    %2045 = vmatprep.subr.bf16.mxu0 0
    %2046 = vmatpush1.bf16.xpose.msra.mxu0 %v2040
    %2047 = vmatprep.subr.bf16.mxu0 0
    %2048 = vmatpush1.bf16.xpose.msra.mxu0 %v2043
    %2049 = vmatprep.subr.bf16.mxu0 0
    %2050 = vmatpush1.bf16.xpose.msra.mxu0 0
    %2051 = vmatprep.subr.bf16.mxu0 0
    %2052 = vmatpush1.bf16.xpose.msra.mxu0 0
    %2053 = vmatprep.subr.bf16.mxu0 0
    %2054 = vmatpush1.bf16.xpose.msra.mxu0 0
    %2055 = vmatprep.subr.bf16.mxu0 0
    %2056 = vmatpush1.bf16.xpose.msra.mxu0 0
    %2057 = vmatprep.subr.bf16.mxu0 0
    %2058 = vmatpush1.bf16.xpose.msra.mxu0 0
    %2059 = vmatprep.subr.bf16.mxu0 0
    %2060 = vmatpush1.bf16.xpose.msra.mxu0 0
    %2061 = vmatprep.subr.bf16.mxu0 0
    %2062 = vmatpush1.bf16.xpose.msra.mxu0 0
    %2063 = vmatprep.subr.bf16.mxu0 0
    %2064 = vmatpush1.bf16.xpose.msra.mxu0 0
    %2065 = vmatprep.subr.bf16.mxu0 0
    %2066 = vmatpush1.bf16.xpose.msra.mxu0 0
    %2067 = vmatprep.subr.bf16.mxu0 0
    %2068 = vmatpush1.bf16.xpose.msra.mxu0 0
    %2069 = vmatprep.subr.bf16.mxu0 0
    %2070 = vmatpush1.bf16.xpose.msra.mxu0 0
    %2071 = vmatprep.subr.bf16.mxu0 0
    %2072 = vmatpush1.bf16.xpose.msra.mxu0 0
    %2073 = vmatprep.subr.bf16.mxu0 0
    %2074 = vmatpush1.bf16.xpose.msra.mxu0 0
    %2075 = vmatprep.subr.bf16.mxu0 0
    %2076 = vmatpush1.bf16.xpose.msra.mxu0 0
    %2077 = vmatprep.mubr.bf16.mxu0 0
    %2078 = vmatmul.mubr.bf16.gmra.mrb[0].mxu0 %v2034
    %v2079 = vpop.f32.mrb[0].mxu0
    %v2080 = vadd.f32 0.0, %v2079
    %v2081 = vpop.f32.mrb[0].mxu0
    %v2082 = vpop.f32.mrb[0].mxu0
    %v2083 = vadd.f32 0.0, %v2082
    %v2084 = vpop.f32.mrb[0].mxu0
    %2085 = vmatprep.mubr.bf16.mxu0 0
    %2086 = vmatmul.mubr.bf16.gmra.mrb[0].mxu0 %v2037
    %v2087 = vpop.f32.mrb[0].mxu0
    %v2088 = vadd.f32 0.0, %v2087
    %v2089 = vpop.f32.mrb[0].mxu0
    %v2090 = vpop.f32.mrb[0].mxu0
    %v2091 = vpop.f32.mrb[0].mxu0
    %2092 = vdwg.mxu0
    %v2093 = vmul.f32 %v2080, 0.25
    %v2094 = vmul.f32 %v2083, 0.25
    %v2095 = vmul.f32 %v2088, 0.25
    %v2096 = vadd.f32 %v2093, %v849
    %v2097 = vadd.f32 %v2094, %v849
    %v2098 = vadd.f32 %v2095, %v849
    %v2099 = vsel %vm1153, %v2096, -inf
    %2100 = vmax.xlane.f32.xlu0 %v2099
    %v2101 = vpop.xlane.xlu0 %2100
    %v2102 = vsel %vm1153, %v2097, -inf
    %2103 = vmax.xlane.f32.xlu0 %v2102
    %v2104 = vpop.xlane.xlu0 %2103
    %v2105 = vsel %vm1153, %v2098, -inf
    %2106 = vmax.xlane.f32.xlu0 %v2105
    %v2107 = vpop.xlane.xlu0 %2106
    %v2108 = vsub.f32 %v2096, %v2101
    %v2109 = vsub.f32 %v2097, %v2104
    %v2110 = vsub.f32 %v2098, %v2107
    %v2111 = vmul.f32 %v2108, 1.442695
    %v2112 = vpow.pop %v2111
    %v2113 = vmul.f32 %v2109, 1.442695
    %v2114 = vpow.pop %v2113
    %v2115 = vmul.f32 %v2110, 1.442695
    %v2116 = vpow.pop %v2115
    %v2117 = vsel %vm1153, %v2112, 0.0
    %2118 = vadd.xlane.f32.xlu0 %v2117
    %v2119 = vpop.xlane.xlu0 %2118
    %v2120 = vsel %vm1153, %v2114, 0.0
    %2121 = vadd.xlane.f32.xlu0 %v2120
    %v2122 = vpop.xlane.xlu0 %2121
    %v2123 = vsel %vm1153, %v2116, 0.0
    %2124 = vadd.xlane.f32.xlu0 %v2123
    %v2125 = vpop.xlane.xlu0 %2124
    %v2126 = vrcp.pop %v2119
    %v2127 = vrcp.pop %v2122
    %v2128 = vrcp.pop %v2125
    %v2129 = vmul.f32 %v2112, %v2126
    %v2130 = vmul.f32 %v2114, %v2127
    %v2131 = vmul.f32 %v2116, %v2128
    %v2132 = vpack.c.bf16 %v2130, %v2129
    %v2133 = vpack.c.bf16 %v2131, %v2131
    %v2135 = vsel %vm1153, %v2132, 0
    %v2138 = vsel %vm1153, %v2133, 0
    %v2141 = vsel %vm1195, %v2026, 0
    %2143 = vmatprep.subr.bf16.mxu0 0
    %2144 = vmatpush1.bf16.msra.mxu0 %v2025
    %2145 = vmatprep.subr.bf16.mxu0 0
    %2146 = vmatpush1.bf16.msra.mxu0 %v2141
    %2147 = vmatprep.subr.bf16.mxu0 0
    %2148 = vmatpush1.bf16.msra.mxu0 0
    %2149 = vmatprep.subr.bf16.mxu0 0
    %2150 = vmatpush1.bf16.msra.mxu0 0
    %2151 = vmatprep.subr.bf16.mxu0 0
    %2152 = vmatpush1.bf16.msra.mxu0 0
    %2153 = vmatprep.subr.bf16.mxu0 0
    %2154 = vmatpush1.bf16.msra.mxu0 0
    %2155 = vmatprep.subr.bf16.mxu0 0
    %2156 = vmatpush1.bf16.msra.mxu0 0
    %2157 = vmatprep.subr.bf16.mxu0 0
    %2158 = vmatpush1.bf16.msra.mxu0 0
    %2159 = vmatprep.subr.bf16.mxu0 0
    %2160 = vmatpush1.bf16.msra.mxu0 0
    %2161 = vmatprep.subr.bf16.mxu0 0
    %2162 = vmatpush1.bf16.msra.mxu0 0
    %2163 = vmatprep.subr.bf16.mxu0 0
    %2164 = vmatpush1.bf16.msra.mxu0 0
    %2165 = vmatprep.subr.bf16.mxu0 0
    %2166 = vmatpush1.bf16.msra.mxu0 0
    %2167 = vmatprep.subr.bf16.mxu0 0
    %2168 = vmatpush1.bf16.msra.mxu0 0
    %2169 = vmatprep.subr.bf16.mxu0 0
    %2170 = vmatpush1.bf16.msra.mxu0 0
    %2171 = vmatprep.subr.bf16.mxu0 0
    %2172 = vmatpush1.bf16.msra.mxu0 0
    %2173 = vmatprep.subr.bf16.mxu0 0
    %2174 = vmatpush1.bf16.msra.mxu0 0
    %2175 = vmatprep.mubr.bf16.mxu0 0
    %2176 = vmatmul.mubr.bf16.gmra.mrb[0].mxu0 %v2135
    %v2177 = vpop.f32.mrb[0].mxu0
    %v2178 = vadd.f32 0.0, %v2177
    %v2179 = vpop.f32.mrb[0].mxu0
    %v2180 = vpop.f32.mrb[0].mxu0
    %v2181 = vadd.f32 0.0, %v2180
    %v2182 = vpop.f32.mrb[0].mxu0
    %2183 = vmatprep.mubr.bf16.mxu0 0
    %2184 = vmatmul.mubr.bf16.gmra.mrb[0].mxu0 %v2138
    %v2185 = vpop.f32.mrb[0].mxu0
    %v2186 = vadd.f32 0.0, %v2185
    %v2187 = vpop.f32.mrb[0].mxu0
    %v2188 = vpop.f32.mrb[0].mxu0
    %v2189 = vpop.f32.mrb[0].mxu0
    %2190 = vdwg.mxu0
    %v2191 = vpack.c.bf16 %v2181, %v2178
    %v2192 = vpack.c.bf16 %v2186, %v2186
    %2193 = vrot.lane.b32.xlu0 %v2023, 112
    %v2194 = vpop.permute.xlu0 %2193
    %2195 = vrot.lane.b32.xlu0 %v2024, 112
    %v2196 = vpop.permute.xlu0 %2195
    %2197 = vrot.lane.b32.xlu0 %v2023, 48
    %v2198 = vpop.permute.xlu0 %2197
    %2199 = vrot.lane.b32.xlu0 %v2024, 48
    %v2200 = vpop.permute.xlu0 %2199
    %v2202 = vsel %vm1086, %v2194, 0
    %v2205 = vsel %vm1086, %v2196, 0
    %v2208 = vsel %vm1086, %v2198, 0
    %v2211 = vsel %vm1086, %v2200, 0
    %2213 = vmatprep.subr.bf16.mxu0 0
    %2214 = vmatpush1.bf16.xpose.msra.mxu0 %v2208
    %2215 = vmatprep.subr.bf16.mxu0 0
    %2216 = vmatpush1.bf16.xpose.msra.mxu0 %v2211
    %2217 = vmatprep.subr.bf16.mxu0 0
    %2218 = vmatpush1.bf16.xpose.msra.mxu0 0
    %2219 = vmatprep.subr.bf16.mxu0 0
    %2220 = vmatpush1.bf16.xpose.msra.mxu0 0
    %2221 = vmatprep.subr.bf16.mxu0 0
    %2222 = vmatpush1.bf16.xpose.msra.mxu0 0
    %2223 = vmatprep.subr.bf16.mxu0 0
    %2224 = vmatpush1.bf16.xpose.msra.mxu0 0
    %2225 = vmatprep.subr.bf16.mxu0 0
    %2226 = vmatpush1.bf16.xpose.msra.mxu0 0
    %2227 = vmatprep.subr.bf16.mxu0 0
    %2228 = vmatpush1.bf16.xpose.msra.mxu0 0
    %2229 = vmatprep.subr.bf16.mxu0 0
    %2230 = vmatpush1.bf16.xpose.msra.mxu0 0
    %2231 = vmatprep.subr.bf16.mxu0 0
    %2232 = vmatpush1.bf16.xpose.msra.mxu0 0
    %2233 = vmatprep.subr.bf16.mxu0 0
    %2234 = vmatpush1.bf16.xpose.msra.mxu0 0
    %2235 = vmatprep.subr.bf16.mxu0 0
    %2236 = vmatpush1.bf16.xpose.msra.mxu0 0
    %2237 = vmatprep.subr.bf16.mxu0 0
    %2238 = vmatpush1.bf16.xpose.msra.mxu0 0
    %2239 = vmatprep.subr.bf16.mxu0 0
    %2240 = vmatpush1.bf16.xpose.msra.mxu0 0
    %2241 = vmatprep.subr.bf16.mxu0 0
    %2242 = vmatpush1.bf16.xpose.msra.mxu0 0
    %2243 = vmatprep.subr.bf16.mxu0 0
    %2244 = vmatpush1.bf16.xpose.msra.mxu0 0
    %2245 = vmatprep.mubr.bf16.mxu0 0
    %2246 = vmatmul.mubr.bf16.gmra.mrb[0].mxu0 %v2202
    %v2247 = vpop.f32.mrb[0].mxu0
    %v2248 = vadd.f32 0.0, %v2247
    %v2249 = vpop.f32.mrb[0].mxu0
    %v2250 = vpop.f32.mrb[0].mxu0
    %v2251 = vadd.f32 0.0, %v2250
    %v2252 = vpop.f32.mrb[0].mxu0
    %2253 = vmatprep.mubr.bf16.mxu0 0
    %2254 = vmatmul.mubr.bf16.gmra.mrb[0].mxu0 %v2205
    %v2255 = vpop.f32.mrb[0].mxu0
    %v2256 = vadd.f32 0.0, %v2255
    %v2257 = vpop.f32.mrb[0].mxu0
    %v2258 = vpop.f32.mrb[0].mxu0
    %v2259 = vpop.f32.mrb[0].mxu0
    %2260 = vdwg.mxu0
    %v2261 = vmul.f32 %v2248, 0.25
    %v2262 = vmul.f32 %v2251, 0.25
    %v2263 = vmul.f32 %v2256, 0.25
    %v2264 = vadd.f32 %v2261, %v849
    %v2265 = vadd.f32 %v2262, %v849
    %v2266 = vadd.f32 %v2263, %v849
    %v2267 = vsel %vm1153, %v2264, -inf
    %2268 = vmax.xlane.f32.xlu0 %v2267
    %v2269 = vpop.xlane.xlu0 %2268
    %v2270 = vsel %vm1153, %v2265, -inf
    %2271 = vmax.xlane.f32.xlu0 %v2270
    %v2272 = vpop.xlane.xlu0 %2271
    %v2273 = vsel %vm1153, %v2266, -inf
    %2274 = vmax.xlane.f32.xlu0 %v2273
    %v2275 = vpop.xlane.xlu0 %2274
    %v2276 = vsub.f32 %v2264, %v2269
    %v2277 = vsub.f32 %v2265, %v2272
    %v2278 = vsub.f32 %v2266, %v2275
    %v2279 = vmul.f32 %v2276, 1.442695
    %v2280 = vpow.pop %v2279
    %v2281 = vmul.f32 %v2277, 1.442695
    %v2282 = vpow.pop %v2281
    %v2283 = vmul.f32 %v2278, 1.442695
    %v2284 = vpow.pop %v2283
    %v2285 = vsel %vm1153, %v2280, 0.0
    %2286 = vadd.xlane.f32.xlu0 %v2285
    %v2287 = vpop.xlane.xlu0 %2286
    %v2288 = vsel %vm1153, %v2282, 0.0
    %2289 = vadd.xlane.f32.xlu0 %v2288
    %v2290 = vpop.xlane.xlu0 %2289
    %v2291 = vsel %vm1153, %v2284, 0.0
    %2292 = vadd.xlane.f32.xlu0 %v2291
    %v2293 = vpop.xlane.xlu0 %2292
    %v2294 = vrcp.pop %v2287
    %v2295 = vrcp.pop %v2290
    %v2296 = vrcp.pop %v2293
    %v2297 = vmul.f32 %v2280, %v2294
    %v2298 = vmul.f32 %v2282, %v2295
    %v2299 = vmul.f32 %v2284, %v2296
    %v2300 = vpack.c.bf16 %v2298, %v2297
    %v2301 = vpack.c.bf16 %v2299, %v2299
    %2304 = vrot.lane.b32.xlu0 %v2025, 112
    %v2305 = vpop.permute.xlu0 %2304
    %2306 = vrot.lane.b32.xlu0 %v2026, 112
    %v2307 = vpop.permute.xlu0 %2306
    %v2310 = vsel %vm1153, %v2300, 0
    %v2313 = vsel %vm1153, %v2301, 0
    %v2316 = vsel %vm1195, %v2307, 0
    %2318 = vmatprep.subr.bf16.mxu0 0
    %2319 = vmatpush1.bf16.msra.mxu0 %v2305
    %2320 = vmatprep.subr.bf16.mxu0 0
    %2321 = vmatpush1.bf16.msra.mxu0 %v2316
    %2322 = vmatprep.subr.bf16.mxu0 0
    %2323 = vmatpush1.bf16.msra.mxu0 0
    %2324 = vmatprep.subr.bf16.mxu0 0
    %2325 = vmatpush1.bf16.msra.mxu0 0
    %2326 = vmatprep.subr.bf16.mxu0 0
    %2327 = vmatpush1.bf16.msra.mxu0 0
    %2328 = vmatprep.subr.bf16.mxu0 0
    %2329 = vmatpush1.bf16.msra.mxu0 0
    %2330 = vmatprep.subr.bf16.mxu0 0
    %2331 = vmatpush1.bf16.msra.mxu0 0
    %2332 = vmatprep.subr.bf16.mxu0 0
    %2333 = vmatpush1.bf16.msra.mxu0 0
    %2334 = vmatprep.subr.bf16.mxu0 0
    %2335 = vmatpush1.bf16.msra.mxu0 0
    %2336 = vmatprep.subr.bf16.mxu0 0
    %2337 = vmatpush1.bf16.msra.mxu0 0
    %2338 = vmatprep.subr.bf16.mxu0 0
    %2339 = vmatpush1.bf16.msra.mxu0 0
    %2340 = vmatprep.subr.bf16.mxu0 0
    %2341 = vmatpush1.bf16.msra.mxu0 0
    %2342 = vmatprep.subr.bf16.mxu0 0
    %2343 = vmatpush1.bf16.msra.mxu0 0
    %2344 = vmatprep.subr.bf16.mxu0 0
    %2345 = vmatpush1.bf16.msra.mxu0 0
    %2346 = vmatprep.subr.bf16.mxu0 0
    %2347 = vmatpush1.bf16.msra.mxu0 0
    %2348 = vmatprep.subr.bf16.mxu0 0
    %2349 = vmatpush1.bf16.msra.mxu0 0
    %2350 = vmatprep.mubr.bf16.mxu0 0
    %2351 = vmatmul.mubr.bf16.gmra.mrb[0].mxu0 %v2310
    %v2352 = vpop.f32.mrb[0].mxu0
    %v2353 = vadd.f32 0.0, %v2352
    %v2354 = vpop.f32.mrb[0].mxu0
    %v2355 = vpop.f32.mrb[0].mxu0
    %v2356 = vadd.f32 0.0, %v2355
    %v2357 = vpop.f32.mrb[0].mxu0
    %2358 = vmatprep.mubr.bf16.mxu0 0
    %2359 = vmatmul.mubr.bf16.gmra.mrb[0].mxu0 %v2313
    %v2360 = vpop.f32.mrb[0].mxu0
    %v2361 = vadd.f32 0.0, %v2360
    %v2362 = vpop.f32.mrb[0].mxu0
    %v2363 = vpop.f32.mrb[0].mxu0
    %v2364 = vpop.f32.mrb[0].mxu0
    %2365 = vdwg.mxu0
    %v2366 = vpack.c.bf16 %v2356, %v2353
    %v2367 = vpack.c.bf16 %v2361, %v2361
    %v2369 = vsel %vm1086, %v2366, 0
    %v2372 = vsel %vm1086, %v2367, 0
    %2374 = vmatprep.subr.bf16.mxu0 0
    %2375 = vmatpush1.bf16.msra.mxu0 %v1428
    %2376 = vmatprep.subr.bf16.mxu0 0
    %2377 = vmatpush1.bf16.msra.mxu0 0
    %2378 = vmatprep.subr.bf16.mxu0 0
    %2379 = vmatpush1.bf16.msra.mxu0 0
    %2380 = vmatprep.subr.bf16.mxu0 0
    %2381 = vmatpush1.bf16.msra.mxu0 0
    %2382 = vmatprep.subr.bf16.mxu0 0
    %2383 = vmatpush1.bf16.msra.mxu0 0
    %2384 = vmatprep.subr.bf16.mxu0 0
    %2385 = vmatpush1.bf16.msra.mxu0 0
    %2386 = vmatprep.subr.bf16.mxu0 0
    %2387 = vmatpush1.bf16.msra.mxu0 0
    %2388 = vmatprep.subr.bf16.mxu0 0
    %2389 = vmatpush1.bf16.msra.mxu0 0
    %2390 = vmatprep.subr.bf16.mxu0 0
    %2391 = vmatpush1.bf16.msra.mxu0 0
    %2392 = vmatprep.subr.bf16.mxu0 0
    %2393 = vmatpush1.bf16.msra.mxu0 0
    %2394 = vmatprep.subr.bf16.mxu0 0
    %2395 = vmatpush1.bf16.msra.mxu0 0
    %2396 = vmatprep.subr.bf16.mxu0 0
    %2397 = vmatpush1.bf16.msra.mxu0 0
    %2398 = vmatprep.subr.bf16.mxu0 0
    %2399 = vmatpush1.bf16.msra.mxu0 0
    %2400 = vmatprep.subr.bf16.mxu0 0
    %2401 = vmatpush1.bf16.msra.mxu0 0
    %2402 = vmatprep.subr.bf16.mxu0 0
    %2403 = vmatpush1.bf16.msra.mxu0 0
    %2404 = vmatprep.subr.bf16.mxu0 0
    %2405 = vmatpush1.bf16.msra.mxu0 0
    %2406 = vmatprep.mubr.bf16.mxu0 0
    %2407 = vmatmul.mubr.bf16.gmra.mrb[0].mxu0 %v2369
    %v2408 = vpop.f32.mrb[0].mxu0
    %v2409 = vadd.f32 0.0, %v2408
    %v2410 = vpop.f32.mrb[0].mxu0
    %v2411 = vpop.f32.mrb[0].mxu0
    %v2412 = vadd.f32 0.0, %v2411
    %v2413 = vpop.f32.mrb[0].mxu0
    %2414 = vmatprep.mubr.bf16.mxu0 0
    %2415 = vmatmul.mubr.bf16.gmra.mrb[0].mxu0 %v2372
    %v2416 = vpop.f32.mrb[0].mxu0
    %v2417 = vadd.f32 0.0, %v2416
    %v2418 = vpop.f32.mrb[0].mxu0
    %v2419 = vpop.f32.mrb[0].mxu0
    %v2420 = vpop.f32.mrb[0].mxu0
    %2421 = vdwg.mxu0
    %v2423 = vsel %vm1086, %v2191, 0
    %v2426 = vsel %vm1086, %v2192, 0
    %2428 = vmatprep.subr.bf16.mxu0 0
    %2429 = vmatpush1.bf16.msra.mxu0 %v1488
    %2430 = vmatprep.subr.bf16.mxu0 0
    %2431 = vmatpush1.bf16.msra.mxu0 0
    %2432 = vmatprep.subr.bf16.mxu0 0
    %2433 = vmatpush1.bf16.msra.mxu0 0
    %2434 = vmatprep.subr.bf16.mxu0 0
    %2435 = vmatpush1.bf16.msra.mxu0 0
    %2436 = vmatprep.subr.bf16.mxu0 0
    %2437 = vmatpush1.bf16.msra.mxu0 0
    %2438 = vmatprep.subr.bf16.mxu0 0
    %2439 = vmatpush1.bf16.msra.mxu0 0
    %2440 = vmatprep.subr.bf16.mxu0 0
    %2441 = vmatpush1.bf16.msra.mxu0 0
    %2442 = vmatprep.subr.bf16.mxu0 0
    %2443 = vmatpush1.bf16.msra.mxu0 0
    %2444 = vmatprep.subr.bf16.mxu0 0
    %2445 = vmatpush1.bf16.msra.mxu0 0
    %2446 = vmatprep.subr.bf16.mxu0 0
    %2447 = vmatpush1.bf16.msra.mxu0 0
    %2448 = vmatprep.subr.bf16.mxu0 0
    %2449 = vmatpush1.bf16.msra.mxu0 0
    %2450 = vmatprep.subr.bf16.mxu0 0
    %2451 = vmatpush1.bf16.msra.mxu0 0
    %2452 = vmatprep.subr.bf16.mxu0 0
    %2453 = vmatpush1.bf16.msra.mxu0 0
    %2454 = vmatprep.subr.bf16.mxu0 0
    %2455 = vmatpush1.bf16.msra.mxu0 0
    %2456 = vmatprep.subr.bf16.mxu0 0
    %2457 = vmatpush1.bf16.msra.mxu0 0
    %2458 = vmatprep.subr.bf16.mxu0 0
    %2459 = vmatpush1.bf16.msra.mxu0 0
    %2460 = vmatprep.mubr.bf16.mxu0 0
    %2461 = vmatmul.mubr.bf16.gmra.mrb[0].mxu0 %v2423
    %v2462 = vpop.f32.mrb[0].mxu0
    %v2463 = vadd.f32 %v2409, %v2462
    %v2464 = vpop.f32.mrb[0].mxu0
    %v2465 = vpop.f32.mrb[0].mxu0
    %v2466 = vadd.f32 %v2412, %v2465
    %v2467 = vpop.f32.mrb[0].mxu0
    %2468 = vmatprep.mubr.bf16.mxu0 0
    %2469 = vmatmul.mubr.bf16.gmra.mrb[0].mxu0 %v2426
    %v2470 = vpop.f32.mrb[0].mxu0
    %v2471 = vadd.f32 %v2417, %v2470
    %v2472 = vpop.f32.mrb[0].mxu0
    %v2473 = vpop.f32.mrb[0].mxu0
    %v2474 = vpop.f32.mrb[0].mxu0
    %2475 = vdwg.mxu0
    %2476 = vrot.lane.b32.xlu0 %v2023, 96
    %v2477 = vpop.permute.xlu0 %2476
    %2478 = vrot.lane.b32.xlu0 %v2024, 96
    %v2479 = vpop.permute.xlu0 %2478
    %2480 = vrot.lane.b32.xlu0 %v2023, 32
    %v2481 = vpop.permute.xlu0 %2480
    %2482 = vrot.lane.b32.xlu0 %v2024, 32
    %v2483 = vpop.permute.xlu0 %2482
    %v2485 = vsel %vm1086, %v2477, 0
    %v2488 = vsel %vm1086, %v2479, 0
    %v2491 = vsel %vm1086, %v2481, 0
    %v2494 = vsel %vm1086, %v2483, 0
    %2496 = vmatprep.subr.bf16.mxu0 0
    %2497 = vmatpush1.bf16.xpose.msra.mxu0 %v2491
    %2498 = vmatprep.subr.bf16.mxu0 0
    %2499 = vmatpush1.bf16.xpose.msra.mxu0 %v2494
    %2500 = vmatprep.subr.bf16.mxu0 0
    %2501 = vmatpush1.bf16.xpose.msra.mxu0 0
    %2502 = vmatprep.subr.bf16.mxu0 0
    %2503 = vmatpush1.bf16.xpose.msra.mxu0 0
    %2504 = vmatprep.subr.bf16.mxu0 0
    %2505 = vmatpush1.bf16.xpose.msra.mxu0 0
    %2506 = vmatprep.subr.bf16.mxu0 0
    %2507 = vmatpush1.bf16.xpose.msra.mxu0 0
    %2508 = vmatprep.subr.bf16.mxu0 0
    %2509 = vmatpush1.bf16.xpose.msra.mxu0 0
    %2510 = vmatprep.subr.bf16.mxu0 0
    %2511 = vmatpush1.bf16.xpose.msra.mxu0 0
    %2512 = vmatprep.subr.bf16.mxu0 0
    %2513 = vmatpush1.bf16.xpose.msra.mxu0 0
    %2514 = vmatprep.subr.bf16.mxu0 0
    %2515 = vmatpush1.bf16.xpose.msra.mxu0 0
    %2516 = vmatprep.subr.bf16.mxu0 0
    %2517 = vmatpush1.bf16.xpose.msra.mxu0 0
    %2518 = vmatprep.subr.bf16.mxu0 0
    %2519 = vmatpush1.bf16.xpose.msra.mxu0 0
    %2520 = vmatprep.subr.bf16.mxu0 0
    %2521 = vmatpush1.bf16.xpose.msra.mxu0 0
    %2522 = vmatprep.subr.bf16.mxu0 0
    %2523 = vmatpush1.bf16.xpose.msra.mxu0 0
    %2524 = vmatprep.subr.bf16.mxu0 0
    %2525 = vmatpush1.bf16.xpose.msra.mxu0 0
    %2526 = vmatprep.subr.bf16.mxu0 0
    %2527 = vmatpush1.bf16.xpose.msra.mxu0 0
    %2528 = vmatprep.mubr.bf16.mxu0 0
    %2529 = vmatmul.mubr.bf16.gmra.mrb[0].mxu0 %v2485
    %v2530 = vpop.f32.mrb[0].mxu0
    %v2531 = vadd.f32 0.0, %v2530
    %v2532 = vpop.f32.mrb[0].mxu0
    %v2533 = vpop.f32.mrb[0].mxu0
    %v2534 = vadd.f32 0.0, %v2533
    %v2535 = vpop.f32.mrb[0].mxu0
    %2536 = vmatprep.mubr.bf16.mxu0 0
    %2537 = vmatmul.mubr.bf16.gmra.mrb[0].mxu0 %v2488
    %v2538 = vpop.f32.mrb[0].mxu0
    %v2539 = vadd.f32 0.0, %v2538
    %v2540 = vpop.f32.mrb[0].mxu0
    %v2541 = vpop.f32.mrb[0].mxu0
    %v2542 = vpop.f32.mrb[0].mxu0
    %2543 = vdwg.mxu0
    %v2544 = vmul.f32 %v2531, 0.25
    %v2545 = vmul.f32 %v2534, 0.25
    %v2546 = vmul.f32 %v2539, 0.25
    %v2547 = vadd.f32 %v2544, %v849
    %v2548 = vadd.f32 %v2545, %v849
    %v2549 = vadd.f32 %v2546, %v849
    %v2550 = vsel %vm1153, %v2547, -inf
    %2551 = vmax.xlane.f32.xlu0 %v2550
    %v2552 = vpop.xlane.xlu0 %2551
    %v2553 = vsel %vm1153, %v2548, -inf
    %2554 = vmax.xlane.f32.xlu0 %v2553
    %v2555 = vpop.xlane.xlu0 %2554
    %v2556 = vsel %vm1153, %v2549, -inf
    %2557 = vmax.xlane.f32.xlu0 %v2556
    %v2558 = vpop.xlane.xlu0 %2557
    %v2559 = vsub.f32 %v2547, %v2552
    %v2560 = vsub.f32 %v2548, %v2555
    %v2561 = vsub.f32 %v2549, %v2558
    %v2562 = vmul.f32 %v2559, 1.442695
    %v2563 = vpow.pop %v2562
    %v2564 = vmul.f32 %v2560, 1.442695
    %v2565 = vpow.pop %v2564
    %v2566 = vmul.f32 %v2561, 1.442695
    %v2567 = vpow.pop %v2566
    %v2568 = vsel %vm1153, %v2563, 0.0
    %2569 = vadd.xlane.f32.xlu0 %v2568
    %v2570 = vpop.xlane.xlu0 %2569
    %v2571 = vsel %vm1153, %v2565, 0.0
    %2572 = vadd.xlane.f32.xlu0 %v2571
    %v2573 = vpop.xlane.xlu0 %2572
    %v2574 = vsel %vm1153, %v2567, 0.0
    %2575 = vadd.xlane.f32.xlu0 %v2574
    %v2576 = vpop.xlane.xlu0 %2575
    %v2577 = vrcp.pop %v2570
    %v2578 = vrcp.pop %v2573
    %v2579 = vrcp.pop %v2576
    %v2580 = vmul.f32 %v2563, %v2577
    %v2581 = vmul.f32 %v2565, %v2578
    %v2582 = vmul.f32 %v2567, %v2579
    %v2583 = vpack.c.bf16 %v2581, %v2580
    %v2584 = vpack.c.bf16 %v2582, %v2582
    %2585 = vrot.lane.b32.xlu0 %v2025, 96
    %v2586 = vpop.permute.xlu0 %2585
    %2587 = vrot.lane.b32.xlu0 %v2026, 96
    %v2588 = vpop.permute.xlu0 %2587
    %v2591 = vsel %vm1153, %v2583, 0
    %v2594 = vsel %vm1153, %v2584, 0
    %v2597 = vsel %vm1195, %v2588, 0
    %2599 = vmatprep.subr.bf16.mxu0 0
    %2600 = vmatpush1.bf16.msra.mxu0 %v2586
    %2601 = vmatprep.subr.bf16.mxu0 0
    %2602 = vmatpush1.bf16.msra.mxu0 %v2597
    %2603 = vmatprep.subr.bf16.mxu0 0
    %2604 = vmatpush1.bf16.msra.mxu0 0
    %2605 = vmatprep.subr.bf16.mxu0 0
    %2606 = vmatpush1.bf16.msra.mxu0 0
    %2607 = vmatprep.subr.bf16.mxu0 0
    %2608 = vmatpush1.bf16.msra.mxu0 0
    %2609 = vmatprep.subr.bf16.mxu0 0
    %2610 = vmatpush1.bf16.msra.mxu0 0
    %2611 = vmatprep.subr.bf16.mxu0 0
    %2612 = vmatpush1.bf16.msra.mxu0 0
    %2613 = vmatprep.subr.bf16.mxu0 0
    %2614 = vmatpush1.bf16.msra.mxu0 0
    %2615 = vmatprep.subr.bf16.mxu0 0
    %2616 = vmatpush1.bf16.msra.mxu0 0
    %2617 = vmatprep.subr.bf16.mxu0 0
    %2618 = vmatpush1.bf16.msra.mxu0 0
    %2619 = vmatprep.subr.bf16.mxu0 0
    %2620 = vmatpush1.bf16.msra.mxu0 0
    %2621 = vmatprep.subr.bf16.mxu0 0
    %2622 = vmatpush1.bf16.msra.mxu0 0
    %2623 = vmatprep.subr.bf16.mxu0 0
    %2624 = vmatpush1.bf16.msra.mxu0 0
    %2625 = vmatprep.subr.bf16.mxu0 0
    %2626 = vmatpush1.bf16.msra.mxu0 0
    %2627 = vmatprep.subr.bf16.mxu0 0
    %2628 = vmatpush1.bf16.msra.mxu0 0
    %2629 = vmatprep.subr.bf16.mxu0 0
    %2630 = vmatpush1.bf16.msra.mxu0 0
    %2631 = vmatprep.mubr.bf16.mxu0 0
    %2632 = vmatmul.mubr.bf16.gmra.mrb[0].mxu0 %v2591
    %v2633 = vpop.f32.mrb[0].mxu0
    %v2634 = vadd.f32 0.0, %v2633
    %v2635 = vpop.f32.mrb[0].mxu0
    %v2636 = vpop.f32.mrb[0].mxu0
    %v2637 = vadd.f32 0.0, %v2636
    %v2638 = vpop.f32.mrb[0].mxu0
    %2639 = vmatprep.mubr.bf16.mxu0 0
    %2640 = vmatmul.mubr.bf16.gmra.mrb[0].mxu0 %v2594
    %v2641 = vpop.f32.mrb[0].mxu0
    %v2642 = vadd.f32 0.0, %v2641
    %v2643 = vpop.f32.mrb[0].mxu0
    %v2644 = vpop.f32.mrb[0].mxu0
    %v2645 = vpop.f32.mrb[0].mxu0
    %2646 = vdwg.mxu0
    %v2647 = vpack.c.bf16 %v2637, %v2634
    %v2648 = vpack.c.bf16 %v2642, %v2642
    %v2650 = vsel %vm1086, %v2647, 0
    %v2653 = vsel %vm1086, %v2648, 0
    %2655 = vmatprep.subr.bf16.mxu0 0
    %2656 = vmatpush1.bf16.msra.mxu0 %v1721
    %2657 = vmatprep.subr.bf16.mxu0 0
    %2658 = vmatpush1.bf16.msra.mxu0 0
    %2659 = vmatprep.subr.bf16.mxu0 0
    %2660 = vmatpush1.bf16.msra.mxu0 0
    %2661 = vmatprep.subr.bf16.mxu0 0
    %2662 = vmatpush1.bf16.msra.mxu0 0
    %2663 = vmatprep.subr.bf16.mxu0 0
    %2664 = vmatpush1.bf16.msra.mxu0 0
    %2665 = vmatprep.subr.bf16.mxu0 0
    %2666 = vmatpush1.bf16.msra.mxu0 0
    %2667 = vmatprep.subr.bf16.mxu0 0
    %2668 = vmatpush1.bf16.msra.mxu0 0
    %2669 = vmatprep.subr.bf16.mxu0 0
    %2670 = vmatpush1.bf16.msra.mxu0 0
    %2671 = vmatprep.subr.bf16.mxu0 0
    %2672 = vmatpush1.bf16.msra.mxu0 0
    %2673 = vmatprep.subr.bf16.mxu0 0
    %2674 = vmatpush1.bf16.msra.mxu0 0
    %2675 = vmatprep.subr.bf16.mxu0 0
    %2676 = vmatpush1.bf16.msra.mxu0 0
    %2677 = vmatprep.subr.bf16.mxu0 0
    %2678 = vmatpush1.bf16.msra.mxu0 0
    %2679 = vmatprep.subr.bf16.mxu0 0
    %2680 = vmatpush1.bf16.msra.mxu0 0
    %2681 = vmatprep.subr.bf16.mxu0 0
    %2682 = vmatpush1.bf16.msra.mxu0 0
    %2683 = vmatprep.subr.bf16.mxu0 0
    %2684 = vmatpush1.bf16.msra.mxu0 0
    %2685 = vmatprep.subr.bf16.mxu0 0
    %2686 = vmatpush1.bf16.msra.mxu0 0
    %2687 = vmatprep.mubr.bf16.mxu0 0
    %2688 = vmatmul.mubr.bf16.gmra.mrb[0].mxu0 %v2650
    %v2689 = vpop.f32.mrb[0].mxu0
    %v2690 = vadd.f32 0.0, %v2689
    %v2691 = vpop.f32.mrb[0].mxu0
    %v2692 = vpop.f32.mrb[0].mxu0
    %v2693 = vadd.f32 0.0, %v2692
    %v2694 = vpop.f32.mrb[0].mxu0
    %2695 = vmatprep.mubr.bf16.mxu0 0
    %2696 = vmatmul.mubr.bf16.gmra.mrb[0].mxu0 %v2653
    %v2697 = vpop.f32.mrb[0].mxu0
    %v2698 = vadd.f32 0.0, %v2697
    %v2699 = vpop.f32.mrb[0].mxu0
    %v2700 = vpop.f32.mrb[0].mxu0
    %v2701 = vpop.f32.mrb[0].mxu0
    %2702 = vdwg.mxu0
    %v2703 = vadd.f32 %v2463, %v2690
    %v2704 = vadd.f32 %v2466, %v2693
    %v2705 = vadd.f32 %v2471, %v2698
    %2706 = vrot.lane.b32.xlu0 %v2023, 80
    %v2707 = vpop.permute.xlu0 %2706
    %2708 = vrot.lane.b32.xlu0 %v2024, 80
    %v2709 = vpop.permute.xlu0 %2708
    %2710 = vrot.lane.b32.xlu0 %v2023, 16
    %v2711 = vpop.permute.xlu0 %2710
    %2712 = vrot.lane.b32.xlu0 %v2024, 16
    %v2713 = vpop.permute.xlu0 %2712
    %v2715 = vsel %vm1086, %v2707, 0
    %v2718 = vsel %vm1086, %v2709, 0
    %v2721 = vsel %vm1086, %v2711, 0
    %v2724 = vsel %vm1086, %v2713, 0
    %2726 = vmatprep.subr.bf16.mxu0 0
    %2727 = vmatpush1.bf16.xpose.msra.mxu0 %v2721
    %2728 = vmatprep.subr.bf16.mxu0 0
    %2729 = vmatpush1.bf16.xpose.msra.mxu0 %v2724
    %2730 = vmatprep.subr.bf16.mxu0 0
    %2731 = vmatpush1.bf16.xpose.msra.mxu0 0
    %2732 = vmatprep.subr.bf16.mxu0 0
    %2733 = vmatpush1.bf16.xpose.msra.mxu0 0
    %2734 = vmatprep.subr.bf16.mxu0 0
    %2735 = vmatpush1.bf16.xpose.msra.mxu0 0
    %2736 = vmatprep.subr.bf16.mxu0 0
    %2737 = vmatpush1.bf16.xpose.msra.mxu0 0
    %2738 = vmatprep.subr.bf16.mxu0 0
    %2739 = vmatpush1.bf16.xpose.msra.mxu0 0
    %2740 = vmatprep.subr.bf16.mxu0 0
    %2741 = vmatpush1.bf16.xpose.msra.mxu0 0
    %2742 = vmatprep.subr.bf16.mxu0 0
    %2743 = vmatpush1.bf16.xpose.msra.mxu0 0
    %2744 = vmatprep.subr.bf16.mxu0 0
    %2745 = vmatpush1.bf16.xpose.msra.mxu0 0
    %2746 = vmatprep.subr.bf16.mxu0 0
    %2747 = vmatpush1.bf16.xpose.msra.mxu0 0
    %2748 = vmatprep.subr.bf16.mxu0 0
    %2749 = vmatpush1.bf16.xpose.msra.mxu0 0
    %2750 = vmatprep.subr.bf16.mxu0 0
    %2751 = vmatpush1.bf16.xpose.msra.mxu0 0
    %2752 = vmatprep.subr.bf16.mxu0 0
    %2753 = vmatpush1.bf16.xpose.msra.mxu0 0
    %2754 = vmatprep.subr.bf16.mxu0 0
    %2755 = vmatpush1.bf16.xpose.msra.mxu0 0
    %2756 = vmatprep.subr.bf16.mxu0 0
    %2757 = vmatpush1.bf16.xpose.msra.mxu0 0
    %2758 = vmatprep.mubr.bf16.mxu0 0
    %2759 = vmatmul.mubr.bf16.gmra.mrb[0].mxu0 %v2715
    %v2760 = vpop.f32.mrb[0].mxu0
    %v2761 = vadd.f32 0.0, %v2760
    %v2762 = vpop.f32.mrb[0].mxu0
    %v2763 = vpop.f32.mrb[0].mxu0
    %v2764 = vadd.f32 0.0, %v2763
    %v2765 = vpop.f32.mrb[0].mxu0
    %2766 = vmatprep.mubr.bf16.mxu0 0
    %2767 = vmatmul.mubr.bf16.gmra.mrb[0].mxu0 %v2718
    %v2768 = vpop.f32.mrb[0].mxu0
    %v2769 = vadd.f32 0.0, %v2768
    %v2770 = vpop.f32.mrb[0].mxu0
    %v2771 = vpop.f32.mrb[0].mxu0
    %v2772 = vpop.f32.mrb[0].mxu0
    %2773 = vdwg.mxu0
    %v2774 = vmul.f32 %v2761, 0.25
    %v2775 = vmul.f32 %v2764, 0.25
    %v2776 = vmul.f32 %v2769, 0.25
    %v2777 = vadd.f32 %v2774, %v849
    %v2778 = vadd.f32 %v2775, %v849
    %v2779 = vadd.f32 %v2776, %v849
    %v2780 = vsel %vm1153, %v2777, -inf
    %2781 = vmax.xlane.f32.xlu0 %v2780
    %v2782 = vpop.xlane.xlu0 %2781
    %v2783 = vsel %vm1153, %v2778, -inf
    %2784 = vmax.xlane.f32.xlu0 %v2783
    %v2785 = vpop.xlane.xlu0 %2784
    %v2786 = vsel %vm1153, %v2779, -inf
    %2787 = vmax.xlane.f32.xlu0 %v2786
    %v2788 = vpop.xlane.xlu0 %2787
    %v2789 = vsub.f32 %v2777, %v2782
    %v2790 = vsub.f32 %v2778, %v2785
    %v2791 = vsub.f32 %v2779, %v2788
    %v2792 = vmul.f32 %v2789, 1.442695
    %v2793 = vpow.pop %v2792
    %v2794 = vmul.f32 %v2790, 1.442695
    %v2795 = vpow.pop %v2794
    %v2796 = vmul.f32 %v2791, 1.442695
    %v2797 = vpow.pop %v2796
    %v2798 = vsel %vm1153, %v2793, 0.0
    %2799 = vadd.xlane.f32.xlu0 %v2798
    %v2800 = vpop.xlane.xlu0 %2799
    %v2801 = vsel %vm1153, %v2795, 0.0
    %2802 = vadd.xlane.f32.xlu0 %v2801
    %v2803 = vpop.xlane.xlu0 %2802
    %v2804 = vsel %vm1153, %v2797, 0.0
    %2805 = vadd.xlane.f32.xlu0 %v2804
    %v2806 = vpop.xlane.xlu0 %2805
    %v2807 = vrcp.pop %v2800
    %v2808 = vrcp.pop %v2803
    %v2809 = vrcp.pop %v2806
    %v2810 = vmul.f32 %v2793, %v2807
    %v2811 = vmul.f32 %v2795, %v2808
    %v2812 = vmul.f32 %v2797, %v2809
    %v2813 = vpack.c.bf16 %v2811, %v2810
    %v2814 = vpack.c.bf16 %v2812, %v2812
    %2815 = vrot.lane.b32.xlu0 %v2025, 80
    %v2816 = vpop.permute.xlu0 %2815
    %2817 = vrot.lane.b32.xlu0 %v2026, 80
    %v2818 = vpop.permute.xlu0 %2817
    %v2821 = vsel %vm1153, %v2813, 0
    %v2824 = vsel %vm1153, %v2814, 0
    %v2827 = vsel %vm1195, %v2818, 0
    %2829 = vmatprep.subr.bf16.mxu0 0
    %2830 = vmatpush1.bf16.msra.mxu0 %v2816
    %2831 = vmatprep.subr.bf16.mxu0 0
    %2832 = vmatpush1.bf16.msra.mxu0 %v2827
    %2833 = vmatprep.subr.bf16.mxu0 0
    %2834 = vmatpush1.bf16.msra.mxu0 0
    %2835 = vmatprep.subr.bf16.mxu0 0
    %2836 = vmatpush1.bf16.msra.mxu0 0
    %2837 = vmatprep.subr.bf16.mxu0 0
    %2838 = vmatpush1.bf16.msra.mxu0 0
    %2839 = vmatprep.subr.bf16.mxu0 0
    %2840 = vmatpush1.bf16.msra.mxu0 0
    %2841 = vmatprep.subr.bf16.mxu0 0
    %2842 = vmatpush1.bf16.msra.mxu0 0
    %2843 = vmatprep.subr.bf16.mxu0 0
    %2844 = vmatpush1.bf16.msra.mxu0 0
    %2845 = vmatprep.subr.bf16.mxu0 0
    %2846 = vmatpush1.bf16.msra.mxu0 0
    %2847 = vmatprep.subr.bf16.mxu0 0
    %2848 = vmatpush1.bf16.msra.mxu0 0
    %2849 = vmatprep.subr.bf16.mxu0 0
    %2850 = vmatpush1.bf16.msra.mxu0 0
    %2851 = vmatprep.subr.bf16.mxu0 0
    %2852 = vmatpush1.bf16.msra.mxu0 0
    %2853 = vmatprep.subr.bf16.mxu0 0
    %2854 = vmatpush1.bf16.msra.mxu0 0
    %2855 = vmatprep.subr.bf16.mxu0 0
    %2856 = vmatpush1.bf16.msra.mxu0 0
    %2857 = vmatprep.subr.bf16.mxu0 0
    %2858 = vmatpush1.bf16.msra.mxu0 0
    %2859 = vmatprep.subr.bf16.mxu0 0
    %2860 = vmatpush1.bf16.msra.mxu0 0
    %2861 = vmatprep.mubr.bf16.mxu0 0
    %2862 = vmatmul.mubr.bf16.gmra.mrb[0].mxu0 %v2821
    %v2863 = vpop.f32.mrb[0].mxu0
    %v2864 = vadd.f32 0.0, %v2863
    %v2865 = vpop.f32.mrb[0].mxu0
    %v2866 = vpop.f32.mrb[0].mxu0
    %v2867 = vadd.f32 0.0, %v2866
    %v2868 = vpop.f32.mrb[0].mxu0
    %2869 = vmatprep.mubr.bf16.mxu0 0
    %2870 = vmatmul.mubr.bf16.gmra.mrb[0].mxu0 %v2824
    %v2871 = vpop.f32.mrb[0].mxu0
    %v2872 = vadd.f32 0.0, %v2871
    %v2873 = vpop.f32.mrb[0].mxu0
    %v2874 = vpop.f32.mrb[0].mxu0
    %v2875 = vpop.f32.mrb[0].mxu0
    %2876 = vdwg.mxu0
    %v2877 = vpack.c.bf16 %v2867, %v2864
    %v2878 = vpack.c.bf16 %v2872, %v2872
    %v2880 = vsel %vm1086, %v2877, 0
    %v2883 = vsel %vm1086, %v2878, 0
    %2885 = vmatprep.subr.bf16.mxu0 0
    %2886 = vmatpush1.bf16.msra.mxu0 %v1957
    %2887 = vmatprep.subr.bf16.mxu0 0
    %2888 = vmatpush1.bf16.msra.mxu0 0
    %2889 = vmatprep.subr.bf16.mxu0 0
    %2890 = vmatpush1.bf16.msra.mxu0 0
    %2891 = vmatprep.subr.bf16.mxu0 0
    %2892 = vmatpush1.bf16.msra.mxu0 0
    %2893 = vmatprep.subr.bf16.mxu0 0
    %2894 = vmatpush1.bf16.msra.mxu0 0
    %2895 = vmatprep.subr.bf16.mxu0 0
    %2896 = vmatpush1.bf16.msra.mxu0 0
    %2897 = vmatprep.subr.bf16.mxu0 0
    %2898 = vmatpush1.bf16.msra.mxu0 0
    %2899 = vmatprep.subr.bf16.mxu0 0
    %2900 = vmatpush1.bf16.msra.mxu0 0
    %2901 = vmatprep.subr.bf16.mxu0 0
    %2902 = vmatpush1.bf16.msra.mxu0 0
    %2903 = vmatprep.subr.bf16.mxu0 0
    %2904 = vmatpush1.bf16.msra.mxu0 0
    %2905 = vmatprep.subr.bf16.mxu0 0
    %2906 = vmatpush1.bf16.msra.mxu0 0
    %2907 = vmatprep.subr.bf16.mxu0 0
    %2908 = vmatpush1.bf16.msra.mxu0 0
    %2909 = vmatprep.subr.bf16.mxu0 0
    %2910 = vmatpush1.bf16.msra.mxu0 0
    %2911 = vmatprep.subr.bf16.mxu0 0
    %2912 = vmatpush1.bf16.msra.mxu0 0
    %2913 = vmatprep.subr.bf16.mxu0 0
    %2914 = vmatpush1.bf16.msra.mxu0 0
    %2915 = vmatprep.subr.bf16.mxu0 0
    %2916 = vmatpush1.bf16.msra.mxu0 0
    %2917 = vmatprep.mubr.bf16.mxu0 0
    %2918 = vmatmul.mubr.bf16.gmra.mrb[0].mxu0 %v2880
    %v2919 = vpop.f32.mrb[0].mxu0
    %v2920 = vadd.f32 0.0, %v2919
    %v2921 = vpop.f32.mrb[0].mxu0
    %v2922 = vpop.f32.mrb[0].mxu0
    %v2923 = vadd.f32 0.0, %v2922
    %v2924 = vpop.f32.mrb[0].mxu0
    %2925 = vmatprep.mubr.bf16.mxu0 0
    %2926 = vmatmul.mubr.bf16.gmra.mrb[0].mxu0 %v2883
    %v2927 = vpop.f32.mrb[0].mxu0
    %v2928 = vadd.f32 0.0, %v2927
    %v2929 = vpop.f32.mrb[0].mxu0
    %v2930 = vpop.f32.mrb[0].mxu0
    %v2931 = vpop.f32.mrb[0].mxu0
    %2932 = vdwg.mxu0
    %v2933 = vadd.f32 %v2703, %v2920
    %v2934 = vadd.f32 %v2704, %v2923
    %v2935 = vadd.f32 %v2705, %v2928
    %v2936 = vadd.f32 %v2933, %v2019
    %v2937 = vadd.f32 %v2934, %v2019
    %v2938 = vadd.f32 %v2935, %v2019
    %v2939 = vadd.f32 %v292, %v2020
    %v2940 = vadd.f32 %v479, %v2021
    %v2941 = vadd.f32 %v90, %v2022
    %v2942 = vadd.f32 %v670, %v2936
    %v2943 = vadd.f32 %v835, %v2937
    %v2944 = vadd.f32 %v90, %v2938
    %v2945 = vsel %vm852, %v2939, 0.0
    %2946 = vadd.xlane.f32.xlu0 %v2945
    %v2947 = vpop.xlane.xlu0 %2946
    %v2948 = vsel %vm852, %v2940, 0.0
    %2949 = vadd.xlane.f32.xlu0 %v2948
    %v2950 = vpop.xlane.xlu0 %2949
    %v2951 = vsel %vm852, %v2941, 0.0
    %2952 = vadd.xlane.f32.xlu0 %v2951
    %v2953 = vpop.xlane.xlu0 %2952
    %v2954 = vsel %vm852, %v2942, 0.0
    %2955 = vadd.xlane.f32.xlu0 %v2954
    %v2956 = vpop.xlane.xlu0 %2955
    %v2957 = vsel %vm852, %v2943, 0.0
    %2958 = vadd.xlane.f32.xlu0 %v2957
    %v2959 = vpop.xlane.xlu0 %2958
    %v2960 = vsel %vm852, %v2944, 0.0
    %2961 = vadd.xlane.f32.xlu0 %v2960
    %v2962 = vpop.xlane.xlu0 %2961
    %v2963 = vmul.f32 %v2947, %v868
    %v2964 = vmul.f32 %v2950, %v868
    %v2965 = vmul.f32 %v2953, %v868
    %v2966 = vmul.f32 %v2956, %v868
    %v2967 = vmul.f32 %v2959, %v868
    %v2968 = vmul.f32 %v2962, %v868
    %v2969 = vsub.f32 %v2939, %v2963
    %v2970 = vsub.f32 %v2940, %v2964
    %v2971 = vsub.f32 %v2941, %v2965
    %v2972 = vsub.f32 %v2942, %v2966
    %v2973 = vsub.f32 %v2943, %v2967
    %v2974 = vsub.f32 %v2944, %v2968
    %v2975 = vmul.f32 %v2969, %v2969
    %v2976 = vmul.f32 %v2970, %v2970
    %v2977 = vmul.f32 %v2971, %v2971
    %v2978 = vmul.f32 %v2972, %v2972
    %v2979 = vmul.f32 %v2973, %v2973
    %v2980 = vmul.f32 %v2974, %v2974
    %v2981 = vsel %vm852, %v2975, 0.0
    %2982 = vadd.xlane.f32.xlu0 %v2981
    %v2983 = vpop.xlane.xlu0 %2982
    %v2984 = vsel %vm852, %v2976, 0.0
    %2985 = vadd.xlane.f32.xlu0 %v2984
    %v2986 = vpop.xlane.xlu0 %2985
    %v2987 = vsel %vm852, %v2977, 0.0
    %2988 = vadd.xlane.f32.xlu0 %v2987
    %v2989 = vpop.xlane.xlu0 %2988
    %v2990 = vsel %vm852, %v2978, 0.0
    %2991 = vadd.xlane.f32.xlu0 %v2990
    %v2992 = vpop.xlane.xlu0 %2991
    %v2993 = vsel %vm852, %v2979, 0.0
    %2994 = vadd.xlane.f32.xlu0 %v2993
    %v2995 = vpop.xlane.xlu0 %2994
    %v2996 = vsel %vm852, %v2980, 0.0
    %2997 = vadd.xlane.f32.xlu0 %v2996
    %v2998 = vpop.xlane.xlu0 %2997
    %v2999 = vmul.f32 %v2983, %v868
    %v3000 = vmul.f32 %v2986, %v868
    %v3001 = vmul.f32 %v2989, %v868
    %v3002 = vmul.f32 %v2992, %v868
    %v3003 = vmul.f32 %v2995, %v868
    %v3004 = vmul.f32 %v2998, %v868
    %v3005 = vadd.f32 %v2999, 1e-05
    %v3006 = vadd.f32 %v3000, 1e-05
    %v3007 = vadd.f32 %v3001, 1e-05
    %v3008 = vadd.f32 %v3002, 1e-05
    %v3009 = vadd.f32 %v3003, 1e-05
    %v3010 = vadd.f32 %v3004, 1e-05
    %v3011 = vrsqrt.pop %v3005
    %v3012 = vrsqrt.pop %v3006
    %v3013 = vrsqrt.pop %v3007
    %v3014 = vrsqrt.pop %v3008
    %v3015 = vrsqrt.pop %v3009
    %v3016 = vrsqrt.pop %v3010
    %v3017 = vmul.f32 %v2969, %v3011
    %v3018 = vmul.f32 %v2970, %v3012
    %v3019 = vmul.f32 %v2971, %v3013
    %v3020 = vmul.f32 %v2972, %v3014
    %v3021 = vmul.f32 %v2973, %v3015
    %v3022 = vmul.f32 %v2974, %v3016
    %v3023 = vlaneseq
    %v3024 = vshrl.u32 %v3023, 7
    %v3025 = vsub.s32 4, %v3024
    %v3026 = vrot.slane %v850, %v3025
    %v3027 = vmul.f32 %v3017, %v3026
    %v3028 = vmul.f32 %v3018, %v3026
    %v3029 = vmul.f32 %v3019, %v3026
    %v3030 = vmul.f32 %v3020, %v3026
    %v3031 = vmul.f32 %v3021, %v3026
    %v3032 = vmul.f32 %v3022, %v3026
    %v3033 = vlaneseq
    %v3034 = vshrl.u32 %v3033, 7
    %v3035 = vsub.s32 5, %v3034
    %v3036 = vrot.slane %v850, %v3035
    %v3037 = vadd.f32 %v3027, %v3036
    %v3038 = vadd.f32 %v3028, %v3036
    %v3039 = vadd.f32 %v3029, %v3036
    %v3040 = vadd.f32 %v3030, %v3036
    %v3041 = vadd.f32 %v3031, %v3036
    %v3042 = vadd.f32 %v3032, %v3036
    %v3043 = vpack.c.bf16 %v3038, %v3037
    %v3044 = vpack.c.bf16 %v3040, %v3039
    %v3045 = vpack.c.bf16 %v3042, %v3041
    %v3046 = vld [vmem:[#allocation9] sm:$0xf]
    %v3047 = vld [vmem:[#allocation9 + $0x4] sm:$0xf]
    %v3048 = vld [vmem:[#allocation9 + $0x8] sm:$0xf]
    %v3049 = vld [vmem:[#allocation9 + $0xc] sm:$0xf]
    %v3050 = vld [vmem:[#allocation9 + $0x10] sm:$0xf]
    %v3051 = vld [vmem:[#allocation9 + $0x14] sm:$0xf]
    %v3052 = vld [vmem:[#allocation9 + $0x18] sm:$0xf]
    %v3053 = vld [vmem:[#allocation9 + $0x1c] sm:$0xf]
    %v3054 = vlaneseq
    %v3055 = vshrl.u32 %v3054, 7
    %v3056 = vsub.s32 6, %v3055
    %v3057 = vrot.slane %v850, %v3056
    %v3066 = vunpack.c.l.b16 %v3046
    %v3067 = vunpack.c.l.b16 %v3047
    %v3068 = vunpack.c.l.b16 %v3048
    %v3069 = vunpack.c.l.b16 %v3049
    %v3070 = vunpack.c.l.b16 %v3050
    %v3071 = vunpack.c.l.b16 %v3051
    %v3072 = vunpack.c.l.b16 %v3052
    %v3073 = vunpack.c.l.b16 %v3053
    %v3074 = vpack.c.b16 %v3067, %v3066
    %v3075 = vpack.c.b16 %v3069, %v3068
    %v3076 = vpack.c.b16 %v3071, %v3070
    %v3077 = vpack.c.b16 %v3073, %v3072
    %v3083 = vsel %vm852, %v3043, 0
    %v3086 = vsel %vm852, %v3044, 0
    %v3089 = vsel %vm852, %v3045, 0
    %3091 = vmatprep.subr.bf16.mxu0 0
    %3092 = vmatpush1.bf16.msra.mxu0 %v3074
    %3093 = vmatprep.subr.bf16.mxu0 0
    %3094 = vmatpush1.bf16.msra.mxu0 %v3075
    %3095 = vmatprep.subr.bf16.mxu0 0
    %3096 = vmatpush1.bf16.msra.mxu0 %v3076
    %3097 = vmatprep.subr.bf16.mxu0 0
    %3098 = vmatpush1.bf16.msra.mxu0 %v3077
    %3099 = vmatprep.subr.bf16.mxu0 0
    %3100 = vmatpush1.bf16.msra.mxu0 0
    %3101 = vmatprep.subr.bf16.mxu0 0
    %3102 = vmatpush1.bf16.msra.mxu0 0
    %3103 = vmatprep.subr.bf16.mxu0 0
    %3104 = vmatpush1.bf16.msra.mxu0 0
    %3105 = vmatprep.subr.bf16.mxu0 0
    %3106 = vmatpush1.bf16.msra.mxu0 0
    %3107 = vmatprep.subr.bf16.mxu0 0
    %3108 = vmatpush1.bf16.msra.mxu0 0
    %3109 = vmatprep.subr.bf16.mxu0 0
    %3110 = vmatpush1.bf16.msra.mxu0 0
    %3111 = vmatprep.subr.bf16.mxu0 0
    %3112 = vmatpush1.bf16.msra.mxu0 0
    %3113 = vmatprep.subr.bf16.mxu0 0
    %3114 = vmatpush1.bf16.msra.mxu0 0
    %3115 = vmatprep.subr.bf16.mxu0 0
    %3116 = vmatpush1.bf16.msra.mxu0 0
    %3117 = vmatprep.subr.bf16.mxu0 0
    %3118 = vmatpush1.bf16.msra.mxu0 0
    %3119 = vmatprep.subr.bf16.mxu0 0
    %3120 = vmatpush1.bf16.msra.mxu0 0
    %3121 = vmatprep.subr.bf16.mxu0 0
    %3122 = vmatpush1.bf16.msra.mxu0 0
    %3123 = vmatprep.mubr.bf16.mxu0 0
    %3124 = vmatmul.mubr.bf16.gmra.mrb[0].mxu0 %v3083
    %v3125 = vpop.f32.mrb[0].mxu0
    %v3126 = vadd.f32 %v3057, %v3125
    %v3127 = vpop.f32.mrb[0].mxu0
    %v3128 = vpop.f32.mrb[0].mxu0
    %v3129 = vadd.f32 %v3057, %v3128
    %v3130 = vpop.f32.mrb[0].mxu0
    %3131 = vmatprep.mubr.bf16.mxu0 0
    %3132 = vmatmul.mubr.bf16.gmra.mrb[0].mxu0 %v3086
    %v3133 = vpop.f32.mrb[0].mxu0
    %v3134 = vadd.f32 %v3057, %v3133
    %v3135 = vpop.f32.mrb[0].mxu0
    %v3136 = vpop.f32.mrb[0].mxu0
    %v3137 = vadd.f32 %v3057, %v3136
    %v3138 = vpop.f32.mrb[0].mxu0
    %3139 = vmatprep.mubr.bf16.mxu0 0
    %3140 = vmatmul.mubr.bf16.gmra.mrb[0].mxu0 %v3089
    %v3141 = vpop.f32.mrb[0].mxu0
    %v3142 = vadd.f32 %v3057, %v3141
    %v3143 = vpop.f32.mrb[0].mxu0
    %v3144 = vpop.f32.mrb[0].mxu0
    %v3145 = vadd.f32 %v3057, %v3144
    %v3146 = vpop.f32.mrb[0].mxu0
    %3147 = vdwg.mxu0
    %v3148 = vmul.f32 %v3126, 0.5
    %v3149 = vmul.f32 %v3129, 0.5
    %v3150 = vmul.f32 %v3134, 0.5
    %v3151 = vmul.f32 %v3137, 0.5
    %v3152 = vmul.f32 %v3142, 0.5
    %v3153 = vmul.f32 %v3145, 0.5
    %v3154 = vmul.f32 %v3126, 0.044715
    %v3155 = vmul.f32 %v3129, 0.044715
    %v3156 = vmul.f32 %v3134, 0.044715
    %v3157 = vmul.f32 %v3137, 0.044715
    %v3158 = vmul.f32 %v3142, 0.044715
    %v3159 = vmul.f32 %v3145, 0.044715
    %v3160 = vmul.f32 %v3154, %v3126
    %v3161 = vmul.f32 %v3155, %v3129
    %v3162 = vmul.f32 %v3156, %v3134
    %v3163 = vmul.f32 %v3157, %v3137
    %v3164 = vmul.f32 %v3158, %v3142
    %v3165 = vmul.f32 %v3159, %v3145
    %v3166 = vmul.f32 %v3160, %v3126
    %v3167 = vmul.f32 %v3161, %v3129
    %v3168 = vmul.f32 %v3162, %v3134
    %v3169 = vmul.f32 %v3163, %v3137
    %v3170 = vmul.f32 %v3164, %v3142
    %v3171 = vmul.f32 %v3165, %v3145
    %v3172 = vadd.f32 %v3126, %v3166
    %v3173 = vadd.f32 %v3129, %v3167
    %v3174 = vadd.f32 %v3134, %v3168
    %v3175 = vadd.f32 %v3137, %v3169
    %v3176 = vadd.f32 %v3142, %v3170
    %v3177 = vadd.f32 %v3145, %v3171
    %v3178 = vmul.f32 %v3172, 0.7978846
    %v3179 = vmul.f32 %v3173, 0.7978846
    %v3180 = vmul.f32 %v3174, 0.7978846
    %v3181 = vmul.f32 %v3175, 0.7978846
    %v3182 = vmul.f32 %v3176, 0.7978846
    %v3183 = vmul.f32 %v3177, 0.7978846
    %v3184 = vtanh.pop %v3178
    %v3185 = vtanh.pop %v3179
    %v3186 = vtanh.pop %v3180
    %v3187 = vtanh.pop %v3181
    %v3188 = vtanh.pop %v3182
    %v3189 = vtanh.pop %v3183
    %v3190 = vadd.f32 %v3184, 1.0
    %v3191 = vadd.f32 %v3185, 1.0
    %v3192 = vadd.f32 %v3186, 1.0
    %v3193 = vadd.f32 %v3187, 1.0
    %v3194 = vadd.f32 %v3188, 1.0
    %v3195 = vadd.f32 %v3189, 1.0
    %v3196 = vmul.f32 %v3148, %v3190
    %v3197 = vmul.f32 %v3149, %v3191
    %v3198 = vmul.f32 %v3150, %v3192
    %v3199 = vmul.f32 %v3151, %v3193
    %v3200 = vmul.f32 %v3152, %v3194
    %v3201 = vmul.f32 %v3153, %v3195
    %v3202 = vpack.c.bf16 %v3197, %v3196
    %v3203 = vpack.c.bf16 %v3199, %v3198
    %v3204 = vpack.c.bf16 %v3201, %v3200
    %v3205 = vld [vmem:[%s8] sm:$0xf]
    %v3206 = vld [vmem:[%s8 + $0x4] sm:$0xf]
    %v3207 = vld [vmem:[%s8 + $0x8] sm:$0xf]
    %v3208 = vld [vmem:[%s8 + $0xc] sm:$0xf]
    %v3209 = vld [vmem:[%s8 + $0x10] sm:$0xf]
    %v3210 = vld [vmem:[%s8 + $0x14] sm:$0xf]
    %v3211 = vld [vmem:[%s8 + $0x18] sm:$0xf]
    %v3212 = vld [vmem:[%s8 + $0x1c] sm:$0xf]
    %v3213 = vld [vmem:[%s8 + $0x20] sm:$0xf]
    %v3214 = vld [vmem:[%s8 + $0x24] sm:$0xf]
    %v3215 = vld [vmem:[%s8 + $0x28] sm:$0xf]
    %v3216 = vld [vmem:[%s8 + $0x2c] sm:$0xf]
    %v3217 = vld [vmem:[%s8 + $0x30] sm:$0xf]
    %v3218 = vld [vmem:[%s8 + $0x34] sm:$0xf]
    %v3219 = vld [vmem:[%s8 + $0x38] sm:$0xf]
    %v3220 = vld [vmem:[%s8 + $0x3c] sm:$0xf]
    %v3237 = vunpack.c.l.b16 %v3205
    %v3238 = vunpack.c.l.b16 %v3206
    %v3239 = vunpack.c.l.b16 %v3207
    %v3240 = vunpack.c.l.b16 %v3208
    %v3241 = vunpack.c.l.b16 %v3209
    %v3242 = vunpack.c.l.b16 %v3210
    %v3243 = vunpack.c.l.b16 %v3211
    %v3244 = vunpack.c.l.b16 %v3212
    %v3245 = vunpack.c.l.b16 %v3213
    %v3246 = vunpack.c.l.b16 %v3214
    %v3247 = vunpack.c.l.b16 %v3215
    %v3248 = vunpack.c.l.b16 %v3216
    %v3249 = vunpack.c.l.b16 %v3217
    %v3250 = vunpack.c.l.b16 %v3218
    %v3251 = vunpack.c.l.b16 %v3219
    %v3252 = vunpack.c.l.b16 %v3220
    %v3253 = vpack.c.b16 %v3238, %v3237
    %v3254 = vpack.c.b16 %v3240, %v3239
    %v3255 = vpack.c.b16 %v3242, %v3241
    %v3256 = vpack.c.b16 %v3244, %v3243
    %v3257 = vpack.c.b16 %v3246, %v3245
    %v3258 = vpack.c.b16 %v3248, %v3247
    %v3259 = vpack.c.b16 %v3250, %v3249
    %v3260 = vpack.c.b16 %v3252, %v3251
    %3269 = vmatprep.subr.bf16.mxu0 0
    %3270 = vmatpush1.bf16.msra.mxu0 %v3253
    %3271 = vmatprep.subr.bf16.mxu0 0
    %3272 = vmatpush1.bf16.msra.mxu0 %v3254
    %3273 = vmatprep.subr.bf16.mxu0 0
    %3274 = vmatpush1.bf16.msra.mxu0 %v3255
    %3275 = vmatprep.subr.bf16.mxu0 0
    %3276 = vmatpush1.bf16.msra.mxu0 %v3256
    %3277 = vmatprep.subr.bf16.mxu0 0
    %3278 = vmatpush1.bf16.msra.mxu0 %v3257
    %3279 = vmatprep.subr.bf16.mxu0 0
    %3280 = vmatpush1.bf16.msra.mxu0 %v3258
    %3281 = vmatprep.subr.bf16.mxu0 0
    %3282 = vmatpush1.bf16.msra.mxu0 %v3259
    %3283 = vmatprep.subr.bf16.mxu0 0
    %3284 = vmatpush1.bf16.msra.mxu0 %v3260
    %3285 = vmatprep.subr.bf16.mxu0 0
    %3286 = vmatpush1.bf16.msra.mxu0 0
    %3287 = vmatprep.subr.bf16.mxu0 0
    %3288 = vmatpush1.bf16.msra.mxu0 0
    %3289 = vmatprep.subr.bf16.mxu0 0
    %3290 = vmatpush1.bf16.msra.mxu0 0
    %3291 = vmatprep.subr.bf16.mxu0 0
    %3292 = vmatpush1.bf16.msra.mxu0 0
    %3293 = vmatprep.subr.bf16.mxu0 0
    %3294 = vmatpush1.bf16.msra.mxu0 0
    %3295 = vmatprep.subr.bf16.mxu0 0
    %3296 = vmatpush1.bf16.msra.mxu0 0
    %3297 = vmatprep.subr.bf16.mxu0 0
    %3298 = vmatpush1.bf16.msra.mxu0 0
    %3299 = vmatprep.subr.bf16.mxu0 0
    %3300 = vmatpush1.bf16.msra.mxu0 0
    %3301 = vmatprep.mubr.bf16.mxu0 0
    %3302 = vmatmul.mubr.bf16.gmra.mrb[0].mxu0 %v3202
    %v3303 = vpop.f32.mrb[0].mxu0
    %v3304 = vadd.f32 0.0, %v3303
    %v3305 = vpop.f32.mrb[0].mxu0
    %v3306 = vpop.f32.mrb[0].mxu0
    %v3307 = vadd.f32 0.0, %v3306
    %v3308 = vpop.f32.mrb[0].mxu0
    %3309 = vmatprep.mubr.bf16.mxu0 0
    %3310 = vmatmul.mubr.bf16.gmra.mrb[0].mxu0 %v3203
    %v3311 = vpop.f32.mrb[0].mxu0
    %v3312 = vadd.f32 0.0, %v3311
    %v3313 = vpop.f32.mrb[0].mxu0
    %v3314 = vpop.f32.mrb[0].mxu0
    %v3315 = vadd.f32 0.0, %v3314
    %v3316 = vpop.f32.mrb[0].mxu0
    %3317 = vmatprep.mubr.bf16.mxu0 0
    %3318 = vmatmul.mubr.bf16.gmra.mrb[0].mxu0 %v3204
    %v3319 = vpop.f32.mrb[0].mxu0
    %v3320 = vadd.f32 0.0, %v3319
    %v3321 = vpop.f32.mrb[0].mxu0
    %v3322 = vpop.f32.mrb[0].mxu0
    %v3323 = vadd.f32 0.0, %v3322
    %v3324 = vpop.f32.mrb[0].mxu0
    %3325 = vdwg.mxu0
    %v3326 = vadd.f32 %v2939, %v3304
    %v3327 = vadd.f32 %v2940, %v3307
    %v3328 = vadd.f32 %v2941, %v3312
    %v3329 = vadd.f32 %v2942, %v3315
    %v3330 = vadd.f32 %v2943, %v3320
    %v3331 = vadd.f32 %v2944, %v3323
    %v3332 = vlaneseq
    %v3333 = vshrl.u32 %v3332, 7
    %v3334 = vsub.s32 7, %v3333
    %v3335 = vrot.slane %v850, %v3334
    %v3336 = vadd.f32 %v3326, %v3335
    %v3337 = vadd.f32 %v3327, %v3335
    %v3338 = vadd.f32 %v3328, %v3335
    %v3339 = vadd.f32 %v3329, %v3335
    %v3340 = vadd.f32 %v3330, %v3335
    %v3341 = vadd.f32 %v3331, %v3335
    %s3342 = scalar_lea.vmem [#allocation7], 16
    %v3343 = vld [vmem:[%s3342] sm:$0xff]
    %v3344 = vld [vmem:[%s3342 + $0x8] sm:$0xff]
    %v3345 = vsel %vm852, %v3336, 0.0
    %3346 = vadd.xlane.f32.xlu0 %v3345
    %v3347 = vpop.xlane.xlu0 %3346
    %v3348 = vsel %vm852, %v3337, 0.0
    %3349 = vadd.xlane.f32.xlu0 %v3348
    %v3350 = vpop.xlane.xlu0 %3349
    %v3351 = vsel %vm852, %v3338, 0.0
    %3352 = vadd.xlane.f32.xlu0 %v3351
    %v3353 = vpop.xlane.xlu0 %3352
    %v3354 = vsel %vm852, %v3339, 0.0
    %3355 = vadd.xlane.f32.xlu0 %v3354
    %v3356 = vpop.xlane.xlu0 %3355
    %v3357 = vsel %vm852, %v3340, 0.0
    %3358 = vadd.xlane.f32.xlu0 %v3357
    %v3359 = vpop.xlane.xlu0 %3358
    %v3360 = vsel %vm852, %v3341, 0.0
    %3361 = vadd.xlane.f32.xlu0 %v3360
    %v3362 = vpop.xlane.xlu0 %3361
    %v3363 = vmul.f32 %v3347, %v868
    %v3364 = vmul.f32 %v3350, %v868
    %v3365 = vmul.f32 %v3353, %v868
    %v3366 = vmul.f32 %v3356, %v868
    %v3367 = vmul.f32 %v3359, %v868
    %v3368 = vmul.f32 %v3362, %v868
    %v3369 = vsub.f32 %v3336, %v3363
    %v3370 = vsub.f32 %v3337, %v3364
    %v3371 = vsub.f32 %v3338, %v3365
    %v3372 = vsub.f32 %v3339, %v3366
    %v3373 = vsub.f32 %v3340, %v3367
    %v3374 = vsub.f32 %v3341, %v3368
    %v3375 = vmul.f32 %v3369, %v3369
    %v3376 = vmul.f32 %v3370, %v3370
    %v3377 = vmul.f32 %v3371, %v3371
    %v3378 = vmul.f32 %v3372, %v3372
    %v3379 = vmul.f32 %v3373, %v3373
    %v3380 = vmul.f32 %v3374, %v3374
    %v3381 = vsel %vm852, %v3375, 0.0
    %3382 = vadd.xlane.f32.xlu0 %v3381
    %v3383 = vpop.xlane.xlu0 %3382
    %v3384 = vsel %vm852, %v3376, 0.0
    %3385 = vadd.xlane.f32.xlu0 %v3384
    %v3386 = vpop.xlane.xlu0 %3385
    %v3387 = vsel %vm852, %v3377, 0.0
    %3388 = vadd.xlane.f32.xlu0 %v3387
    %v3389 = vpop.xlane.xlu0 %3388
    %v3390 = vsel %vm852, %v3378, 0.0
    %3391 = vadd.xlane.f32.xlu0 %v3390
    %v3392 = vpop.xlane.xlu0 %3391
    %v3393 = vsel %vm852, %v3379, 0.0
    %3394 = vadd.xlane.f32.xlu0 %v3393
    %v3395 = vpop.xlane.xlu0 %3394
    %v3396 = vsel %vm852, %v3380, 0.0
    %3397 = vadd.xlane.f32.xlu0 %v3396
    %v3398 = vpop.xlane.xlu0 %3397
    %v3399 = vmul.f32 %v3383, %v868
    %v3400 = vmul.f32 %v3386, %v868
    %v3401 = vmul.f32 %v3389, %v868
    %v3402 = vmul.f32 %v3392, %v868
    %v3403 = vmul.f32 %v3395, %v868
    %v3404 = vmul.f32 %v3398, %v868
    %v3405 = vadd.f32 %v3399, 1e-05
    %v3406 = vadd.f32 %v3400, 1e-05
    %v3407 = vadd.f32 %v3401, 1e-05
    %v3408 = vadd.f32 %v3402, 1e-05
    %v3409 = vadd.f32 %v3403, 1e-05
    %v3410 = vadd.f32 %v3404, 1e-05
    %v3411 = vrsqrt.pop %v3405
    %v3412 = vrsqrt.pop %v3406
    %v3413 = vrsqrt.pop %v3407
    %v3414 = vrsqrt.pop %v3408
    %v3415 = vrsqrt.pop %v3409
    %v3416 = vrsqrt.pop %v3410
    %v3417 = vmul.f32 %v3369, %v3411
    %v3418 = vmul.f32 %v3370, %v3412
    %v3419 = vmul.f32 %v3371, %v3413
    %v3420 = vmul.f32 %v3372, %v3414
    %v3421 = vmul.f32 %v3373, %v3415
    %v3422 = vmul.f32 %v3374, %v3416
    %v3423 = vlaneseq
    %v3424 = vshrl.u32 %v3423, 7
    %v3425 = vsub.s32 0, %v3424
    %v3426 = vrot.slane %v3343, %v3425
    %v3427 = vmul.f32 %v3417, %v3426
    %v3428 = vmul.f32 %v3418, %v3426
    %v3429 = vmul.f32 %v3419, %v3426
    %v3430 = vmul.f32 %v3420, %v3426
    %v3431 = vmul.f32 %v3421, %v3426
    %v3432 = vmul.f32 %v3422, %v3426
    %v3433 = vlaneseq
    %v3434 = vshrl.u32 %v3433, 7
    %v3435 = vsub.s32 1, %v3434
    %v3436 = vrot.slane %v3343, %v3435
    %v3437 = vadd.f32 %v3427, %v3436
    %v3438 = vadd.f32 %v3428, %v3436
    %v3439 = vadd.f32 %v3429, %v3436
    %v3440 = vadd.f32 %v3430, %v3436
    %v3441 = vadd.f32 %v3431, %v3436
    %v3442 = vadd.f32 %v3432, %v3436
    %v3443 = vpack.c.bf16 %v3438, %v3437
    %v3444 = vpack.c.bf16 %v3440, %v3439
    %v3445 = vpack.c.bf16 %v3442, %v3441
    %s3446 = scalar_lea.vmem %s5, 64
    %v3447 = vld [vmem:[%s3446] sm:$0xff]
    %v3448 = vld [vmem:[%s3446 + $0x8] sm:$0xff]
    %v3449 = vld [vmem:[%s3446 + $0x10] sm:$0xff]
    %v3450 = vld [vmem:[%s3446 + $0x18] sm:$0xff]
    %v3451 = vld [vmem:[%s3446 + $0x20] sm:$0xff]
    %v3452 = vld [vmem:[%s3446 + $0x28] sm:$0xff]
    %v3453 = vld [vmem:[%s3446 + $0x30] sm:$0xff]
    %v3454 = vld [vmem:[%s3446 + $0x38] sm:$0xff]
    %v3455 = vlaneseq
    %v3456 = vshrl.u32 %v3455, 7
    %v3457 = vsub.s32 2, %v3456
    %v3458 = vrot.slane %v3343, %v3457
    %v3459 = vlaneseq
    %v3460 = vshrl.u32 %v3459, 7
    %v3461 = vsub.s32 2, %v3460
    %v3462 = vrot.slane %v3344, %v3461
    %v3471 = vunpack.c.l.b16 %v3447
    %v3472 = vunpack.c.h.b16 %v3447
    %v3473 = vunpack.c.l.b16 %v3448
    %v3474 = vunpack.c.h.b16 %v3448
    %v3475 = vunpack.c.l.b16 %v3449
    %v3476 = vunpack.c.h.b16 %v3449
    %v3477 = vunpack.c.l.b16 %v3450
    %v3478 = vunpack.c.h.b16 %v3450
    %v3479 = vunpack.c.l.b16 %v3451
    %v3480 = vunpack.c.h.b16 %v3451
    %v3481 = vunpack.c.l.b16 %v3452
    %v3482 = vunpack.c.h.b16 %v3452
    %v3483 = vunpack.c.l.b16 %v3453
    %v3484 = vunpack.c.h.b16 %v3453
    %v3485 = vunpack.c.l.b16 %v3454
    %v3486 = vunpack.c.h.b16 %v3454
    %v3487 = vpack.c.b16 %v3473, %v3471
    %v3488 = vpack.c.b16 %v3474, %v3472
    %v3489 = vpack.c.b16 %v3477, %v3475
    %v3490 = vpack.c.b16 %v3478, %v3476
    %v3491 = vpack.c.b16 %v3481, %v3479
    %v3492 = vpack.c.b16 %v3482, %v3480
    %v3493 = vpack.c.b16 %v3485, %v3483
    %v3494 = vpack.c.b16 %v3486, %v3484
    %v3504 = vsel %vm852, %v3443, 0
    %v3507 = vsel %vm852, %v3444, 0
    %v3510 = vsel %vm852, %v3445, 0
    %3512 = vmatprep.subr.bf16.mxu0 %v3488
    %3513 = vmatpush1.bf16.msra.mxu0 %v3487
    %3514 = vmatprep.subr.bf16.mxu0 %v3490
    %3515 = vmatpush1.bf16.msra.mxu0 %v3489
    %3516 = vmatprep.subr.bf16.mxu0 %v3492
    %3517 = vmatpush1.bf16.msra.mxu0 %v3491
    %3518 = vmatprep.subr.bf16.mxu0 %v3494
    %3519 = vmatpush1.bf16.msra.mxu0 %v3493
    %3520 = vmatprep.subr.bf16.mxu0 0
    %3521 = vmatpush1.bf16.msra.mxu0 0
    %3522 = vmatprep.subr.bf16.mxu0 0
    %3523 = vmatpush1.bf16.msra.mxu0 0
    %3524 = vmatprep.subr.bf16.mxu0 0
    %3525 = vmatpush1.bf16.msra.mxu0 0
    %3526 = vmatprep.subr.bf16.mxu0 0
    %3527 = vmatpush1.bf16.msra.mxu0 0
    %3528 = vmatprep.subr.bf16.mxu0 0
    %3529 = vmatpush1.bf16.msra.mxu0 0
    %3530 = vmatprep.subr.bf16.mxu0 0
    %3531 = vmatpush1.bf16.msra.mxu0 0
    %3532 = vmatprep.subr.bf16.mxu0 0
    %3533 = vmatpush1.bf16.msra.mxu0 0
    %3534 = vmatprep.subr.bf16.mxu0 0
    %3535 = vmatpush1.bf16.msra.mxu0 0
    %3536 = vmatprep.subr.bf16.mxu0 0
    %3537 = vmatpush1.bf16.msra.mxu0 0
    %3538 = vmatprep.subr.bf16.mxu0 0
    %3539 = vmatpush1.bf16.msra.mxu0 0
    %3540 = vmatprep.subr.bf16.mxu0 0
    %3541 = vmatpush1.bf16.msra.mxu0 0
    %3542 = vmatprep.subr.bf16.mxu0 0
    %3543 = vmatpush1.bf16.msra.mxu0 0
    %3544 = vmatprep.mubr.bf16.mxu0 0
    %3545 = vmatmul.mubr.bf16.gmra.mrb[0].mxu0 %v3504
    %v3546 = vpop.f32.mrb[0].mxu0
    %v3547 = vadd.f32 %v3458, %v3546
    %v3548 = vpop.f32.mrb[0].mxu0
    %v3549 = vadd.f32 %v3462, %v3548
    %v3550 = vpop.f32.mrb[0].mxu0
    %v3551 = vadd.f32 %v3458, %v3550
    %v3552 = vpop.f32.mrb[0].mxu0
    %v3553 = vadd.f32 %v3462, %v3552
    %3554 = vmatprep.mubr.bf16.mxu0 0
    %3555 = vmatmul.mubr.bf16.gmra.mrb[0].mxu0 %v3507
    %v3556 = vpop.f32.mrb[0].mxu0
    %v3557 = vadd.f32 %v3458, %v3556
    %v3558 = vpop.f32.mrb[0].mxu0
    %v3559 = vadd.f32 %v3462, %v3558
    %v3560 = vpop.f32.mrb[0].mxu0
    %v3561 = vadd.f32 %v3458, %v3560
    %v3562 = vpop.f32.mrb[0].mxu0
    %v3563 = vadd.f32 %v3462, %v3562
    %3564 = vmatprep.mubr.bf16.mxu0 0
    %3565 = vmatmul.mubr.bf16.gmra.mrb[0].mxu0 %v3510
    %v3566 = vpop.f32.mrb[0].mxu0
    %v3567 = vadd.f32 %v3458, %v3566
    %v3568 = vpop.f32.mrb[0].mxu0
    %v3569 = vadd.f32 %v3462, %v3568
    %v3570 = vpop.f32.mrb[0].mxu0
    %v3571 = vadd.f32 %v3458, %v3570
    %v3572 = vpop.f32.mrb[0].mxu0
    %v3573 = vadd.f32 %v3462, %v3572
    %3574 = vdwg.mxu0
    %s3575 = scalar_lea.vmem %s6, 32
    %v3576 = vld [vmem:[%s3575] sm:$0xf]
    %v3577 = vld [vmem:[%s3575 + $0x4] sm:$0xf]
    %v3578 = vld [vmem:[%s3575 + $0x8] sm:$0xf]
    %v3579 = vld [vmem:[%s3575 + $0xc] sm:$0xf]
    %v3580 = vld [vmem:[%s3575 + $0x10] sm:$0xf]
    %v3581 = vld [vmem:[%s3575 + $0x14] sm:$0xf]
    %v3582 = vld [vmem:[%s3575 + $0x18] sm:$0xf]
    %v3583 = vld [vmem:[%s3575 + $0x1c] sm:$0xf]
    %v3584 = vpack.c.bf16 %v3551, %v3547
    %v3585 = vpack.c.bf16 %v3557, %v3557
    %v3586 = vpack.c.bf16 %v3553, %v3549
    %v3587 = vpack.c.bf16 %v3559, %v3559
    %3590 = vrot.lane.b32.xlu0 %v3584, 64
    %v3591 = vpop.permute.xlu0 %3590
    %3592 = vrot.lane.b32.xlu0 %v3585, 64
    %v3593 = vpop.permute.xlu0 %3592
    %v3595 = vsel %vm1086, %v3584, 0
    %v3598 = vsel %vm1086, %v3585, 0
    %v3601 = vsel %vm1086, %v3591, 0
    %v3604 = vsel %vm1086, %v3593, 0
    %3606 = vmatprep.subr.bf16.mxu0 0
    %3607 = vmatpush1.bf16.xpose.msra.mxu0 %v3601
    %3608 = vmatprep.subr.bf16.mxu0 0
    %3609 = vmatpush1.bf16.xpose.msra.mxu0 %v3604
    %3610 = vmatprep.subr.bf16.mxu0 0
    %3611 = vmatpush1.bf16.xpose.msra.mxu0 0
    %3612 = vmatprep.subr.bf16.mxu0 0
    %3613 = vmatpush1.bf16.xpose.msra.mxu0 0
    %3614 = vmatprep.subr.bf16.mxu0 0
    %3615 = vmatpush1.bf16.xpose.msra.mxu0 0
    %3616 = vmatprep.subr.bf16.mxu0 0
    %3617 = vmatpush1.bf16.xpose.msra.mxu0 0
    %3618 = vmatprep.subr.bf16.mxu0 0
    %3619 = vmatpush1.bf16.xpose.msra.mxu0 0
    %3620 = vmatprep.subr.bf16.mxu0 0
    %3621 = vmatpush1.bf16.xpose.msra.mxu0 0
    %3622 = vmatprep.subr.bf16.mxu0 0
    %3623 = vmatpush1.bf16.xpose.msra.mxu0 0
    %3624 = vmatprep.subr.bf16.mxu0 0
    %3625 = vmatpush1.bf16.xpose.msra.mxu0 0
    %3626 = vmatprep.subr.bf16.mxu0 0
    %3627 = vmatpush1.bf16.xpose.msra.mxu0 0
    %3628 = vmatprep.subr.bf16.mxu0 0
    %3629 = vmatpush1.bf16.xpose.msra.mxu0 0
    %3630 = vmatprep.subr.bf16.mxu0 0
    %3631 = vmatpush1.bf16.xpose.msra.mxu0 0
    %3632 = vmatprep.subr.bf16.mxu0 0
    %3633 = vmatpush1.bf16.xpose.msra.mxu0 0
    %3634 = vmatprep.subr.bf16.mxu0 0
    %3635 = vmatpush1.bf16.xpose.msra.mxu0 0
    %3636 = vmatprep.subr.bf16.mxu0 0
    %3637 = vmatpush1.bf16.xpose.msra.mxu0 0
    %3638 = vmatprep.mubr.bf16.mxu0 0
    %3639 = vmatmul.mubr.bf16.gmra.mrb[0].mxu0 %v3595
    %v3640 = vpop.f32.mrb[0].mxu0
    %v3641 = vadd.f32 0.0, %v3640
    %v3642 = vpop.f32.mrb[0].mxu0
    %v3643 = vpop.f32.mrb[0].mxu0
    %v3644 = vadd.f32 0.0, %v3643
    %v3645 = vpop.f32.mrb[0].mxu0
    %3646 = vmatprep.mubr.bf16.mxu0 0
    %3647 = vmatmul.mubr.bf16.gmra.mrb[0].mxu0 %v3598
    %v3648 = vpop.f32.mrb[0].mxu0
    %v3649 = vadd.f32 0.0, %v3648
    %v3650 = vpop.f32.mrb[0].mxu0
    %v3651 = vpop.f32.mrb[0].mxu0
    %v3652 = vpop.f32.mrb[0].mxu0
    %3653 = vdwg.mxu0
    %v3654 = vmul.f32 %v3641, 0.25
    %v3655 = vmul.f32 %v3644, 0.25
    %v3656 = vmul.f32 %v3649, 0.25
    %v3657 = vadd.f32 %v3654, %v500
    %v3658 = vadd.f32 %v3655, %v500
    %v3659 = vadd.f32 %v3656, %v500
    %v3660 = vsel %vm1153, %v3657, -inf
    %3661 = vmax.xlane.f32.xlu0 %v3660
    %v3662 = vpop.xlane.xlu0 %3661
    %v3663 = vsel %vm1153, %v3658, -inf
    %3664 = vmax.xlane.f32.xlu0 %v3663
    %v3665 = vpop.xlane.xlu0 %3664
    %v3666 = vsel %vm1153, %v3659, -inf
    %3667 = vmax.xlane.f32.xlu0 %v3666
    %v3668 = vpop.xlane.xlu0 %3667
    %v3669 = vsub.f32 %v3657, %v3662
    %v3670 = vsub.f32 %v3658, %v3665
    %v3671 = vsub.f32 %v3659, %v3668
    %v3672 = vmul.f32 %v3669, 1.442695
    %v3673 = vpow.pop %v3672
    %v3674 = vmul.f32 %v3670, 1.442695
    %v3675 = vpow.pop %v3674
    %v3676 = vmul.f32 %v3671, 1.442695
    %v3677 = vpow.pop %v3676
    %v3678 = vsel %vm1153, %v3673, 0.0
    %3679 = vadd.xlane.f32.xlu0 %v3678
    %v3680 = vpop.xlane.xlu0 %3679
    %v3681 = vsel %vm1153, %v3675, 0.0
    %3682 = vadd.xlane.f32.xlu0 %v3681
    %v3683 = vpop.xlane.xlu0 %3682
    %v3684 = vsel %vm1153, %v3677, 0.0
    %3685 = vadd.xlane.f32.xlu0 %v3684
    %v3686 = vpop.xlane.xlu0 %3685
    %v3687 = vrcp.pop %v3680
    %v3688 = vrcp.pop %v3683
    %v3689 = vrcp.pop %v3686
    %v3690 = vmul.f32 %v3673, %v3687
    %v3691 = vmul.f32 %v3675, %v3688
    %v3692 = vmul.f32 %v3677, %v3689
    %v3693 = vpack.c.bf16 %v3691, %v3690
    %v3694 = vpack.c.bf16 %v3692, %v3692
    %v3696 = vsel %vm1153, %v3693, 0
    %v3699 = vsel %vm1153, %v3694, 0
    %v3702 = vsel %vm1195, %v3587, 0
    %3704 = vmatprep.subr.bf16.mxu0 0
    %3705 = vmatpush1.bf16.msra.mxu0 %v3586
    %3706 = vmatprep.subr.bf16.mxu0 0
    %3707 = vmatpush1.bf16.msra.mxu0 %v3702
    %3708 = vmatprep.subr.bf16.mxu0 0
    %3709 = vmatpush1.bf16.msra.mxu0 0
    %3710 = vmatprep.subr.bf16.mxu0 0
    %3711 = vmatpush1.bf16.msra.mxu0 0
    %3712 = vmatprep.subr.bf16.mxu0 0
    %3713 = vmatpush1.bf16.msra.mxu0 0
    %3714 = vmatprep.subr.bf16.mxu0 0
    %3715 = vmatpush1.bf16.msra.mxu0 0
    %3716 = vmatprep.subr.bf16.mxu0 0
    %3717 = vmatpush1.bf16.msra.mxu0 0
    %3718 = vmatprep.subr.bf16.mxu0 0
    %3719 = vmatpush1.bf16.msra.mxu0 0
    %3720 = vmatprep.subr.bf16.mxu0 0
    %3721 = vmatpush1.bf16.msra.mxu0 0
    %3722 = vmatprep.subr.bf16.mxu0 0
    %3723 = vmatpush1.bf16.msra.mxu0 0
    %3724 = vmatprep.subr.bf16.mxu0 0
    %3725 = vmatpush1.bf16.msra.mxu0 0
    %3726 = vmatprep.subr.bf16.mxu0 0
    %3727 = vmatpush1.bf16.msra.mxu0 0
    %3728 = vmatprep.subr.bf16.mxu0 0
    %3729 = vmatpush1.bf16.msra.mxu0 0
    %3730 = vmatprep.subr.bf16.mxu0 0
    %3731 = vmatpush1.bf16.msra.mxu0 0
    %3732 = vmatprep.subr.bf16.mxu0 0
    %3733 = vmatpush1.bf16.msra.mxu0 0
    %3734 = vmatprep.subr.bf16.mxu0 0
    %3735 = vmatpush1.bf16.msra.mxu0 0
    %3736 = vmatprep.mubr.bf16.mxu0 0
    %3737 = vmatmul.mubr.bf16.gmra.mrb[0].mxu0 %v3696
    %v3738 = vpop.f32.mrb[0].mxu0
    %v3739 = vadd.f32 0.0, %v3738
    %v3740 = vpop.f32.mrb[0].mxu0
    %v3741 = vpop.f32.mrb[0].mxu0
    %v3742 = vadd.f32 0.0, %v3741
    %v3743 = vpop.f32.mrb[0].mxu0
    %3744 = vmatprep.mubr.bf16.mxu0 0
    %3745 = vmatmul.mubr.bf16.gmra.mrb[0].mxu0 %v3699
    %v3746 = vpop.f32.mrb[0].mxu0
    %v3747 = vadd.f32 0.0, %v3746
    %v3748 = vpop.f32.mrb[0].mxu0
    %v3749 = vpop.f32.mrb[0].mxu0
    %v3750 = vpop.f32.mrb[0].mxu0
    %3751 = vdwg.mxu0
    %v3752 = vpack.c.bf16 %v3742, %v3739
    %v3753 = vpack.c.bf16 %v3747, %v3747
    %3754 = vrot.lane.b32.xlu0 %v3584, 112
    %v3755 = vpop.permute.xlu0 %3754
    %3756 = vrot.lane.b32.xlu0 %v3585, 112
    %v3757 = vpop.permute.xlu0 %3756
    %3758 = vrot.lane.b32.xlu0 %v3584, 48
    %v3759 = vpop.permute.xlu0 %3758
    %3760 = vrot.lane.b32.xlu0 %v3585, 48
    %v3761 = vpop.permute.xlu0 %3760
    %v3763 = vsel %vm1086, %v3755, 0
    %v3766 = vsel %vm1086, %v3757, 0
    %v3769 = vsel %vm1086, %v3759, 0
    %v3772 = vsel %vm1086, %v3761, 0
    %3774 = vmatprep.subr.bf16.mxu0 0
    %3775 = vmatpush1.bf16.xpose.msra.mxu0 %v3769
    %3776 = vmatprep.subr.bf16.mxu0 0
    %3777 = vmatpush1.bf16.xpose.msra.mxu0 %v3772
    %3778 = vmatprep.subr.bf16.mxu0 0
    %3779 = vmatpush1.bf16.xpose.msra.mxu0 0
    %3780 = vmatprep.subr.bf16.mxu0 0
    %3781 = vmatpush1.bf16.xpose.msra.mxu0 0
    %3782 = vmatprep.subr.bf16.mxu0 0
    %3783 = vmatpush1.bf16.xpose.msra.mxu0 0
    %3784 = vmatprep.subr.bf16.mxu0 0
    %3785 = vmatpush1.bf16.xpose.msra.mxu0 0
    %3786 = vmatprep.subr.bf16.mxu0 0
    %3787 = vmatpush1.bf16.xpose.msra.mxu0 0
    %3788 = vmatprep.subr.bf16.mxu0 0
    %3789 = vmatpush1.bf16.xpose.msra.mxu0 0
    %3790 = vmatprep.subr.bf16.mxu0 0
    %3791 = vmatpush1.bf16.xpose.msra.mxu0 0
    %3792 = vmatprep.subr.bf16.mxu0 0
    %3793 = vmatpush1.bf16.xpose.msra.mxu0 0
    %3794 = vmatprep.subr.bf16.mxu0 0
    %3795 = vmatpush1.bf16.xpose.msra.mxu0 0
    %3796 = vmatprep.subr.bf16.mxu0 0
    %3797 = vmatpush1.bf16.xpose.msra.mxu0 0
    %3798 = vmatprep.subr.bf16.mxu0 0
    %3799 = vmatpush1.bf16.xpose.msra.mxu0 0
    %3800 = vmatprep.subr.bf16.mxu0 0
    %3801 = vmatpush1.bf16.xpose.msra.mxu0 0
    %3802 = vmatprep.subr.bf16.mxu0 0
    %3803 = vmatpush1.bf16.xpose.msra.mxu0 0
    %3804 = vmatprep.subr.bf16.mxu0 0
    %3805 = vmatpush1.bf16.xpose.msra.mxu0 0
    %3806 = vmatprep.mubr.bf16.mxu0 0
    %3807 = vmatmul.mubr.bf16.gmra.mrb[0].mxu0 %v3763
    %v3808 = vpop.f32.mrb[0].mxu0
    %v3809 = vadd.f32 0.0, %v3808
    %v3810 = vpop.f32.mrb[0].mxu0
    %v3811 = vpop.f32.mrb[0].mxu0
    %v3812 = vadd.f32 0.0, %v3811
    %v3813 = vpop.f32.mrb[0].mxu0
    %3814 = vmatprep.mubr.bf16.mxu0 0
    %3815 = vmatmul.mubr.bf16.gmra.mrb[0].mxu0 %v3766
    %v3816 = vpop.f32.mrb[0].mxu0
    %v3817 = vadd.f32 0.0, %v3816
    %v3818 = vpop.f32.mrb[0].mxu0
    %v3819 = vpop.f32.mrb[0].mxu0
    %v3820 = vpop.f32.mrb[0].mxu0
    %3821 = vdwg.mxu0
    %v3822 = vmul.f32 %v3809, 0.25
    %v3823 = vmul.f32 %v3812, 0.25
    %v3824 = vmul.f32 %v3817, 0.25
    %v3825 = vadd.f32 %v3822, %v500
    %v3826 = vadd.f32 %v3823, %v500
    %v3827 = vadd.f32 %v3824, %v500
    %v3828 = vsel %vm1153, %v3825, -inf
    %3829 = vmax.xlane.f32.xlu0 %v3828
    %v3830 = vpop.xlane.xlu0 %3829
    %v3831 = vsel %vm1153, %v3826, -inf
    %3832 = vmax.xlane.f32.xlu0 %v3831
    %v3833 = vpop.xlane.xlu0 %3832
    %v3834 = vsel %vm1153, %v3827, -inf
    %3835 = vmax.xlane.f32.xlu0 %v3834
    %v3836 = vpop.xlane.xlu0 %3835
    %v3837 = vsub.f32 %v3825, %v3830
    %v3838 = vsub.f32 %v3826, %v3833
    %v3839 = vsub.f32 %v3827, %v3836
    %v3840 = vmul.f32 %v3837, 1.442695
    %v3841 = vpow.pop %v3840
    %v3842 = vmul.f32 %v3838, 1.442695
    %v3843 = vpow.pop %v3842
    %v3844 = vmul.f32 %v3839, 1.442695
    %v3845 = vpow.pop %v3844
    %v3846 = vsel %vm1153, %v3841, 0.0
    %3847 = vadd.xlane.f32.xlu0 %v3846
    %v3848 = vpop.xlane.xlu0 %3847
    %v3849 = vsel %vm1153, %v3843, 0.0
    %3850 = vadd.xlane.f32.xlu0 %v3849
    %v3851 = vpop.xlane.xlu0 %3850
    %v3852 = vsel %vm1153, %v3845, 0.0
    %3853 = vadd.xlane.f32.xlu0 %v3852
    %v3854 = vpop.xlane.xlu0 %3853
    %v3855 = vrcp.pop %v3848
    %v3856 = vrcp.pop %v3851
    %v3857 = vrcp.pop %v3854
    %v3858 = vmul.f32 %v3841, %v3855
    %v3859 = vmul.f32 %v3843, %v3856
    %v3860 = vmul.f32 %v3845, %v3857
    %v3861 = vpack.c.bf16 %v3859, %v3858
    %v3862 = vpack.c.bf16 %v3860, %v3860
    %3865 = vrot.lane.b32.xlu0 %v3586, 112
    %v3866 = vpop.permute.xlu0 %3865
    %3867 = vrot.lane.b32.xlu0 %v3587, 112
    %v3868 = vpop.permute.xlu0 %3867
    %v3871 = vsel %vm1153, %v3861, 0
    %v3874 = vsel %vm1153, %v3862, 0
    %v3877 = vsel %vm1195, %v3868, 0
    %3879 = vmatprep.subr.bf16.mxu0 0
    %3880 = vmatpush1.bf16.msra.mxu0 %v3866
    %3881 = vmatprep.subr.bf16.mxu0 0
    %3882 = vmatpush1.bf16.msra.mxu0 %v3877
    %3883 = vmatprep.subr.bf16.mxu0 0
    %3884 = vmatpush1.bf16.msra.mxu0 0
    %3885 = vmatprep.subr.bf16.mxu0 0
    %3886 = vmatpush1.bf16.msra.mxu0 0
    %3887 = vmatprep.subr.bf16.mxu0 0
    %3888 = vmatpush1.bf16.msra.mxu0 0
    %3889 = vmatprep.subr.bf16.mxu0 0
    %3890 = vmatpush1.bf16.msra.mxu0 0
    %3891 = vmatprep.subr.bf16.mxu0 0
    %3892 = vmatpush1.bf16.msra.mxu0 0
    %3893 = vmatprep.subr.bf16.mxu0 0
    %3894 = vmatpush1.bf16.msra.mxu0 0
    %3895 = vmatprep.subr.bf16.mxu0 0
    %3896 = vmatpush1.bf16.msra.mxu0 0
    %3897 = vmatprep.subr.bf16.mxu0 0
    %3898 = vmatpush1.bf16.msra.mxu0 0
    %3899 = vmatprep.subr.bf16.mxu0 0
    %3900 = vmatpush1.bf16.msra.mxu0 0
    %3901 = vmatprep.subr.bf16.mxu0 0
    %3902 = vmatpush1.bf16.msra.mxu0 0
    %3903 = vmatprep.subr.bf16.mxu0 0
    %3904 = vmatpush1.bf16.msra.mxu0 0
    %3905 = vmatprep.subr.bf16.mxu0 0
    %3906 = vmatpush1.bf16.msra.mxu0 0
    %3907 = vmatprep.subr.bf16.mxu0 0
    %3908 = vmatpush1.bf16.msra.mxu0 0
    %3909 = vmatprep.subr.bf16.mxu0 0
    %3910 = vmatpush1.bf16.msra.mxu0 0
    %3911 = vmatprep.mubr.bf16.mxu0 0
    %3912 = vmatmul.mubr.bf16.gmra.mrb[0].mxu0 %v3871
    %v3913 = vpop.f32.mrb[0].mxu0
    %v3914 = vadd.f32 0.0, %v3913
    %v3915 = vpop.f32.mrb[0].mxu0
    %v3916 = vpop.f32.mrb[0].mxu0
    %v3917 = vadd.f32 0.0, %v3916
    %v3918 = vpop.f32.mrb[0].mxu0
    %3919 = vmatprep.mubr.bf16.mxu0 0
    %3920 = vmatmul.mubr.bf16.gmra.mrb[0].mxu0 %v3874
    %v3921 = vpop.f32.mrb[0].mxu0
    %v3922 = vadd.f32 0.0, %v3921
    %v3923 = vpop.f32.mrb[0].mxu0
    %v3924 = vpop.f32.mrb[0].mxu0
    %v3925 = vpop.f32.mrb[0].mxu0
    %3926 = vdwg.mxu0
    %v3927 = vpack.c.bf16 %v3917, %v3914
    %v3928 = vpack.c.bf16 %v3922, %v3922
    %v3931 = vunpack.c.l.b16 %v3578
    %v3932 = vunpack.c.l.b16 %v3579
    %v3933 = vpack.c.b16 %v3932, %v3931
    %v3936 = vsel %vm1086, %v3927, 0
    %v3939 = vsel %vm1086, %v3928, 0
    %3941 = vmatprep.subr.bf16.mxu0 0
    %3942 = vmatpush1.bf16.msra.mxu0 %v3933
    %3943 = vmatprep.subr.bf16.mxu0 0
    %3944 = vmatpush1.bf16.msra.mxu0 0
    %3945 = vmatprep.subr.bf16.mxu0 0
    %3946 = vmatpush1.bf16.msra.mxu0 0
    %3947 = vmatprep.subr.bf16.mxu0 0
    %3948 = vmatpush1.bf16.msra.mxu0 0
    %3949 = vmatprep.subr.bf16.mxu0 0
    %3950 = vmatpush1.bf16.msra.mxu0 0
    %3951 = vmatprep.subr.bf16.mxu0 0
    %3952 = vmatpush1.bf16.msra.mxu0 0
    %3953 = vmatprep.subr.bf16.mxu0 0
    %3954 = vmatpush1.bf16.msra.mxu0 0
    %3955 = vmatprep.subr.bf16.mxu0 0
    %3956 = vmatpush1.bf16.msra.mxu0 0
    %3957 = vmatprep.subr.bf16.mxu0 0
    %3958 = vmatpush1.bf16.msra.mxu0 0
    %3959 = vmatprep.subr.bf16.mxu0 0
    %3960 = vmatpush1.bf16.msra.mxu0 0
    %3961 = vmatprep.subr.bf16.mxu0 0
    %3962 = vmatpush1.bf16.msra.mxu0 0
    %3963 = vmatprep.subr.bf16.mxu0 0
    %3964 = vmatpush1.bf16.msra.mxu0 0
    %3965 = vmatprep.subr.bf16.mxu0 0
    %3966 = vmatpush1.bf16.msra.mxu0 0
    %3967 = vmatprep.subr.bf16.mxu0 0
    %3968 = vmatpush1.bf16.msra.mxu0 0
    %3969 = vmatprep.subr.bf16.mxu0 0
    %3970 = vmatpush1.bf16.msra.mxu0 0
    %3971 = vmatprep.subr.bf16.mxu0 0
    %3972 = vmatpush1.bf16.msra.mxu0 0
    %3973 = vmatprep.mubr.bf16.mxu0 0
    %3974 = vmatmul.mubr.bf16.gmra.mrb[0].mxu0 %v3936
    %v3975 = vpop.f32.mrb[0].mxu0
    %v3976 = vadd.f32 0.0, %v3975
    %v3977 = vpop.f32.mrb[0].mxu0
    %v3978 = vpop.f32.mrb[0].mxu0
    %v3979 = vadd.f32 0.0, %v3978
    %v3980 = vpop.f32.mrb[0].mxu0
    %3981 = vmatprep.mubr.bf16.mxu0 0
    %3982 = vmatmul.mubr.bf16.gmra.mrb[0].mxu0 %v3939
    %v3983 = vpop.f32.mrb[0].mxu0
    %v3984 = vadd.f32 0.0, %v3983
    %v3985 = vpop.f32.mrb[0].mxu0
    %v3986 = vpop.f32.mrb[0].mxu0
    %v3987 = vpop.f32.mrb[0].mxu0
    %3988 = vdwg.mxu0
    %v3991 = vunpack.c.l.b16 %v3576
    %v3992 = vunpack.c.l.b16 %v3577
    %v3993 = vpack.c.b16 %v3992, %v3991
    %v3996 = vsel %vm1086, %v3752, 0
    %v3999 = vsel %vm1086, %v3753, 0
    %4001 = vmatprep.subr.bf16.mxu0 0
    %4002 = vmatpush1.bf16.msra.mxu0 %v3993
    %4003 = vmatprep.subr.bf16.mxu0 0
    %4004 = vmatpush1.bf16.msra.mxu0 0
    %4005 = vmatprep.subr.bf16.mxu0 0
    %4006 = vmatpush1.bf16.msra.mxu0 0
    %4007 = vmatprep.subr.bf16.mxu0 0
    %4008 = vmatpush1.bf16.msra.mxu0 0
    %4009 = vmatprep.subr.bf16.mxu0 0
    %4010 = vmatpush1.bf16.msra.mxu0 0
    %4011 = vmatprep.subr.bf16.mxu0 0
    %4012 = vmatpush1.bf16.msra.mxu0 0
    %4013 = vmatprep.subr.bf16.mxu0 0
    %4014 = vmatpush1.bf16.msra.mxu0 0
    %4015 = vmatprep.subr.bf16.mxu0 0
    %4016 = vmatpush1.bf16.msra.mxu0 0
    %4017 = vmatprep.subr.bf16.mxu0 0
    %4018 = vmatpush1.bf16.msra.mxu0 0
    %4019 = vmatprep.subr.bf16.mxu0 0
    %4020 = vmatpush1.bf16.msra.mxu0 0
    %4021 = vmatprep.subr.bf16.mxu0 0
    %4022 = vmatpush1.bf16.msra.mxu0 0
    %4023 = vmatprep.subr.bf16.mxu0 0
    %4024 = vmatpush1.bf16.msra.mxu0 0
    %4025 = vmatprep.subr.bf16.mxu0 0
    %4026 = vmatpush1.bf16.msra.mxu0 0
    %4027 = vmatprep.subr.bf16.mxu0 0
    %4028 = vmatpush1.bf16.msra.mxu0 0
    %4029 = vmatprep.subr.bf16.mxu0 0
    %4030 = vmatpush1.bf16.msra.mxu0 0
    %4031 = vmatprep.subr.bf16.mxu0 0
    %4032 = vmatpush1.bf16.msra.mxu0 0
    %4033 = vmatprep.mubr.bf16.mxu0 0
    %4034 = vmatmul.mubr.bf16.gmra.mrb[0].mxu0 %v3996
    %v4035 = vpop.f32.mrb[0].mxu0
    %v4036 = vadd.f32 %v3976, %v4035
    %v4037 = vpop.f32.mrb[0].mxu0
    %v4038 = vpop.f32.mrb[0].mxu0
    %v4039 = vadd.f32 %v3979, %v4038
    %v4040 = vpop.f32.mrb[0].mxu0
    %4041 = vmatprep.mubr.bf16.mxu0 0
    %4042 = vmatmul.mubr.bf16.gmra.mrb[0].mxu0 %v3999
    %v4043 = vpop.f32.mrb[0].mxu0
    %v4044 = vadd.f32 %v3984, %v4043
    %v4045 = vpop.f32.mrb[0].mxu0
    %v4046 = vpop.f32.mrb[0].mxu0
    %v4047 = vpop.f32.mrb[0].mxu0
    %4048 = vdwg.mxu0
    %4049 = vrot.lane.b32.xlu0 %v3584, 96
    %v4050 = vpop.permute.xlu0 %4049
    %4051 = vrot.lane.b32.xlu0 %v3585, 96
    %v4052 = vpop.permute.xlu0 %4051
    %4053 = vrot.lane.b32.xlu0 %v3584, 32
    %v4054 = vpop.permute.xlu0 %4053
    %4055 = vrot.lane.b32.xlu0 %v3585, 32
    %v4056 = vpop.permute.xlu0 %4055
    %v4058 = vsel %vm1086, %v4050, 0
    %v4061 = vsel %vm1086, %v4052, 0
    %v4064 = vsel %vm1086, %v4054, 0
    %v4067 = vsel %vm1086, %v4056, 0
    %4069 = vmatprep.subr.bf16.mxu0 0
    %4070 = vmatpush1.bf16.xpose.msra.mxu0 %v4064
    %4071 = vmatprep.subr.bf16.mxu0 0
    %4072 = vmatpush1.bf16.xpose.msra.mxu0 %v4067
    %4073 = vmatprep.subr.bf16.mxu0 0
    %4074 = vmatpush1.bf16.xpose.msra.mxu0 0
    %4075 = vmatprep.subr.bf16.mxu0 0
    %4076 = vmatpush1.bf16.xpose.msra.mxu0 0
    %4077 = vmatprep.subr.bf16.mxu0 0
    %4078 = vmatpush1.bf16.xpose.msra.mxu0 0
    %4079 = vmatprep.subr.bf16.mxu0 0
    %4080 = vmatpush1.bf16.xpose.msra.mxu0 0
    %4081 = vmatprep.subr.bf16.mxu0 0
    %4082 = vmatpush1.bf16.xpose.msra.mxu0 0
    %4083 = vmatprep.subr.bf16.mxu0 0
    %4084 = vmatpush1.bf16.xpose.msra.mxu0 0
    %4085 = vmatprep.subr.bf16.mxu0 0
    %4086 = vmatpush1.bf16.xpose.msra.mxu0 0
    %4087 = vmatprep.subr.bf16.mxu0 0
    %4088 = vmatpush1.bf16.xpose.msra.mxu0 0
    %4089 = vmatprep.subr.bf16.mxu0 0
    %4090 = vmatpush1.bf16.xpose.msra.mxu0 0
    %4091 = vmatprep.subr.bf16.mxu0 0
    %4092 = vmatpush1.bf16.xpose.msra.mxu0 0
    %4093 = vmatprep.subr.bf16.mxu0 0
    %4094 = vmatpush1.bf16.xpose.msra.mxu0 0
    %4095 = vmatprep.subr.bf16.mxu0 0
    %4096 = vmatpush1.bf16.xpose.msra.mxu0 0
    %4097 = vmatprep.subr.bf16.mxu0 0
    %4098 = vmatpush1.bf16.xpose.msra.mxu0 0
    %4099 = vmatprep.subr.bf16.mxu0 0
    %4100 = vmatpush1.bf16.xpose.msra.mxu0 0
    %4101 = vmatprep.mubr.bf16.mxu0 0
    %4102 = vmatmul.mubr.bf16.gmra.mrb[0].mxu0 %v4058
    %v4103 = vpop.f32.mrb[0].mxu0
    %v4104 = vadd.f32 0.0, %v4103
    %v4105 = vpop.f32.mrb[0].mxu0
    %v4106 = vpop.f32.mrb[0].mxu0
    %v4107 = vadd.f32 0.0, %v4106
    %v4108 = vpop.f32.mrb[0].mxu0
    %4109 = vmatprep.mubr.bf16.mxu0 0
    %4110 = vmatmul.mubr.bf16.gmra.mrb[0].mxu0 %v4061
    %v4111 = vpop.f32.mrb[0].mxu0
    %v4112 = vadd.f32 0.0, %v4111
    %v4113 = vpop.f32.mrb[0].mxu0
    %v4114 = vpop.f32.mrb[0].mxu0
    %v4115 = vpop.f32.mrb[0].mxu0
    %4116 = vdwg.mxu0
    %v4117 = vmul.f32 %v4104, 0.25
    %v4118 = vmul.f32 %v4107, 0.25
    %v4119 = vmul.f32 %v4112, 0.25
    %v4120 = vadd.f32 %v4117, %v500
    %v4121 = vadd.f32 %v4118, %v500
    %v4122 = vadd.f32 %v4119, %v500
    %v4123 = vsel %vm1153, %v4120, -inf
    %4124 = vmax.xlane.f32.xlu0 %v4123
    %v4125 = vpop.xlane.xlu0 %4124
    %v4126 = vsel %vm1153, %v4121, -inf
    %4127 = vmax.xlane.f32.xlu0 %v4126
    %v4128 = vpop.xlane.xlu0 %4127
    %v4129 = vsel %vm1153, %v4122, -inf
    %4130 = vmax.xlane.f32.xlu0 %v4129
    %v4131 = vpop.xlane.xlu0 %4130
    %v4132 = vsub.f32 %v4120, %v4125
    %v4133 = vsub.f32 %v4121, %v4128
    %v4134 = vsub.f32 %v4122, %v4131
    %v4135 = vmul.f32 %v4132, 1.442695
    %v4136 = vpow.pop %v4135
    %v4137 = vmul.f32 %v4133, 1.442695
    %v4138 = vpow.pop %v4137
    %v4139 = vmul.f32 %v4134, 1.442695
    %v4140 = vpow.pop %v4139
    %v4141 = vsel %vm1153, %v4136, 0.0
    %4142 = vadd.xlane.f32.xlu0 %v4141
    %v4143 = vpop.xlane.xlu0 %4142
    %v4144 = vsel %vm1153, %v4138, 0.0
    %4145 = vadd.xlane.f32.xlu0 %v4144
    %v4146 = vpop.xlane.xlu0 %4145
    %v4147 = vsel %vm1153, %v4140, 0.0
    %4148 = vadd.xlane.f32.xlu0 %v4147
    %v4149 = vpop.xlane.xlu0 %4148
    %v4150 = vrcp.pop %v4143
    %v4151 = vrcp.pop %v4146
    %v4152 = vrcp.pop %v4149
    %v4153 = vmul.f32 %v4136, %v4150
    %v4154 = vmul.f32 %v4138, %v4151
    %v4155 = vmul.f32 %v4140, %v4152
    %v4156 = vpack.c.bf16 %v4154, %v4153
    %v4157 = vpack.c.bf16 %v4155, %v4155
    %4158 = vrot.lane.b32.xlu0 %v3586, 96
    %v4159 = vpop.permute.xlu0 %4158
    %4160 = vrot.lane.b32.xlu0 %v3587, 96
    %v4161 = vpop.permute.xlu0 %4160
    %v4164 = vsel %vm1153, %v4156, 0
    %v4167 = vsel %vm1153, %v4157, 0
    %v4170 = vsel %vm1195, %v4161, 0
    %4172 = vmatprep.subr.bf16.mxu0 0
    %4173 = vmatpush1.bf16.msra.mxu0 %v4159
    %4174 = vmatprep.subr.bf16.mxu0 0
    %4175 = vmatpush1.bf16.msra.mxu0 %v4170
    %4176 = vmatprep.subr.bf16.mxu0 0
    %4177 = vmatpush1.bf16.msra.mxu0 0
    %4178 = vmatprep.subr.bf16.mxu0 0
    %4179 = vmatpush1.bf16.msra.mxu0 0
    %4180 = vmatprep.subr.bf16.mxu0 0
    %4181 = vmatpush1.bf16.msra.mxu0 0
    %4182 = vmatprep.subr.bf16.mxu0 0
    %4183 = vmatpush1.bf16.msra.mxu0 0
    %4184 = vmatprep.subr.bf16.mxu0 0
    %4185 = vmatpush1.bf16.msra.mxu0 0
    %4186 = vmatprep.subr.bf16.mxu0 0
    %4187 = vmatpush1.bf16.msra.mxu0 0
    %4188 = vmatprep.subr.bf16.mxu0 0
    %4189 = vmatpush1.bf16.msra.mxu0 0
    %4190 = vmatprep.subr.bf16.mxu0 0
    %4191 = vmatpush1.bf16.msra.mxu0 0
    %4192 = vmatprep.subr.bf16.mxu0 0
    %4193 = vmatpush1.bf16.msra.mxu0 0
    %4194 = vmatprep.subr.bf16.mxu0 0
    %4195 = vmatpush1.bf16.msra.mxu0 0
    %4196 = vmatprep.subr.bf16.mxu0 0
    %4197 = vmatpush1.bf16.msra.mxu0 0
    %4198 = vmatprep.subr.bf16.mxu0 0
    %4199 = vmatpush1.bf16.msra.mxu0 0
    %4200 = vmatprep.subr.bf16.mxu0 0
    %4201 = vmatpush1.bf16.msra.mxu0 0
    %4202 = vmatprep.subr.bf16.mxu0 0
    %4203 = vmatpush1.bf16.msra.mxu0 0
    %4204 = vmatprep.mubr.bf16.mxu0 0
    %4205 = vmatmul.mubr.bf16.gmra.mrb[0].mxu0 %v4164
    %v4206 = vpop.f32.mrb[0].mxu0
    %v4207 = vadd.f32 0.0, %v4206
    %v4208 = vpop.f32.mrb[0].mxu0
    %v4209 = vpop.f32.mrb[0].mxu0
    %v4210 = vadd.f32 0.0, %v4209
    %v4211 = vpop.f32.mrb[0].mxu0
    %4212 = vmatprep.mubr.bf16.mxu0 0
    %4213 = vmatmul.mubr.bf16.gmra.mrb[0].mxu0 %v4167
    %v4214 = vpop.f32.mrb[0].mxu0
    %v4215 = vadd.f32 0.0, %v4214
    %v4216 = vpop.f32.mrb[0].mxu0
    %v4217 = vpop.f32.mrb[0].mxu0
    %v4218 = vpop.f32.mrb[0].mxu0
    %4219 = vdwg.mxu0
    %v4220 = vpack.c.bf16 %v4210, %v4207
    %v4221 = vpack.c.bf16 %v4215, %v4215
    %v4224 = vunpack.c.l.b16 %v3580
    %v4225 = vunpack.c.l.b16 %v3581
    %v4226 = vpack.c.b16 %v4225, %v4224
    %v4229 = vsel %vm1086, %v4220, 0
    %v4232 = vsel %vm1086, %v4221, 0
    %4234 = vmatprep.subr.bf16.mxu0 0
    %4235 = vmatpush1.bf16.msra.mxu0 %v4226
    %4236 = vmatprep.subr.bf16.mxu0 0
    %4237 = vmatpush1.bf16.msra.mxu0 0
    %4238 = vmatprep.subr.bf16.mxu0 0
    %4239 = vmatpush1.bf16.msra.mxu0 0
    %4240 = vmatprep.subr.bf16.mxu0 0
    %4241 = vmatpush1.bf16.msra.mxu0 0
    %4242 = vmatprep.subr.bf16.mxu0 0
    %4243 = vmatpush1.bf16.msra.mxu0 0
    %4244 = vmatprep.subr.bf16.mxu0 0
    %4245 = vmatpush1.bf16.msra.mxu0 0
    %4246 = vmatprep.subr.bf16.mxu0 0
    %4247 = vmatpush1.bf16.msra.mxu0 0
    %4248 = vmatprep.subr.bf16.mxu0 0
    %4249 = vmatpush1.bf16.msra.mxu0 0
    %4250 = vmatprep.subr.bf16.mxu0 0
    %4251 = vmatpush1.bf16.msra.mxu0 0
    %4252 = vmatprep.subr.bf16.mxu0 0
    %4253 = vmatpush1.bf16.msra.mxu0 0
    %4254 = vmatprep.subr.bf16.mxu0 0
    %4255 = vmatpush1.bf16.msra.mxu0 0
    %4256 = vmatprep.subr.bf16.mxu0 0
    %4257 = vmatpush1.bf16.msra.mxu0 0
    %4258 = vmatprep.subr.bf16.mxu0 0
    %4259 = vmatpush1.bf16.msra.mxu0 0
    %4260 = vmatprep.subr.bf16.mxu0 0
    %4261 = vmatpush1.bf16.msra.mxu0 0
    %4262 = vmatprep.subr.bf16.mxu0 0
    %4263 = vmatpush1.bf16.msra.mxu0 0
    %4264 = vmatprep.subr.bf16.mxu0 0
    %4265 = vmatpush1.bf16.msra.mxu0 0
    %4266 = vmatprep.mubr.bf16.mxu0 0
    %4267 = vmatmul.mubr.bf16.gmra.mrb[0].mxu0 %v4229
    %v4268 = vpop.f32.mrb[0].mxu0
    %v4269 = vadd.f32 0.0, %v4268
    %v4270 = vpop.f32.mrb[0].mxu0
    %v4271 = vpop.f32.mrb[0].mxu0
    %v4272 = vadd.f32 0.0, %v4271
    %v4273 = vpop.f32.mrb[0].mxu0
    %4274 = vmatprep.mubr.bf16.mxu0 0
    %4275 = vmatmul.mubr.bf16.gmra.mrb[0].mxu0 %v4232
    %v4276 = vpop.f32.mrb[0].mxu0
    %v4277 = vadd.f32 0.0, %v4276
    %v4278 = vpop.f32.mrb[0].mxu0
    %v4279 = vpop.f32.mrb[0].mxu0
    %v4280 = vpop.f32.mrb[0].mxu0
    %4281 = vdwg.mxu0
    %v4282 = vadd.f32 %v4036, %v4269
    %v4283 = vadd.f32 %v4039, %v4272
    %v4284 = vadd.f32 %v4044, %v4277
    %4285 = vrot.lane.b32.xlu0 %v3584, 80
    %v4286 = vpop.permute.xlu0 %4285
    %4287 = vrot.lane.b32.xlu0 %v3585, 80
    %v4288 = vpop.permute.xlu0 %4287
    %4289 = vrot.lane.b32.xlu0 %v3584, 16
    %v4290 = vpop.permute.xlu0 %4289
    %4291 = vrot.lane.b32.xlu0 %v3585, 16
    %v4292 = vpop.permute.xlu0 %4291
    %v4294 = vsel %vm1086, %v4286, 0
    %v4297 = vsel %vm1086, %v4288, 0
    %v4300 = vsel %vm1086, %v4290, 0
    %v4303 = vsel %vm1086, %v4292, 0
    %4305 = vmatprep.subr.bf16.mxu0 0
    %4306 = vmatpush1.bf16.xpose.msra.mxu0 %v4300
    %4307 = vmatprep.subr.bf16.mxu0 0
    %4308 = vmatpush1.bf16.xpose.msra.mxu0 %v4303
    %4309 = vmatprep.subr.bf16.mxu0 0
    %4310 = vmatpush1.bf16.xpose.msra.mxu0 0
    %4311 = vmatprep.subr.bf16.mxu0 0
    %4312 = vmatpush1.bf16.xpose.msra.mxu0 0
    %4313 = vmatprep.subr.bf16.mxu0 0
    %4314 = vmatpush1.bf16.xpose.msra.mxu0 0
    %4315 = vmatprep.subr.bf16.mxu0 0
    %4316 = vmatpush1.bf16.xpose.msra.mxu0 0
    %4317 = vmatprep.subr.bf16.mxu0 0
    %4318 = vmatpush1.bf16.xpose.msra.mxu0 0
    %4319 = vmatprep.subr.bf16.mxu0 0
    %4320 = vmatpush1.bf16.xpose.msra.mxu0 0
    %4321 = vmatprep.subr.bf16.mxu0 0
    %4322 = vmatpush1.bf16.xpose.msra.mxu0 0
    %4323 = vmatprep.subr.bf16.mxu0 0
    %4324 = vmatpush1.bf16.xpose.msra.mxu0 0
    %4325 = vmatprep.subr.bf16.mxu0 0
    %4326 = vmatpush1.bf16.xpose.msra.mxu0 0
    %4327 = vmatprep.subr.bf16.mxu0 0
    %4328 = vmatpush1.bf16.xpose.msra.mxu0 0
    %4329 = vmatprep.subr.bf16.mxu0 0
    %4330 = vmatpush1.bf16.xpose.msra.mxu0 0
    %4331 = vmatprep.subr.bf16.mxu0 0
    %4332 = vmatpush1.bf16.xpose.msra.mxu0 0
    %4333 = vmatprep.subr.bf16.mxu0 0
    %4334 = vmatpush1.bf16.xpose.msra.mxu0 0
    %4335 = vmatprep.subr.bf16.mxu0 0
    %4336 = vmatpush1.bf16.xpose.msra.mxu0 0
    %4337 = vmatprep.mubr.bf16.mxu0 0
    %4338 = vmatmul.mubr.bf16.gmra.mrb[0].mxu0 %v4294
    %v4339 = vpop.f32.mrb[0].mxu0
    %v4340 = vadd.f32 0.0, %v4339
    %v4341 = vpop.f32.mrb[0].mxu0
    %v4342 = vpop.f32.mrb[0].mxu0
    %v4343 = vadd.f32 0.0, %v4342
    %v4344 = vpop.f32.mrb[0].mxu0
    %4345 = vmatprep.mubr.bf16.mxu0 0
    %4346 = vmatmul.mubr.bf16.gmra.mrb[0].mxu0 %v4297
    %v4347 = vpop.f32.mrb[0].mxu0
    %v4348 = vadd.f32 0.0, %v4347
    %v4349 = vpop.f32.mrb[0].mxu0
    %v4350 = vpop.f32.mrb[0].mxu0
    %v4351 = vpop.f32.mrb[0].mxu0
    %4352 = vdwg.mxu0
    %v4353 = vmul.f32 %v4340, 0.25
    %v4354 = vmul.f32 %v4343, 0.25
    %v4355 = vmul.f32 %v4348, 0.25
    %v4356 = vadd.f32 %v4353, %v500
    %v4357 = vadd.f32 %v4354, %v500
    %v4358 = vadd.f32 %v4355, %v500
    %v4359 = vsel %vm1153, %v4356, -inf
    %4360 = vmax.xlane.f32.xlu0 %v4359
    %v4361 = vpop.xlane.xlu0 %4360
    %v4362 = vsel %vm1153, %v4357, -inf
    %4363 = vmax.xlane.f32.xlu0 %v4362
    %v4364 = vpop.xlane.xlu0 %4363
    %v4365 = vsel %vm1153, %v4358, -inf
    %4366 = vmax.xlane.f32.xlu0 %v4365
    %v4367 = vpop.xlane.xlu0 %4366
    %v4368 = vsub.f32 %v4356, %v4361
    %v4369 = vsub.f32 %v4357, %v4364
    %v4370 = vsub.f32 %v4358, %v4367
    %v4371 = vmul.f32 %v4368, 1.442695
    %v4372 = vpow.pop %v4371
    %v4373 = vmul.f32 %v4369, 1.442695
    %v4374 = vpow.pop %v4373
    %v4375 = vmul.f32 %v4370, 1.442695
    %v4376 = vpow.pop %v4375
    %v4377 = vsel %vm1153, %v4372, 0.0
    %4378 = vadd.xlane.f32.xlu0 %v4377
    %v4379 = vpop.xlane.xlu0 %4378
    %v4380 = vsel %vm1153, %v4374, 0.0
    %4381 = vadd.xlane.f32.xlu0 %v4380
    %v4382 = vpop.xlane.xlu0 %4381
    %v4383 = vsel %vm1153, %v4376, 0.0
    %4384 = vadd.xlane.f32.xlu0 %v4383
    %v4385 = vpop.xlane.xlu0 %4384
    %v4386 = vrcp.pop %v4379
    %v4387 = vrcp.pop %v4382
    %v4388 = vrcp.pop %v4385
    %v4389 = vmul.f32 %v4372, %v4386
    %v4390 = vmul.f32 %v4374, %v4387
    %v4391 = vmul.f32 %v4376, %v4388
    %v4392 = vpack.c.bf16 %v4390, %v4389
    %v4393 = vpack.c.bf16 %v4391, %v4391
    %4394 = vrot.lane.b32.xlu0 %v3586, 80
    %v4395 = vpop.permute.xlu0 %4394
    %4396 = vrot.lane.b32.xlu0 %v3587, 80
    %v4397 = vpop.permute.xlu0 %4396
    %v4400 = vsel %vm1153, %v4392, 0
    %v4403 = vsel %vm1153, %v4393, 0
    %v4406 = vsel %vm1195, %v4397, 0
    %4408 = vmatprep.subr.bf16.mxu0 0
    %4409 = vmatpush1.bf16.msra.mxu0 %v4395
    %4410 = vmatprep.subr.bf16.mxu0 0
    %4411 = vmatpush1.bf16.msra.mxu0 %v4406
    %4412 = vmatprep.subr.bf16.mxu0 0
    %4413 = vmatpush1.bf16.msra.mxu0 0
    %4414 = vmatprep.subr.bf16.mxu0 0
    %4415 = vmatpush1.bf16.msra.mxu0 0
    %4416 = vmatprep.subr.bf16.mxu0 0
    %4417 = vmatpush1.bf16.msra.mxu0 0
    %4418 = vmatprep.subr.bf16.mxu0 0
    %4419 = vmatpush1.bf16.msra.mxu0 0
    %4420 = vmatprep.subr.bf16.mxu0 0
    %4421 = vmatpush1.bf16.msra.mxu0 0
    %4422 = vmatprep.subr.bf16.mxu0 0
    %4423 = vmatpush1.bf16.msra.mxu0 0
    %4424 = vmatprep.subr.bf16.mxu0 0
    %4425 = vmatpush1.bf16.msra.mxu0 0
    %4426 = vmatprep.subr.bf16.mxu0 0
    %4427 = vmatpush1.bf16.msra.mxu0 0
    %4428 = vmatprep.subr.bf16.mxu0 0
    %4429 = vmatpush1.bf16.msra.mxu0 0
    %4430 = vmatprep.subr.bf16.mxu0 0
    %4431 = vmatpush1.bf16.msra.mxu0 0
    %4432 = vmatprep.subr.bf16.mxu0 0
    %4433 = vmatpush1.bf16.msra.mxu0 0
    %4434 = vmatprep.subr.bf16.mxu0 0
    %4435 = vmatpush1.bf16.msra.mxu0 0
    %4436 = vmatprep.subr.bf16.mxu0 0
    %4437 = vmatpush1.bf16.msra.mxu0 0
    %4438 = vmatprep.subr.bf16.mxu0 0
    %4439 = vmatpush1.bf16.msra.mxu0 0
    %4440 = vmatprep.mubr.bf16.mxu0 0
    %4441 = vmatmul.mubr.bf16.gmra.mrb[0].mxu0 %v4400
    %v4442 = vpop.f32.mrb[0].mxu0
    %v4443 = vadd.f32 0.0, %v4442
    %v4444 = vpop.f32.mrb[0].mxu0
    %v4445 = vpop.f32.mrb[0].mxu0
    %v4446 = vadd.f32 0.0, %v4445
    %v4447 = vpop.f32.mrb[0].mxu0
    %4448 = vmatprep.mubr.bf16.mxu0 0
    %4449 = vmatmul.mubr.bf16.gmra.mrb[0].mxu0 %v4403
    %v4450 = vpop.f32.mrb[0].mxu0
    %v4451 = vadd.f32 0.0, %v4450
    %v4452 = vpop.f32.mrb[0].mxu0
    %v4453 = vpop.f32.mrb[0].mxu0
    %v4454 = vpop.f32.mrb[0].mxu0
    %4455 = vdwg.mxu0
    %v4456 = vpack.c.bf16 %v4446, %v4443
    %v4457 = vpack.c.bf16 %v4451, %v4451
    %v4460 = vunpack.c.l.b16 %v3582
    %v4461 = vunpack.c.l.b16 %v3583
    %v4462 = vpack.c.b16 %v4461, %v4460
    %v4465 = vsel %vm1086, %v4456, 0
    %v4468 = vsel %vm1086, %v4457, 0
    %4470 = vmatprep.subr.bf16.mxu0 0
    %4471 = vmatpush1.bf16.msra.mxu0 %v4462
    %4472 = vmatprep.subr.bf16.mxu0 0
    %4473 = vmatpush1.bf16.msra.mxu0 0
    %4474 = vmatprep.subr.bf16.mxu0 0
    %4475 = vmatpush1.bf16.msra.mxu0 0
    %4476 = vmatprep.subr.bf16.mxu0 0
    %4477 = vmatpush1.bf16.msra.mxu0 0
    %4478 = vmatprep.subr.bf16.mxu0 0
    %4479 = vmatpush1.bf16.msra.mxu0 0
    %4480 = vmatprep.subr.bf16.mxu0 0
    %4481 = vmatpush1.bf16.msra.mxu0 0
    %4482 = vmatprep.subr.bf16.mxu0 0
    %4483 = vmatpush1.bf16.msra.mxu0 0
    %4484 = vmatprep.subr.bf16.mxu0 0
    %4485 = vmatpush1.bf16.msra.mxu0 0
    %4486 = vmatprep.subr.bf16.mxu0 0
    %4487 = vmatpush1.bf16.msra.mxu0 0
    %4488 = vmatprep.subr.bf16.mxu0 0
    %4489 = vmatpush1.bf16.msra.mxu0 0
    %4490 = vmatprep.subr.bf16.mxu0 0
    %4491 = vmatpush1.bf16.msra.mxu0 0
    %4492 = vmatprep.subr.bf16.mxu0 0
    %4493 = vmatpush1.bf16.msra.mxu0 0
    %4494 = vmatprep.subr.bf16.mxu0 0
    %4495 = vmatpush1.bf16.msra.mxu0 0
    %4496 = vmatprep.subr.bf16.mxu0 0
    %4497 = vmatpush1.bf16.msra.mxu0 0
    %4498 = vmatprep.subr.bf16.mxu0 0
    %4499 = vmatpush1.bf16.msra.mxu0 0
    %4500 = vmatprep.subr.bf16.mxu0 0
    %4501 = vmatpush1.bf16.msra.mxu0 0
    %4502 = vmatprep.mubr.bf16.mxu0 0
    %4503 = vmatmul.mubr.bf16.gmra.mrb[0].mxu0 %v4465
    %v4504 = vpop.f32.mrb[0].mxu0
    %v4505 = vadd.f32 0.0, %v4504
    %v4506 = vpop.f32.mrb[0].mxu0
    %v4507 = vpop.f32.mrb[0].mxu0
    %v4508 = vadd.f32 0.0, %v4507
    %v4509 = vpop.f32.mrb[0].mxu0
    %4510 = vmatprep.mubr.bf16.mxu0 0
    %4511 = vmatmul.mubr.bf16.gmra.mrb[0].mxu0 %v4468
    %v4512 = vpop.f32.mrb[0].mxu0
    %v4513 = vadd.f32 0.0, %v4512
    %v4514 = vpop.f32.mrb[0].mxu0
    %v4515 = vpop.f32.mrb[0].mxu0
    %v4516 = vpop.f32.mrb[0].mxu0
    %4517 = vdwg.mxu0
    %v4518 = vadd.f32 %v4282, %v4505
    %v4519 = vadd.f32 %v4283, %v4508
    %v4520 = vadd.f32 %v4284, %v4513
    %v4521 = vlaneseq
    %v4522 = vshrl.u32 %v4521, 7
    %v4523 = vsub.s32 3, %v4522
    %v4524 = vrot.slane %v3343, %v4523
    %v4525 = vadd.f32 %v4518, %v4524
    %v4526 = vadd.f32 %v4519, %v4524
    %v4527 = vadd.f32 %v4520, %v4524
    %v4528 = vpack.c.bf16 %v3567, %v3561
    %v4529 = vpack.c.bf16 %v3571, %v3571
    %v4530 = vpack.c.bf16 %v3569, %v3563
    %v4531 = vpack.c.bf16 %v3573, %v3573
    %4534 = vrot.lane.b32.xlu0 %v4528, 64
    %v4535 = vpop.permute.xlu0 %4534
    %4536 = vrot.lane.b32.xlu0 %v4529, 64
    %v4537 = vpop.permute.xlu0 %4536
    %v4539 = vsel %vm1086, %v4528, 0
    %v4542 = vsel %vm1086, %v4529, 0
    %v4545 = vsel %vm1086, %v4535, 0
    %v4548 = vsel %vm1086, %v4537, 0
    %4550 = vmatprep.subr.bf16.mxu0 0
    %4551 = vmatpush1.bf16.xpose.msra.mxu0 %v4545
    %4552 = vmatprep.subr.bf16.mxu0 0
    %4553 = vmatpush1.bf16.xpose.msra.mxu0 %v4548
    %4554 = vmatprep.subr.bf16.mxu0 0
    %4555 = vmatpush1.bf16.xpose.msra.mxu0 0
    %4556 = vmatprep.subr.bf16.mxu0 0
    %4557 = vmatpush1.bf16.xpose.msra.mxu0 0
    %4558 = vmatprep.subr.bf16.mxu0 0
    %4559 = vmatpush1.bf16.xpose.msra.mxu0 0
    %4560 = vmatprep.subr.bf16.mxu0 0
    %4561 = vmatpush1.bf16.xpose.msra.mxu0 0
    %4562 = vmatprep.subr.bf16.mxu0 0
    %4563 = vmatpush1.bf16.xpose.msra.mxu0 0
    %4564 = vmatprep.subr.bf16.mxu0 0
    %4565 = vmatpush1.bf16.xpose.msra.mxu0 0
    %4566 = vmatprep.subr.bf16.mxu0 0
    %4567 = vmatpush1.bf16.xpose.msra.mxu0 0
    %4568 = vmatprep.subr.bf16.mxu0 0
    %4569 = vmatpush1.bf16.xpose.msra.mxu0 0
    %4570 = vmatprep.subr.bf16.mxu0 0
    %4571 = vmatpush1.bf16.xpose.msra.mxu0 0
    %4572 = vmatprep.subr.bf16.mxu0 0
    %4573 = vmatpush1.bf16.xpose.msra.mxu0 0
    %4574 = vmatprep.subr.bf16.mxu0 0
    %4575 = vmatpush1.bf16.xpose.msra.mxu0 0
    %4576 = vmatprep.subr.bf16.mxu0 0
    %4577 = vmatpush1.bf16.xpose.msra.mxu0 0
    %4578 = vmatprep.subr.bf16.mxu0 0
    %4579 = vmatpush1.bf16.xpose.msra.mxu0 0
    %4580 = vmatprep.subr.bf16.mxu0 0
    %4581 = vmatpush1.bf16.xpose.msra.mxu0 0
    %4582 = vmatprep.mubr.bf16.mxu0 0
    %4583 = vmatmul.mubr.bf16.gmra.mrb[0].mxu0 %v4539
    %v4584 = vpop.f32.mrb[0].mxu0
    %v4585 = vadd.f32 0.0, %v4584
    %v4586 = vpop.f32.mrb[0].mxu0
    %v4587 = vpop.f32.mrb[0].mxu0
    %v4588 = vadd.f32 0.0, %v4587
    %v4589 = vpop.f32.mrb[0].mxu0
    %4590 = vmatprep.mubr.bf16.mxu0 0
    %4591 = vmatmul.mubr.bf16.gmra.mrb[0].mxu0 %v4542
    %v4592 = vpop.f32.mrb[0].mxu0
    %v4593 = vadd.f32 0.0, %v4592
    %v4594 = vpop.f32.mrb[0].mxu0
    %v4595 = vpop.f32.mrb[0].mxu0
    %v4596 = vpop.f32.mrb[0].mxu0
    %4597 = vdwg.mxu0
    %v4598 = vmul.f32 %v4585, 0.25
    %v4599 = vmul.f32 %v4588, 0.25
    %v4600 = vmul.f32 %v4593, 0.25
    %v4601 = vadd.f32 %v4598, %v849
    %v4602 = vadd.f32 %v4599, %v849
    %v4603 = vadd.f32 %v4600, %v849
    %v4604 = vsel %vm1153, %v4601, -inf
    %4605 = vmax.xlane.f32.xlu0 %v4604
    %v4606 = vpop.xlane.xlu0 %4605
    %v4607 = vsel %vm1153, %v4602, -inf
    %4608 = vmax.xlane.f32.xlu0 %v4607
    %v4609 = vpop.xlane.xlu0 %4608
    %v4610 = vsel %vm1153, %v4603, -inf
    %4611 = vmax.xlane.f32.xlu0 %v4610
    %v4612 = vpop.xlane.xlu0 %4611
    %v4613 = vsub.f32 %v4601, %v4606
    %v4614 = vsub.f32 %v4602, %v4609
    %v4615 = vsub.f32 %v4603, %v4612
    %v4616 = vmul.f32 %v4613, 1.442695
    %v4617 = vpow.pop %v4616
    %v4618 = vmul.f32 %v4614, 1.442695
    %v4619 = vpow.pop %v4618
    %v4620 = vmul.f32 %v4615, 1.442695
    %v4621 = vpow.pop %v4620
    %v4622 = vsel %vm1153, %v4617, 0.0
    %4623 = vadd.xlane.f32.xlu0 %v4622
    %v4624 = vpop.xlane.xlu0 %4623
    %v4625 = vsel %vm1153, %v4619, 0.0
    %4626 = vadd.xlane.f32.xlu0 %v4625
    %v4627 = vpop.xlane.xlu0 %4626
    %v4628 = vsel %vm1153, %v4621, 0.0
    %4629 = vadd.xlane.f32.xlu0 %v4628
    %v4630 = vpop.xlane.xlu0 %4629
    %v4631 = vrcp.pop %v4624
    %v4632 = vrcp.pop %v4627
    %v4633 = vrcp.pop %v4630
    %v4634 = vmul.f32 %v4617, %v4631
    %v4635 = vmul.f32 %v4619, %v4632
    %v4636 = vmul.f32 %v4621, %v4633
    %v4637 = vpack.c.bf16 %v4635, %v4634
    %v4638 = vpack.c.bf16 %v4636, %v4636
    %v4640 = vsel %vm1153, %v4637, 0
    %v4643 = vsel %vm1153, %v4638, 0
    %v4646 = vsel %vm1195, %v4531, 0
    %4648 = vmatprep.subr.bf16.mxu0 0
    %4649 = vmatpush1.bf16.msra.mxu0 %v4530
    %4650 = vmatprep.subr.bf16.mxu0 0
    %4651 = vmatpush1.bf16.msra.mxu0 %v4646
    %4652 = vmatprep.subr.bf16.mxu0 0
    %4653 = vmatpush1.bf16.msra.mxu0 0
    %4654 = vmatprep.subr.bf16.mxu0 0
    %4655 = vmatpush1.bf16.msra.mxu0 0
    %4656 = vmatprep.subr.bf16.mxu0 0
    %4657 = vmatpush1.bf16.msra.mxu0 0
    %4658 = vmatprep.subr.bf16.mxu0 0
    %4659 = vmatpush1.bf16.msra.mxu0 0
    %4660 = vmatprep.subr.bf16.mxu0 0
    %4661 = vmatpush1.bf16.msra.mxu0 0
    %4662 = vmatprep.subr.bf16.mxu0 0
    %4663 = vmatpush1.bf16.msra.mxu0 0
    %4664 = vmatprep.subr.bf16.mxu0 0
    %4665 = vmatpush1.bf16.msra.mxu0 0
    %4666 = vmatprep.subr.bf16.mxu0 0
    %4667 = vmatpush1.bf16.msra.mxu0 0
    %4668 = vmatprep.subr.bf16.mxu0 0
    %4669 = vmatpush1.bf16.msra.mxu0 0
    %4670 = vmatprep.subr.bf16.mxu0 0
    %4671 = vmatpush1.bf16.msra.mxu0 0
    %4672 = vmatprep.subr.bf16.mxu0 0
    %4673 = vmatpush1.bf16.msra.mxu0 0
    %4674 = vmatprep.subr.bf16.mxu0 0
    %4675 = vmatpush1.bf16.msra.mxu0 0
    %4676 = vmatprep.subr.bf16.mxu0 0
    %4677 = vmatpush1.bf16.msra.mxu0 0
    %4678 = vmatprep.subr.bf16.mxu0 0
    %4679 = vmatpush1.bf16.msra.mxu0 0
    %4680 = vmatprep.mubr.bf16.mxu0 0
    %4681 = vmatmul.mubr.bf16.gmra.mrb[0].mxu0 %v4640
    %v4682 = vpop.f32.mrb[0].mxu0
    %v4683 = vadd.f32 0.0, %v4682
    %v4684 = vpop.f32.mrb[0].mxu0
    %v4685 = vpop.f32.mrb[0].mxu0
    %v4686 = vadd.f32 0.0, %v4685
    %v4687 = vpop.f32.mrb[0].mxu0
    %4688 = vmatprep.mubr.bf16.mxu0 0
    %4689 = vmatmul.mubr.bf16.gmra.mrb[0].mxu0 %v4643
    %v4690 = vpop.f32.mrb[0].mxu0
    %v4691 = vadd.f32 0.0, %v4690
    %v4692 = vpop.f32.mrb[0].mxu0
    %v4693 = vpop.f32.mrb[0].mxu0
    %v4694 = vpop.f32.mrb[0].mxu0
    %4695 = vdwg.mxu0
    %v4696 = vpack.c.bf16 %v4686, %v4683
    %v4697 = vpack.c.bf16 %v4691, %v4691
    %4698 = vrot.lane.b32.xlu0 %v4528, 112
    %v4699 = vpop.permute.xlu0 %4698
    %4700 = vrot.lane.b32.xlu0 %v4529, 112
    %v4701 = vpop.permute.xlu0 %4700
    %4702 = vrot.lane.b32.xlu0 %v4528, 48
    %v4703 = vpop.permute.xlu0 %4702
    %4704 = vrot.lane.b32.xlu0 %v4529, 48
    %v4705 = vpop.permute.xlu0 %4704
    %v4707 = vsel %vm1086, %v4699, 0
    %v4710 = vsel %vm1086, %v4701, 0
    %v4713 = vsel %vm1086, %v4703, 0
    %v4716 = vsel %vm1086, %v4705, 0
    %4718 = vmatprep.subr.bf16.mxu0 0
    %4719 = vmatpush1.bf16.xpose.msra.mxu0 %v4713
    %4720 = vmatprep.subr.bf16.mxu0 0
    %4721 = vmatpush1.bf16.xpose.msra.mxu0 %v4716
    %4722 = vmatprep.subr.bf16.mxu0 0
    %4723 = vmatpush1.bf16.xpose.msra.mxu0 0
    %4724 = vmatprep.subr.bf16.mxu0 0
    %4725 = vmatpush1.bf16.xpose.msra.mxu0 0
    %4726 = vmatprep.subr.bf16.mxu0 0
    %4727 = vmatpush1.bf16.xpose.msra.mxu0 0
    %4728 = vmatprep.subr.bf16.mxu0 0
    %4729 = vmatpush1.bf16.xpose.msra.mxu0 0
    %4730 = vmatprep.subr.bf16.mxu0 0
    %4731 = vmatpush1.bf16.xpose.msra.mxu0 0
    %4732 = vmatprep.subr.bf16.mxu0 0
    %4733 = vmatpush1.bf16.xpose.msra.mxu0 0
    %4734 = vmatprep.subr.bf16.mxu0 0
    %4735 = vmatpush1.bf16.xpose.msra.mxu0 0
    %4736 = vmatprep.subr.bf16.mxu0 0
    %4737 = vmatpush1.bf16.xpose.msra.mxu0 0
    %4738 = vmatprep.subr.bf16.mxu0 0
    %4739 = vmatpush1.bf16.xpose.msra.mxu0 0
    %4740 = vmatprep.subr.bf16.mxu0 0
    %4741 = vmatpush1.bf16.xpose.msra.mxu0 0
    %4742 = vmatprep.subr.bf16.mxu0 0
    %4743 = vmatpush1.bf16.xpose.msra.mxu0 0
    %4744 = vmatprep.subr.bf16.mxu0 0
    %4745 = vmatpush1.bf16.xpose.msra.mxu0 0
    %4746 = vmatprep.subr.bf16.mxu0 0
    %4747 = vmatpush1.bf16.xpose.msra.mxu0 0
    %4748 = vmatprep.subr.bf16.mxu0 0
    %4749 = vmatpush1.bf16.xpose.msra.mxu0 0
    %4750 = vmatprep.mubr.bf16.mxu0 0
    %4751 = vmatmul.mubr.bf16.gmra.mrb[0].mxu0 %v4707
    %v4752 = vpop.f32.mrb[0].mxu0
    %v4753 = vadd.f32 0.0, %v4752
    %v4754 = vpop.f32.mrb[0].mxu0
    %v4755 = vpop.f32.mrb[0].mxu0
    %v4756 = vadd.f32 0.0, %v4755
    %v4757 = vpop.f32.mrb[0].mxu0
    %4758 = vmatprep.mubr.bf16.mxu0 0
    %4759 = vmatmul.mubr.bf16.gmra.mrb[0].mxu0 %v4710
    %v4760 = vpop.f32.mrb[0].mxu0
    %v4761 = vadd.f32 0.0, %v4760
    %v4762 = vpop.f32.mrb[0].mxu0
    %v4763 = vpop.f32.mrb[0].mxu0
    %v4764 = vpop.f32.mrb[0].mxu0
    %4765 = vdwg.mxu0
    %v4766 = vmul.f32 %v4753, 0.25
    %v4767 = vmul.f32 %v4756, 0.25
    %v4768 = vmul.f32 %v4761, 0.25
    %v4769 = vadd.f32 %v4766, %v849
    %v4770 = vadd.f32 %v4767, %v849
    %v4771 = vadd.f32 %v4768, %v849
    %v4772 = vsel %vm1153, %v4769, -inf
    %4773 = vmax.xlane.f32.xlu0 %v4772
    %v4774 = vpop.xlane.xlu0 %4773
    %v4775 = vsel %vm1153, %v4770, -inf
    %4776 = vmax.xlane.f32.xlu0 %v4775
    %v4777 = vpop.xlane.xlu0 %4776
    %v4778 = vsel %vm1153, %v4771, -inf
    %4779 = vmax.xlane.f32.xlu0 %v4778
    %v4780 = vpop.xlane.xlu0 %4779
    %v4781 = vsub.f32 %v4769, %v4774
    %v4782 = vsub.f32 %v4770, %v4777
    %v4783 = vsub.f32 %v4771, %v4780
    %v4784 = vmul.f32 %v4781, 1.442695
    %v4785 = vpow.pop %v4784
    %v4786 = vmul.f32 %v4782, 1.442695
    %v4787 = vpow.pop %v4786
    %v4788 = vmul.f32 %v4783, 1.442695
    %v4789 = vpow.pop %v4788
    %v4790 = vsel %vm1153, %v4785, 0.0
    %4791 = vadd.xlane.f32.xlu0 %v4790
    %v4792 = vpop.xlane.xlu0 %4791
    %v4793 = vsel %vm1153, %v4787, 0.0
    %4794 = vadd.xlane.f32.xlu0 %v4793
    %v4795 = vpop.xlane.xlu0 %4794
    %v4796 = vsel %vm1153, %v4789, 0.0
    %4797 = vadd.xlane.f32.xlu0 %v4796
    %v4798 = vpop.xlane.xlu0 %4797
    %v4799 = vrcp.pop %v4792
    %v4800 = vrcp.pop %v4795
    %v4801 = vrcp.pop %v4798
    %v4802 = vmul.f32 %v4785, %v4799
    %v4803 = vmul.f32 %v4787, %v4800
    %v4804 = vmul.f32 %v4789, %v4801
    %v4805 = vpack.c.bf16 %v4803, %v4802
    %v4806 = vpack.c.bf16 %v4804, %v4804
    %4809 = vrot.lane.b32.xlu0 %v4530, 112
    %v4810 = vpop.permute.xlu0 %4809
    %4811 = vrot.lane.b32.xlu0 %v4531, 112
    %v4812 = vpop.permute.xlu0 %4811
    %v4815 = vsel %vm1153, %v4805, 0
    %v4818 = vsel %vm1153, %v4806, 0
    %v4821 = vsel %vm1195, %v4812, 0
    %4823 = vmatprep.subr.bf16.mxu0 0
    %4824 = vmatpush1.bf16.msra.mxu0 %v4810
    %4825 = vmatprep.subr.bf16.mxu0 0
    %4826 = vmatpush1.bf16.msra.mxu0 %v4821
    %4827 = vmatprep.subr.bf16.mxu0 0
    %4828 = vmatpush1.bf16.msra.mxu0 0
    %4829 = vmatprep.subr.bf16.mxu0 0
    %4830 = vmatpush1.bf16.msra.mxu0 0
    %4831 = vmatprep.subr.bf16.mxu0 0
    %4832 = vmatpush1.bf16.msra.mxu0 0
    %4833 = vmatprep.subr.bf16.mxu0 0
    %4834 = vmatpush1.bf16.msra.mxu0 0
    %4835 = vmatprep.subr.bf16.mxu0 0
    %4836 = vmatpush1.bf16.msra.mxu0 0
    %4837 = vmatprep.subr.bf16.mxu0 0
    %4838 = vmatpush1.bf16.msra.mxu0 0
    %4839 = vmatprep.subr.bf16.mxu0 0
    %4840 = vmatpush1.bf16.msra.mxu0 0
    %4841 = vmatprep.subr.bf16.mxu0 0
    %4842 = vmatpush1.bf16.msra.mxu0 0
    %4843 = vmatprep.subr.bf16.mxu0 0
    %4844 = vmatpush1.bf16.msra.mxu0 0
    %4845 = vmatprep.subr.bf16.mxu0 0
    %4846 = vmatpush1.bf16.msra.mxu0 0
    %4847 = vmatprep.subr.bf16.mxu0 0
    %4848 = vmatpush1.bf16.msra.mxu0 0
    %4849 = vmatprep.subr.bf16.mxu0 0
    %4850 = vmatpush1.bf16.msra.mxu0 0
    %4851 = vmatprep.subr.bf16.mxu0 0
    %4852 = vmatpush1.bf16.msra.mxu0 0
    %4853 = vmatprep.subr.bf16.mxu0 0
    %4854 = vmatpush1.bf16.msra.mxu0 0
    %4855 = vmatprep.mubr.bf16.mxu0 0
    %4856 = vmatmul.mubr.bf16.gmra.mrb[0].mxu0 %v4815
    %v4857 = vpop.f32.mrb[0].mxu0
    %v4858 = vadd.f32 0.0, %v4857
    %v4859 = vpop.f32.mrb[0].mxu0
    %v4860 = vpop.f32.mrb[0].mxu0
    %v4861 = vadd.f32 0.0, %v4860
    %v4862 = vpop.f32.mrb[0].mxu0
    %4863 = vmatprep.mubr.bf16.mxu0 0
    %4864 = vmatmul.mubr.bf16.gmra.mrb[0].mxu0 %v4818
    %v4865 = vpop.f32.mrb[0].mxu0
    %v4866 = vadd.f32 0.0, %v4865
    %v4867 = vpop.f32.mrb[0].mxu0
    %v4868 = vpop.f32.mrb[0].mxu0
    %v4869 = vpop.f32.mrb[0].mxu0
    %4870 = vdwg.mxu0
    %v4871 = vpack.c.bf16 %v4861, %v4858
    %v4872 = vpack.c.bf16 %v4866, %v4866
    %v4874 = vsel %vm1086, %v4871, 0
    %v4877 = vsel %vm1086, %v4872, 0
    %4879 = vmatprep.subr.bf16.mxu0 0
    %4880 = vmatpush1.bf16.msra.mxu0 %v3933
    %4881 = vmatprep.subr.bf16.mxu0 0
    %4882 = vmatpush1.bf16.msra.mxu0 0
    %4883 = vmatprep.subr.bf16.mxu0 0
    %4884 = vmatpush1.bf16.msra.mxu0 0
    %4885 = vmatprep.subr.bf16.mxu0 0
    %4886 = vmatpush1.bf16.msra.mxu0 0
    %4887 = vmatprep.subr.bf16.mxu0 0
    %4888 = vmatpush1.bf16.msra.mxu0 0
    %4889 = vmatprep.subr.bf16.mxu0 0
    %4890 = vmatpush1.bf16.msra.mxu0 0
    %4891 = vmatprep.subr.bf16.mxu0 0
    %4892 = vmatpush1.bf16.msra.mxu0 0
    %4893 = vmatprep.subr.bf16.mxu0 0
    %4894 = vmatpush1.bf16.msra.mxu0 0
    %4895 = vmatprep.subr.bf16.mxu0 0
    %4896 = vmatpush1.bf16.msra.mxu0 0
    %4897 = vmatprep.subr.bf16.mxu0 0
    %4898 = vmatpush1.bf16.msra.mxu0 0
    %4899 = vmatprep.subr.bf16.mxu0 0
    %4900 = vmatpush1.bf16.msra.mxu0 0
    %4901 = vmatprep.subr.bf16.mxu0 0
    %4902 = vmatpush1.bf16.msra.mxu0 0
    %4903 = vmatprep.subr.bf16.mxu0 0
    %4904 = vmatpush1.bf16.msra.mxu0 0
    %4905 = vmatprep.subr.bf16.mxu0 0
    %4906 = vmatpush1.bf16.msra.mxu0 0
    %4907 = vmatprep.subr.bf16.mxu0 0
    %4908 = vmatpush1.bf16.msra.mxu0 0
    %4909 = vmatprep.subr.bf16.mxu0 0
    %4910 = vmatpush1.bf16.msra.mxu0 0
    %4911 = vmatprep.mubr.bf16.mxu0 0
    %4912 = vmatmul.mubr.bf16.gmra.mrb[0].mxu0 %v4874
    %v4913 = vpop.f32.mrb[0].mxu0
    %v4914 = vadd.f32 0.0, %v4913
    %v4915 = vpop.f32.mrb[0].mxu0
    %v4916 = vpop.f32.mrb[0].mxu0
    %v4917 = vadd.f32 0.0, %v4916
    %v4918 = vpop.f32.mrb[0].mxu0
    %4919 = vmatprep.mubr.bf16.mxu0 0
    %4920 = vmatmul.mubr.bf16.gmra.mrb[0].mxu0 %v4877
    %v4921 = vpop.f32.mrb[0].mxu0
    %v4922 = vadd.f32 0.0, %v4921
    %v4923 = vpop.f32.mrb[0].mxu0
    %v4924 = vpop.f32.mrb[0].mxu0
    %v4925 = vpop.f32.mrb[0].mxu0
    %4926 = vdwg.mxu0
    %v4928 = vsel %vm1086, %v4696, 0
    %v4931 = vsel %vm1086, %v4697, 0
    %4933 = vmatprep.subr.bf16.mxu0 0
    %4934 = vmatpush1.bf16.msra.mxu0 %v3993
    %4935 = vmatprep.subr.bf16.mxu0 0
    %4936 = vmatpush1.bf16.msra.mxu0 0
    %4937 = vmatprep.subr.bf16.mxu0 0
    %4938 = vmatpush1.bf16.msra.mxu0 0
    %4939 = vmatprep.subr.bf16.mxu0 0
    %4940 = vmatpush1.bf16.msra.mxu0 0
    %4941 = vmatprep.subr.bf16.mxu0 0
    %4942 = vmatpush1.bf16.msra.mxu0 0
    %4943 = vmatprep.subr.bf16.mxu0 0
    %4944 = vmatpush1.bf16.msra.mxu0 0
    %4945 = vmatprep.subr.bf16.mxu0 0
    %4946 = vmatpush1.bf16.msra.mxu0 0
    %4947 = vmatprep.subr.bf16.mxu0 0
    %4948 = vmatpush1.bf16.msra.mxu0 0
    %4949 = vmatprep.subr.bf16.mxu0 0
    %4950 = vmatpush1.bf16.msra.mxu0 0
    %4951 = vmatprep.subr.bf16.mxu0 0
    %4952 = vmatpush1.bf16.msra.mxu0 0
    %4953 = vmatprep.subr.bf16.mxu0 0
    %4954 = vmatpush1.bf16.msra.mxu0 0
    %4955 = vmatprep.subr.bf16.mxu0 0
    %4956 = vmatpush1.bf16.msra.mxu0 0
    %4957 = vmatprep.subr.bf16.mxu0 0
    %4958 = vmatpush1.bf16.msra.mxu0 0
    %4959 = vmatprep.subr.bf16.mxu0 0
    %4960 = vmatpush1.bf16.msra.mxu0 0
    %4961 = vmatprep.subr.bf16.mxu0 0
    %4962 = vmatpush1.bf16.msra.mxu0 0
    %4963 = vmatprep.subr.bf16.mxu0 0
    %4964 = vmatpush1.bf16.msra.mxu0 0
    %4965 = vmatprep.mubr.bf16.mxu0 0
    %4966 = vmatmul.mubr.bf16.gmra.mrb[0].mxu0 %v4928
    %v4967 = vpop.f32.mrb[0].mxu0
    %v4968 = vadd.f32 %v4914, %v4967
    %v4969 = vpop.f32.mrb[0].mxu0
    %v4970 = vpop.f32.mrb[0].mxu0
    %v4971 = vadd.f32 %v4917, %v4970
    %v4972 = vpop.f32.mrb[0].mxu0
    %4973 = vmatprep.mubr.bf16.mxu0 0
    %4974 = vmatmul.mubr.bf16.gmra.mrb[0].mxu0 %v4931
    %v4975 = vpop.f32.mrb[0].mxu0
    %v4976 = vadd.f32 %v4922, %v4975
    %v4977 = vpop.f32.mrb[0].mxu0
    %v4978 = vpop.f32.mrb[0].mxu0
    %v4979 = vpop.f32.mrb[0].mxu0
    %4980 = vdwg.mxu0
    %4981 = vrot.lane.b32.xlu0 %v4528, 96
    %v4982 = vpop.permute.xlu0 %4981
    %4983 = vrot.lane.b32.xlu0 %v4529, 96
    %v4984 = vpop.permute.xlu0 %4983
    %4985 = vrot.lane.b32.xlu0 %v4528, 32
    %v4986 = vpop.permute.xlu0 %4985
    %4987 = vrot.lane.b32.xlu0 %v4529, 32
    %v4988 = vpop.permute.xlu0 %4987
    %v4990 = vsel %vm1086, %v4982, 0
    %v4993 = vsel %vm1086, %v4984, 0
    %v4996 = vsel %vm1086, %v4986, 0
    %v4999 = vsel %vm1086, %v4988, 0
    %5001 = vmatprep.subr.bf16.mxu0 0
    %5002 = vmatpush1.bf16.xpose.msra.mxu0 %v4996
    %5003 = vmatprep.subr.bf16.mxu0 0
    %5004 = vmatpush1.bf16.xpose.msra.mxu0 %v4999
    %5005 = vmatprep.subr.bf16.mxu0 0
    %5006 = vmatpush1.bf16.xpose.msra.mxu0 0
    %5007 = vmatprep.subr.bf16.mxu0 0
    %5008 = vmatpush1.bf16.xpose.msra.mxu0 0
    %5009 = vmatprep.subr.bf16.mxu0 0
    %5010 = vmatpush1.bf16.xpose.msra.mxu0 0
    %5011 = vmatprep.subr.bf16.mxu0 0
    %5012 = vmatpush1.bf16.xpose.msra.mxu0 0
    %5013 = vmatprep.subr.bf16.mxu0 0
    %5014 = vmatpush1.bf16.xpose.msra.mxu0 0
    %5015 = vmatprep.subr.bf16.mxu0 0
    %5016 = vmatpush1.bf16.xpose.msra.mxu0 0
    %5017 = vmatprep.subr.bf16.mxu0 0
    %5018 = vmatpush1.bf16.xpose.msra.mxu0 0
    %5019 = vmatprep.subr.bf16.mxu0 0
    %5020 = vmatpush1.bf16.xpose.msra.mxu0 0
    %5021 = vmatprep.subr.bf16.mxu0 0
    %5022 = vmatpush1.bf16.xpose.msra.mxu0 0
    %5023 = vmatprep.subr.bf16.mxu0 0
    %5024 = vmatpush1.bf16.xpose.msra.mxu0 0
    %5025 = vmatprep.subr.bf16.mxu0 0
    %5026 = vmatpush1.bf16.xpose.msra.mxu0 0
    %5027 = vmatprep.subr.bf16.mxu0 0
    %5028 = vmatpush1.bf16.xpose.msra.mxu0 0
    %5029 = vmatprep.subr.bf16.mxu0 0
    %5030 = vmatpush1.bf16.xpose.msra.mxu0 0
    %5031 = vmatprep.subr.bf16.mxu0 0
    %5032 = vmatpush1.bf16.xpose.msra.mxu0 0
    %5033 = vmatprep.mubr.bf16.mxu0 0
    %5034 = vmatmul.mubr.bf16.gmra.mrb[0].mxu0 %v4990
    %v5035 = vpop.f32.mrb[0].mxu0
    %v5036 = vadd.f32 0.0, %v5035
    %v5037 = vpop.f32.mrb[0].mxu0
    %v5038 = vpop.f32.mrb[0].mxu0
    %v5039 = vadd.f32 0.0, %v5038
    %v5040 = vpop.f32.mrb[0].mxu0
    %5041 = vmatprep.mubr.bf16.mxu0 0
    %5042 = vmatmul.mubr.bf16.gmra.mrb[0].mxu0 %v4993
    %v5043 = vpop.f32.mrb[0].mxu0
    %v5044 = vadd.f32 0.0, %v5043
    %v5045 = vpop.f32.mrb[0].mxu0
    %v5046 = vpop.f32.mrb[0].mxu0
    %v5047 = vpop.f32.mrb[0].mxu0
    %5048 = vdwg.mxu0
    %v5049 = vmul.f32 %v5036, 0.25
    %v5050 = vmul.f32 %v5039, 0.25
    %v5051 = vmul.f32 %v5044, 0.25
    %v5052 = vadd.f32 %v5049, %v849
    %v5053 = vadd.f32 %v5050, %v849
    %v5054 = vadd.f32 %v5051, %v849
    %v5055 = vsel %vm1153, %v5052, -inf
    %5056 = vmax.xlane.f32.xlu0 %v5055
    %v5057 = vpop.xlane.xlu0 %5056
    %v5058 = vsel %vm1153, %v5053, -inf
    %5059 = vmax.xlane.f32.xlu0 %v5058
    %v5060 = vpop.xlane.xlu0 %5059
    %v5061 = vsel %vm1153, %v5054, -inf
    %5062 = vmax.xlane.f32.xlu0 %v5061
    %v5063 = vpop.xlane.xlu0 %5062
    %v5064 = vsub.f32 %v5052, %v5057
    %v5065 = vsub.f32 %v5053, %v5060
    %v5066 = vsub.f32 %v5054, %v5063
    %v5067 = vmul.f32 %v5064, 1.442695
    %v5068 = vpow.pop %v5067
    %v5069 = vmul.f32 %v5065, 1.442695
    %v5070 = vpow.pop %v5069
    %v5071 = vmul.f32 %v5066, 1.442695
    %v5072 = vpow.pop %v5071
    %v5073 = vsel %vm1153, %v5068, 0.0
    %5074 = vadd.xlane.f32.xlu0 %v5073
    %v5075 = vpop.xlane.xlu0 %5074
    %v5076 = vsel %vm1153, %v5070, 0.0
    %5077 = vadd.xlane.f32.xlu0 %v5076
    %v5078 = vpop.xlane.xlu0 %5077
    %v5079 = vsel %vm1153, %v5072, 0.0
    %5080 = vadd.xlane.f32.xlu0 %v5079
    %v5081 = vpop.xlane.xlu0 %5080
    %v5082 = vrcp.pop %v5075
    %v5083 = vrcp.pop %v5078
    %v5084 = vrcp.pop %v5081
    %v5085 = vmul.f32 %v5068, %v5082
    %v5086 = vmul.f32 %v5070, %v5083
    %v5087 = vmul.f32 %v5072, %v5084
    %v5088 = vpack.c.bf16 %v5086, %v5085
    %v5089 = vpack.c.bf16 %v5087, %v5087
    %5090 = vrot.lane.b32.xlu0 %v4530, 96
    %v5091 = vpop.permute.xlu0 %5090
    %5092 = vrot.lane.b32.xlu0 %v4531, 96
    %v5093 = vpop.permute.xlu0 %5092
    %v5096 = vsel %vm1153, %v5088, 0
    %v5099 = vsel %vm1153, %v5089, 0
    %v5102 = vsel %vm1195, %v5093, 0
    %5104 = vmatprep.subr.bf16.mxu0 0
    %5105 = vmatpush1.bf16.msra.mxu0 %v5091
    %5106 = vmatprep.subr.bf16.mxu0 0
    %5107 = vmatpush1.bf16.msra.mxu0 %v5102
    %5108 = vmatprep.subr.bf16.mxu0 0
    %5109 = vmatpush1.bf16.msra.mxu0 0
    %5110 = vmatprep.subr.bf16.mxu0 0
    %5111 = vmatpush1.bf16.msra.mxu0 0
    %5112 = vmatprep.subr.bf16.mxu0 0
    %5113 = vmatpush1.bf16.msra.mxu0 0
    %5114 = vmatprep.subr.bf16.mxu0 0
    %5115 = vmatpush1.bf16.msra.mxu0 0
    %5116 = vmatprep.subr.bf16.mxu0 0
    %5117 = vmatpush1.bf16.msra.mxu0 0
    %5118 = vmatprep.subr.bf16.mxu0 0
    %5119 = vmatpush1.bf16.msra.mxu0 0
    %5120 = vmatprep.subr.bf16.mxu0 0
    %5121 = vmatpush1.bf16.msra.mxu0 0
    %5122 = vmatprep.subr.bf16.mxu0 0
    %5123 = vmatpush1.bf16.msra.mxu0 0
    %5124 = vmatprep.subr.bf16.mxu0 0
    %5125 = vmatpush1.bf16.msra.mxu0 0
    %5126 = vmatprep.subr.bf16.mxu0 0
    %5127 = vmatpush1.bf16.msra.mxu0 0
    %5128 = vmatprep.subr.bf16.mxu0 0
    %5129 = vmatpush1.bf16.msra.mxu0 0
    %5130 = vmatprep.subr.bf16.mxu0 0
    %5131 = vmatpush1.bf16.msra.mxu0 0
    %5132 = vmatprep.subr.bf16.mxu0 0
    %5133 = vmatpush1.bf16.msra.mxu0 0
    %5134 = vmatprep.subr.bf16.mxu0 0
    %5135 = vmatpush1.bf16.msra.mxu0 0
    %5136 = vmatprep.mubr.bf16.mxu0 0
    %5137 = vmatmul.mubr.bf16.gmra.mrb[0].mxu0 %v5096
    %v5138 = vpop.f32.mrb[0].mxu0
    %v5139 = vadd.f32 0.0, %v5138
    %v5140 = vpop.f32.mrb[0].mxu0
    %v5141 = vpop.f32.mrb[0].mxu0
    %v5142 = vadd.f32 0.0, %v5141
    %v5143 = vpop.f32.mrb[0].mxu0
    %5144 = vmatprep.mubr.bf16.mxu0 0
    %5145 = vmatmul.mubr.bf16.gmra.mrb[0].mxu0 %v5099
    %v5146 = vpop.f32.mrb[0].mxu0
    %v5147 = vadd.f32 0.0, %v5146
    %v5148 = vpop.f32.mrb[0].mxu0
    %v5149 = vpop.f32.mrb[0].mxu0
    %v5150 = vpop.f32.mrb[0].mxu0
    %5151 = vdwg.mxu0
    %v5152 = vpack.c.bf16 %v5142, %v5139
    %v5153 = vpack.c.bf16 %v5147, %v5147
    %v5155 = vsel %vm1086, %v5152, 0
    %v5158 = vsel %vm1086, %v5153, 0
    %5160 = vmatprep.subr.bf16.mxu0 0
    %5161 = vmatpush1.bf16.msra.mxu0 %v4226
    %5162 = vmatprep.subr.bf16.mxu0 0
    %5163 = vmatpush1.bf16.msra.mxu0 0
    %5164 = vmatprep.subr.bf16.mxu0 0
    %5165 = vmatpush1.bf16.msra.mxu0 0
    %5166 = vmatprep.subr.bf16.mxu0 0
    %5167 = vmatpush1.bf16.msra.mxu0 0
    %5168 = vmatprep.subr.bf16.mxu0 0
    %5169 = vmatpush1.bf16.msra.mxu0 0
    %5170 = vmatprep.subr.bf16.mxu0 0
    %5171 = vmatpush1.bf16.msra.mxu0 0
    %5172 = vmatprep.subr.bf16.mxu0 0
    %5173 = vmatpush1.bf16.msra.mxu0 0
    %5174 = vmatprep.subr.bf16.mxu0 0
    %5175 = vmatpush1.bf16.msra.mxu0 0
    %5176 = vmatprep.subr.bf16.mxu0 0
    %5177 = vmatpush1.bf16.msra.mxu0 0
    %5178 = vmatprep.subr.bf16.mxu0 0
    %5179 = vmatpush1.bf16.msra.mxu0 0
    %5180 = vmatprep.subr.bf16.mxu0 0
    %5181 = vmatpush1.bf16.msra.mxu0 0
    %5182 = vmatprep.subr.bf16.mxu0 0
    %5183 = vmatpush1.bf16.msra.mxu0 0
    %5184 = vmatprep.subr.bf16.mxu0 0
    %5185 = vmatpush1.bf16.msra.mxu0 0
    %5186 = vmatprep.subr.bf16.mxu0 0
    %5187 = vmatpush1.bf16.msra.mxu0 0
    %5188 = vmatprep.subr.bf16.mxu0 0
    %5189 = vmatpush1.bf16.msra.mxu0 0
    %5190 = vmatprep.subr.bf16.mxu0 0
    %5191 = vmatpush1.bf16.msra.mxu0 0
    %5192 = vmatprep.mubr.bf16.mxu0 0
    %5193 = vmatmul.mubr.bf16.gmra.mrb[0].mxu0 %v5155
    %v5194 = vpop.f32.mrb[0].mxu0
    %v5195 = vadd.f32 0.0, %v5194
    %v5196 = vpop.f32.mrb[0].mxu0
    %v5197 = vpop.f32.mrb[0].mxu0
    %v5198 = vadd.f32 0.0, %v5197
    %v5199 = vpop.f32.mrb[0].mxu0
    %5200 = vmatprep.mubr.bf16.mxu0 0
    %5201 = vmatmul.mubr.bf16.gmra.mrb[0].mxu0 %v5158
    %v5202 = vpop.f32.mrb[0].mxu0
    %v5203 = vadd.f32 0.0, %v5202
    %v5204 = vpop.f32.mrb[0].mxu0
    %v5205 = vpop.f32.mrb[0].mxu0
    %v5206 = vpop.f32.mrb[0].mxu0
    %5207 = vdwg.mxu0
    %v5208 = vadd.f32 %v4968, %v5195
    %v5209 = vadd.f32 %v4971, %v5198
    %v5210 = vadd.f32 %v4976, %v5203
    %5211 = vrot.lane.b32.xlu0 %v4528, 80
    %v5212 = vpop.permute.xlu0 %5211
    %5213 = vrot.lane.b32.xlu0 %v4529, 80
    %v5214 = vpop.permute.xlu0 %5213
    %5215 = vrot.lane.b32.xlu0 %v4528, 16
    %v5216 = vpop.permute.xlu0 %5215
    %5217 = vrot.lane.b32.xlu0 %v4529, 16
    %v5218 = vpop.permute.xlu0 %5217
    %v5220 = vsel %vm1086, %v5212, 0
    %v5223 = vsel %vm1086, %v5214, 0
    %v5226 = vsel %vm1086, %v5216, 0
    %v5229 = vsel %vm1086, %v5218, 0
    %5231 = vmatprep.subr.bf16.mxu0 0
    %5232 = vmatpush1.bf16.xpose.msra.mxu0 %v5226
    %5233 = vmatprep.subr.bf16.mxu0 0
    %5234 = vmatpush1.bf16.xpose.msra.mxu0 %v5229
    %5235 = vmatprep.subr.bf16.mxu0 0
    %5236 = vmatpush1.bf16.xpose.msra.mxu0 0
    %5237 = vmatprep.subr.bf16.mxu0 0
    %5238 = vmatpush1.bf16.xpose.msra.mxu0 0
    %5239 = vmatprep.subr.bf16.mxu0 0
    %5240 = vmatpush1.bf16.xpose.msra.mxu0 0
    %5241 = vmatprep.subr.bf16.mxu0 0
    %5242 = vmatpush1.bf16.xpose.msra.mxu0 0
    %5243 = vmatprep.subr.bf16.mxu0 0
    %5244 = vmatpush1.bf16.xpose.msra.mxu0 0
    %5245 = vmatprep.subr.bf16.mxu0 0
    %5246 = vmatpush1.bf16.xpose.msra.mxu0 0
    %5247 = vmatprep.subr.bf16.mxu0 0
    %5248 = vmatpush1.bf16.xpose.msra.mxu0 0
    %5249 = vmatprep.subr.bf16.mxu0 0
    %5250 = vmatpush1.bf16.xpose.msra.mxu0 0
    %5251 = vmatprep.subr.bf16.mxu0 0
    %5252 = vmatpush1.bf16.xpose.msra.mxu0 0
    %5253 = vmatprep.subr.bf16.mxu0 0
    %5254 = vmatpush1.bf16.xpose.msra.mxu0 0
    %5255 = vmatprep.subr.bf16.mxu0 0
    %5256 = vmatpush1.bf16.xpose.msra.mxu0 0
    %5257 = vmatprep.subr.bf16.mxu0 0
    %5258 = vmatpush1.bf16.xpose.msra.mxu0 0
    %5259 = vmatprep.subr.bf16.mxu0 0
    %5260 = vmatpush1.bf16.xpose.msra.mxu0 0
    %5261 = vmatprep.subr.bf16.mxu0 0
    %5262 = vmatpush1.bf16.xpose.msra.mxu0 0
    %5263 = vmatprep.mubr.bf16.mxu0 0
    %5264 = vmatmul.mubr.bf16.gmra.mrb[0].mxu0 %v5220
    %v5265 = vpop.f32.mrb[0].mxu0
    %v5266 = vadd.f32 0.0, %v5265
    %v5267 = vpop.f32.mrb[0].mxu0
    %v5268 = vpop.f32.mrb[0].mxu0
    %v5269 = vadd.f32 0.0, %v5268
    %v5270 = vpop.f32.mrb[0].mxu0
    %5271 = vmatprep.mubr.bf16.mxu0 0
    %5272 = vmatmul.mubr.bf16.gmra.mrb[0].mxu0 %v5223
    %v5273 = vpop.f32.mrb[0].mxu0
    %v5274 = vadd.f32 0.0, %v5273
    %v5275 = vpop.f32.mrb[0].mxu0
    %v5276 = vpop.f32.mrb[0].mxu0
    %v5277 = vpop.f32.mrb[0].mxu0
    %5278 = vdwg.mxu0
    %v5279 = vmul.f32 %v5266, 0.25
    %v5280 = vmul.f32 %v5269, 0.25
    %v5281 = vmul.f32 %v5274, 0.25
    %v5282 = vadd.f32 %v5279, %v849
    %v5283 = vadd.f32 %v5280, %v849
    %v5284 = vadd.f32 %v5281, %v849
    %v5285 = vsel %vm1153, %v5282, -inf
    %5286 = vmax.xlane.f32.xlu0 %v5285
    %v5287 = vpop.xlane.xlu0 %5286
    %v5288 = vsel %vm1153, %v5283, -inf
    %5289 = vmax.xlane.f32.xlu0 %v5288
    %v5290 = vpop.xlane.xlu0 %5289
    %v5291 = vsel %vm1153, %v5284, -inf
    %5292 = vmax.xlane.f32.xlu0 %v5291
    %v5293 = vpop.xlane.xlu0 %5292
    %v5294 = vsub.f32 %v5282, %v5287
    %v5295 = vsub.f32 %v5283, %v5290
    %v5296 = vsub.f32 %v5284, %v5293
    %v5297 = vmul.f32 %v5294, 1.442695
    %v5298 = vpow.pop %v5297
    %v5299 = vmul.f32 %v5295, 1.442695
    %v5300 = vpow.pop %v5299
    %v5301 = vmul.f32 %v5296, 1.442695
    %v5302 = vpow.pop %v5301
    %v5303 = vsel %vm1153, %v5298, 0.0
    %5304 = vadd.xlane.f32.xlu0 %v5303
    %v5305 = vpop.xlane.xlu0 %5304
    %v5306 = vsel %vm1153, %v5300, 0.0
    %5307 = vadd.xlane.f32.xlu0 %v5306
    %v5308 = vpop.xlane.xlu0 %5307
    %v5309 = vsel %vm1153, %v5302, 0.0
    %5310 = vadd.xlane.f32.xlu0 %v5309
    %v5311 = vpop.xlane.xlu0 %5310
    %v5312 = vrcp.pop %v5305
    %v5313 = vrcp.pop %v5308
    %v5314 = vrcp.pop %v5311
    %v5315 = vmul.f32 %v5298, %v5312
    %v5316 = vmul.f32 %v5300, %v5313
    %v5317 = vmul.f32 %v5302, %v5314
    %v5318 = vpack.c.bf16 %v5316, %v5315
    %v5319 = vpack.c.bf16 %v5317, %v5317
    %5320 = vrot.lane.b32.xlu0 %v4530, 80
    %v5321 = vpop.permute.xlu0 %5320
    %5322 = vrot.lane.b32.xlu0 %v4531, 80
    %v5323 = vpop.permute.xlu0 %5322
    %v5326 = vsel %vm1153, %v5318, 0
    %v5329 = vsel %vm1153, %v5319, 0
    %v5332 = vsel %vm1195, %v5323, 0
    %5334 = vmatprep.subr.bf16.mxu0 0
    %5335 = vmatpush1.bf16.msra.mxu0 %v5321
    %5336 = vmatprep.subr.bf16.mxu0 0
    %5337 = vmatpush1.bf16.msra.mxu0 %v5332
    %5338 = vmatprep.subr.bf16.mxu0 0
    %5339 = vmatpush1.bf16.msra.mxu0 0
    %5340 = vmatprep.subr.bf16.mxu0 0
    %5341 = vmatpush1.bf16.msra.mxu0 0
    %5342 = vmatprep.subr.bf16.mxu0 0
    %5343 = vmatpush1.bf16.msra.mxu0 0
    %5344 = vmatprep.subr.bf16.mxu0 0
    %5345 = vmatpush1.bf16.msra.mxu0 0
    %5346 = vmatprep.subr.bf16.mxu0 0
    %5347 = vmatpush1.bf16.msra.mxu0 0
    %5348 = vmatprep.subr.bf16.mxu0 0
    %5349 = vmatpush1.bf16.msra.mxu0 0
    %5350 = vmatprep.subr.bf16.mxu0 0
    %5351 = vmatpush1.bf16.msra.mxu0 0
    %5352 = vmatprep.subr.bf16.mxu0 0
    %5353 = vmatpush1.bf16.msra.mxu0 0
    %5354 = vmatprep.subr.bf16.mxu0 0
    %5355 = vmatpush1.bf16.msra.mxu0 0
    %5356 = vmatprep.subr.bf16.mxu0 0
    %5357 = vmatpush1.bf16.msra.mxu0 0
    %5358 = vmatprep.subr.bf16.mxu0 0
    %5359 = vmatpush1.bf16.msra.mxu0 0
    %5360 = vmatprep.subr.bf16.mxu0 0
    %5361 = vmatpush1.bf16.msra.mxu0 0
    %5362 = vmatprep.subr.bf16.mxu0 0
    %5363 = vmatpush1.bf16.msra.mxu0 0
    %5364 = vmatprep.subr.bf16.mxu0 0
    %5365 = vmatpush1.bf16.msra.mxu0 0
    %5366 = vmatprep.mubr.bf16.mxu0 0
    %5367 = vmatmul.mubr.bf16.gmra.mrb[0].mxu0 %v5326
    %v5368 = vpop.f32.mrb[0].mxu0
    %v5369 = vadd.f32 0.0, %v5368
    %v5370 = vpop.f32.mrb[0].mxu0
    %v5371 = vpop.f32.mrb[0].mxu0
    %v5372 = vadd.f32 0.0, %v5371
    %v5373 = vpop.f32.mrb[0].mxu0
    %5374 = vmatprep.mubr.bf16.mxu0 0
    %5375 = vmatmul.mubr.bf16.gmra.mrb[0].mxu0 %v5329
    %v5376 = vpop.f32.mrb[0].mxu0
    %v5377 = vadd.f32 0.0, %v5376
    %v5378 = vpop.f32.mrb[0].mxu0
    %v5379 = vpop.f32.mrb[0].mxu0
    %v5380 = vpop.f32.mrb[0].mxu0
    %5381 = vdwg.mxu0
    %v5382 = vpack.c.bf16 %v5372, %v5369
    %v5383 = vpack.c.bf16 %v5377, %v5377
    %v5385 = vsel %vm1086, %v5382, 0
    %v5388 = vsel %vm1086, %v5383, 0
    %5390 = vmatprep.subr.bf16.mxu0 0
    %5391 = vmatpush1.bf16.msra.mxu0 %v4462
    %5392 = vmatprep.subr.bf16.mxu0 0
    %5393 = vmatpush1.bf16.msra.mxu0 0
    %5394 = vmatprep.subr.bf16.mxu0 0
    %5395 = vmatpush1.bf16.msra.mxu0 0
    %5396 = vmatprep.subr.bf16.mxu0 0
    %5397 = vmatpush1.bf16.msra.mxu0 0
    %5398 = vmatprep.subr.bf16.mxu0 0
    %5399 = vmatpush1.bf16.msra.mxu0 0
    %5400 = vmatprep.subr.bf16.mxu0 0
    %5401 = vmatpush1.bf16.msra.mxu0 0
    %5402 = vmatprep.subr.bf16.mxu0 0
    %5403 = vmatpush1.bf16.msra.mxu0 0
    %5404 = vmatprep.subr.bf16.mxu0 0
    %5405 = vmatpush1.bf16.msra.mxu0 0
    %5406 = vmatprep.subr.bf16.mxu0 0
    %5407 = vmatpush1.bf16.msra.mxu0 0
    %5408 = vmatprep.subr.bf16.mxu0 0
    %5409 = vmatpush1.bf16.msra.mxu0 0
    %5410 = vmatprep.subr.bf16.mxu0 0
    %5411 = vmatpush1.bf16.msra.mxu0 0
    %5412 = vmatprep.subr.bf16.mxu0 0
    %5413 = vmatpush1.bf16.msra.mxu0 0
    %5414 = vmatprep.subr.bf16.mxu0 0
    %5415 = vmatpush1.bf16.msra.mxu0 0
    %5416 = vmatprep.subr.bf16.mxu0 0
    %5417 = vmatpush1.bf16.msra.mxu0 0
    %5418 = vmatprep.subr.bf16.mxu0 0
    %5419 = vmatpush1.bf16.msra.mxu0 0
    %5420 = vmatprep.subr.bf16.mxu0 0
    %5421 = vmatpush1.bf16.msra.mxu0 0
    %5422 = vmatprep.mubr.bf16.mxu0 0
    %5423 = vmatmul.mubr.bf16.gmra.mrb[0].mxu0 %v5385
    %v5424 = vpop.f32.mrb[0].mxu0
    %v5425 = vadd.f32 0.0, %v5424
    %v5426 = vpop.f32.mrb[0].mxu0
    %v5427 = vpop.f32.mrb[0].mxu0
    %v5428 = vadd.f32 0.0, %v5427
    %v5429 = vpop.f32.mrb[0].mxu0
    %5430 = vmatprep.mubr.bf16.mxu0 0
    %5431 = vmatmul.mubr.bf16.gmra.mrb[0].mxu0 %v5388
    %v5432 = vpop.f32.mrb[0].mxu0
    %v5433 = vadd.f32 0.0, %v5432
    %v5434 = vpop.f32.mrb[0].mxu0
    %v5435 = vpop.f32.mrb[0].mxu0
    %v5436 = vpop.f32.mrb[0].mxu0
    %5437 = vdwg.mxu0
    %v5438 = vadd.f32 %v5208, %v5425
    %v5439 = vadd.f32 %v5209, %v5428
    %v5440 = vadd.f32 %v5210, %v5433
    %v5441 = vadd.f32 %v5438, %v4524
    %v5442 = vadd.f32 %v5439, %v4524
    %v5443 = vadd.f32 %v5440, %v4524
    %v5444 = vadd.f32 %v3336, %v4525
    %v5445 = vadd.f32 %v3337, %v4526
    %v5446 = vadd.f32 %v3338, %v4527
    %v5447 = vadd.f32 %v3339, %v5441
    %v5448 = vadd.f32 %v3340, %v5442
    %v5449 = vadd.f32 %v3341, %v5443
    %v5450 = vsel %vm852, %v5444, 0.0
    %5451 = vadd.xlane.f32.xlu0 %v5450
    %v5452 = vpop.xlane.xlu0 %5451
    %v5453 = vsel %vm852, %v5445, 0.0
    %5454 = vadd.xlane.f32.xlu0 %v5453
    %v5455 = vpop.xlane.xlu0 %5454
    %v5456 = vsel %vm852, %v5446, 0.0
    %5457 = vadd.xlane.f32.xlu0 %v5456
    %v5458 = vpop.xlane.xlu0 %5457
    %v5459 = vsel %vm852, %v5447, 0.0
    %5460 = vadd.xlane.f32.xlu0 %v5459
    %v5461 = vpop.xlane.xlu0 %5460
    %v5462 = vsel %vm852, %v5448, 0.0
    %5463 = vadd.xlane.f32.xlu0 %v5462
    %v5464 = vpop.xlane.xlu0 %5463
    %v5465 = vsel %vm852, %v5449, 0.0
    %5466 = vadd.xlane.f32.xlu0 %v5465
    %v5467 = vpop.xlane.xlu0 %5466
    %v5468 = vmul.f32 %v5452, %v868
    %v5469 = vmul.f32 %v5455, %v868
    %v5470 = vmul.f32 %v5458, %v868
    %v5471 = vmul.f32 %v5461, %v868
    %v5472 = vmul.f32 %v5464, %v868
    %v5473 = vmul.f32 %v5467, %v868
    %v5474 = vsub.f32 %v5444, %v5468
    %v5475 = vsub.f32 %v5445, %v5469
    %v5476 = vsub.f32 %v5446, %v5470
    %v5477 = vsub.f32 %v5447, %v5471
    %v5478 = vsub.f32 %v5448, %v5472
    %v5479 = vsub.f32 %v5449, %v5473
    %v5480 = vmul.f32 %v5474, %v5474
    %v5481 = vmul.f32 %v5475, %v5475
    %v5482 = vmul.f32 %v5476, %v5476
    %v5483 = vmul.f32 %v5477, %v5477
    %v5484 = vmul.f32 %v5478, %v5478
    %v5485 = vmul.f32 %v5479, %v5479
    %v5486 = vsel %vm852, %v5480, 0.0
    %5487 = vadd.xlane.f32.xlu0 %v5486
    %v5488 = vpop.xlane.xlu0 %5487
    %v5489 = vsel %vm852, %v5481, 0.0
    %5490 = vadd.xlane.f32.xlu0 %v5489
    %v5491 = vpop.xlane.xlu0 %5490
    %v5492 = vsel %vm852, %v5482, 0.0
    %5493 = vadd.xlane.f32.xlu0 %v5492
    %v5494 = vpop.xlane.xlu0 %5493
    %v5495 = vsel %vm852, %v5483, 0.0
    %5496 = vadd.xlane.f32.xlu0 %v5495
    %v5497 = vpop.xlane.xlu0 %5496
    %v5498 = vsel %vm852, %v5484, 0.0
    %5499 = vadd.xlane.f32.xlu0 %v5498
    %v5500 = vpop.xlane.xlu0 %5499
    %v5501 = vsel %vm852, %v5485, 0.0
    %5502 = vadd.xlane.f32.xlu0 %v5501
    %v5503 = vpop.xlane.xlu0 %5502
    %v5504 = vmul.f32 %v5488, %v868
    %v5505 = vmul.f32 %v5491, %v868
    %v5506 = vmul.f32 %v5494, %v868
    %v5507 = vmul.f32 %v5497, %v868
    %v5508 = vmul.f32 %v5500, %v868
    %v5509 = vmul.f32 %v5503, %v868
    %v5510 = vadd.f32 %v5504, 1e-05
    %v5511 = vadd.f32 %v5505, 1e-05
    %v5512 = vadd.f32 %v5506, 1e-05
    %v5513 = vadd.f32 %v5507, 1e-05
    %v5514 = vadd.f32 %v5508, 1e-05
    %v5515 = vadd.f32 %v5509, 1e-05
    %v5516 = vrsqrt.pop %v5510
    %v5517 = vrsqrt.pop %v5511
    %v5518 = vrsqrt.pop %v5512
    %v5519 = vrsqrt.pop %v5513
    %v5520 = vrsqrt.pop %v5514
    %v5521 = vrsqrt.pop %v5515
    %v5522 = vmul.f32 %v5474, %v5516
    %v5523 = vmul.f32 %v5475, %v5517
    %v5524 = vmul.f32 %v5476, %v5518
    %v5525 = vmul.f32 %v5477, %v5519
    %v5526 = vmul.f32 %v5478, %v5520
    %v5527 = vmul.f32 %v5479, %v5521
    %v5528 = vlaneseq
    %v5529 = vshrl.u32 %v5528, 7
    %v5530 = vsub.s32 4, %v5529
    %v5531 = vrot.slane %v3343, %v5530
    %v5532 = vmul.f32 %v5522, %v5531
    %v5533 = vmul.f32 %v5523, %v5531
    %v5534 = vmul.f32 %v5524, %v5531
    %v5535 = vmul.f32 %v5525, %v5531
    %v5536 = vmul.f32 %v5526, %v5531
    %v5537 = vmul.f32 %v5527, %v5531
    %v5538 = vlaneseq
    %v5539 = vshrl.u32 %v5538, 7
    %v5540 = vsub.s32 5, %v5539
    %v5541 = vrot.slane %v3343, %v5540
    %v5542 = vadd.f32 %v5532, %v5541
    %v5543 = vadd.f32 %v5533, %v5541
    %v5544 = vadd.f32 %v5534, %v5541
    %v5545 = vadd.f32 %v5535, %v5541
    %v5546 = vadd.f32 %v5536, %v5541
    %v5547 = vadd.f32 %v5537, %v5541
    %v5548 = vpack.c.bf16 %v5543, %v5542
    %v5549 = vpack.c.bf16 %v5545, %v5544
    %v5550 = vpack.c.bf16 %v5547, %v5546
    %s5551 = scalar_lea.vmem [#allocation9], 32
    %v5552 = vld [vmem:[%s5551] sm:$0xf]
    %v5553 = vld [vmem:[%s5551 + $0x4] sm:$0xf]
    %v5554 = vld [vmem:[%s5551 + $0x8] sm:$0xf]
    %v5555 = vld [vmem:[%s5551 + $0xc] sm:$0xf]
    %v5556 = vld [vmem:[%s5551 + $0x10] sm:$0xf]
    %v5557 = vld [vmem:[%s5551 + $0x14] sm:$0xf]
    %v5558 = vld [vmem:[%s5551 + $0x18] sm:$0xf]
    %v5559 = vld [vmem:[%s5551 + $0x1c] sm:$0xf]
    %v5560 = vlaneseq
    %v5561 = vshrl.u32 %v5560, 7
    %v5562 = vsub.s32 6, %v5561
    %v5563 = vrot.slane %v3343, %v5562
    %v5572 = vunpack.c.l.b16 %v5552
    %v5573 = vunpack.c.l.b16 %v5553
    %v5574 = vunpack.c.l.b16 %v5554
    %v5575 = vunpack.c.l.b16 %v5555
    %v5576 = vunpack.c.l.b16 %v5556
    %v5577 = vunpack.c.l.b16 %v5557
    %v5578 = vunpack.c.l.b16 %v5558
    %v5579 = vunpack.c.l.b16 %v5559
    %v5580 = vpack.c.b16 %v5573, %v5572
    %v5581 = vpack.c.b16 %v5575, %v5574
    %v5582 = vpack.c.b16 %v5577, %v5576
    %v5583 = vpack.c.b16 %v5579, %v5578
    %v5589 = vsel %vm852, %v5548, 0
    %v5592 = vsel %vm852, %v5549, 0
    %v5595 = vsel %vm852, %v5550, 0
    %5597 = vmatprep.subr.bf16.mxu0 0
    %5598 = vmatpush1.bf16.msra.mxu0 %v5580
    %5599 = vmatprep.subr.bf16.mxu0 0
    %5600 = vmatpush1.bf16.msra.mxu0 %v5581
    %5601 = vmatprep.subr.bf16.mxu0 0
    %5602 = vmatpush1.bf16.msra.mxu0 %v5582
    %5603 = vmatprep.subr.bf16.mxu0 0
    %5604 = vmatpush1.bf16.msra.mxu0 %v5583
    %5605 = vmatprep.subr.bf16.mxu0 0
    %5606 = vmatpush1.bf16.msra.mxu0 0
    %5607 = vmatprep.subr.bf16.mxu0 0
    %5608 = vmatpush1.bf16.msra.mxu0 0
    %5609 = vmatprep.subr.bf16.mxu0 0
    %5610 = vmatpush1.bf16.msra.mxu0 0
    %5611 = vmatprep.subr.bf16.mxu0 0
    %5612 = vmatpush1.bf16.msra.mxu0 0
    %5613 = vmatprep.subr.bf16.mxu0 0
    %5614 = vmatpush1.bf16.msra.mxu0 0
    %5615 = vmatprep.subr.bf16.mxu0 0
    %5616 = vmatpush1.bf16.msra.mxu0 0
    %5617 = vmatprep.subr.bf16.mxu0 0
    %5618 = vmatpush1.bf16.msra.mxu0 0
    %5619 = vmatprep.subr.bf16.mxu0 0
    %5620 = vmatpush1.bf16.msra.mxu0 0
    %5621 = vmatprep.subr.bf16.mxu0 0
    %5622 = vmatpush1.bf16.msra.mxu0 0
    %5623 = vmatprep.subr.bf16.mxu0 0
    %5624 = vmatpush1.bf16.msra.mxu0 0
    %5625 = vmatprep.subr.bf16.mxu0 0
    %5626 = vmatpush1.bf16.msra.mxu0 0
    %5627 = vmatprep.subr.bf16.mxu0 0
    %5628 = vmatpush1.bf16.msra.mxu0 0
    %5629 = vmatprep.mubr.bf16.mxu0 0
    %5630 = vmatmul.mubr.bf16.gmra.mrb[0].mxu0 %v5589
    %v5631 = vpop.f32.mrb[0].mxu0
    %v5632 = vadd.f32 %v5563, %v5631
    %v5633 = vpop.f32.mrb[0].mxu0
    %v5634 = vpop.f32.mrb[0].mxu0
    %v5635 = vadd.f32 %v5563, %v5634
    %v5636 = vpop.f32.mrb[0].mxu0
    %5637 = vmatprep.mubr.bf16.mxu0 0
    %5638 = vmatmul.mubr.bf16.gmra.mrb[0].mxu0 %v5592
    %v5639 = vpop.f32.mrb[0].mxu0
    %v5640 = vadd.f32 %v5563, %v5639
    %v5641 = vpop.f32.mrb[0].mxu0
    %v5642 = vpop.f32.mrb[0].mxu0
    %v5643 = vadd.f32 %v5563, %v5642
    %v5644 = vpop.f32.mrb[0].mxu0
    %5645 = vmatprep.mubr.bf16.mxu0 0
    %5646 = vmatmul.mubr.bf16.gmra.mrb[0].mxu0 %v5595
    %v5647 = vpop.f32.mrb[0].mxu0
    %v5648 = vadd.f32 %v5563, %v5647
    %v5649 = vpop.f32.mrb[0].mxu0
    %v5650 = vpop.f32.mrb[0].mxu0
    %v5651 = vadd.f32 %v5563, %v5650
    %v5652 = vpop.f32.mrb[0].mxu0
    %5653 = vdwg.mxu0
    %v5654 = vmul.f32 %v5632, 0.5
    %v5655 = vmul.f32 %v5635, 0.5
    %v5656 = vmul.f32 %v5640, 0.5
    %v5657 = vmul.f32 %v5643, 0.5
    %v5658 = vmul.f32 %v5648, 0.5
    %v5659 = vmul.f32 %v5651, 0.5
    %v5660 = vmul.f32 %v5632, 0.044715
    %v5661 = vmul.f32 %v5635, 0.044715
    %v5662 = vmul.f32 %v5640, 0.044715
    %v5663 = vmul.f32 %v5643, 0.044715
    %v5664 = vmul.f32 %v5648, 0.044715
    %v5665 = vmul.f32 %v5651, 0.044715
    %v5666 = vmul.f32 %v5660, %v5632
    %v5667 = vmul.f32 %v5661, %v5635
    %v5668 = vmul.f32 %v5662, %v5640
    %v5669 = vmul.f32 %v5663, %v5643
    %v5670 = vmul.f32 %v5664, %v5648
    %v5671 = vmul.f32 %v5665, %v5651
    %v5672 = vmul.f32 %v5666, %v5632
    %v5673 = vmul.f32 %v5667, %v5635
    %v5674 = vmul.f32 %v5668, %v5640
    %v5675 = vmul.f32 %v5669, %v5643
    %v5676 = vmul.f32 %v5670, %v5648
    %v5677 = vmul.f32 %v5671, %v5651
    %v5678 = vadd.f32 %v5632, %v5672
    %v5679 = vadd.f32 %v5635, %v5673
    %v5680 = vadd.f32 %v5640, %v5674
    %v5681 = vadd.f32 %v5643, %v5675
    %v5682 = vadd.f32 %v5648, %v5676
    %v5683 = vadd.f32 %v5651, %v5677
    %v5684 = vmul.f32 %v5678, 0.7978846
    %v5685 = vmul.f32 %v5679, 0.7978846
    %v5686 = vmul.f32 %v5680, 0.7978846
    %v5687 = vmul.f32 %v5681, 0.7978846
    %v5688 = vmul.f32 %v5682, 0.7978846
    %v5689 = vmul.f32 %v5683, 0.7978846
    %v5690 = vtanh.pop %v5684
    %v5691 = vtanh.pop %v5685
    %v5692 = vtanh.pop %v5686
    %v5693 = vtanh.pop %v5687
    %v5694 = vtanh.pop %v5688
    %v5695 = vtanh.pop %v5689
    %v5696 = vadd.f32 %v5690, 1.0
    %v5697 = vadd.f32 %v5691, 1.0
    %v5698 = vadd.f32 %v5692, 1.0
    %v5699 = vadd.f32 %v5693, 1.0
    %v5700 = vadd.f32 %v5694, 1.0
    %v5701 = vadd.f32 %v5695, 1.0
    %v5702 = vmul.f32 %v5654, %v5696
    %v5703 = vmul.f32 %v5655, %v5697
    %v5704 = vmul.f32 %v5656, %v5698
    %v5705 = vmul.f32 %v5657, %v5699
    %v5706 = vmul.f32 %v5658, %v5700
    %v5707 = vmul.f32 %v5659, %v5701
    %v5708 = vpack.c.bf16 %v5703, %v5702
    %v5709 = vpack.c.bf16 %v5705, %v5704
    %v5710 = vpack.c.bf16 %v5707, %v5706
    %s5711 = scalar_lea.vmem %s8, 64
    %v5712 = vld [vmem:[%s5711] sm:$0xf]
    %v5713 = vld [vmem:[%s5711 + $0x4] sm:$0xf]
    %v5714 = vld [vmem:[%s5711 + $0x8] sm:$0xf]
    %v5715 = vld [vmem:[%s5711 + $0xc] sm:$0xf]
    %v5716 = vld [vmem:[%s5711 + $0x10] sm:$0xf]
    %v5717 = vld [vmem:[%s5711 + $0x14] sm:$0xf]
    %v5718 = vld [vmem:[%s5711 + $0x18] sm:$0xf]
    %v5719 = vld [vmem:[%s5711 + $0x1c] sm:$0xf]
    %v5720 = vld [vmem:[%s5711 + $0x20] sm:$0xf]
    %v5721 = vld [vmem:[%s5711 + $0x24] sm:$0xf]
    %v5722 = vld [vmem:[%s5711 + $0x28] sm:$0xf]
    %v5723 = vld [vmem:[%s5711 + $0x2c] sm:$0xf]
    %v5724 = vld [vmem:[%s5711 + $0x30] sm:$0xf]
    %v5725 = vld [vmem:[%s5711 + $0x34] sm:$0xf]
    %v5726 = vld [vmem:[%s5711 + $0x38] sm:$0xf]
    %v5727 = vld [vmem:[%s5711 + $0x3c] sm:$0xf]
    %v5744 = vunpack.c.l.b16 %v5712
    %v5745 = vunpack.c.l.b16 %v5713
    %v5746 = vunpack.c.l.b16 %v5714
    %v5747 = vunpack.c.l.b16 %v5715
    %v5748 = vunpack.c.l.b16 %v5716
    %v5749 = vunpack.c.l.b16 %v5717
    %v5750 = vunpack.c.l.b16 %v5718
    %v5751 = vunpack.c.l.b16 %v5719
    %v5752 = vunpack.c.l.b16 %v5720
    %v5753 = vunpack.c.l.b16 %v5721
    %v5754 = vunpack.c.l.b16 %v5722
    %v5755 = vunpack.c.l.b16 %v5723
    %v5756 = vunpack.c.l.b16 %v5724
    %v5757 = vunpack.c.l.b16 %v5725
    %v5758 = vunpack.c.l.b16 %v5726
    %v5759 = vunpack.c.l.b16 %v5727
    %v5760 = vpack.c.b16 %v5745, %v5744
    %v5761 = vpack.c.b16 %v5747, %v5746
    %v5762 = vpack.c.b16 %v5749, %v5748
    %v5763 = vpack.c.b16 %v5751, %v5750
    %v5764 = vpack.c.b16 %v5753, %v5752
    %v5765 = vpack.c.b16 %v5755, %v5754
    %v5766 = vpack.c.b16 %v5757, %v5756
    %v5767 = vpack.c.b16 %v5759, %v5758
    %5776 = vmatprep.subr.bf16.mxu0 0
    %5777 = vmatpush1.bf16.msra.mxu0 %v5760
    %5778 = vmatprep.subr.bf16.mxu0 0
    %5779 = vmatpush1.bf16.msra.mxu0 %v5761
    %5780 = vmatprep.subr.bf16.mxu0 0
    %5781 = vmatpush1.bf16.msra.mxu0 %v5762
    %5782 = vmatprep.subr.bf16.mxu0 0
    %5783 = vmatpush1.bf16.msra.mxu0 %v5763
    %5784 = vmatprep.subr.bf16.mxu0 0
    %5785 = vmatpush1.bf16.msra.mxu0 %v5764
    %5786 = vmatprep.subr.bf16.mxu0 0
    %5787 = vmatpush1.bf16.msra.mxu0 %v5765
    %5788 = vmatprep.subr.bf16.mxu0 0
    %5789 = vmatpush1.bf16.msra.mxu0 %v5766
    %5790 = vmatprep.subr.bf16.mxu0 0
    %5791 = vmatpush1.bf16.msra.mxu0 %v5767
    %5792 = vmatprep.subr.bf16.mxu0 0
    %5793 = vmatpush1.bf16.msra.mxu0 0
    %5794 = vmatprep.subr.bf16.mxu0 0
    %5795 = vmatpush1.bf16.msra.mxu0 0
    %5796 = vmatprep.subr.bf16.mxu0 0
    %5797 = vmatpush1.bf16.msra.mxu0 0
    %5798 = vmatprep.subr.bf16.mxu0 0
    %5799 = vmatpush1.bf16.msra.mxu0 0
    %5800 = vmatprep.subr.bf16.mxu0 0
    %5801 = vmatpush1.bf16.msra.mxu0 0
    %5802 = vmatprep.subr.bf16.mxu0 0
    %5803 = vmatpush1.bf16.msra.mxu0 0
    %5804 = vmatprep.subr.bf16.mxu0 0
    %5805 = vmatpush1.bf16.msra.mxu0 0
    %5806 = vmatprep.subr.bf16.mxu0 0
    %5807 = vmatpush1.bf16.msra.mxu0 0
    %5808 = vmatprep.mubr.bf16.mxu0 0
    %5809 = vmatmul.mubr.bf16.gmra.mrb[0].mxu0 %v5708
    %v5810 = vpop.f32.mrb[0].mxu0
    %v5811 = vpop.f32.mrb[0].mxu0
    %v5812 = vpop.f32.mrb[0].mxu0
    %v5813 = vpop.f32.mrb[0].mxu0
    %5814 = vmatprep.mubr.bf16.mxu0 0
    %5815 = vmatmul.mubr.bf16.gmra.mrb[0].mxu0 %v5709
    %v5816 = vpop.f32.mrb[0].mxu0
    %v5817 = vadd.f32 0.0, %v5816
    %v5818 = vpop.f32.mrb[0].mxu0
    %v5819 = vpop.f32.mrb[0].mxu0
    %v5820 = vpop.f32.mrb[0].mxu0
    %5821 = vmatprep.mubr.bf16.mxu0 0
    %5822 = vmatmul.mubr.bf16.gmra.mrb[0].mxu0 %v5710
    %v5823 = vpop.f32.mrb[0].mxu0
    %v5824 = vpop.f32.mrb[0].mxu0
    %v5825 = vpop.f32.mrb[0].mxu0
    %v5826 = vadd.f32 0.0, %v5825
    %v5827 = vpop.f32.mrb[0].mxu0
    %5828 = vdwg.mxu0
    %v5829 = vadd.f32 %v5446, %v5817
    %v5830 = vadd.f32 %v5449, %v5826
    %v5831 = vlaneseq
    %v5832 = vshrl.u32 %v5831, 7
    %v5833 = vsub.s32 7, %v5832
    %v5834 = vrot.slane %v3343, %v5833
    %v5835 = vadd.f32 %v5829, %v5834
    %v5836 = vadd.f32 %v5830, %v5834
    %v5837 = vld [vmem:[%s9] sm:$0xf]
    %v5838 = vld [vmem:[%s9 + $0x4] sm:$0xf]
    %v5839 = vld [vmem:[%s9 + $0x8] sm:$0xf]
    %v5840 = vld [vmem:[%s9 + $0xc] sm:$0xf]
    %v5841 = vld [vmem:[%s9 + $0x10] sm:$0xf]
    %v5842 = vld [vmem:[%s9 + $0x14] sm:$0xf]
    %v5843 = vld [vmem:[%s9 + $0x18] sm:$0xf]
    %v5844 = vld [vmem:[%s9 + $0x1c] sm:$0xf]
    %v5845 = vld [vmem:[%s9 + $0x20] sm:$0x1]
    %v5846 = vpack.c.bf16 %v5835, %v5835
    %v5847 = vunpack.c.l.bf16 %v5845
    %v5856 = vunpack.c.l.b16 %v5837
    %v5857 = vunpack.c.l.b16 %v5838
    %v5858 = vunpack.c.l.b16 %v5839
    %v5859 = vunpack.c.l.b16 %v5840
    %v5860 = vunpack.c.l.b16 %v5841
    %v5861 = vunpack.c.l.b16 %v5842
    %v5862 = vunpack.c.l.b16 %v5843
    %v5863 = vunpack.c.l.b16 %v5844
    %v5864 = vpack.c.b16 %v5857, %v5856
    %v5865 = vpack.c.b16 %v5859, %v5858
    %v5866 = vpack.c.b16 %v5861, %v5860
    %v5867 = vpack.c.b16 %v5863, %v5862
    %v5873 = vsel %vm852, %v5846, 0
    %5875 = vmatprep.subr.bf16.mxu0 0
    %5876 = vmatpush1.bf16.msra.mxu0 %v5864
    %5877 = vmatprep.subr.bf16.mxu0 0
    %5878 = vmatpush1.bf16.msra.mxu0 %v5865
    %5879 = vmatprep.subr.bf16.mxu0 0
    %5880 = vmatpush1.bf16.msra.mxu0 %v5866
    %5881 = vmatprep.subr.bf16.mxu0 0
    %5882 = vmatpush1.bf16.msra.mxu0 %v5867
    %5883 = vmatprep.subr.bf16.mxu0 0
    %5884 = vmatpush1.bf16.msra.mxu0 0
    %5885 = vmatprep.subr.bf16.mxu0 0
    %5886 = vmatpush1.bf16.msra.mxu0 0
    %5887 = vmatprep.subr.bf16.mxu0 0
    %5888 = vmatpush1.bf16.msra.mxu0 0
    %5889 = vmatprep.subr.bf16.mxu0 0
    %5890 = vmatpush1.bf16.msra.mxu0 0
    %5891 = vmatprep.subr.bf16.mxu0 0
    %5892 = vmatpush1.bf16.msra.mxu0 0
    %5893 = vmatprep.subr.bf16.mxu0 0
    %5894 = vmatpush1.bf16.msra.mxu0 0
    %5895 = vmatprep.subr.bf16.mxu0 0
    %5896 = vmatpush1.bf16.msra.mxu0 0
    %5897 = vmatprep.subr.bf16.mxu0 0
    %5898 = vmatpush1.bf16.msra.mxu0 0
    %5899 = vmatprep.subr.bf16.mxu0 0
    %5900 = vmatpush1.bf16.msra.mxu0 0
    %5901 = vmatprep.subr.bf16.mxu0 0
    %5902 = vmatpush1.bf16.msra.mxu0 0
    %5903 = vmatprep.subr.bf16.mxu0 0
    %5904 = vmatpush1.bf16.msra.mxu0 0
    %5905 = vmatprep.subr.bf16.mxu0 0
    %5906 = vmatpush1.bf16.msra.mxu0 0
    %5907 = vmatprep.mubr.bf16.mxu0 0
    %5908 = vmatmul.mubr.bf16.gmra.mrb[0].mxu0 %v5873
    %v5909 = vpop.f32.mrb[0].mxu0
    %v5910 = vadd.f32 %v5847, %v5909
    %v5911 = vpop.f32.mrb[0].mxu0
    %v5912 = vpop.f32.mrb[0].mxu0
    %v5913 = vpop.f32.mrb[0].mxu0
    %5914 = vdwg.mxu0
    %5915 = vst [vmem:[#allocation10] sm:$0x1] %v5910
    %v5916 = vpack.c.bf16 %v5836, %v5836
    %v5918 = vsel %vm852, %v5916, 0
    %5920 = vmatprep.subr.bf16.mxu0 0
    %5921 = vmatpush1.bf16.msra.mxu0 %v5864
    %5922 = vmatprep.subr.bf16.mxu0 0
    %5923 = vmatpush1.bf16.msra.mxu0 %v5865
    %5924 = vmatprep.subr.bf16.mxu0 0
    %5925 = vmatpush1.bf16.msra.mxu0 %v5866
    %5926 = vmatprep.subr.bf16.mxu0 0
    %5927 = vmatpush1.bf16.msra.mxu0 %v5867
    %5928 = vmatprep.subr.bf16.mxu0 0
    %5929 = vmatpush1.bf16.msra.mxu0 0
    %5930 = vmatprep.subr.bf16.mxu0 0
    %5931 = vmatpush1.bf16.msra.mxu0 0
    %5932 = vmatprep.subr.bf16.mxu0 0
    %5933 = vmatpush1.bf16.msra.mxu0 0
    %5934 = vmatprep.subr.bf16.mxu0 0
    %5935 = vmatpush1.bf16.msra.mxu0 0
    %5936 = vmatprep.subr.bf16.mxu0 0
    %5937 = vmatpush1.bf16.msra.mxu0 0
    %5938 = vmatprep.subr.bf16.mxu0 0
    %5939 = vmatpush1.bf16.msra.mxu0 0
    %5940 = vmatprep.subr.bf16.mxu0 0
    %5941 = vmatpush1.bf16.msra.mxu0 0
    %5942 = vmatprep.subr.bf16.mxu0 0
    %5943 = vmatpush1.bf16.msra.mxu0 0
    %5944 = vmatprep.subr.bf16.mxu0 0
    %5945 = vmatpush1.bf16.msra.mxu0 0
    %5946 = vmatprep.subr.bf16.mxu0 0
    %5947 = vmatpush1.bf16.msra.mxu0 0
    %5948 = vmatprep.subr.bf16.mxu0 0
    %5949 = vmatpush1.bf16.msra.mxu0 0
    %5950 = vmatprep.subr.bf16.mxu0 0
    %5951 = vmatpush1.bf16.msra.mxu0 0
    %5952 = vmatprep.mubr.bf16.mxu0 0
    %5953 = vmatmul.mubr.bf16.gmra.mrb[0].mxu0 %v5918
    %v5954 = vpop.f32.mrb[0].mxu0
    %v5955 = vadd.f32 %v5847, %v5954
    %v5956 = vpop.f32.mrb[0].mxu0
    %v5957 = vpop.f32.mrb[0].mxu0
    %v5958 = vpop.f32.mrb[0].mxu0
    %5959 = vdwg.mxu0
    %s5960 = scalar_lea.vmem [#allocation10], 1
    %5961 = vst [vmem:[%s5960] sm:$0x1] %v5955
    // Predicated region
    $region50: #{lightcurve_classifier_forward.1} parent=1 // pred_check
      _
    $region51: #{lightcurve_classifier_forward.1} parent=1 // pred_check_branch
      %5963 = sbr.rel (0) target = $region53
    $region52: #{lightcurve_classifier_forward.1} parent=1 // pred_region
      %s5965 = ssub.s32 32, 32
      %5966 = vsyncadd [#allocation6], %s5965
      %s5967 = sshll.u32 [#allocation10], 4
      %s5968 = int_to_ptr.vmem [resolvable:$true] %s5967
      %5973 = dma.vmem_to_hbm [thread:$0]  %s5968, 32, %s10, [#allocation6], 16, 16, 1
    $region53: #{lightcurve_classifier_forward.1} parent=1 // pred_fallthru
      _
    // Predicated region
    $region54: #{lightcurve_classifier_forward.1} parent=1 // pred_check
      _
    $region55: #{lightcurve_classifier_forward.1} parent=1 // pred_check_branch
      %5975 = sbr.rel (0) target = $region57
    $region56: #{lightcurve_classifier_forward.1} parent=1 // pred_region
      %5976 = dma.done [#allocation6], 32
    $region57: #{lightcurve_classifier_forward.1} parent=1 // pred_fallthru
      _
    %5977 = vsyncpa [#allocation5], 1
    %5978 = vsyncpa [#allocation8], 1
    %5979 = vsyncpa [#allocation6], 1

</llo_original>
